<compile_context>
chip_gen: v7x
topology: tpu7x:2x2x1
jax: 0.10.0
libtpu: 0.0.40
codegen_flags: <defaults>
</compile_context>

<pallas_src>
import functools

import jax
import jax.numpy as jnp
from jax.experimental import pallas as pl
from jax.experimental.pallas import tpu as pltpu


# ----------------------------------------------------------------------------
# Fused kernel: all LSTM layers + Linear + BatchNorm1d, single invocation.
# ----------------------------------------------------------------------------
def _lstm_gene_kernel(*refs, n_layers, seq, batch_p, real_batch,
                      hidden_size, eps):
    # ---- unpack refs: inputs..., output, scratches -------------------------
    n_in = 1 + 3 * n_layers + 4
    in_refs = refs[:n_in]
    out_ref = refs[n_in]
    xp_i, xp_f, xp_g, xp_o, hseq = refs[n_in + 1:]

    x2d_ref = in_refs[0]                                   # (seq*Bp, in_size)
    layer_refs = [tuple(in_refs[1 + 3 * l: 4 + 3 * l]) for l in range(n_layers)]
    fc_w_ref, fc_b_ref, gamma_ref, beta_ref = in_refs[1 + 3 * n_layers:]

    H = hidden_size
    Bp = batch_p
    xp_refs = (xp_i, xp_f, xp_g, xp_o)

    h_last = None
    for l, (wih_ref, whh_ref, b_ref) in enumerate(layer_refs):
        last_layer = (l == n_layers - 1)

        # ---- hoisted, time-parallel input projection (one matmul per gate) --
        # layer 0 reads the real input; deeper layers read previous layer's
        # h_seq straight out of VMEM scratch (never leaves the chip).
        x2d = x2d_ref[...] if l == 0 else hseq[...]        # (seq*Bp, in_l)
        for g in range(4):
            xp_refs[g][...] = (
                jnp.dot(x2d, wih_ref[g], preferred_element_type=jnp.float32)
                + b_ref[g])                                # (seq*Bp, H)

        # recurrent weights loaded once per layer (hoisted out of the loop)
        w_i = whh_ref[0]
        w_f = whh_ref[1]
        w_g = whh_ref[2]
        w_o = whh_ref[3]

        def step(t, carry):
            h_prev, c_prev = carry
            off = pl.multiple_of(t * Bp, Bp)               # aligned sublane offset
            i_g = jax.nn.sigmoid(
                xp_i[pl.ds(off, Bp), :]
                + jnp.dot(h_prev, w_i, preferred_element_type=jnp.float32))
            f_g = jax.nn.sigmoid(
                xp_f[pl.ds(off, Bp), :]
                + jnp.dot(h_prev, w_f, preferred_element_type=jnp.float32))
            g_g = jnp.tanh(
                xp_g[pl.ds(off, Bp), :]
                + jnp.dot(h_prev, w_g, preferred_element_type=jnp.float32))
            o_g = jax.nn.sigmoid(
                xp_o[pl.ds(off, Bp), :]
                + jnp.dot(h_prev, w_o, preferred_element_type=jnp.float32))
            c_new = f_g * c_prev + i_g * g_g
            h_new = o_g * jnp.tanh(c_new)
            if not last_layer:                             # last layer's h_seq is dead
                hseq[pl.ds(off, Bp), :] = h_new
            return h_new, c_new

        h0 = jnp.zeros((Bp, H), jnp.float32)
        c0 = jnp.zeros((Bp, H), jnp.float32)
        h_last, _ = jax.lax.fori_loop(0, seq, step, (h0, c0), unroll=True)

    # ---- fused Linear + BatchNorm1d (training-mode batch statistics) -------
    y = (jnp.dot(h_last, fc_w_ref[...], preferred_element_type=jnp.float32)
         + fc_b_ref[...])                                  # (Bp, out_dim)
    out_dim = y.shape[-1]
    # mask padded batch rows out of the BN statistics
    row = jax.lax.broadcasted_iota(jnp.int32, (Bp, out_dim), 0)
    mask = (row < real_batch).astype(jnp.float32)
    inv_n = 1.0 / float(real_batch)
    mean = jnp.sum(y * mask, axis=0, keepdims=True) * inv_n
    diff = (y - mean) * mask
    var = jnp.sum(diff * diff, axis=0, keepdims=True) * inv_n   # biased variance
    out_ref[...] = (gamma_ref[...] * (y - mean) * jax.lax.rsqrt(var + eps)
                    + beta_ref[...])


# ----------------------------------------------------------------------------
# Parameters (PyTorch-default-style init), pre-split per gate & transposed.
# ----------------------------------------------------------------------------
def init_lstm_gene_params(key, input_size, hidden_size, output_size, n_layers):
    H = hidden_size
    k = 1.0 / jnp.sqrt(jnp.float32(H))
    layers = []
    for layer in range(n_layers):
        in_dim = input_size if layer == 0 else H
        key, k1, k2, k3, k4 = jax.random.split(key, 5)
        w_ih = jax.random.uniform(k1, (4 * H, in_dim), jnp.float32, -k, k)
        w_hh = jax.random.uniform(k2, (4 * H, H), jnp.float32, -k, k)
        b_ih = jax.random.uniform(k3, (4 * H,), jnp.float32, -k, k)
        b_hh = jax.random.uniform(k4, (4 * H,), jnp.float32, -k, k)
        bias = b_ih + b_hh
        # PyTorch gate order i, f, g, o; split per gate and transpose.
        wih_g = jnp.stack([w_ih[g * H:(g + 1) * H, :].T for g in range(4)])   # (4, in, H)
        whh_g = jnp.stack([w_hh[g * H:(g + 1) * H, :].T for g in range(4)])   # (4, H, H)
        b_g = jnp.stack([bias[g * H:(g + 1) * H].reshape(1, H) for g in range(4)])  # (4,1,H)
        layers.append({"wih": wih_g, "whh": whh_g, "bias": b_g})
    key, k5, k6 = jax.random.split(key, 3)
    fc_w = jax.random.uniform(k5, (output_size, H), jnp.float32, -k, k)
    fc_b = jax.random.uniform(k6, (output_size,), jnp.float32, -k, k)
    return {
        "layers": layers,
        "fc_w_t": fc_w.T,                                  # (H, out)
        "fc_b": fc_b.reshape(1, output_size),
        "bn_gamma": jnp.ones((1, output_size), jnp.float32),
        "bn_beta": jnp.zeros((1, output_size), jnp.float32),
        "hidden_size": hidden_size,
        "output_size": output_size,
        "n_layers": n_layers,
    }


# ----------------------------------------------------------------------------
# Wrapper: pad batch to 8 sublanes, go time-major, single pallas_call.
# ----------------------------------------------------------------------------
def lstm_gene_forward(params, x):
    """x: (batch, seq, input_size) -> (batch, output_size)."""
    batch, seq, in_size = x.shape
    H = params["hidden_size"]
    out_dim = params["output_size"]
    n_layers = params["n_layers"]
    Bp = max(8, -(-batch // 8) * 8)                        # sublane-aligned batch

    # pad batch with zero rows, transpose to time-major, flatten to (seq*Bp, in)
    xf = jnp.zeros((Bp, seq, in_size), jnp.float32).at[:batch].set(
        x.astype(jnp.float32))
    x2d = jnp.transpose(xf, (1, 0, 2)).reshape(seq * Bp, in_size)

    args = [x2d]
    for lp in params["layers"]:
        args += [lp["wih"], lp["whh"], lp["bias"]]
    args += [params["fc_w_t"], params["fc_b"],
             params["bn_gamma"], params["bn_beta"]]

    kernel = functools.partial(
        _lstm_gene_kernel, n_layers=n_layers, seq=seq, batch_p=Bp,
        real_batch=batch, hidden_size=H, eps=1e-5)

    out = pl.pallas_call(
        kernel,
        out_shape=jax.ShapeDtypeStruct((Bp, out_dim), jnp.float32),
        scratch_shapes=[pltpu.VMEM((seq * Bp, H), jnp.float32),   # xproj gate i
                        pltpu.VMEM((seq * Bp, H), jnp.float32),   # xproj gate f
                        pltpu.VMEM((seq * Bp, H), jnp.float32),   # xproj gate g
                        pltpu.VMEM((seq * Bp, H), jnp.float32),   # xproj gate o
                        pltpu.VMEM((seq * Bp, H), jnp.float32)],  # inter-layer h_seq
    )(*args)
    return out[:batch]


if __name__ == "__main__":
    batch, seq, input_size = 2, 8, 16
    hidden_size, output_size, n_layers = 32, 8, 2

    key = jax.random.PRNGKey(0)
    key_p, key_x = jax.random.split(key)
    params = init_lstm_gene_params(key_p, input_size, hidden_size,
                                   output_size, n_layers)
    x = jax.random.normal(key_x, (batch, seq, input_size), jnp.float32)

    out = lstm_gene_forward(params, x)
    jax.block_until_ready(out)
    assert out.shape == (batch, output_size)
    print("KERNEL_OK")
</pallas_src>

<mosaic_0001>
module attributes {stable_mosaic.version = 11 : i64} {
  func.func @_lstm_gene_kernel(%arg0: memref<64x16xf32, #tpu.memory_space<vmem>>, %arg1: memref<4x16x32xf32, #tpu.memory_space<vmem>>, %arg2: memref<4x32x32xf32, #tpu.memory_space<vmem>>, %arg3: memref<4x1x32xf32, #tpu.memory_space<vmem>>, %arg4: memref<4x32x32xf32, #tpu.memory_space<vmem>>, %arg5: memref<4x32x32xf32, #tpu.memory_space<vmem>>, %arg6: memref<4x1x32xf32, #tpu.memory_space<vmem>>, %arg7: memref<32x8xf32, #tpu.memory_space<vmem>>, %arg8: memref<1x8xf32, #tpu.memory_space<vmem>>, %arg9: memref<1x8xf32, #tpu.memory_space<vmem>>, %arg10: memref<1x8xf32, #tpu.memory_space<vmem>>, %arg11: memref<8x8xf32, #tpu.memory_space<vmem>>, %arg12: memref<64x32xf32, #tpu.memory_space<vmem>>, %arg13: memref<64x32xf32, #tpu.memory_space<vmem>>, %arg14: memref<64x32xf32, #tpu.memory_space<vmem>>, %arg15: memref<64x32xf32, #tpu.memory_space<vmem>>, %arg16: memref<64x32xf32, #tpu.memory_space<vmem>>) attributes {dimension_semantics = [], scalar_prefetch = 0 : i64, scratch_operands = 5 : i64, tpu.core_type = #tpu.core_type<tc>} {
    %c0 = arith.constant 0 : index
    %c0_0 = arith.constant 0 : index
    %0 = vector.load %arg0[%c0, %c0_0] : memref<64x16xf32, #tpu.memory_space<vmem>>, vector<64x16xf32>
    %c0_1 = arith.constant 0 : index
    %c0_2 = arith.constant 0 : index
    %c0_3 = arith.constant 0 : index
    %1 = vector.load %arg1[%c0_1, %c0_2, %c0_3] : memref<4x16x32xf32, #tpu.memory_space<vmem>>, vector<1x16x32xf32>
    %2 = vector.shape_cast %1 : vector<1x16x32xf32> to vector<16x32xf32>
    %cst = arith.constant dense<0.000000e+00> : vector<64x32xf32>
    %3 = tpu.matmul %0, %2, %cst {dimension_numbers = #tpu.dot_dimension_numbers<[1], [0], [0], [1], [0, 0, 1, 1], [], []>} : vector<64x16xf32>, vector<16x32xf32>, vector<64x32xf32> -> vector<64x32xf32>
    %c0_4 = arith.constant 0 : index
    %c0_5 = arith.constant 0 : index
    %c0_6 = arith.constant 0 : index
    %4 = vector.load %arg3[%c0_4, %c0_5, %c0_6] : memref<4x1x32xf32, #tpu.memory_space<vmem>>, vector<1x1x32xf32>
    %5 = vector.shape_cast %4 : vector<1x1x32xf32> to vector<1x32xf32>
    %6 = vector.broadcast %5 : vector<1x32xf32> to vector<64x32xf32>
    %7 = arith.addf %3, %6 : vector<64x32xf32>
    %c0_7 = arith.constant 0 : index
    %c0_8 = arith.constant 0 : index
    %8 = vector.load %arg12[%c0_7, %c0_8] : memref<64x32xf32, #tpu.memory_space<vmem>>, vector<64x32xf32>
    tpu.vector_store %arg12[%c0_7, %c0_8], %7 {strides = array<i32>} : memref<64x32xf32, #tpu.memory_space<vmem>>, vector<64x32xf32>,
    %c1 = arith.constant 1 : index
    %c0_9 = arith.constant 0 : index
    %c0_10 = arith.constant 0 : index
    %9 = vector.load %arg1[%c1, %c0_9, %c0_10] : memref<4x16x32xf32, #tpu.memory_space<vmem>>, vector<1x16x32xf32>
    %10 = vector.shape_cast %9 : vector<1x16x32xf32> to vector<16x32xf32>
    %cst_11 = arith.constant dense<0.000000e+00> : vector<64x32xf32>
    %11 = tpu.matmul %0, %10, %cst_11 {dimension_numbers = #tpu.dot_dimension_numbers<[1], [0], [0], [1], [0, 0, 1, 1], [], []>} : vector<64x16xf32>, vector<16x32xf32>, vector<64x32xf32> -> vector<64x32xf32>
    %c1_12 = arith.constant 1 : index
    %c0_13 = arith.constant 0 : index
    %c0_14 = arith.constant 0 : index
    %12 = vector.load %arg3[%c1_12, %c0_13, %c0_14] : memref<4x1x32xf32, #tpu.memory_space<vmem>>, vector<1x1x32xf32>
    %13 = vector.shape_cast %12 : vector<1x1x32xf32> to vector<1x32xf32>
    %14 = vector.broadcast %13 : vector<1x32xf32> to vector<64x32xf32>
    %15 = arith.addf %11, %14 : vector<64x32xf32>
    %c0_15 = arith.constant 0 : index
    %c0_16 = arith.constant 0 : index
    %16 = vector.load %arg13[%c0_15, %c0_16] : memref<64x32xf32, #tpu.memory_space<vmem>>, vector<64x32xf32>
    tpu.vector_store %arg13[%c0_15, %c0_16], %15 {strides = array<i32>} : memref<64x32xf32, #tpu.memory_space<vmem>>, vector<64x32xf32>,
    %c2 = arith.constant 2 : index
    %c0_17 = arith.constant 0 : index
    %c0_18 = arith.constant 0 : index
    %17 = vector.load %arg1[%c2, %c0_17, %c0_18] : memref<4x16x32xf32, #tpu.memory_space<vmem>>, vector<1x16x32xf32>
    %18 = vector.shape_cast %17 : vector<1x16x32xf32> to vector<16x32xf32>
    %cst_19 = arith.constant dense<0.000000e+00> : vector<64x32xf32>
    %19 = tpu.matmul %0, %18, %cst_19 {dimension_numbers = #tpu.dot_dimension_numbers<[1], [0], [0], [1], [0, 0, 1, 1], [], []>} : vector<64x16xf32>, vector<16x32xf32>, vector<64x32xf32> -> vector<64x32xf32>
    %c2_20 = arith.constant 2 : index
    %c0_21 = arith.constant 0 : index
    %c0_22 = arith.constant 0 : index
    %20 = vector.load %arg3[%c2_20, %c0_21, %c0_22] : memref<4x1x32xf32, #tpu.memory_space<vmem>>, vector<1x1x32xf32>
    %21 = vector.shape_cast %20 : vector<1x1x32xf32> to vector<1x32xf32>
    %22 = vector.broadcast %21 : vector<1x32xf32> to vector<64x32xf32>
    %23 = arith.addf %19, %22 : vector<64x32xf32>
    %c0_23 = arith.constant 0 : index
    %c0_24 = arith.constant 0 : index
    %24 = vector.load %arg14[%c0_23, %c0_24] : memref<64x32xf32, #tpu.memory_space<vmem>>, vector<64x32xf32>
    tpu.vector_store %arg14[%c0_23, %c0_24], %23 {strides = array<i32>} : memref<64x32xf32, #tpu.memory_space<vmem>>, vector<64x32xf32>,
    %c3 = arith.constant 3 : index
    %c0_25 = arith.constant 0 : index
    %c0_26 = arith.constant 0 : index
    %25 = vector.load %arg1[%c3, %c0_25, %c0_26] : memref<4x16x32xf32, #tpu.memory_space<vmem>>, vector<1x16x32xf32>
    %26 = vector.shape_cast %25 : vector<1x16x32xf32> to vector<16x32xf32>
    %cst_27 = arith.constant dense<0.000000e+00> : vector<64x32xf32>
    %27 = tpu.matmul %0, %26, %cst_27 {dimension_numbers = #tpu.dot_dimension_numbers<[1], [0], [0], [1], [0, 0, 1, 1], [], []>} : vector<64x16xf32>, vector<16x32xf32>, vector<64x32xf32> -> vector<64x32xf32>
    %c3_28 = arith.constant 3 : index
    %c0_29 = arith.constant 0 : index
    %c0_30 = arith.constant 0 : index
    %28 = vector.load %arg3[%c3_28, %c0_29, %c0_30] : memref<4x1x32xf32, #tpu.memory_space<vmem>>, vector<1x1x32xf32>
    %29 = vector.shape_cast %28 : vector<1x1x32xf32> to vector<1x32xf32>
    %30 = vector.broadcast %29 : vector<1x32xf32> to vector<64x32xf32>
    %31 = arith.addf %27, %30 : vector<64x32xf32>
    %c0_31 = arith.constant 0 : index
    %c0_32 = arith.constant 0 : index
    %32 = vector.load %arg15[%c0_31, %c0_32] : memref<64x32xf32, #tpu.memory_space<vmem>>, vector<64x32xf32>
    tpu.vector_store %arg15[%c0_31, %c0_32], %31 {strides = array<i32>} : memref<64x32xf32, #tpu.memory_space<vmem>>, vector<64x32xf32>,
    %c0_33 = arith.constant 0 : index
    %c0_34 = arith.constant 0 : index
    %c0_35 = arith.constant 0 : index
    %33 = vector.load %arg2[%c0_33, %c0_34, %c0_35] : memref<4x32x32xf32, #tpu.memory_space<vmem>>, vector<1x32x32xf32>
    %34 = vector.shape_cast %33 : vector<1x32x32xf32> to vector<32x32xf32>
    %c1_36 = arith.constant 1 : index
    %c0_37 = arith.constant 0 : index
    %c0_38 = arith.constant 0 : index
    %35 = vector.load %arg2[%c1_36, %c0_37, %c0_38] : memref<4x32x32xf32, #tpu.memory_space<vmem>>, vector<1x32x32xf32>
    %36 = vector.shape_cast %35 : vector<1x32x32xf32> to vector<32x32xf32>
    %c2_39 = arith.constant 2 : index
    %c0_40 = arith.constant 0 : index
    %c0_41 = arith.constant 0 : index
    %37 = vector.load %arg2[%c2_39, %c0_40, %c0_41] : memref<4x32x32xf32, #tpu.memory_space<vmem>>, vector<1x32x32xf32>
    %38 = vector.shape_cast %37 : vector<1x32x32xf32> to vector<32x32xf32>
    %c3_42 = arith.constant 3 : index
    %c0_43 = arith.constant 0 : index
    %c0_44 = arith.constant 0 : index
    %39 = vector.load %arg2[%c3_42, %c0_43, %c0_44] : memref<4x32x32xf32, #tpu.memory_space<vmem>>, vector<1x32x32xf32>
    %40 = vector.shape_cast %39 : vector<1x32x32xf32> to vector<32x32xf32>
    %cst_45 = arith.constant 0.000000e+00 : f32
    %41 = vector.broadcast %cst_45 : f32 to vector<8x32xf32>
    %cst_46 = arith.constant 0.000000e+00 : f32
    %42 = vector.broadcast %cst_46 : f32 to vector<8x32xf32>
    %c0_i32 = arith.constant 0 : i32
    %c8_i32 = arith.constant 8 : i32
    %43 = arith.muli %c0_i32, %c8_i32 : i32
    %44 = tpu.assume_multiple %43, 8 : i32
    %45 = arith.index_cast %44 : i32 to index
    %c0_47 = arith.constant 0 : index
    %46 = vector.load %arg12[%45, %c0_47] : memref<64x32xf32, #tpu.memory_space<vmem>>, vector<8x32xf32>
    %cst_48 = arith.constant dense<0.000000e+00> : vector<8x32xf32>
    %47 = tpu.matmul %41, %34, %cst_48 {dimension_numbers = #tpu.dot_dimension_numbers<[1], [0], [0], [1], [0, 0, 1, 1], [], []>} : vector<8x32xf32>, vector<32x32xf32>, vector<8x32xf32> -> vector<8x32xf32>
    %48 = arith.addf %46, %47 : vector<8x32xf32>
    %49 = arith.negf %48 : vector<8x32xf32>
    %50 = math.exp %49 : vector<8x32xf32>
    %cst_49 = arith.constant 1.000000e+00 : f32
    %51 = vector.broadcast %cst_49 : f32 to vector<8x32xf32>
    %52 = arith.addf %51, %50 : vector<8x32xf32>
    %53 = arith.divf %51, %52 : vector<8x32xf32>
    %54 = arith.index_cast %44 : i32 to index
    %c0_50 = arith.constant 0 : index
    %55 = vector.load %arg13[%54, %c0_50] : memref<64x32xf32, #tpu.memory_space<vmem>>, vector<8x32xf32>
    %cst_51 = arith.constant dense<0.000000e+00> : vector<8x32xf32>
    %56 = tpu.matmul %41, %36, %cst_51 {dimension_numbers = #tpu.dot_dimension_numbers<[1], [0], [0], [1], [0, 0, 1, 1], [], []>} : vector<8x32xf32>, vector<32x32xf32>, vector<8x32xf32> -> vector<8x32xf32>
    %57 = arith.addf %55, %56 : vector<8x32xf32>
    %58 = arith.negf %57 : vector<8x32xf32>
    %59 = math.exp %58 : vector<8x32xf32>
    %cst_52 = arith.constant 1.000000e+00 : f32
    %60 = vector.broadcast %cst_52 : f32 to vector<8x32xf32>
    %61 = arith.addf %60, %59 : vector<8x32xf32>
    %62 = arith.divf %60, %61 : vector<8x32xf32>
    %63 = arith.index_cast %44 : i32 to index
    %c0_53 = arith.constant 0 : index
    %64 = vector.load %arg14[%63, %c0_53] : memref<64x32xf32, #tpu.memory_space<vmem>>, vector<8x32xf32>
    %cst_54 = arith.constant dense<0.000000e+00> : vector<8x32xf32>
    %65 = tpu.matmul %41, %38, %cst_54 {dimension_numbers = #tpu.dot_dimension_numbers<[1], [0], [0], [1], [0, 0, 1, 1], [], []>} : vector<8x32xf32>, vector<32x32xf32>, vector<8x32xf32> -> vector<8x32xf32>
    %66 = arith.addf %64, %65 : vector<8x32xf32>
    %67 = math.tanh %66 : vector<8x32xf32>
    %68 = arith.index_cast %44 : i32 to index
    %c0_55 = arith.constant 0 : index
    %69 = vector.load %arg15[%68, %c0_55] : memref<64x32xf32, #tpu.memory_space<vmem>>, vector<8x32xf32>
    %cst_56 = arith.constant dense<0.000000e+00> : vector<8x32xf32>
    %70 = tpu.matmul %41, %40, %cst_56 {dimension_numbers = #tpu.dot_dimension_numbers<[1], [0], [0], [1], [0, 0, 1, 1], [], []>} : vector<8x32xf32>, vector<32x32xf32>, vector<8x32xf32> -> vector<8x32xf32>
    %71 = arith.addf %69, %70 : vector<8x32xf32>
    %72 = arith.negf %71 : vector<8x32xf32>
    %73 = math.exp %72 : vector<8x32xf32>
    %cst_57 = arith.constant 1.000000e+00 : f32
    %74 = vector.broadcast %cst_57 : f32 to vector<8x32xf32>
    %75 = arith.addf %74, %73 : vector<8x32xf32>
    %76 = arith.divf %74, %75 : vector<8x32xf32>
    %77 = arith.mulf %62, %42 : vector<8x32xf32>
    %78 = arith.mulf %53, %67 : vector<8x32xf32>
    %79 = arith.addf %77, %78 : vector<8x32xf32>
    %80 = math.tanh %79 : vector<8x32xf32>
    %81 = arith.mulf %76, %80 : vector<8x32xf32>
    %82 = arith.index_cast %44 : i32 to index
    %c0_58 = arith.constant 0 : index
    %83 = vector.load %arg16[%82, %c0_58] : memref<64x32xf32, #tpu.memory_space<vmem>>, vector<8x32xf32>
    tpu.vector_store %arg16[%82, %c0_58], %81 {strides = array<i32>} : memref<64x32xf32, #tpu.memory_space<vmem>>, vector<8x32xf32>,
    %c1_i32 = arith.constant 1 : i32
    %c8_i32_59 = arith.constant 8 : i32
    %84 = arith.muli %c1_i32, %c8_i32_59 : i32
    %85 = tpu.assume_multiple %84, 8 : i32
    %86 = arith.index_cast %85 : i32 to index
    %c0_60 = arith.constant 0 : index
    %87 = vector.load %arg12[%86, %c0_60] : memref<64x32xf32, #tpu.memory_space<vmem>>, vector<8x32xf32>
    %cst_61 = arith.constant dense<0.000000e+00> : vector<8x32xf32>
    %88 = tpu.matmul %81, %34, %cst_61 {dimension_numbers = #tpu.dot_dimension_numbers<[1], [0], [0], [1], [0, 0, 1, 1], [], []>} : vector<8x32xf32>, vector<32x32xf32>, vector<8x32xf32> -> vector<8x32xf32>
    %89 = arith.addf %87, %88 : vector<8x32xf32>
    %90 = arith.negf %89 : vector<8x32xf32>
    %91 = math.exp %90 : vector<8x32xf32>
    %cst_62 = arith.constant 1.000000e+00 : f32
    %92 = vector.broadcast %cst_62 : f32 to vector<8x32xf32>
    %93 = arith.addf %92, %91 : vector<8x32xf32>
    %94 = arith.divf %92, %93 : vector<8x32xf32>
    %95 = arith.index_cast %85 : i32 to index
    %c0_63 = arith.constant 0 : index
    %96 = vector.load %arg13[%95, %c0_63] : memref<64x32xf32, #tpu.memory_space<vmem>>, vector<8x32xf32>
    %cst_64 = arith.constant dense<0.000000e+00> : vector<8x32xf32>
    %97 = tpu.matmul %81, %36, %cst_64 {dimension_numbers = #tpu.dot_dimension_numbers<[1], [0], [0], [1], [0, 0, 1, 1], [], []>} : vector<8x32xf32>, vector<32x32xf32>, vector<8x32xf32> -> vector<8x32xf32>
    %98 = arith.addf %96, %97 : vector<8x32xf32>
    %99 = arith.negf %98 : vector<8x32xf32>
    %100 = math.exp %99 : vector<8x32xf32>
    %cst_65 = arith.constant 1.000000e+00 : f32
    %101 = vector.broadcast %cst_65 : f32 to vector<8x32xf32>
    %102 = arith.addf %101, %100 : vector<8x32xf32>
    %103 = arith.divf %101, %102 : vector<8x32xf32>
    %104 = arith.index_cast %85 : i32 to index
    %c0_66 = arith.constant 0 : index
    %105 = vector.load %arg14[%104, %c0_66] : memref<64x32xf32, #tpu.memory_space<vmem>>, vector<8x32xf32>
    %cst_67 = arith.constant dense<0.000000e+00> : vector<8x32xf32>
    %106 = tpu.matmul %81, %38, %cst_67 {dimension_numbers = #tpu.dot_dimension_numbers<[1], [0], [0], [1], [0, 0, 1, 1], [], []>} : vector<8x32xf32>, vector<32x32xf32>, vector<8x32xf32> -> vector<8x32xf32>
    %107 = arith.addf %105, %106 : vector<8x32xf32>
    %108 = math.tanh %107 : vector<8x32xf32>
    %109 = arith.index_cast %85 : i32 to index
    %c0_68 = arith.constant 0 : index
    %110 = vector.load %arg15[%109, %c0_68] : memref<64x32xf32, #tpu.memory_space<vmem>>, vector<8x32xf32>
    %cst_69 = arith.constant dense<0.000000e+00> : vector<8x32xf32>
    %111 = tpu.matmul %81, %40, %cst_69 {dimension_numbers = #tpu.dot_dimension_numbers<[1], [0], [0], [1], [0, 0, 1, 1], [], []>} : vector<8x32xf32>, vector<32x32xf32>, vector<8x32xf32> -> vector<8x32xf32>
    %112 = arith.addf %110, %111 : vector<8x32xf32>
    %113 = arith.negf %112 : vector<8x32xf32>
    %114 = math.exp %113 : vector<8x32xf32>
    %cst_70 = arith.constant 1.000000e+00 : f32
    %115 = vector.broadcast %cst_70 : f32 to vector<8x32xf32>
    %116 = arith.addf %115, %114 : vector<8x32xf32>
    %117 = arith.divf %115, %116 : vector<8x32xf32>
    %118 = arith.mulf %103, %79 : vector<8x32xf32>
    %119 = arith.mulf %94, %108 : vector<8x32xf32>
    %120 = arith.addf %118, %119 : vector<8x32xf32>
    %121 = math.tanh %120 : vector<8x32xf32>
    %122 = arith.mulf %117, %121 : vector<8x32xf32>
    %123 = arith.index_cast %85 : i32 to index
    %c0_71 = arith.constant 0 : index
    %124 = vector.load %arg16[%123, %c0_71] : memref<64x32xf32, #tpu.memory_space<vmem>>, vector<8x32xf32>
    tpu.vector_store %arg16[%123, %c0_71], %122 {strides = array<i32>} : memref<64x32xf32, #tpu.memory_space<vmem>>, vector<8x32xf32>,
    %c2_i32 = arith.constant 2 : i32
    %c8_i32_72 = arith.constant 8 : i32
    %125 = arith.muli %c2_i32, %c8_i32_72 : i32
    %126 = tpu.assume_multiple %125, 8 : i32
    %127 = arith.index_cast %126 : i32 to index
    %c0_73 = arith.constant 0 : index
    %128 = vector.load %arg12[%127, %c0_73] : memref<64x32xf32, #tpu.memory_space<vmem>>, vector<8x32xf32>
    %cst_74 = arith.constant dense<0.000000e+00> : vector<8x32xf32>
    %129 = tpu.matmul %122, %34, %cst_74 {dimension_numbers = #tpu.dot_dimension_numbers<[1], [0], [0], [1], [0, 0, 1, 1], [], []>} : vector<8x32xf32>, vector<32x32xf32>, vector<8x32xf32> -> vector<8x32xf32>
    %130 = arith.addf %128, %129 : vector<8x32xf32>
    %131 = arith.negf %130 : vector<8x32xf32>
    %132 = math.exp %131 : vector<8x32xf32>
    %cst_75 = arith.constant 1.000000e+00 : f32
    %133 = vector.broadcast %cst_75 : f32 to vector<8x32xf32>
    %134 = arith.addf %133, %132 : vector<8x32xf32>
    %135 = arith.divf %133, %134 : vector<8x32xf32>
    %136 = arith.index_cast %126 : i32 to index
    %c0_76 = arith.constant 0 : index
    %137 = vector.load %arg13[%136, %c0_76] : memref<64x32xf32, #tpu.memory_space<vmem>>, vector<8x32xf32>
    %cst_77 = arith.constant dense<0.000000e+00> : vector<8x32xf32>
    %138 = tpu.matmul %122, %36, %cst_77 {dimension_numbers = #tpu.dot_dimension_numbers<[1], [0], [0], [1], [0, 0, 1, 1], [], []>} : vector<8x32xf32>, vector<32x32xf32>, vector<8x32xf32> -> vector<8x32xf32>
    %139 = arith.addf %137, %138 : vector<8x32xf32>
    %140 = arith.negf %139 : vector<8x32xf32>
    %141 = math.exp %140 : vector<8x32xf32>
    %cst_78 = arith.constant 1.000000e+00 : f32
    %142 = vector.broadcast %cst_78 : f32 to vector<8x32xf32>
    %143 = arith.addf %142, %141 : vector<8x32xf32>
    %144 = arith.divf %142, %143 : vector<8x32xf32>
    %145 = arith.index_cast %126 : i32 to index
    %c0_79 = arith.constant 0 : index
    %146 = vector.load %arg14[%145, %c0_79] : memref<64x32xf32, #tpu.memory_space<vmem>>, vector<8x32xf32>
    %cst_80 = arith.constant dense<0.000000e+00> : vector<8x32xf32>
    %147 = tpu.matmul %122, %38, %cst_80 {dimension_numbers = #tpu.dot_dimension_numbers<[1], [0], [0], [1], [0, 0, 1, 1], [], []>} : vector<8x32xf32>, vector<32x32xf32>, vector<8x32xf32> -> vector<8x32xf32>
    %148 = arith.addf %146, %147 : vector<8x32xf32>
    %149 = math.tanh %148 : vector<8x32xf32>
    %150 = arith.index_cast %126 : i32 to index
    %c0_81 = arith.constant 0 : index
    %151 = vector.load %arg15[%150, %c0_81] : memref<64x32xf32, #tpu.memory_space<vmem>>, vector<8x32xf32>
    %cst_82 = arith.constant dense<0.000000e+00> : vector<8x32xf32>
    %152 = tpu.matmul %122, %40, %cst_82 {dimension_numbers = #tpu.dot_dimension_numbers<[1], [0], [0], [1], [0, 0, 1, 1], [], []>} : vector<8x32xf32>, vector<32x32xf32>, vector<8x32xf32> -> vector<8x32xf32>
    %153 = arith.addf %151, %152 : vector<8x32xf32>
    %154 = arith.negf %153 : vector<8x32xf32>
    %155 = math.exp %154 : vector<8x32xf32>
    %cst_83 = arith.constant 1.000000e+00 : f32
    %156 = vector.broadcast %cst_83 : f32 to vector<8x32xf32>
    %157 = arith.addf %156, %155 : vector<8x32xf32>
    %158 = arith.divf %156, %157 : vector<8x32xf32>
    %159 = arith.mulf %144, %120 : vector<8x32xf32>
    %160 = arith.mulf %135, %149 : vector<8x32xf32>
    %161 = arith.addf %159, %160 : vector<8x32xf32>
    %162 = math.tanh %161 : vector<8x32xf32>
    %163 = arith.mulf %158, %162 : vector<8x32xf32>
    %164 = arith.index_cast %126 : i32 to index
    %c0_84 = arith.constant 0 : index
    %165 = vector.load %arg16[%164, %c0_84] : memref<64x32xf32, #tpu.memory_space<vmem>>, vector<8x32xf32>
    tpu.vector_store %arg16[%164, %c0_84], %163 {strides = array<i32>} : memref<64x32xf32, #tpu.memory_space<vmem>>, vector<8x32xf32>,
    %c3_i32 = arith.constant 3 : i32
    %c8_i32_85 = arith.constant 8 : i32
    %166 = arith.muli %c3_i32, %c8_i32_85 : i32
    %167 = tpu.assume_multiple %166, 8 : i32
    %168 = arith.index_cast %167 : i32 to index
    %c0_86 = arith.constant 0 : index
    %169 = vector.load %arg12[%168, %c0_86] : memref<64x32xf32, #tpu.memory_space<vmem>>, vector<8x32xf32>
    %cst_87 = arith.constant dense<0.000000e+00> : vector<8x32xf32>
    %170 = tpu.matmul %163, %34, %cst_87 {dimension_numbers = #tpu.dot_dimension_numbers<[1], [0], [0], [1], [0, 0, 1, 1], [], []>} : vector<8x32xf32>, vector<32x32xf32>, vector<8x32xf32> -> vector<8x32xf32>
    %171 = arith.addf %169, %170 : vector<8x32xf32>
    %172 = arith.negf %171 : vector<8x32xf32>
    %173 = math.exp %172 : vector<8x32xf32>
    %cst_88 = arith.constant 1.000000e+00 : f32
    %174 = vector.broadcast %cst_88 : f32 to vector<8x32xf32>
    %175 = arith.addf %174, %173 : vector<8x32xf32>
    %176 = arith.divf %174, %175 : vector<8x32xf32>
    %177 = arith.index_cast %167 : i32 to index
    %c0_89 = arith.constant 0 : index
    %178 = vector.load %arg13[%177, %c0_89] : memref<64x32xf32, #tpu.memory_space<vmem>>, vector<8x32xf32>
    %cst_90 = arith.constant dense<0.000000e+00> : vector<8x32xf32>
    %179 = tpu.matmul %163, %36, %cst_90 {dimension_numbers = #tpu.dot_dimension_numbers<[1], [0], [0], [1], [0, 0, 1, 1], [], []>} : vector<8x32xf32>, vector<32x32xf32>, vector<8x32xf32> -> vector<8x32xf32>
    %180 = arith.addf %178, %179 : vector<8x32xf32>
    %181 = arith.negf %180 : vector<8x32xf32>
    %182 = math.exp %181 : vector<8x32xf32>
    %cst_91 = arith.constant 1.000000e+00 : f32
    %183 = vector.broadcast %cst_91 : f32 to vector<8x32xf32>
    %184 = arith.addf %183, %182 : vector<8x32xf32>
    %185 = arith.divf %183, %184 : vector<8x32xf32>
    %186 = arith.index_cast %167 : i32 to index
    %c0_92 = arith.constant 0 : index
    %187 = vector.load %arg14[%186, %c0_92] : memref<64x32xf32, #tpu.memory_space<vmem>>, vector<8x32xf32>
    %cst_93 = arith.constant dense<0.000000e+00> : vector<8x32xf32>
    %188 = tpu.matmul %163, %38, %cst_93 {dimension_numbers = #tpu.dot_dimension_numbers<[1], [0], [0], [1], [0, 0, 1, 1], [], []>} : vector<8x32xf32>, vector<32x32xf32>, vector<8x32xf32> -> vector<8x32xf32>
    %189 = arith.addf %187, %188 : vector<8x32xf32>
    %190 = math.tanh %189 : vector<8x32xf32>
    %191 = arith.index_cast %167 : i32 to index
    %c0_94 = arith.constant 0 : index
    %192 = vector.load %arg15[%191, %c0_94] : memref<64x32xf32, #tpu.memory_space<vmem>>, vector<8x32xf32>
    %cst_95 = arith.constant dense<0.000000e+00> : vector<8x32xf32>
    %193 = tpu.matmul %163, %40, %cst_95 {dimension_numbers = #tpu.dot_dimension_numbers<[1], [0], [0], [1], [0, 0, 1, 1], [], []>} : vector<8x32xf32>, vector<32x32xf32>, vector<8x32xf32> -> vector<8x32xf32>
    %194 = arith.addf %192, %193 : vector<8x32xf32>
    %195 = arith.negf %194 : vector<8x32xf32>
    %196 = math.exp %195 : vector<8x32xf32>
    %cst_96 = arith.constant 1.000000e+00 : f32
    %197 = vector.broadcast %cst_96 : f32 to vector<8x32xf32>
    %198 = arith.addf %197, %196 : vector<8x32xf32>
    %199 = arith.divf %197, %198 : vector<8x32xf32>
    %200 = arith.mulf %185, %161 : vector<8x32xf32>
    %201 = arith.mulf %176, %190 : vector<8x32xf32>
    %202 = arith.addf %200, %201 : vector<8x32xf32>
    %203 = math.tanh %202 : vector<8x32xf32>
    %204 = arith.mulf %199, %203 : vector<8x32xf32>
    %205 = arith.index_cast %167 : i32 to index
    %c0_97 = arith.constant 0 : index
    %206 = vector.load %arg16[%205, %c0_97] : memref<64x32xf32, #tpu.memory_space<vmem>>, vector<8x32xf32>
    tpu.vector_store %arg16[%205, %c0_97], %204 {strides = array<i32>} : memref<64x32xf32, #tpu.memory_space<vmem>>, vector<8x32xf32>,
    %c4_i32 = arith.constant 4 : i32
    %c8_i32_98 = arith.constant 8 : i32
    %207 = arith.muli %c4_i32, %c8_i32_98 : i32
    %208 = tpu.assume_multiple %207, 8 : i32
    %209 = arith.index_cast %208 : i32 to index
    %c0_99 = arith.constant 0 : index
    %210 = vector.load %arg12[%209, %c0_99] : memref<64x32xf32, #tpu.memory_space<vmem>>, vector<8x32xf32>
    %cst_100 = arith.constant dense<0.000000e+00> : vector<8x32xf32>
    %211 = tpu.matmul %204, %34, %cst_100 {dimension_numbers = #tpu.dot_dimension_numbers<[1], [0], [0], [1], [0, 0, 1, 1], [], []>} : vector<8x32xf32>, vector<32x32xf32>, vector<8x32xf32> -> vector<8x32xf32>
    %212 = arith.addf %210, %211 : vector<8x32xf32>
    %213 = arith.negf %212 : vector<8x32xf32>
    %214 = math.exp %213 : vector<8x32xf32>
    %cst_101 = arith.constant 1.000000e+00 : f32
    %215 = vector.broadcast %cst_101 : f32 to vector<8x32xf32>
    %216 = arith.addf %215, %214 : vector<8x32xf32>
    %217 = arith.divf %215, %216 : vector<8x32xf32>
    %218 = arith.index_cast %208 : i32 to index
    %c0_102 = arith.constant 0 : index
    %219 = vector.load %arg13[%218, %c0_102] : memref<64x32xf32, #tpu.memory_space<vmem>>, vector<8x32xf32>
    %cst_103 = arith.constant dense<0.000000e+00> : vector<8x32xf32>
    %220 = tpu.matmul %204, %36, %cst_103 {dimension_numbers = #tpu.dot_dimension_numbers<[1], [0], [0], [1], [0, 0, 1, 1], [], []>} : vector<8x32xf32>, vector<32x32xf32>, vector<8x32xf32> -> vector<8x32xf32>
    %221 = arith.addf %219, %220 : vector<8x32xf32>
    %222 = arith.negf %221 : vector<8x32xf32>
    %223 = math.exp %222 : vector<8x32xf32>
    %cst_104 = arith.constant 1.000000e+00 : f32
    %224 = vector.broadcast %cst_104 : f32 to vector<8x32xf32>
    %225 = arith.addf %224, %223 : vector<8x32xf32>
    %226 = arith.divf %224, %225 : vector<8x32xf32>
    %227 = arith.index_cast %208 : i32 to index
    %c0_105 = arith.constant 0 : index
    %228 = vector.load %arg14[%227, %c0_105] : memref<64x32xf32, #tpu.memory_space<vmem>>, vector<8x32xf32>
    %cst_106 = arith.constant dense<0.000000e+00> : vector<8x32xf32>
    %229 = tpu.matmul %204, %38, %cst_106 {dimension_numbers = #tpu.dot_dimension_numbers<[1], [0], [0], [1], [0, 0, 1, 1], [], []>} : vector<8x32xf32>, vector<32x32xf32>, vector<8x32xf32> -> vector<8x32xf32>
    %230 = arith.addf %228, %229 : vector<8x32xf32>
    %231 = math.tanh %230 : vector<8x32xf32>
    %232 = arith.index_cast %208 : i32 to index
    %c0_107 = arith.constant 0 : index
    %233 = vector.load %arg15[%232, %c0_107] : memref<64x32xf32, #tpu.memory_space<vmem>>, vector<8x32xf32>
    %cst_108 = arith.constant dense<0.000000e+00> : vector<8x32xf32>
    %234 = tpu.matmul %204, %40, %cst_108 {dimension_numbers = #tpu.dot_dimension_numbers<[1], [0], [0], [1], [0, 0, 1, 1], [], []>} : vector<8x32xf32>, vector<32x32xf32>, vector<8x32xf32> -> vector<8x32xf32>
    %235 = arith.addf %233, %234 : vector<8x32xf32>
    %236 = arith.negf %235 : vector<8x32xf32>
    %237 = math.exp %236 : vector<8x32xf32>
    %cst_109 = arith.constant 1.000000e+00 : f32
    %238 = vector.broadcast %cst_109 : f32 to vector<8x32xf32>
    %239 = arith.addf %238, %237 : vector<8x32xf32>
    %240 = arith.divf %238, %239 : vector<8x32xf32>
    %241 = arith.mulf %226, %202 : vector<8x32xf32>
    %242 = arith.mulf %217, %231 : vector<8x32xf32>
    %243 = arith.addf %241, %242 : vector<8x32xf32>
    %244 = math.tanh %243 : vector<8x32xf32>
    %245 = arith.mulf %240, %244 : vector<8x32xf32>
    %246 = arith.index_cast %208 : i32 to index
    %c0_110 = arith.constant 0 : index
    %247 = vector.load %arg16[%246, %c0_110] : memref<64x32xf32, #tpu.memory_space<vmem>>, vector<8x32xf32>
    tpu.vector_store %arg16[%246, %c0_110], %245 {strides = array<i32>} : memref<64x32xf32, #tpu.memory_space<vmem>>, vector<8x32xf32>,
    %c5_i32 = arith.constant 5 : i32
    %c8_i32_111 = arith.constant 8 : i32
    %248 = arith.muli %c5_i32, %c8_i32_111 : i32
    %249 = tpu.assume_multiple %248, 8 : i32
    %250 = arith.index_cast %249 : i32 to index
    %c0_112 = arith.constant 0 : index
    %251 = vector.load %arg12[%250, %c0_112] : memref<64x32xf32, #tpu.memory_space<vmem>>, vector<8x32xf32>
    %cst_113 = arith.constant dense<0.000000e+00> : vector<8x32xf32>
    %252 = tpu.matmul %245, %34, %cst_113 {dimension_numbers = #tpu.dot_dimension_numbers<[1], [0], [0], [1], [0, 0, 1, 1], [], []>} : vector<8x32xf32>, vector<32x32xf32>, vector<8x32xf32> -> vector<8x32xf32>
    %253 = arith.addf %251, %252 : vector<8x32xf32>
    %254 = arith.negf %253 : vector<8x32xf32>
    %255 = math.exp %254 : vector<8x32xf32>
    %cst_114 = arith.constant 1.000000e+00 : f32
    %256 = vector.broadcast %cst_114 : f32 to vector<8x32xf32>
    %257 = arith.addf %256, %255 : vector<8x32xf32>
    %258 = arith.divf %256, %257 : vector<8x32xf32>
    %259 = arith.index_cast %249 : i32 to index
    %c0_115 = arith.constant 0 : index
    %260 = vector.load %arg13[%259, %c0_115] : memref<64x32xf32, #tpu.memory_space<vmem>>, vector<8x32xf32>
    %cst_116 = arith.constant dense<0.000000e+00> : vector<8x32xf32>
    %261 = tpu.matmul %245, %36, %cst_116 {dimension_numbers = #tpu.dot_dimension_numbers<[1], [0], [0], [1], [0, 0, 1, 1], [], []>} : vector<8x32xf32>, vector<32x32xf32>, vector<8x32xf32> -> vector<8x32xf32>
    %262 = arith.addf %260, %261 : vector<8x32xf32>
    %263 = arith.negf %262 : vector<8x32xf32>
    %264 = math.exp %263 : vector<8x32xf32>
    %cst_117 = arith.constant 1.000000e+00 : f32
    %265 = vector.broadcast %cst_117 : f32 to vector<8x32xf32>
    %266 = arith.addf %265, %264 : vector<8x32xf32>
    %267 = arith.divf %265, %266 : vector<8x32xf32>
    %268 = arith.index_cast %249 : i32 to index
    %c0_118 = arith.constant 0 : index
    %269 = vector.load %arg14[%268, %c0_118] : memref<64x32xf32, #tpu.memory_space<vmem>>, vector<8x32xf32>
    %cst_119 = arith.constant dense<0.000000e+00> : vector<8x32xf32>
    %270 = tpu.matmul %245, %38, %cst_119 {dimension_numbers = #tpu.dot_dimension_numbers<[1], [0], [0], [1], [0, 0, 1, 1], [], []>} : vector<8x32xf32>, vector<32x32xf32>, vector<8x32xf32> -> vector<8x32xf32>
    %271 = arith.addf %269, %270 : vector<8x32xf32>
    %272 = math.tanh %271 : vector<8x32xf32>
    %273 = arith.index_cast %249 : i32 to index
    %c0_120 = arith.constant 0 : index
    %274 = vector.load %arg15[%273, %c0_120] : memref<64x32xf32, #tpu.memory_space<vmem>>, vector<8x32xf32>
    %cst_121 = arith.constant dense<0.000000e+00> : vector<8x32xf32>
    %275 = tpu.matmul %245, %40, %cst_121 {dimension_numbers = #tpu.dot_dimension_numbers<[1], [0], [0], [1], [0, 0, 1, 1], [], []>} : vector<8x32xf32>, vector<32x32xf32>, vector<8x32xf32> -> vector<8x32xf32>
    %276 = arith.addf %274, %275 : vector<8x32xf32>
    %277 = arith.negf %276 : vector<8x32xf32>
    %278 = math.exp %277 : vector<8x32xf32>
    %cst_122 = arith.constant 1.000000e+00 : f32
    %279 = vector.broadcast %cst_122 : f32 to vector<8x32xf32>
    %280 = arith.addf %279, %278 : vector<8x32xf32>
    %281 = arith.divf %279, %280 : vector<8x32xf32>
    %282 = arith.mulf %267, %243 : vector<8x32xf32>
    %283 = arith.mulf %258, %272 : vector<8x32xf32>
    %284 = arith.addf %282, %283 : vector<8x32xf32>
    %285 = math.tanh %284 : vector<8x32xf32>
    %286 = arith.mulf %281, %285 : vector<8x32xf32>
    %287 = arith.index_cast %249 : i32 to index
    %c0_123 = arith.constant 0 : index
    %288 = vector.load %arg16[%287, %c0_123] : memref<64x32xf32, #tpu.memory_space<vmem>>, vector<8x32xf32>
    tpu.vector_store %arg16[%287, %c0_123], %286 {strides = array<i32>} : memref<64x32xf32, #tpu.memory_space<vmem>>, vector<8x32xf32>,
    %c6_i32 = arith.constant 6 : i32
    %c8_i32_124 = arith.constant 8 : i32
    %289 = arith.muli %c6_i32, %c8_i32_124 : i32
    %290 = tpu.assume_multiple %289, 8 : i32
    %291 = arith.index_cast %290 : i32 to index
    %c0_125 = arith.constant 0 : index
    %292 = vector.load %arg12[%291, %c0_125] : memref<64x32xf32, #tpu.memory_space<vmem>>, vector<8x32xf32>
    %cst_126 = arith.constant dense<0.000000e+00> : vector<8x32xf32>
    %293 = tpu.matmul %286, %34, %cst_126 {dimension_numbers = #tpu.dot_dimension_numbers<[1], [0], [0], [1], [0, 0, 1, 1], [], []>} : vector<8x32xf32>, vector<32x32xf32>, vector<8x32xf32> -> vector<8x32xf32>
    %294 = arith.addf %292, %293 : vector<8x32xf32>
    %295 = arith.negf %294 : vector<8x32xf32>
    %296 = math.exp %295 : vector<8x32xf32>
    %cst_127 = arith.constant 1.000000e+00 : f32
    %297 = vector.broadcast %cst_127 : f32 to vector<8x32xf32>
    %298 = arith.addf %297, %296 : vector<8x32xf32>
    %299 = arith.divf %297, %298 : vector<8x32xf32>
    %300 = arith.index_cast %290 : i32 to index
    %c0_128 = arith.constant 0 : index
    %301 = vector.load %arg13[%300, %c0_128] : memref<64x32xf32, #tpu.memory_space<vmem>>, vector<8x32xf32>
    %cst_129 = arith.constant dense<0.000000e+00> : vector<8x32xf32>
    %302 = tpu.matmul %286, %36, %cst_129 {dimension_numbers = #tpu.dot_dimension_numbers<[1], [0], [0], [1], [0, 0, 1, 1], [], []>} : vector<8x32xf32>, vector<32x32xf32>, vector<8x32xf32> -> vector<8x32xf32>
    %303 = arith.addf %301, %302 : vector<8x32xf32>
    %304 = arith.negf %303 : vector<8x32xf32>
    %305 = math.exp %304 : vector<8x32xf32>
    %cst_130 = arith.constant 1.000000e+00 : f32
    %306 = vector.broadcast %cst_130 : f32 to vector<8x32xf32>
    %307 = arith.addf %306, %305 : vector<8x32xf32>
    %308 = arith.divf %306, %307 : vector<8x32xf32>
    %309 = arith.index_cast %290 : i32 to index
    %c0_131 = arith.constant 0 : index
    %310 = vector.load %arg14[%309, %c0_131] : memref<64x32xf32, #tpu.memory_space<vmem>>, vector<8x32xf32>
    %cst_132 = arith.constant dense<0.000000e+00> : vector<8x32xf32>
    %311 = tpu.matmul %286, %38, %cst_132 {dimension_numbers = #tpu.dot_dimension_numbers<[1], [0], [0], [1], [0, 0, 1, 1], [], []>} : vector<8x32xf32>, vector<32x32xf32>, vector<8x32xf32> -> vector<8x32xf32>
    %312 = arith.addf %310, %311 : vector<8x32xf32>
    %313 = math.tanh %312 : vector<8x32xf32>
    %314 = arith.index_cast %290 : i32 to index
    %c0_133 = arith.constant 0 : index
    %315 = vector.load %arg15[%314, %c0_133] : memref<64x32xf32, #tpu.memory_space<vmem>>, vector<8x32xf32>
    %cst_134 = arith.constant dense<0.000000e+00> : vector<8x32xf32>
    %316 = tpu.matmul %286, %40, %cst_134 {dimension_numbers = #tpu.dot_dimension_numbers<[1], [0], [0], [1], [0, 0, 1, 1], [], []>} : vector<8x32xf32>, vector<32x32xf32>, vector<8x32xf32> -> vector<8x32xf32>
    %317 = arith.addf %315, %316 : vector<8x32xf32>
    %318 = arith.negf %317 : vector<8x32xf32>
    %319 = math.exp %318 : vector<8x32xf32>
    %cst_135 = arith.constant 1.000000e+00 : f32
    %320 = vector.broadcast %cst_135 : f32 to vector<8x32xf32>
    %321 = arith.addf %320, %319 : vector<8x32xf32>
    %322 = arith.divf %320, %321 : vector<8x32xf32>
    %323 = arith.mulf %308, %284 : vector<8x32xf32>
    %324 = arith.mulf %299, %313 : vector<8x32xf32>
    %325 = arith.addf %323, %324 : vector<8x32xf32>
    %326 = math.tanh %325 : vector<8x32xf32>
    %327 = arith.mulf %322, %326 : vector<8x32xf32>
    %328 = arith.index_cast %290 : i32 to index
    %c0_136 = arith.constant 0 : index
    %329 = vector.load %arg16[%328, %c0_136] : memref<64x32xf32, #tpu.memory_space<vmem>>, vector<8x32xf32>
    tpu.vector_store %arg16[%328, %c0_136], %327 {strides = array<i32>} : memref<64x32xf32, #tpu.memory_space<vmem>>, vector<8x32xf32>,
    %c7_i32 = arith.constant 7 : i32
    %c8_i32_137 = arith.constant 8 : i32
    %330 = arith.muli %c7_i32, %c8_i32_137 : i32
    %331 = tpu.assume_multiple %330, 8 : i32
    %332 = arith.index_cast %331 : i32 to index
    %c0_138 = arith.constant 0 : index
    %333 = vector.load %arg12[%332, %c0_138] : memref<64x32xf32, #tpu.memory_space<vmem>>, vector<8x32xf32>
    %cst_139 = arith.constant dense<0.000000e+00> : vector<8x32xf32>
    %334 = tpu.matmul %327, %34, %cst_139 {dimension_numbers = #tpu.dot_dimension_numbers<[1], [0], [0], [1], [0, 0, 1, 1], [], []>} : vector<8x32xf32>, vector<32x32xf32>, vector<8x32xf32> -> vector<8x32xf32>
    %335 = arith.addf %333, %334 : vector<8x32xf32>
    %336 = arith.negf %335 : vector<8x32xf32>
    %337 = math.exp %336 : vector<8x32xf32>
    %cst_140 = arith.constant 1.000000e+00 : f32
    %338 = vector.broadcast %cst_140 : f32 to vector<8x32xf32>
    %339 = arith.addf %338, %337 : vector<8x32xf32>
    %340 = arith.divf %338, %339 : vector<8x32xf32>
    %341 = arith.index_cast %331 : i32 to index
    %c0_141 = arith.constant 0 : index
    %342 = vector.load %arg13[%341, %c0_141] : memref<64x32xf32, #tpu.memory_space<vmem>>, vector<8x32xf32>
    %cst_142 = arith.constant dense<0.000000e+00> : vector<8x32xf32>
    %343 = tpu.matmul %327, %36, %cst_142 {dimension_numbers = #tpu.dot_dimension_numbers<[1], [0], [0], [1], [0, 0, 1, 1], [], []>} : vector<8x32xf32>, vector<32x32xf32>, vector<8x32xf32> -> vector<8x32xf32>
    %344 = arith.addf %342, %343 : vector<8x32xf32>
    %345 = arith.negf %344 : vector<8x32xf32>
    %346 = math.exp %345 : vector<8x32xf32>
    %cst_143 = arith.constant 1.000000e+00 : f32
    %347 = vector.broadcast %cst_143 : f32 to vector<8x32xf32>
    %348 = arith.addf %347, %346 : vector<8x32xf32>
    %349 = arith.divf %347, %348 : vector<8x32xf32>
    %350 = arith.index_cast %331 : i32 to index
    %c0_144 = arith.constant 0 : index
    %351 = vector.load %arg14[%350, %c0_144] : memref<64x32xf32, #tpu.memory_space<vmem>>, vector<8x32xf32>
    %cst_145 = arith.constant dense<0.000000e+00> : vector<8x32xf32>
    %352 = tpu.matmul %327, %38, %cst_145 {dimension_numbers = #tpu.dot_dimension_numbers<[1], [0], [0], [1], [0, 0, 1, 1], [], []>} : vector<8x32xf32>, vector<32x32xf32>, vector<8x32xf32> -> vector<8x32xf32>
    %353 = arith.addf %351, %352 : vector<8x32xf32>
    %354 = math.tanh %353 : vector<8x32xf32>
    %355 = arith.index_cast %331 : i32 to index
    %c0_146 = arith.constant 0 : index
    %356 = vector.load %arg15[%355, %c0_146] : memref<64x32xf32, #tpu.memory_space<vmem>>, vector<8x32xf32>
    %cst_147 = arith.constant dense<0.000000e+00> : vector<8x32xf32>
    %357 = tpu.matmul %327, %40, %cst_147 {dimension_numbers = #tpu.dot_dimension_numbers<[1], [0], [0], [1], [0, 0, 1, 1], [], []>} : vector<8x32xf32>, vector<32x32xf32>, vector<8x32xf32> -> vector<8x32xf32>
    %358 = arith.addf %356, %357 : vector<8x32xf32>
    %359 = arith.negf %358 : vector<8x32xf32>
    %360 = math.exp %359 : vector<8x32xf32>
    %cst_148 = arith.constant 1.000000e+00 : f32
    %361 = vector.broadcast %cst_148 : f32 to vector<8x32xf32>
    %362 = arith.addf %361, %360 : vector<8x32xf32>
    %363 = arith.divf %361, %362 : vector<8x32xf32>
    %364 = arith.mulf %349, %325 : vector<8x32xf32>
    %365 = arith.mulf %340, %354 : vector<8x32xf32>
    %366 = arith.addf %364, %365 : vector<8x32xf32>
    %367 = math.tanh %366 : vector<8x32xf32>
    %368 = arith.mulf %363, %367 : vector<8x32xf32>
    %369 = arith.index_cast %331 : i32 to index
    %c0_149 = arith.constant 0 : index
    %370 = vector.load %arg16[%369, %c0_149] : memref<64x32xf32, #tpu.memory_space<vmem>>, vector<8x32xf32>
    tpu.vector_store %arg16[%369, %c0_149], %368 {strides = array<i32>} : memref<64x32xf32, #tpu.memory_space<vmem>>, vector<8x32xf32>,
    %c8_i32_150 = arith.constant 8 : i32
    %c0_151 = arith.constant 0 : index
    %c0_152 = arith.constant 0 : index
    %371 = vector.load %arg16[%c0_151, %c0_152] : memref<64x32xf32, #tpu.memory_space<vmem>>, vector<64x32xf32>
    %c0_153 = arith.constant 0 : index
    %c0_154 = arith.constant 0 : index
    %c0_155 = arith.constant 0 : index
    %372 = vector.load %arg4[%c0_153, %c0_154, %c0_155] : memref<4x32x32xf32, #tpu.memory_space<vmem>>, vector<1x32x32xf32>
    %373 = vector.shape_cast %372 : vector<1x32x32xf32> to vector<32x32xf32>
    %cst_156 = arith.constant dense<0.000000e+00> : vector<64x32xf32>
    %374 = tpu.matmul %371, %373, %cst_156 {dimension_numbers = #tpu.dot_dimension_numbers<[1], [0], [0], [1], [0, 0, 1, 1], [], []>} : vector<64x32xf32>, vector<32x32xf32>, vector<64x32xf32> -> vector<64x32xf32>
    %c0_157 = arith.constant 0 : index
    %c0_158 = arith.constant 0 : index
    %c0_159 = arith.constant 0 : index
    %375 = vector.load %arg6[%c0_157, %c0_158, %c0_159] : memref<4x1x32xf32, #tpu.memory_space<vmem>>, vector<1x1x32xf32>
    %376 = vector.shape_cast %375 : vector<1x1x32xf32> to vector<1x32xf32>
    %377 = vector.broadcast %376 : vector<1x32xf32> to vector<64x32xf32>
    %378 = arith.addf %374, %377 : vector<64x32xf32>
    %c0_160 = arith.constant 0 : index
    %c0_161 = arith.constant 0 : index
    %379 = vector.load %arg12[%c0_160, %c0_161] : memref<64x32xf32, #tpu.memory_space<vmem>>, vector<64x32xf32>
    tpu.vector_store %arg12[%c0_160, %c0_161], %378 {strides = array<i32>} : memref<64x32xf32, #tpu.memory_space<vmem>>, vector<64x32xf32>,
    %c1_162 = arith.constant 1 : index
    %c0_163 = arith.constant 0 : index
    %c0_164 = arith.constant 0 : index
    %380 = vector.load %arg4[%c1_162, %c0_163, %c0_164] : memref<4x32x32xf32, #tpu.memory_space<vmem>>, vector<1x32x32xf32>
    %381 = vector.shape_cast %380 : vector<1x32x32xf32> to vector<32x32xf32>
    %cst_165 = arith.constant dense<0.000000e+00> : vector<64x32xf32>
    %382 = tpu.matmul %371, %381, %cst_165 {dimension_numbers = #tpu.dot_dimension_numbers<[1], [0], [0], [1], [0, 0, 1, 1], [], []>} : vector<64x32xf32>, vector<32x32xf32>, vector<64x32xf32> -> vector<64x32xf32>
    %c1_166 = arith.constant 1 : index
    %c0_167 = arith.constant 0 : index
    %c0_168 = arith.constant 0 : index
    %383 = vector.load %arg6[%c1_166, %c0_167, %c0_168] : memref<4x1x32xf32, #tpu.memory_space<vmem>>, vector<1x1x32xf32>
    %384 = vector.shape_cast %383 : vector<1x1x32xf32> to vector<1x32xf32>
    %385 = vector.broadcast %384 : vector<1x32xf32> to vector<64x32xf32>
    %386 = arith.addf %382, %385 : vector<64x32xf32>
    %c0_169 = arith.constant 0 : index
    %c0_170 = arith.constant 0 : index
    %387 = vector.load %arg13[%c0_169, %c0_170] : memref<64x32xf32, #tpu.memory_space<vmem>>, vector<64x32xf32>
    tpu.vector_store %arg13[%c0_169, %c0_170], %386 {strides = array<i32>} : memref<64x32xf32, #tpu.memory_space<vmem>>, vector<64x32xf32>,
    %c2_171 = arith.constant 2 : index
    %c0_172 = arith.constant 0 : index
    %c0_173 = arith.constant 0 : index
    %388 = vector.load %arg4[%c2_171, %c0_172, %c0_173] : memref<4x32x32xf32, #tpu.memory_space<vmem>>, vector<1x32x32xf32>
    %389 = vector.shape_cast %388 : vector<1x32x32xf32> to vector<32x32xf32>
    %cst_174 = arith.constant dense<0.000000e+00> : vector<64x32xf32>
    %390 = tpu.matmul %371, %389, %cst_174 {dimension_numbers = #tpu.dot_dimension_numbers<[1], [0], [0], [1], [0, 0, 1, 1], [], []>} : vector<64x32xf32>, vector<32x32xf32>, vector<64x32xf32> -> vector<64x32xf32>
    %c2_175 = arith.constant 2 : index
    %c0_176 = arith.constant 0 : index
    %c0_177 = arith.constant 0 : index
    %391 = vector.load %arg6[%c2_175, %c0_176, %c0_177] : memref<4x1x32xf32, #tpu.memory_space<vmem>>, vector<1x1x32xf32>
    %392 = vector.shape_cast %391 : vector<1x1x32xf32> to vector<1x32xf32>
    %393 = vector.broadcast %392 : vector<1x32xf32> to vector<64x32xf32>
    %394 = arith.addf %390, %393 : vector<64x32xf32>
    %c0_178 = arith.constant 0 : index
    %c0_179 = arith.constant 0 : index
    %395 = vector.load %arg14[%c0_178, %c0_179] : memref<64x32xf32, #tpu.memory_space<vmem>>, vector<64x32xf32>
    tpu.vector_store %arg14[%c0_178, %c0_179], %394 {strides = array<i32>} : memref<64x32xf32, #tpu.memory_space<vmem>>, vector<64x32xf32>,
    %c3_180 = arith.constant 3 : index
    %c0_181 = arith.constant 0 : index
    %c0_182 = arith.constant 0 : index
    %396 = vector.load %arg4[%c3_180, %c0_181, %c0_182] : memref<4x32x32xf32, #tpu.memory_space<vmem>>, vector<1x32x32xf32>
    %397 = vector.shape_cast %396 : vector<1x32x32xf32> to vector<32x32xf32>
    %cst_183 = arith.constant dense<0.000000e+00> : vector<64x32xf32>
    %398 = tpu.matmul %371, %397, %cst_183 {dimension_numbers = #tpu.dot_dimension_numbers<[1], [0], [0], [1], [0, 0, 1, 1], [], []>} : vector<64x32xf32>, vector<32x32xf32>, vector<64x32xf32> -> vector<64x32xf32>
    %c3_184 = arith.constant 3 : index
    %c0_185 = arith.constant 0 : index
    %c0_186 = arith.constant 0 : index
    %399 = vector.load %arg6[%c3_184, %c0_185, %c0_186] : memref<4x1x32xf32, #tpu.memory_space<vmem>>, vector<1x1x32xf32>
    %400 = vector.shape_cast %399 : vector<1x1x32xf32> to vector<1x32xf32>
    %401 = vector.broadcast %400 : vector<1x32xf32> to vector<64x32xf32>
    %402 = arith.addf %398, %401 : vector<64x32xf32>
    %c0_187 = arith.constant 0 : index
    %c0_188 = arith.constant 0 : index
    %403 = vector.load %arg15[%c0_187, %c0_188] : memref<64x32xf32, #tpu.memory_space<vmem>>, vector<64x32xf32>
    tpu.vector_store %arg15[%c0_187, %c0_188], %402 {strides = array<i32>} : memref<64x32xf32, #tpu.memory_space<vmem>>, vector<64x32xf32>,
    %c0_189 = arith.constant 0 : index
    %c0_190 = arith.constant 0 : index
    %c0_191 = arith.constant 0 : index
    %404 = vector.load %arg5[%c0_189, %c0_190, %c0_191] : memref<4x32x32xf32, #tpu.memory_space<vmem>>, vector<1x32x32xf32>
    %405 = vector.shape_cast %404 : vector<1x32x32xf32> to vector<32x32xf32>
    %c1_192 = arith.constant 1 : index
    %c0_193 = arith.constant 0 : index
    %c0_194 = arith.constant 0 : index
    %406 = vector.load %arg5[%c1_192, %c0_193, %c0_194] : memref<4x32x32xf32, #tpu.memory_space<vmem>>, vector<1x32x32xf32>
    %407 = vector.shape_cast %406 : vector<1x32x32xf32> to vector<32x32xf32>
    %c2_195 = arith.constant 2 : index
    %c0_196 = arith.constant 0 : index
    %c0_197 = arith.constant 0 : index
    %408 = vector.load %arg5[%c2_195, %c0_196, %c0_197] : memref<4x32x32xf32, #tpu.memory_space<vmem>>, vector<1x32x32xf32>
    %409 = vector.shape_cast %408 : vector<1x32x32xf32> to vector<32x32xf32>
    %c3_198 = arith.constant 3 : index
    %c0_199 = arith.constant 0 : index
    %c0_200 = arith.constant 0 : index
    %410 = vector.load %arg5[%c3_198, %c0_199, %c0_200] : memref<4x32x32xf32, #tpu.memory_space<vmem>>, vector<1x32x32xf32>
    %411 = vector.shape_cast %410 : vector<1x32x32xf32> to vector<32x32xf32>
    %cst_201 = arith.constant 0.000000e+00 : f32
    %412 = vector.broadcast %cst_201 : f32 to vector<8x32xf32>
    %cst_202 = arith.constant 0.000000e+00 : f32
    %413 = vector.broadcast %cst_202 : f32 to vector<8x32xf32>
    %c0_i32_203 = arith.constant 0 : i32
    %c8_i32_204 = arith.constant 8 : i32
    %414 = arith.muli %c0_i32_203, %c8_i32_204 : i32
    %415 = tpu.assume_multiple %414, 8 : i32
    %416 = arith.index_cast %415 : i32 to index
    %c0_205 = arith.constant 0 : index
    %417 = vector.load %arg12[%416, %c0_205] : memref<64x32xf32, #tpu.memory_space<vmem>>, vector<8x32xf32>
    %cst_206 = arith.constant dense<0.000000e+00> : vector<8x32xf32>
    %418 = tpu.matmul %412, %405, %cst_206 {dimension_numbers = #tpu.dot_dimension_numbers<[1], [0], [0], [1], [0, 0, 1, 1], [], []>} : vector<8x32xf32>, vector<32x32xf32>, vector<8x32xf32> -> vector<8x32xf32>
    %419 = arith.addf %417, %418 : vector<8x32xf32>
    %420 = arith.negf %419 : vector<8x32xf32>
    %421 = math.exp %420 : vector<8x32xf32>
    %cst_207 = arith.constant 1.000000e+00 : f32
    %422 = vector.broadcast %cst_207 : f32 to vector<8x32xf32>
    %423 = arith.addf %422, %421 : vector<8x32xf32>
    %424 = arith.divf %422, %423 : vector<8x32xf32>
    %425 = arith.index_cast %415 : i32 to index
    %c0_208 = arith.constant 0 : index
    %426 = vector.load %arg13[%425, %c0_208] : memref<64x32xf32, #tpu.memory_space<vmem>>, vector<8x32xf32>
    %cst_209 = arith.constant dense<0.000000e+00> : vector<8x32xf32>
    %427 = tpu.matmul %412, %407, %cst_209 {dimension_numbers = #tpu.dot_dimension_numbers<[1], [0], [0], [1], [0, 0, 1, 1], [], []>} : vector<8x32xf32>, vector<32x32xf32>, vector<8x32xf32> -> vector<8x32xf32>
    %428 = arith.addf %426, %427 : vector<8x32xf32>
    %429 = arith.negf %428 : vector<8x32xf32>
    %430 = math.exp %429 : vector<8x32xf32>
    %cst_210 = arith.constant 1.000000e+00 : f32
    %431 = vector.broadcast %cst_210 : f32 to vector<8x32xf32>
    %432 = arith.addf %431, %430 : vector<8x32xf32>
    %433 = arith.divf %431, %432 : vector<8x32xf32>
    %434 = arith.index_cast %415 : i32 to index
    %c0_211 = arith.constant 0 : index
    %435 = vector.load %arg14[%434, %c0_211] : memref<64x32xf32, #tpu.memory_space<vmem>>, vector<8x32xf32>
    %cst_212 = arith.constant dense<0.000000e+00> : vector<8x32xf32>
    %436 = tpu.matmul %412, %409, %cst_212 {dimension_numbers = #tpu.dot_dimension_numbers<[1], [0], [0], [1], [0, 0, 1, 1], [], []>} : vector<8x32xf32>, vector<32x32xf32>, vector<8x32xf32> -> vector<8x32xf32>
    %437 = arith.addf %435, %436 : vector<8x32xf32>
    %438 = math.tanh %437 : vector<8x32xf32>
    %439 = arith.index_cast %415 : i32 to index
    %c0_213 = arith.constant 0 : index
    %440 = vector.load %arg15[%439, %c0_213] : memref<64x32xf32, #tpu.memory_space<vmem>>, vector<8x32xf32>
    %cst_214 = arith.constant dense<0.000000e+00> : vector<8x32xf32>
    %441 = tpu.matmul %412, %411, %cst_214 {dimension_numbers = #tpu.dot_dimension_numbers<[1], [0], [0], [1], [0, 0, 1, 1], [], []>} : vector<8x32xf32>, vector<32x32xf32>, vector<8x32xf32> -> vector<8x32xf32>
    %442 = arith.addf %440, %441 : vector<8x32xf32>
    %443 = arith.negf %442 : vector<8x32xf32>
    %444 = math.exp %443 : vector<8x32xf32>
    %cst_215 = arith.constant 1.000000e+00 : f32
    %445 = vector.broadcast %cst_215 : f32 to vector<8x32xf32>
    %446 = arith.addf %445, %444 : vector<8x32xf32>
    %447 = arith.divf %445, %446 : vector<8x32xf32>
    %448 = arith.mulf %433, %413 : vector<8x32xf32>
    %449 = arith.mulf %424, %438 : vector<8x32xf32>
    %450 = arith.addf %448, %449 : vector<8x32xf32>
    %451 = math.tanh %450 : vector<8x32xf32>
    %452 = arith.mulf %447, %451 : vector<8x32xf32>
    %c1_i32_216 = arith.constant 1 : i32
    %c8_i32_217 = arith.constant 8 : i32
    %453 = arith.muli %c1_i32_216, %c8_i32_217 : i32
    %454 = tpu.assume_multiple %453, 8 : i32
    %455 = arith.index_cast %454 : i32 to index
    %c0_218 = arith.constant 0 : index
    %456 = vector.load %arg12[%455, %c0_218] : memref<64x32xf32, #tpu.memory_space<vmem>>, vector<8x32xf32>
    %cst_219 = arith.constant dense<0.000000e+00> : vector<8x32xf32>
    %457 = tpu.matmul %452, %405, %cst_219 {dimension_numbers = #tpu.dot_dimension_numbers<[1], [0], [0], [1], [0, 0, 1, 1], [], []>} : vector<8x32xf32>, vector<32x32xf32>, vector<8x32xf32> -> vector<8x32xf32>
    %458 = arith.addf %456, %457 : vector<8x32xf32>
    %459 = arith.negf %458 : vector<8x32xf32>
    %460 = math.exp %459 : vector<8x32xf32>
    %cst_220 = arith.constant 1.000000e+00 : f32
    %461 = vector.broadcast %cst_220 : f32 to vector<8x32xf32>
    %462 = arith.addf %461, %460 : vector<8x32xf32>
    %463 = arith.divf %461, %462 : vector<8x32xf32>
    %464 = arith.index_cast %454 : i32 to index
    %c0_221 = arith.constant 0 : index
    %465 = vector.load %arg13[%464, %c0_221] : memref<64x32xf32, #tpu.memory_space<vmem>>, vector<8x32xf32>
    %cst_222 = arith.constant dense<0.000000e+00> : vector<8x32xf32>
    %466 = tpu.matmul %452, %407, %cst_222 {dimension_numbers = #tpu.dot_dimension_numbers<[1], [0], [0], [1], [0, 0, 1, 1], [], []>} : vector<8x32xf32>, vector<32x32xf32>, vector<8x32xf32> -> vector<8x32xf32>
    %467 = arith.addf %465, %466 : vector<8x32xf32>
    %468 = arith.negf %467 : vector<8x32xf32>
    %469 = math.exp %468 : vector<8x32xf32>
    %cst_223 = arith.constant 1.000000e+00 : f32
    %470 = vector.broadcast %cst_223 : f32 to vector<8x32xf32>
    %471 = arith.addf %470, %469 : vector<8x32xf32>
    %472 = arith.divf %470, %471 : vector<8x32xf32>
    %473 = arith.index_cast %454 : i32 to index
    %c0_224 = arith.constant 0 : index
    %474 = vector.load %arg14[%473, %c0_224] : memref<64x32xf32, #tpu.memory_space<vmem>>, vector<8x32xf32>
    %cst_225 = arith.constant dense<0.000000e+00> : vector<8x32xf32>
    %475 = tpu.matmul %452, %409, %cst_225 {dimension_numbers = #tpu.dot_dimension_numbers<[1], [0], [0], [1], [0, 0, 1, 1], [], []>} : vector<8x32xf32>, vector<32x32xf32>, vector<8x32xf32> -> vector<8x32xf32>
    %476 = arith.addf %474, %475 : vector<8x32xf32>
    %477 = math.tanh %476 : vector<8x32xf32>
    %478 = arith.index_cast %454 : i32 to index
    %c0_226 = arith.constant 0 : index
    %479 = vector.load %arg15[%478, %c0_226] : memref<64x32xf32, #tpu.memory_space<vmem>>, vector<8x32xf32>
    %cst_227 = arith.constant dense<0.000000e+00> : vector<8x32xf32>
    %480 = tpu.matmul %452, %411, %cst_227 {dimension_numbers = #tpu.dot_dimension_numbers<[1], [0], [0], [1], [0, 0, 1, 1], [], []>} : vector<8x32xf32>, vector<32x32xf32>, vector<8x32xf32> -> vector<8x32xf32>
    %481 = arith.addf %479, %480 : vector<8x32xf32>
    %482 = arith.negf %481 : vector<8x32xf32>
    %483 = math.exp %482 : vector<8x32xf32>
    %cst_228 = arith.constant 1.000000e+00 : f32
    %484 = vector.broadcast %cst_228 : f32 to vector<8x32xf32>
    %485 = arith.addf %484, %483 : vector<8x32xf32>
    %486 = arith.divf %484, %485 : vector<8x32xf32>
    %487 = arith.mulf %472, %450 : vector<8x32xf32>
    %488 = arith.mulf %463, %477 : vector<8x32xf32>
    %489 = arith.addf %487, %488 : vector<8x32xf32>
    %490 = math.tanh %489 : vector<8x32xf32>
    %491 = arith.mulf %486, %490 : vector<8x32xf32>
    %c2_i32_229 = arith.constant 2 : i32
    %c8_i32_230 = arith.constant 8 : i32
    %492 = arith.muli %c2_i32_229, %c8_i32_230 : i32
    %493 = tpu.assume_multiple %492, 8 : i32
    %494 = arith.index_cast %493 : i32 to index
    %c0_231 = arith.constant 0 : index
    %495 = vector.load %arg12[%494, %c0_231] : memref<64x32xf32, #tpu.memory_space<vmem>>, vector<8x32xf32>
    %cst_232 = arith.constant dense<0.000000e+00> : vector<8x32xf32>
    %496 = tpu.matmul %491, %405, %cst_232 {dimension_numbers = #tpu.dot_dimension_numbers<[1], [0], [0], [1], [0, 0, 1, 1], [], []>} : vector<8x32xf32>, vector<32x32xf32>, vector<8x32xf32> -> vector<8x32xf32>
    %497 = arith.addf %495, %496 : vector<8x32xf32>
    %498 = arith.negf %497 : vector<8x32xf32>
    %499 = math.exp %498 : vector<8x32xf32>
    %cst_233 = arith.constant 1.000000e+00 : f32
    %500 = vector.broadcast %cst_233 : f32 to vector<8x32xf32>
    %501 = arith.addf %500, %499 : vector<8x32xf32>
    %502 = arith.divf %500, %501 : vector<8x32xf32>
    %503 = arith.index_cast %493 : i32 to index
    %c0_234 = arith.constant 0 : index
    %504 = vector.load %arg13[%503, %c0_234] : memref<64x32xf32, #tpu.memory_space<vmem>>, vector<8x32xf32>
    %cst_235 = arith.constant dense<0.000000e+00> : vector<8x32xf32>
    %505 = tpu.matmul %491, %407, %cst_235 {dimension_numbers = #tpu.dot_dimension_numbers<[1], [0], [0], [1], [0, 0, 1, 1], [], []>} : vector<8x32xf32>, vector<32x32xf32>, vector<8x32xf32> -> vector<8x32xf32>
    %506 = arith.addf %504, %505 : vector<8x32xf32>
    %507 = arith.negf %506 : vector<8x32xf32>
    %508 = math.exp %507 : vector<8x32xf32>
    %cst_236 = arith.constant 1.000000e+00 : f32
    %509 = vector.broadcast %cst_236 : f32 to vector<8x32xf32>
    %510 = arith.addf %509, %508 : vector<8x32xf32>
    %511 = arith.divf %509, %510 : vector<8x32xf32>
    %512 = arith.index_cast %493 : i32 to index
    %c0_237 = arith.constant 0 : index
    %513 = vector.load %arg14[%512, %c0_237] : memref<64x32xf32, #tpu.memory_space<vmem>>, vector<8x32xf32>
    %cst_238 = arith.constant dense<0.000000e+00> : vector<8x32xf32>
    %514 = tpu.matmul %491, %409, %cst_238 {dimension_numbers = #tpu.dot_dimension_numbers<[1], [0], [0], [1], [0, 0, 1, 1], [], []>} : vector<8x32xf32>, vector<32x32xf32>, vector<8x32xf32> -> vector<8x32xf32>
    %515 = arith.addf %513, %514 : vector<8x32xf32>
    %516 = math.tanh %515 : vector<8x32xf32>
    %517 = arith.index_cast %493 : i32 to index
    %c0_239 = arith.constant 0 : index
    %518 = vector.load %arg15[%517, %c0_239] : memref<64x32xf32, #tpu.memory_space<vmem>>, vector<8x32xf32>
    %cst_240 = arith.constant dense<0.000000e+00> : vector<8x32xf32>
    %519 = tpu.matmul %491, %411, %cst_240 {dimension_numbers = #tpu.dot_dimension_numbers<[1], [0], [0], [1], [0, 0, 1, 1], [], []>} : vector<8x32xf32>, vector<32x32xf32>, vector<8x32xf32> -> vector<8x32xf32>
    %520 = arith.addf %518, %519 : vector<8x32xf32>
    %521 = arith.negf %520 : vector<8x32xf32>
    %522 = math.exp %521 : vector<8x32xf32>
    %cst_241 = arith.constant 1.000000e+00 : f32
    %523 = vector.broadcast %cst_241 : f32 to vector<8x32xf32>
    %524 = arith.addf %523, %522 : vector<8x32xf32>
    %525 = arith.divf %523, %524 : vector<8x32xf32>
    %526 = arith.mulf %511, %489 : vector<8x32xf32>
    %527 = arith.mulf %502, %516 : vector<8x32xf32>
    %528 = arith.addf %526, %527 : vector<8x32xf32>
    %529 = math.tanh %528 : vector<8x32xf32>
    %530 = arith.mulf %525, %529 : vector<8x32xf32>
    %c3_i32_242 = arith.constant 3 : i32
    %c8_i32_243 = arith.constant 8 : i32
    %531 = arith.muli %c3_i32_242, %c8_i32_243 : i32
    %532 = tpu.assume_multiple %531, 8 : i32
    %533 = arith.index_cast %532 : i32 to index
    %c0_244 = arith.constant 0 : index
    %534 = vector.load %arg12[%533, %c0_244] : memref<64x32xf32, #tpu.memory_space<vmem>>, vector<8x32xf32>
    %cst_245 = arith.constant dense<0.000000e+00> : vector<8x32xf32>
    %535 = tpu.matmul %530, %405, %cst_245 {dimension_numbers = #tpu.dot_dimension_numbers<[1], [0], [0], [1], [0, 0, 1, 1], [], []>} : vector<8x32xf32>, vector<32x32xf32>, vector<8x32xf32> -> vector<8x32xf32>
    %536 = arith.addf %534, %535 : vector<8x32xf32>
    %537 = arith.negf %536 : vector<8x32xf32>
    %538 = math.exp %537 : vector<8x32xf32>
    %cst_246 = arith.constant 1.000000e+00 : f32
    %539 = vector.broadcast %cst_246 : f32 to vector<8x32xf32>
    %540 = arith.addf %539, %538 : vector<8x32xf32>
    %541 = arith.divf %539, %540 : vector<8x32xf32>
    %542 = arith.index_cast %532 : i32 to index
    %c0_247 = arith.constant 0 : index
    %543 = vector.load %arg13[%542, %c0_247] : memref<64x32xf32, #tpu.memory_space<vmem>>, vector<8x32xf32>
    %cst_248 = arith.constant dense<0.000000e+00> : vector<8x32xf32>
    %544 = tpu.matmul %530, %407, %cst_248 {dimension_numbers = #tpu.dot_dimension_numbers<[1], [0], [0], [1], [0, 0, 1, 1], [], []>} : vector<8x32xf32>, vector<32x32xf32>, vector<8x32xf32> -> vector<8x32xf32>
    %545 = arith.addf %543, %544 : vector<8x32xf32>
    %546 = arith.negf %545 : vector<8x32xf32>
    %547 = math.exp %546 : vector<8x32xf32>
    %cst_249 = arith.constant 1.000000e+00 : f32
    %548 = vector.broadcast %cst_249 : f32 to vector<8x32xf32>
    %549 = arith.addf %548, %547 : vector<8x32xf32>
    %550 = arith.divf %548, %549 : vector<8x32xf32>
    %551 = arith.index_cast %532 : i32 to index
    %c0_250 = arith.constant 0 : index
    %552 = vector.load %arg14[%551, %c0_250] : memref<64x32xf32, #tpu.memory_space<vmem>>, vector<8x32xf32>
    %cst_251 = arith.constant dense<0.000000e+00> : vector<8x32xf32>
    %553 = tpu.matmul %530, %409, %cst_251 {dimension_numbers = #tpu.dot_dimension_numbers<[1], [0], [0], [1], [0, 0, 1, 1], [], []>} : vector<8x32xf32>, vector<32x32xf32>, vector<8x32xf32> -> vector<8x32xf32>
    %554 = arith.addf %552, %553 : vector<8x32xf32>
    %555 = math.tanh %554 : vector<8x32xf32>
    %556 = arith.index_cast %532 : i32 to index
    %c0_252 = arith.constant 0 : index
    %557 = vector.load %arg15[%556, %c0_252] : memref<64x32xf32, #tpu.memory_space<vmem>>, vector<8x32xf32>
    %cst_253 = arith.constant dense<0.000000e+00> : vector<8x32xf32>
    %558 = tpu.matmul %530, %411, %cst_253 {dimension_numbers = #tpu.dot_dimension_numbers<[1], [0], [0], [1], [0, 0, 1, 1], [], []>} : vector<8x32xf32>, vector<32x32xf32>, vector<8x32xf32> -> vector<8x32xf32>
    %559 = arith.addf %557, %558 : vector<8x32xf32>
    %560 = arith.negf %559 : vector<8x32xf32>
    %561 = math.exp %560 : vector<8x32xf32>
    %cst_254 = arith.constant 1.000000e+00 : f32
    %562 = vector.broadcast %cst_254 : f32 to vector<8x32xf32>
    %563 = arith.addf %562, %561 : vector<8x32xf32>
    %564 = arith.divf %562, %563 : vector<8x32xf32>
    %565 = arith.mulf %550, %528 : vector<8x32xf32>
    %566 = arith.mulf %541, %555 : vector<8x32xf32>
    %567 = arith.addf %565, %566 : vector<8x32xf32>
    %568 = math.tanh %567 : vector<8x32xf32>
    %569 = arith.mulf %564, %568 : vector<8x32xf32>
    %c4_i32_255 = arith.constant 4 : i32
    %c8_i32_256 = arith.constant 8 : i32
    %570 = arith.muli %c4_i32_255, %c8_i32_256 : i32
    %571 = tpu.assume_multiple %570, 8 : i32
    %572 = arith.index_cast %571 : i32 to index
    %c0_257 = arith.constant 0 : index
    %573 = vector.load %arg12[%572, %c0_257] : memref<64x32xf32, #tpu.memory_space<vmem>>, vector<8x32xf32>
    %cst_258 = arith.constant dense<0.000000e+00> : vector<8x32xf32>
    %574 = tpu.matmul %569, %405, %cst_258 {dimension_numbers = #tpu.dot_dimension_numbers<[1], [0], [0], [1], [0, 0, 1, 1], [], []>} : vector<8x32xf32>, vector<32x32xf32>, vector<8x32xf32> -> vector<8x32xf32>
    %575 = arith.addf %573, %574 : vector<8x32xf32>
    %576 = arith.negf %575 : vector<8x32xf32>
    %577 = math.exp %576 : vector<8x32xf32>
    %cst_259 = arith.constant 1.000000e+00 : f32
    %578 = vector.broadcast %cst_259 : f32 to vector<8x32xf32>
    %579 = arith.addf %578, %577 : vector<8x32xf32>
    %580 = arith.divf %578, %579 : vector<8x32xf32>
    %581 = arith.index_cast %571 : i32 to index
    %c0_260 = arith.constant 0 : index
    %582 = vector.load %arg13[%581, %c0_260] : memref<64x32xf32, #tpu.memory_space<vmem>>, vector<8x32xf32>
    %cst_261 = arith.constant dense<0.000000e+00> : vector<8x32xf32>
    %583 = tpu.matmul %569, %407, %cst_261 {dimension_numbers = #tpu.dot_dimension_numbers<[1], [0], [0], [1], [0, 0, 1, 1], [], []>} : vector<8x32xf32>, vector<32x32xf32>, vector<8x32xf32> -> vector<8x32xf32>
    %584 = arith.addf %582, %583 : vector<8x32xf32>
    %585 = arith.negf %584 : vector<8x32xf32>
    %586 = math.exp %585 : vector<8x32xf32>
    %cst_262 = arith.constant 1.000000e+00 : f32
    %587 = vector.broadcast %cst_262 : f32 to vector<8x32xf32>
    %588 = arith.addf %587, %586 : vector<8x32xf32>
    %589 = arith.divf %587, %588 : vector<8x32xf32>
    %590 = arith.index_cast %571 : i32 to index
    %c0_263 = arith.constant 0 : index
    %591 = vector.load %arg14[%590, %c0_263] : memref<64x32xf32, #tpu.memory_space<vmem>>, vector<8x32xf32>
    %cst_264 = arith.constant dense<0.000000e+00> : vector<8x32xf32>
    %592 = tpu.matmul %569, %409, %cst_264 {dimension_numbers = #tpu.dot_dimension_numbers<[1], [0], [0], [1], [0, 0, 1, 1], [], []>} : vector<8x32xf32>, vector<32x32xf32>, vector<8x32xf32> -> vector<8x32xf32>
    %593 = arith.addf %591, %592 : vector<8x32xf32>
    %594 = math.tanh %593 : vector<8x32xf32>
    %595 = arith.index_cast %571 : i32 to index
    %c0_265 = arith.constant 0 : index
    %596 = vector.load %arg15[%595, %c0_265] : memref<64x32xf32, #tpu.memory_space<vmem>>, vector<8x32xf32>
    %cst_266 = arith.constant dense<0.000000e+00> : vector<8x32xf32>
    %597 = tpu.matmul %569, %411, %cst_266 {dimension_numbers = #tpu.dot_dimension_numbers<[1], [0], [0], [1], [0, 0, 1, 1], [], []>} : vector<8x32xf32>, vector<32x32xf32>, vector<8x32xf32> -> vector<8x32xf32>
    %598 = arith.addf %596, %597 : vector<8x32xf32>
    %599 = arith.negf %598 : vector<8x32xf32>
    %600 = math.exp %599 : vector<8x32xf32>
    %cst_267 = arith.constant 1.000000e+00 : f32
    %601 = vector.broadcast %cst_267 : f32 to vector<8x32xf32>
    %602 = arith.addf %601, %600 : vector<8x32xf32>
    %603 = arith.divf %601, %602 : vector<8x32xf32>
    %604 = arith.mulf %589, %567 : vector<8x32xf32>
    %605 = arith.mulf %580, %594 : vector<8x32xf32>
    %606 = arith.addf %604, %605 : vector<8x32xf32>
    %607 = math.tanh %606 : vector<8x32xf32>
    %608 = arith.mulf %603, %607 : vector<8x32xf32>
    %c5_i32_268 = arith.constant 5 : i32
    %c8_i32_269 = arith.constant 8 : i32
    %609 = arith.muli %c5_i32_268, %c8_i32_269 : i32
    %610 = tpu.assume_multiple %609, 8 : i32
    %611 = arith.index_cast %610 : i32 to index
    %c0_270 = arith.constant 0 : index
    %612 = vector.load %arg12[%611, %c0_270] : memref<64x32xf32, #tpu.memory_space<vmem>>, vector<8x32xf32>
    %cst_271 = arith.constant dense<0.000000e+00> : vector<8x32xf32>
    %613 = tpu.matmul %608, %405, %cst_271 {dimension_numbers = #tpu.dot_dimension_numbers<[1], [0], [0], [1], [0, 0, 1, 1], [], []>} : vector<8x32xf32>, vector<32x32xf32>, vector<8x32xf32> -> vector<8x32xf32>
    %614 = arith.addf %612, %613 : vector<8x32xf32>
    %615 = arith.negf %614 : vector<8x32xf32>
    %616 = math.exp %615 : vector<8x32xf32>
    %cst_272 = arith.constant 1.000000e+00 : f32
    %617 = vector.broadcast %cst_272 : f32 to vector<8x32xf32>
    %618 = arith.addf %617, %616 : vector<8x32xf32>
    %619 = arith.divf %617, %618 : vector<8x32xf32>
    %620 = arith.index_cast %610 : i32 to index
    %c0_273 = arith.constant 0 : index
    %621 = vector.load %arg13[%620, %c0_273] : memref<64x32xf32, #tpu.memory_space<vmem>>, vector<8x32xf32>
    %cst_274 = arith.constant dense<0.000000e+00> : vector<8x32xf32>
    %622 = tpu.matmul %608, %407, %cst_274 {dimension_numbers = #tpu.dot_dimension_numbers<[1], [0], [0], [1], [0, 0, 1, 1], [], []>} : vector<8x32xf32>, vector<32x32xf32>, vector<8x32xf32> -> vector<8x32xf32>
    %623 = arith.addf %621, %622 : vector<8x32xf32>
    %624 = arith.negf %623 : vector<8x32xf32>
    %625 = math.exp %624 : vector<8x32xf32>
    %cst_275 = arith.constant 1.000000e+00 : f32
    %626 = vector.broadcast %cst_275 : f32 to vector<8x32xf32>
    %627 = arith.addf %626, %625 : vector<8x32xf32>
    %628 = arith.divf %626, %627 : vector<8x32xf32>
    %629 = arith.index_cast %610 : i32 to index
    %c0_276 = arith.constant 0 : index
    %630 = vector.load %arg14[%629, %c0_276] : memref<64x32xf32, #tpu.memory_space<vmem>>, vector<8x32xf32>
    %cst_277 = arith.constant dense<0.000000e+00> : vector<8x32xf32>
    %631 = tpu.matmul %608, %409, %cst_277 {dimension_numbers = #tpu.dot_dimension_numbers<[1], [0], [0], [1], [0, 0, 1, 1], [], []>} : vector<8x32xf32>, vector<32x32xf32>, vector<8x32xf32> -> vector<8x32xf32>
    %632 = arith.addf %630, %631 : vector<8x32xf32>
    %633 = math.tanh %632 : vector<8x32xf32>
    %634 = arith.index_cast %610 : i32 to index
    %c0_278 = arith.constant 0 : index
    %635 = vector.load %arg15[%634, %c0_278] : memref<64x32xf32, #tpu.memory_space<vmem>>, vector<8x32xf32>
    %cst_279 = arith.constant dense<0.000000e+00> : vector<8x32xf32>
    %636 = tpu.matmul %608, %411, %cst_279 {dimension_numbers = #tpu.dot_dimension_numbers<[1], [0], [0], [1], [0, 0, 1, 1], [], []>} : vector<8x32xf32>, vector<32x32xf32>, vector<8x32xf32> -> vector<8x32xf32>
    %637 = arith.addf %635, %636 : vector<8x32xf32>
    %638 = arith.negf %637 : vector<8x32xf32>
    %639 = math.exp %638 : vector<8x32xf32>
    %cst_280 = arith.constant 1.000000e+00 : f32
    %640 = vector.broadcast %cst_280 : f32 to vector<8x32xf32>
    %641 = arith.addf %640, %639 : vector<8x32xf32>
    %642 = arith.divf %640, %641 : vector<8x32xf32>
    %643 = arith.mulf %628, %606 : vector<8x32xf32>
    %644 = arith.mulf %619, %633 : vector<8x32xf32>
    %645 = arith.addf %643, %644 : vector<8x32xf32>
    %646 = math.tanh %645 : vector<8x32xf32>
    %647 = arith.mulf %642, %646 : vector<8x32xf32>
    %c6_i32_281 = arith.constant 6 : i32
    %c8_i32_282 = arith.constant 8 : i32
    %648 = arith.muli %c6_i32_281, %c8_i32_282 : i32
    %649 = tpu.assume_multiple %648, 8 : i32
    %650 = arith.index_cast %649 : i32 to index
    %c0_283 = arith.constant 0 : index
    %651 = vector.load %arg12[%650, %c0_283] : memref<64x32xf32, #tpu.memory_space<vmem>>, vector<8x32xf32>
    %cst_284 = arith.constant dense<0.000000e+00> : vector<8x32xf32>
    %652 = tpu.matmul %647, %405, %cst_284 {dimension_numbers = #tpu.dot_dimension_numbers<[1], [0], [0], [1], [0, 0, 1, 1], [], []>} : vector<8x32xf32>, vector<32x32xf32>, vector<8x32xf32> -> vector<8x32xf32>
    %653 = arith.addf %651, %652 : vector<8x32xf32>
    %654 = arith.negf %653 : vector<8x32xf32>
    %655 = math.exp %654 : vector<8x32xf32>
    %cst_285 = arith.constant 1.000000e+00 : f32
    %656 = vector.broadcast %cst_285 : f32 to vector<8x32xf32>
    %657 = arith.addf %656, %655 : vector<8x32xf32>
    %658 = arith.divf %656, %657 : vector<8x32xf32>
    %659 = arith.index_cast %649 : i32 to index
    %c0_286 = arith.constant 0 : index
    %660 = vector.load %arg13[%659, %c0_286] : memref<64x32xf32, #tpu.memory_space<vmem>>, vector<8x32xf32>
    %cst_287 = arith.constant dense<0.000000e+00> : vector<8x32xf32>
    %661 = tpu.matmul %647, %407, %cst_287 {dimension_numbers = #tpu.dot_dimension_numbers<[1], [0], [0], [1], [0, 0, 1, 1], [], []>} : vector<8x32xf32>, vector<32x32xf32>, vector<8x32xf32> -> vector<8x32xf32>
    %662 = arith.addf %660, %661 : vector<8x32xf32>
    %663 = arith.negf %662 : vector<8x32xf32>
    %664 = math.exp %663 : vector<8x32xf32>
    %cst_288 = arith.constant 1.000000e+00 : f32
    %665 = vector.broadcast %cst_288 : f32 to vector<8x32xf32>
    %666 = arith.addf %665, %664 : vector<8x32xf32>
    %667 = arith.divf %665, %666 : vector<8x32xf32>
    %668 = arith.index_cast %649 : i32 to index
    %c0_289 = arith.constant 0 : index
    %669 = vector.load %arg14[%668, %c0_289] : memref<64x32xf32, #tpu.memory_space<vmem>>, vector<8x32xf32>
    %cst_290 = arith.constant dense<0.000000e+00> : vector<8x32xf32>
    %670 = tpu.matmul %647, %409, %cst_290 {dimension_numbers = #tpu.dot_dimension_numbers<[1], [0], [0], [1], [0, 0, 1, 1], [], []>} : vector<8x32xf32>, vector<32x32xf32>, vector<8x32xf32> -> vector<8x32xf32>
    %671 = arith.addf %669, %670 : vector<8x32xf32>
    %672 = math.tanh %671 : vector<8x32xf32>
    %673 = arith.index_cast %649 : i32 to index
    %c0_291 = arith.constant 0 : index
    %674 = vector.load %arg15[%673, %c0_291] : memref<64x32xf32, #tpu.memory_space<vmem>>, vector<8x32xf32>
    %cst_292 = arith.constant dense<0.000000e+00> : vector<8x32xf32>
    %675 = tpu.matmul %647, %411, %cst_292 {dimension_numbers = #tpu.dot_dimension_numbers<[1], [0], [0], [1], [0, 0, 1, 1], [], []>} : vector<8x32xf32>, vector<32x32xf32>, vector<8x32xf32> -> vector<8x32xf32>
    %676 = arith.addf %674, %675 : vector<8x32xf32>
    %677 = arith.negf %676 : vector<8x32xf32>
    %678 = math.exp %677 : vector<8x32xf32>
    %cst_293 = arith.constant 1.000000e+00 : f32
    %679 = vector.broadcast %cst_293 : f32 to vector<8x32xf32>
    %680 = arith.addf %679, %678 : vector<8x32xf32>
    %681 = arith.divf %679, %680 : vector<8x32xf32>
    %682 = arith.mulf %667, %645 : vector<8x32xf32>
    %683 = arith.mulf %658, %672 : vector<8x32xf32>
    %684 = arith.addf %682, %683 : vector<8x32xf32>
    %685 = math.tanh %684 : vector<8x32xf32>
    %686 = arith.mulf %681, %685 : vector<8x32xf32>
    %c7_i32_294 = arith.constant 7 : i32
    %c8_i32_295 = arith.constant 8 : i32
    %687 = arith.muli %c7_i32_294, %c8_i32_295 : i32
    %688 = tpu.assume_multiple %687, 8 : i32
    %689 = arith.index_cast %688 : i32 to index
    %c0_296 = arith.constant 0 : index
    %690 = vector.load %arg12[%689, %c0_296] : memref<64x32xf32, #tpu.memory_space<vmem>>, vector<8x32xf32>
    %cst_297 = arith.constant dense<0.000000e+00> : vector<8x32xf32>
    %691 = tpu.matmul %686, %405, %cst_297 {dimension_numbers = #tpu.dot_dimension_numbers<[1], [0], [0], [1], [0, 0, 1, 1], [], []>} : vector<8x32xf32>, vector<32x32xf32>, vector<8x32xf32> -> vector<8x32xf32>
    %692 = arith.addf %690, %691 : vector<8x32xf32>
    %693 = arith.negf %692 : vector<8x32xf32>
    %694 = math.exp %693 : vector<8x32xf32>
    %cst_298 = arith.constant 1.000000e+00 : f32
    %695 = vector.broadcast %cst_298 : f32 to vector<8x32xf32>
    %696 = arith.addf %695, %694 : vector<8x32xf32>
    %697 = arith.divf %695, %696 : vector<8x32xf32>
    %698 = arith.index_cast %688 : i32 to index
    %c0_299 = arith.constant 0 : index
    %699 = vector.load %arg13[%698, %c0_299] : memref<64x32xf32, #tpu.memory_space<vmem>>, vector<8x32xf32>
    %cst_300 = arith.constant dense<0.000000e+00> : vector<8x32xf32>
    %700 = tpu.matmul %686, %407, %cst_300 {dimension_numbers = #tpu.dot_dimension_numbers<[1], [0], [0], [1], [0, 0, 1, 1], [], []>} : vector<8x32xf32>, vector<32x32xf32>, vector<8x32xf32> -> vector<8x32xf32>
    %701 = arith.addf %699, %700 : vector<8x32xf32>
    %702 = arith.negf %701 : vector<8x32xf32>
    %703 = math.exp %702 : vector<8x32xf32>
    %cst_301 = arith.constant 1.000000e+00 : f32
    %704 = vector.broadcast %cst_301 : f32 to vector<8x32xf32>
    %705 = arith.addf %704, %703 : vector<8x32xf32>
    %706 = arith.divf %704, %705 : vector<8x32xf32>
    %707 = arith.index_cast %688 : i32 to index
    %c0_302 = arith.constant 0 : index
    %708 = vector.load %arg14[%707, %c0_302] : memref<64x32xf32, #tpu.memory_space<vmem>>, vector<8x32xf32>
    %cst_303 = arith.constant dense<0.000000e+00> : vector<8x32xf32>
    %709 = tpu.matmul %686, %409, %cst_303 {dimension_numbers = #tpu.dot_dimension_numbers<[1], [0], [0], [1], [0, 0, 1, 1], [], []>} : vector<8x32xf32>, vector<32x32xf32>, vector<8x32xf32> -> vector<8x32xf32>
    %710 = arith.addf %708, %709 : vector<8x32xf32>
    %711 = math.tanh %710 : vector<8x32xf32>
    %712 = arith.index_cast %688 : i32 to index
    %c0_304 = arith.constant 0 : index
    %713 = vector.load %arg15[%712, %c0_304] : memref<64x32xf32, #tpu.memory_space<vmem>>, vector<8x32xf32>
    %cst_305 = arith.constant dense<0.000000e+00> : vector<8x32xf32>
    %714 = tpu.matmul %686, %411, %cst_305 {dimension_numbers = #tpu.dot_dimension_numbers<[1], [0], [0], [1], [0, 0, 1, 1], [], []>} : vector<8x32xf32>, vector<32x32xf32>, vector<8x32xf32> -> vector<8x32xf32>
    %715 = arith.addf %713, %714 : vector<8x32xf32>
    %716 = arith.negf %715 : vector<8x32xf32>
    %717 = math.exp %716 : vector<8x32xf32>
    %cst_306 = arith.constant 1.000000e+00 : f32
    %718 = vector.broadcast %cst_306 : f32 to vector<8x32xf32>
    %719 = arith.addf %718, %717 : vector<8x32xf32>
    %720 = arith.divf %718, %719 : vector<8x32xf32>
    %721 = arith.mulf %706, %684 : vector<8x32xf32>
    %722 = arith.mulf %697, %711 : vector<8x32xf32>
    %723 = arith.addf %721, %722 : vector<8x32xf32>
    %724 = math.tanh %723 : vector<8x32xf32>
    %725 = arith.mulf %720, %724 : vector<8x32xf32>
    %c8_i32_307 = arith.constant 8 : i32
    %c0_308 = arith.constant 0 : index
    %c0_309 = arith.constant 0 : index
    %726 = vector.load %arg7[%c0_308, %c0_309] : memref<32x8xf32, #tpu.memory_space<vmem>>, vector<32x8xf32>
    %cst_310 = arith.constant dense<0.000000e+00> : vector<8x8xf32>
    %727 = tpu.matmul %725, %726, %cst_310 {dimension_numbers = #tpu.dot_dimension_numbers<[1], [0], [0], [1], [0, 0, 1, 1], [], []>} : vector<8x32xf32>, vector<32x8xf32>, vector<8x8xf32> -> vector<8x8xf32>
    %c0_311 = arith.constant 0 : index
    %c0_312 = arith.constant 0 : index
    %728 = vector.load %arg8[%c0_311, %c0_312] : memref<1x8xf32, #tpu.memory_space<vmem>>, vector<1x8xf32>
    %729 = vector.broadcast %728 : vector<1x8xf32> to vector<8x8xf32>
    %730 = arith.addf %727, %729 : vector<8x8xf32>
    %731 = tpu.iota {dimensions = array<i32: 0>} : vector<8x8xi32>
    %c2_i32_313 = arith.constant 2 : i32
    %732 = vector.broadcast %c2_i32_313 : i32 to vector<8x8xi32>
    %733 = arith.cmpi slt, %731, %732 : vector<8x8xi32>
    %734 = arith.extui %733 : vector<8x8xi1> to vector<8x8xi32>
    %735 = arith.sitofp %734 : vector<8x8xi32> to vector<8x8xf32>
    %736 = arith.mulf %730, %735 : vector<8x8xf32>
    %cst_314 = arith.constant dense<0.000000e+00> : vector<8xf32>
    %737 = vector.multi_reduction <add>, %736, %cst_314 [0] : vector<8x8xf32> to vector<8xf32>
    %738 = vector.shape_cast %737 : vector<8xf32> to vector<1x8xf32>
    %cst_315 = arith.constant 5.000000e-01 : f32
    %739 = vector.broadcast %cst_315 : f32 to vector<1x8xf32>
    %740 = arith.mulf %738, %739 : vector<1x8xf32>
    %741 = vector.broadcast %740 : vector<1x8xf32> to vector<8x8xf32>
    %742 = arith.subf %730, %741 : vector<8x8xf32>
    %743 = arith.mulf %742, %735 : vector<8x8xf32>
    %744 = arith.mulf %743, %743 : vector<8x8xf32>
    %cst_316 = arith.constant dense<0.000000e+00> : vector<8xf32>
    %745 = vector.multi_reduction <add>, %744, %cst_316 [0] : vector<8x8xf32> to vector<8xf32>
    %746 = vector.shape_cast %745 : vector<8xf32> to vector<1x8xf32>
    %cst_317 = arith.constant 5.000000e-01 : f32
    %747 = vector.broadcast %cst_317 : f32 to vector<1x8xf32>
    %748 = arith.mulf %746, %747 : vector<1x8xf32>
    %c0_318 = arith.constant 0 : index
    %c0_319 = arith.constant 0 : index
    %749 = vector.load %arg9[%c0_318, %c0_319] : memref<1x8xf32, #tpu.memory_space<vmem>>, vector<1x8xf32>
    %750 = vector.broadcast %740 : vector<1x8xf32> to vector<8x8xf32>
    %751 = arith.subf %730, %750 : vector<8x8xf32>
    %752 = vector.broadcast %749 : vector<1x8xf32> to vector<8x8xf32>
    %753 = arith.mulf %752, %751 : vector<8x8xf32>
    %cst_320 = arith.constant 9.99999974E-6 : f32
    %754 = vector.broadcast %cst_320 : f32 to vector<1x8xf32>
    %755 = arith.addf %748, %754 : vector<1x8xf32>
    %756 = math.rsqrt %755 : vector<1x8xf32>
    %757 = vector.broadcast %756 : vector<1x8xf32> to vector<8x8xf32>
    %758 = arith.mulf %753, %757 : vector<8x8xf32>
    %c0_321 = arith.constant 0 : index
    %c0_322 = arith.constant 0 : index
    %759 = vector.load %arg10[%c0_321, %c0_322] : memref<1x8xf32, #tpu.memory_space<vmem>>, vector<1x8xf32>
    %760 = vector.broadcast %759 : vector<1x8xf32> to vector<8x8xf32>
    %761 = arith.addf %758, %760 : vector<8x8xf32>
    %c0_323 = arith.constant 0 : index
    %c0_324 = arith.constant 0 : index
    %762 = vector.load %arg11[%c0_323, %c0_324] : memref<8x8xf32, #tpu.memory_space<vmem>>, vector<8x8xf32>
    tpu.vector_store %arg11[%c0_323, %c0_324], %761 {strides = array<i32>} : memref<8x8xf32, #tpu.memory_space<vmem>>, vector<8x8xf32>,
    return
  }
}

</mosaic_0001>

<llo_original>
// kernel: tpu_custom_call.1
$region0: #{tpu_custom_call.1}
  #allocation0 [shape = 'u32[]', space=smem, size = 0x4, offset = 0x4, fixed_abs, tag = 'smem constant byte address 0x4 - core index']
  #allocation1 [shape = 'u32[144,128]{1,0:T(1,128)}', space=vmem, size = 0x12000, scoped, tag = 'internal scratch']
  #allocation2 [shape = 'f32[64,32]{1,0:T(8,128)}', space=vmem, size = 0x8000, scoped, tag = 'scratch operand']
  #allocation3 [shape = 'f32[64,32]{1,0:T(8,128)}', space=vmem, size = 0x8000, scoped, tag = 'scratch operand']
  #allocation4 [shape = 'f32[64,32]{1,0:T(8,128)}', space=vmem, size = 0x8000, scoped, tag = 'scratch operand']
  #allocation5 [shape = 'f32[64,32]{1,0:T(8,128)}', space=vmem, size = 0x8000, scoped, tag = 'scratch operand']
  #allocation6 [shape = 'f32[64,32]{1,0:T(8,128)}', space=vmem, size = 0x8000, scoped, tag = 'scratch operand']
  %s0 = inlined_call_operand.vmem [shape: f32[64,16], index: 0, kind: input, shape index: {}]
  %s1 = inlined_call_operand.hbm [shape: f32[4,16,32], index: 1, kind: input, shape index: {}]
  %s2 = inlined_call_operand.hbm [shape: f32[4,32,32], index: 2, kind: input, shape index: {}]
  %s3 = inlined_call_operand.hbm [shape: f32[4,1,32], index: 3, kind: input, shape index: {}]
  %s4 = inlined_call_operand.vmem [shape: f32[4,32,32], index: 4, kind: input, shape index: {}]
  %s5 = inlined_call_operand.hbm [shape: f32[4,32,32], index: 5, kind: input, shape index: {}]
  %s6 = inlined_call_operand.vmem [shape: f32[4,1,32], index: 6, kind: input, shape index: {}]
  %s7 = inlined_call_operand.vmem [shape: f32[32,8], index: 7, kind: input, shape index: {}]
  %s8 = inlined_call_operand.vmem [shape: f32[1,8], index: 8, kind: input, shape index: {}]
  %s9 = inlined_call_operand.vmem [shape: f32[1,8], index: 9, kind: input, shape index: {}]
  %s10 = inlined_call_operand.vmem [shape: f32[1,8], index: 10, kind: input, shape index: {}]
  %s11 = inlined_call_operand.hbm [shape: f32[8,8], index: 11, kind: output, shape index: {}]
  %s12 = sld [smem:[#allocation0]]
  $region70: #{tpu_custom_call.1} parent=0
    _
  %s14 = ssub.s32 1, %s12
  %s15 = scalar_select 0, %s14, %s12
  $region1: #{tpu_custom_call.1} parent=0
    #allocation7 [shape = 'u8[32768]{0}', space=vmem, size = 0x8000, scoped, tag = 'input window, operand 1, single buffered']
    #allocation8 [shape = 's32[1]{0}', space=sflag, size = 0x4, scoped, tag = 'scoped memory for tpu_custom_call.1']
    #allocation9 [shape = 's32[1]{0}', space=sflag, size = 0x4, scoped, tag = 'scoped memory for tpu_custom_call.1']
    #allocation10 [shape = 'u8[65536]{0}', space=vmem, size = 0x10000, scoped, tag = 'input window, operand 2, single buffered']
    #allocation11 [shape = 's32[1]{0}', space=sflag, size = 0x4, scoped, tag = 'scoped memory for tpu_custom_call.1']
    #allocation12 [shape = 'u8[2048]{0}', space=vmem, size = 0x800, scoped, tag = 'input window, operand 3, single buffered']
    #allocation13 [shape = 'u8[65536]{0}', space=vmem, size = 0x10000, scoped, tag = 'input window, operand 5, single buffered']
    #allocation14 [shape = 's32[1]{0}', space=sflag, size = 0x4, scoped, tag = 'scoped memory for tpu_custom_call.1']
    #allocation15 [shape = 'u8[4096]{0}', space=vmem, size = 0x1000, scoped, tag = 'output window, operand 0, single buffered']
    %16 = vsyncpa [#allocation8], 0
    %17 = vsyncpa [#allocation11], 0
    %18 = vsyncpa [#allocation14], 0
    %19 = vsyncpa [#allocation9], 0
    // Predicated region
    $region2: #{tpu_custom_call.1} parent=1 // pred_check
      _
    $region3: #{tpu_custom_call.1} parent=1 // pred_check_branch
      %21 = sbr.rel (0) target = $region5
    $region4: #{tpu_custom_call.1} parent=1 // pred_region
      _
    $region5: #{tpu_custom_call.1} parent=1 // pred_fallthru
      _
    // Predicated region
    $region6: #{tpu_custom_call.1} parent=1 // pred_check
      _
    $region7: #{tpu_custom_call.1} parent=1 // pred_check_branch
      %23 = sbr.rel (0) target = $region9
    $region8: #{tpu_custom_call.1} parent=1 // pred_region
      %s25 = ssub.s32 1024, 1024
      %26 = vsyncadd [#allocation8], %s25
      %s27 = sshll.u32 [#allocation7], 4
      %s28 = int_to_ptr.vmem [resolvable:$true] %s27
      %33 = dma.hbm_to_vmem [thread:$0]  %s1, 1024, %s28, [#allocation8], 128, 128, 8
    $region9: #{tpu_custom_call.1} parent=1 // pred_fallthru
      _
    // Predicated region
    $region10: #{tpu_custom_call.1} parent=1 // pred_check
      _
    $region11: #{tpu_custom_call.1} parent=1 // pred_check_branch
      %35 = sbr.rel (0) target = $region13
    $region12: #{tpu_custom_call.1} parent=1 // pred_region
      %s37 = ssub.s32 2048, 2048
      %38 = vsyncadd [#allocation11], %s37
      %s39 = sshll.u32 [#allocation10], 4
      %s40 = int_to_ptr.vmem [resolvable:$true] %s39
      %45 = dma.hbm_to_vmem [thread:$0]  %s2, 2048, %s40, [#allocation11], 128, 128, 8
    $region13: #{tpu_custom_call.1} parent=1 // pred_fallthru
      _
    // Predicated region
    $region14: #{tpu_custom_call.1} parent=1 // pred_check
      _
    $region15: #{tpu_custom_call.1} parent=1 // pred_check_branch
      %47 = sbr.rel (0) target = $region17
    $region16: #{tpu_custom_call.1} parent=1 // pred_region
      %s49 = ssub.s32 64, 64
      %50 = vsyncadd [#allocation11], %s49
      %s51 = sshll.u32 [#allocation12], 4
      %s52 = int_to_ptr.vmem [resolvable:$true] %s51
      %57 = dma.hbm_to_vmem [thread:$0]  %s3, 64, %s52, [#allocation11], 16, 16, 1
    $region17: #{tpu_custom_call.1} parent=1 // pred_fallthru
      _
    // Predicated region
    $region18: #{tpu_custom_call.1} parent=1 // pred_check
      _
    $region19: #{tpu_custom_call.1} parent=1 // pred_check_branch
      %59 = sbr.rel (0) target = $region21
    $region20: #{tpu_custom_call.1} parent=1 // pred_region
      _
    $region21: #{tpu_custom_call.1} parent=1 // pred_fallthru
      _
    // Predicated region
    $region22: #{tpu_custom_call.1} parent=1 // pred_check
      _
    $region23: #{tpu_custom_call.1} parent=1 // pred_check_branch
      %61 = sbr.rel (0) target = $region25
    $region24: #{tpu_custom_call.1} parent=1 // pred_region
      %s63 = ssub.s32 2048, 2048
      %64 = vsyncadd [#allocation14], %s63
      %s65 = sshll.u32 [#allocation13], 4
      %s66 = int_to_ptr.vmem [resolvable:$true] %s65
      %71 = dma.hbm_to_vmem [thread:$0]  %s5, 2048, %s66, [#allocation14], 128, 128, 8
    $region25: #{tpu_custom_call.1} parent=1 // pred_fallthru
      _
    // Predicated region
    $region26: #{tpu_custom_call.1} parent=1 // pred_check
      _
    $region27: #{tpu_custom_call.1} parent=1 // pred_check_branch
      %73 = sbr.rel (0) target = $region29
    $region28: #{tpu_custom_call.1} parent=1 // pred_region
      _
    $region29: #{tpu_custom_call.1} parent=1 // pred_fallthru
      _
    // Predicated region
    $region30: #{tpu_custom_call.1} parent=1 // pred_check
      _
    $region31: #{tpu_custom_call.1} parent=1 // pred_check_branch
      %75 = sbr.rel (0) target = $region33
    $region32: #{tpu_custom_call.1} parent=1 // pred_region
      _
    $region33: #{tpu_custom_call.1} parent=1 // pred_fallthru
      _
    // Predicated region
    $region34: #{tpu_custom_call.1} parent=1 // pred_check
      _
    $region35: #{tpu_custom_call.1} parent=1 // pred_check_branch
      %77 = sbr.rel (0) target = $region37
    $region36: #{tpu_custom_call.1} parent=1 // pred_region
      _
    $region37: #{tpu_custom_call.1} parent=1 // pred_fallthru
      _
    // Predicated region
    $region38: #{tpu_custom_call.1} parent=1 // pred_check
      _
    $region39: #{tpu_custom_call.1} parent=1 // pred_check_branch
      %79 = sbr.rel (0) target = $region41
    $region40: #{tpu_custom_call.1} parent=1 // pred_region
      _
    $region41: #{tpu_custom_call.1} parent=1 // pred_fallthru
      _
    // Predicated region
    $region42: #{tpu_custom_call.1} parent=1 // pred_check
      _
    $region43: #{tpu_custom_call.1} parent=1 // pred_check_branch
      %81 = sbr.rel (0) target = $region45
    $region44: #{tpu_custom_call.1} parent=1 // pred_region
      _
    $region45: #{tpu_custom_call.1} parent=1 // pred_fallthru
      _
    // Predicated region
    $region46: #{tpu_custom_call.1} parent=1 // pred_check
      _
    $region47: #{tpu_custom_call.1} parent=1 // pred_check_branch
      %83 = sbr.rel (0) target = $region49
    $region48: #{tpu_custom_call.1} parent=1 // pred_region
      %84 = dma.done [#allocation8], 1024
    $region49: #{tpu_custom_call.1} parent=1 // pred_fallthru
      _
    // Predicated region
    $region50: #{tpu_custom_call.1} parent=1 // pred_check
      _
    $region51: #{tpu_custom_call.1} parent=1 // pred_check_branch
      %86 = sbr.rel (0) target = $region53
    $region52: #{tpu_custom_call.1} parent=1 // pred_region
      %87 = dma.done [#allocation11], 2048
    $region53: #{tpu_custom_call.1} parent=1 // pred_fallthru
      _
    // Predicated region
    $region54: #{tpu_custom_call.1} parent=1 // pred_check
      _
    $region55: #{tpu_custom_call.1} parent=1 // pred_check_branch
      %89 = sbr.rel (0) target = $region57
    $region56: #{tpu_custom_call.1} parent=1 // pred_region
      %90 = dma.done [#allocation11], 64
    $region57: #{tpu_custom_call.1} parent=1 // pred_fallthru
      _
    // Predicated region
    $region58: #{tpu_custom_call.1} parent=1 // pred_check
      _
    $region59: #{tpu_custom_call.1} parent=1 // pred_check_branch
      %92 = sbr.rel (0) target = $region61
    $region60: #{tpu_custom_call.1} parent=1 // pred_region
      %93 = dma.done [#allocation14], 2048
    $region61: #{tpu_custom_call.1} parent=1 // pred_fallthru
      _
    %v94 = vld [vmem:[%s0] sm:$0xff]
    %v95 = vld [vmem:[%s0 + $0x8] sm:$0xff]
    %v96 = vld [vmem:[%s0 + $0x10] sm:$0xff]
    %v97 = vld [vmem:[%s0 + $0x18] sm:$0xff]
    %v98 = vld [vmem:[%s0 + $0x20] sm:$0xff]
    %v99 = vld [vmem:[%s0 + $0x28] sm:$0xff]
    %v100 = vld [vmem:[%s0 + $0x30] sm:$0xff]
    %v101 = vld [vmem:[%s0 + $0x38] sm:$0xff]
    %v102 = vld [vmem:[#allocation7] sm:$0xff]
    %v103 = vld [vmem:[#allocation7 + $0x8] sm:$0xff]
    %v104 = vld [vmem:[#allocation12] sm:$0x1]
    %v106 = vlaneseq
    %v107 = vshrl.u32 %v106, 7
    %v108 = vsub.s32 0, %v107
    %v109 = vrot.slane %v104, %v108
    %vm111 = vcmask 130048
    %v113 = vsel %vm111, %v94, 0
    %v116 = vsel %vm111, %v95, 0
    %v119 = vsel %vm111, %v96, 0
    %v122 = vsel %vm111, %v97, 0
    %v125 = vsel %vm111, %v98, 0
    %v128 = vsel %vm111, %v99, 0
    %v131 = vsel %vm111, %v100, 0
    %v134 = vsel %vm111, %v101, 0
    %136 = vmatprep.subr.mxu0 0.0
    %137 = vmatpush1.msra.mxu0 %v102
    %138 = vmatprep.subr.mxu0 0.0
    %139 = vmatpush1.msra.mxu0 %v103
    %140 = vmatprep.subr.mxu0 0.0
    %141 = vmatpush1.msra.mxu0 0.0
    %142 = vmatprep.subr.mxu0 0.0
    %143 = vmatpush1.msra.mxu0 0.0
    %144 = vmatprep.subr.mxu0 0.0
    %145 = vmatpush1.msra.mxu0 0.0
    %146 = vmatprep.subr.mxu0 0.0
    %147 = vmatpush1.msra.mxu0 0.0
    %148 = vmatprep.subr.mxu0 0.0
    %149 = vmatpush1.msra.mxu0 0.0
    %150 = vmatprep.subr.mxu0 0.0
    %151 = vmatpush1.msra.mxu0 0.0
    %152 = vmatprep.subr.mxu0 0.0
    %153 = vmatpush1.msra.mxu0 0.0
    %154 = vmatprep.subr.mxu0 0.0
    %155 = vmatpush1.msra.mxu0 0.0
    %156 = vmatprep.subr.mxu0 0.0
    %157 = vmatpush1.msra.mxu0 0.0
    %158 = vmatprep.subr.mxu0 0.0
    %159 = vmatpush1.msra.mxu0 0.0
    %160 = vmatprep.subr.mxu0 0.0
    %161 = vmatpush1.msra.mxu0 0.0
    %162 = vmatprep.subr.mxu0 0.0
    %163 = vmatpush1.msra.mxu0 0.0
    %164 = vmatprep.subr.mxu0 0.0
    %165 = vmatpush1.msra.mxu0 0.0
    %166 = vmatprep.subr.mxu0 0.0
    %167 = vmatpush1.msra.mxu0 0.0
    %168 = vmatprep.subr.mxu0 0.0
    %169 = vmatpush1.msra.mxu0 0.0
    %170 = vmatprep.subr.mxu0 0.0
    %171 = vmatpush1.msra.mxu0 0.0
    %172 = vmatprep.subr.mxu0 0.0
    %173 = vmatpush1.msra.mxu0 0.0
    %174 = vmatprep.subr.mxu0 0.0
    %175 = vmatpush1.msra.mxu0 0.0
    %176 = vmatprep.subr.mxu0 0.0
    %177 = vmatpush1.msra.mxu0 0.0
    %178 = vmatprep.subr.mxu0 0.0
    %179 = vmatpush1.msra.mxu0 0.0
    %180 = vmatprep.subr.mxu0 0.0
    %181 = vmatpush1.msra.mxu0 0.0
    %182 = vmatprep.subr.mxu0 0.0
    %183 = vmatpush1.msra.mxu0 0.0
    %184 = vmatprep.subr.mxu0 0.0
    %185 = vmatpush1.msra.mxu0 0.0
    %186 = vmatprep.subr.mxu0 0.0
    %187 = vmatpush1.msra.mxu0 0.0
    %188 = vmatprep.subr.mxu0 0.0
    %189 = vmatpush1.msra.mxu0 0.0
    %190 = vmatprep.subr.mxu0 0.0
    %191 = vmatpush1.msra.mxu0 0.0
    %192 = vmatprep.subr.mxu0 0.0
    %193 = vmatpush1.msra.mxu0 0.0
    %194 = vmatprep.subr.mxu0 0.0
    %195 = vmatpush1.msra.mxu0 0.0
    %196 = vmatprep.subr.mxu0 0.0
    %197 = vmatpush1.msra.mxu0 0.0
    %198 = vmatprep.subr.mxu0 0.0
    %199 = vmatpush1.msra.mxu0 0.0
    %200 = vmatprep.mubr.f32.mxu0 0.0
    %201 = vmatmul.mubr.f32.gmra.mrb[0].mxu0 %v113
    %v202 = vpop.f32.mrb[0].mxu0
    %v203 = vadd.f32 %v109, %v202
    %v204 = vpop.f32.mrb[0].mxu0
    %205 = vmatprep.mubr.f32.mxu0 0.0
    %206 = vmatmul.mubr.f32.gmra.mrb[0].mxu0 %v116
    %v207 = vpop.f32.mrb[0].mxu0
    %v208 = vadd.f32 %v109, %v207
    %v209 = vpop.f32.mrb[0].mxu0
    %210 = vmatprep.mubr.f32.mxu0 0.0
    %211 = vmatmul.mubr.f32.gmra.mrb[0].mxu0 %v119
    %v212 = vpop.f32.mrb[0].mxu0
    %v213 = vadd.f32 %v109, %v212
    %v214 = vpop.f32.mrb[0].mxu0
    %215 = vmatprep.mubr.f32.mxu0 0.0
    %216 = vmatmul.mubr.f32.gmra.mrb[0].mxu0 %v122
    %v217 = vpop.f32.mrb[0].mxu0
    %v218 = vadd.f32 %v109, %v217
    %v219 = vpop.f32.mrb[0].mxu0
    %220 = vmatprep.mubr.f32.mxu0 0.0
    %221 = vmatmul.mubr.f32.gmra.mrb[0].mxu0 %v125
    %v222 = vpop.f32.mrb[0].mxu0
    %v223 = vadd.f32 %v109, %v222
    %v224 = vpop.f32.mrb[0].mxu0
    %225 = vmatprep.mubr.f32.mxu0 0.0
    %226 = vmatmul.mubr.f32.gmra.mrb[0].mxu0 %v128
    %v227 = vpop.f32.mrb[0].mxu0
    %v228 = vadd.f32 %v109, %v227
    %v229 = vpop.f32.mrb[0].mxu0
    %230 = vmatprep.mubr.f32.mxu0 0.0
    %231 = vmatmul.mubr.f32.gmra.mrb[0].mxu0 %v131
    %v232 = vpop.f32.mrb[0].mxu0
    %v233 = vadd.f32 %v109, %v232
    %v234 = vpop.f32.mrb[0].mxu0
    %235 = vmatprep.mubr.f32.mxu0 0.0
    %236 = vmatmul.mubr.f32.gmra.mrb[0].mxu0 %v134
    %v237 = vpop.f32.mrb[0].mxu0
    %v238 = vadd.f32 %v109, %v237
    %v239 = vpop.f32.mrb[0].mxu0
    %240 = vdwg.mxu0
    %vm241 = vcmask 261120
    %242 = vst.msk [vmem:[#allocation2] sm:$0xff] %vm241, %v203
    %243 = vst.msk [vmem:[#allocation2 + $0x8] sm:$0xff] %vm241, %v208
    %244 = vst.msk [vmem:[#allocation2 + $0x10] sm:$0xff] %vm241, %v213
    %245 = vst.msk [vmem:[#allocation2 + $0x18] sm:$0xff] %vm241, %v218
    %246 = vst.msk [vmem:[#allocation2 + $0x20] sm:$0xff] %vm241, %v223
    %247 = vst.msk [vmem:[#allocation2 + $0x28] sm:$0xff] %vm241, %v228
    %248 = vst.msk [vmem:[#allocation2 + $0x30] sm:$0xff] %vm241, %v233
    %249 = vst.msk [vmem:[#allocation2 + $0x38] sm:$0xff] %vm241, %v238
    %s250 = scalar_lea.vmem [#allocation7], 16
    %v251 = vld [vmem:[%s250] sm:$0xff]
    %v252 = vld [vmem:[%s250 + $0x8] sm:$0xff]
    %s253 = scalar_lea.vmem [#allocation12], 1
    %v254 = vld [vmem:[%s253] sm:$0x1]
    %v256 = vlaneseq
    %v257 = vshrl.u32 %v256, 7
    %v258 = vsub.s32 0, %v257
    %v259 = vrot.slane %v254, %v258
    %261 = vmatprep.subr.mxu0 0.0
    %262 = vmatpush1.msra.mxu0 %v251
    %263 = vmatprep.subr.mxu0 0.0
    %264 = vmatpush1.msra.mxu0 %v252
    %265 = vmatprep.subr.mxu0 0.0
    %266 = vmatpush1.msra.mxu0 0.0
    %267 = vmatprep.subr.mxu0 0.0
    %268 = vmatpush1.msra.mxu0 0.0
    %269 = vmatprep.subr.mxu0 0.0
    %270 = vmatpush1.msra.mxu0 0.0
    %271 = vmatprep.subr.mxu0 0.0
    %272 = vmatpush1.msra.mxu0 0.0
    %273 = vmatprep.subr.mxu0 0.0
    %274 = vmatpush1.msra.mxu0 0.0
    %275 = vmatprep.subr.mxu0 0.0
    %276 = vmatpush1.msra.mxu0 0.0
    %277 = vmatprep.subr.mxu0 0.0
    %278 = vmatpush1.msra.mxu0 0.0
    %279 = vmatprep.subr.mxu0 0.0
    %280 = vmatpush1.msra.mxu0 0.0
    %281 = vmatprep.subr.mxu0 0.0
    %282 = vmatpush1.msra.mxu0 0.0
    %283 = vmatprep.subr.mxu0 0.0
    %284 = vmatpush1.msra.mxu0 0.0
    %285 = vmatprep.subr.mxu0 0.0
    %286 = vmatpush1.msra.mxu0 0.0
    %287 = vmatprep.subr.mxu0 0.0
    %288 = vmatpush1.msra.mxu0 0.0
    %289 = vmatprep.subr.mxu0 0.0
    %290 = vmatpush1.msra.mxu0 0.0
    %291 = vmatprep.subr.mxu0 0.0
    %292 = vmatpush1.msra.mxu0 0.0
    %293 = vmatprep.subr.mxu0 0.0
    %294 = vmatpush1.msra.mxu0 0.0
    %295 = vmatprep.subr.mxu0 0.0
    %296 = vmatpush1.msra.mxu0 0.0
    %297 = vmatprep.subr.mxu0 0.0
    %298 = vmatpush1.msra.mxu0 0.0
    %299 = vmatprep.subr.mxu0 0.0
    %300 = vmatpush1.msra.mxu0 0.0
    %301 = vmatprep.subr.mxu0 0.0
    %302 = vmatpush1.msra.mxu0 0.0
    %303 = vmatprep.subr.mxu0 0.0
    %304 = vmatpush1.msra.mxu0 0.0
    %305 = vmatprep.subr.mxu0 0.0
    %306 = vmatpush1.msra.mxu0 0.0
    %307 = vmatprep.subr.mxu0 0.0
    %308 = vmatpush1.msra.mxu0 0.0
    %309 = vmatprep.subr.mxu0 0.0
    %310 = vmatpush1.msra.mxu0 0.0
    %311 = vmatprep.subr.mxu0 0.0
    %312 = vmatpush1.msra.mxu0 0.0
    %313 = vmatprep.subr.mxu0 0.0
    %314 = vmatpush1.msra.mxu0 0.0
    %315 = vmatprep.subr.mxu0 0.0
    %316 = vmatpush1.msra.mxu0 0.0
    %317 = vmatprep.subr.mxu0 0.0
    %318 = vmatpush1.msra.mxu0 0.0
    %319 = vmatprep.subr.mxu0 0.0
    %320 = vmatpush1.msra.mxu0 0.0
    %321 = vmatprep.subr.mxu0 0.0
    %322 = vmatpush1.msra.mxu0 0.0
    %323 = vmatprep.subr.mxu0 0.0
    %324 = vmatpush1.msra.mxu0 0.0
    %325 = vmatprep.mubr.f32.mxu0 0.0
    %326 = vmatmul.mubr.f32.gmra.mrb[0].mxu0 %v113
    %v327 = vpop.f32.mrb[0].mxu0
    %v328 = vadd.f32 %v259, %v327
    %v329 = vpop.f32.mrb[0].mxu0
    %330 = vmatprep.mubr.f32.mxu0 0.0
    %331 = vmatmul.mubr.f32.gmra.mrb[0].mxu0 %v116
    %v332 = vpop.f32.mrb[0].mxu0
    %v333 = vadd.f32 %v259, %v332
    %v334 = vpop.f32.mrb[0].mxu0
    %335 = vmatprep.mubr.f32.mxu0 0.0
    %336 = vmatmul.mubr.f32.gmra.mrb[0].mxu0 %v119
    %v337 = vpop.f32.mrb[0].mxu0
    %v338 = vadd.f32 %v259, %v337
    %v339 = vpop.f32.mrb[0].mxu0
    %340 = vmatprep.mubr.f32.mxu0 0.0
    %341 = vmatmul.mubr.f32.gmra.mrb[0].mxu0 %v122
    %v342 = vpop.f32.mrb[0].mxu0
    %v343 = vadd.f32 %v259, %v342
    %v344 = vpop.f32.mrb[0].mxu0
    %345 = vmatprep.mubr.f32.mxu0 0.0
    %346 = vmatmul.mubr.f32.gmra.mrb[0].mxu0 %v125
    %v347 = vpop.f32.mrb[0].mxu0
    %v348 = vadd.f32 %v259, %v347
    %v349 = vpop.f32.mrb[0].mxu0
    %350 = vmatprep.mubr.f32.mxu0 0.0
    %351 = vmatmul.mubr.f32.gmra.mrb[0].mxu0 %v128
    %v352 = vpop.f32.mrb[0].mxu0
    %v353 = vadd.f32 %v259, %v352
    %v354 = vpop.f32.mrb[0].mxu0
    %355 = vmatprep.mubr.f32.mxu0 0.0
    %356 = vmatmul.mubr.f32.gmra.mrb[0].mxu0 %v131
    %v357 = vpop.f32.mrb[0].mxu0
    %v358 = vadd.f32 %v259, %v357
    %v359 = vpop.f32.mrb[0].mxu0
    %360 = vmatprep.mubr.f32.mxu0 0.0
    %361 = vmatmul.mubr.f32.gmra.mrb[0].mxu0 %v134
    %v362 = vpop.f32.mrb[0].mxu0
    %v363 = vadd.f32 %v259, %v362
    %v364 = vpop.f32.mrb[0].mxu0
    %365 = vdwg.mxu0
    %366 = vst.msk [vmem:[#allocation3] sm:$0xff] %vm241, %v328
    %367 = vst.msk [vmem:[#allocation3 + $0x8] sm:$0xff] %vm241, %v333
    %368 = vst.msk [vmem:[#allocation3 + $0x10] sm:$0xff] %vm241, %v338
    %369 = vst.msk [vmem:[#allocation3 + $0x18] sm:$0xff] %vm241, %v343
    %370 = vst.msk [vmem:[#allocation3 + $0x20] sm:$0xff] %vm241, %v348
    %371 = vst.msk [vmem:[#allocation3 + $0x28] sm:$0xff] %vm241, %v353
    %372 = vst.msk [vmem:[#allocation3 + $0x30] sm:$0xff] %vm241, %v358
    %373 = vst.msk [vmem:[#allocation3 + $0x38] sm:$0xff] %vm241, %v363
    %s374 = scalar_lea.vmem [#allocation7], 32
    %v375 = vld [vmem:[%s374] sm:$0xff]
    %v376 = vld [vmem:[%s374 + $0x8] sm:$0xff]
    %s377 = scalar_lea.vmem [#allocation12], 2
    %v378 = vld [vmem:[%s377] sm:$0x1]
    %v380 = vlaneseq
    %v381 = vshrl.u32 %v380, 7
    %v382 = vsub.s32 0, %v381
    %v383 = vrot.slane %v378, %v382
    %385 = vmatprep.subr.mxu0 0.0
    %386 = vmatpush1.msra.mxu0 %v375
    %387 = vmatprep.subr.mxu0 0.0
    %388 = vmatpush1.msra.mxu0 %v376
    %389 = vmatprep.subr.mxu0 0.0
    %390 = vmatpush1.msra.mxu0 0.0
    %391 = vmatprep.subr.mxu0 0.0
    %392 = vmatpush1.msra.mxu0 0.0
    %393 = vmatprep.subr.mxu0 0.0
    %394 = vmatpush1.msra.mxu0 0.0
    %395 = vmatprep.subr.mxu0 0.0
    %396 = vmatpush1.msra.mxu0 0.0
    %397 = vmatprep.subr.mxu0 0.0
    %398 = vmatpush1.msra.mxu0 0.0
    %399 = vmatprep.subr.mxu0 0.0
    %400 = vmatpush1.msra.mxu0 0.0
    %401 = vmatprep.subr.mxu0 0.0
    %402 = vmatpush1.msra.mxu0 0.0
    %403 = vmatprep.subr.mxu0 0.0
    %404 = vmatpush1.msra.mxu0 0.0
    %405 = vmatprep.subr.mxu0 0.0
    %406 = vmatpush1.msra.mxu0 0.0
    %407 = vmatprep.subr.mxu0 0.0
    %408 = vmatpush1.msra.mxu0 0.0
    %409 = vmatprep.subr.mxu0 0.0
    %410 = vmatpush1.msra.mxu0 0.0
    %411 = vmatprep.subr.mxu0 0.0
    %412 = vmatpush1.msra.mxu0 0.0
    %413 = vmatprep.subr.mxu0 0.0
    %414 = vmatpush1.msra.mxu0 0.0
    %415 = vmatprep.subr.mxu0 0.0
    %416 = vmatpush1.msra.mxu0 0.0
    %417 = vmatprep.subr.mxu0 0.0
    %418 = vmatpush1.msra.mxu0 0.0
    %419 = vmatprep.subr.mxu0 0.0
    %420 = vmatpush1.msra.mxu0 0.0
    %421 = vmatprep.subr.mxu0 0.0
    %422 = vmatpush1.msra.mxu0 0.0
    %423 = vmatprep.subr.mxu0 0.0
    %424 = vmatpush1.msra.mxu0 0.0
    %425 = vmatprep.subr.mxu0 0.0
    %426 = vmatpush1.msra.mxu0 0.0
    %427 = vmatprep.subr.mxu0 0.0
    %428 = vmatpush1.msra.mxu0 0.0
    %429 = vmatprep.subr.mxu0 0.0
    %430 = vmatpush1.msra.mxu0 0.0
    %431 = vmatprep.subr.mxu0 0.0
    %432 = vmatpush1.msra.mxu0 0.0
    %433 = vmatprep.subr.mxu0 0.0
    %434 = vmatpush1.msra.mxu0 0.0
    %435 = vmatprep.subr.mxu0 0.0
    %436 = vmatpush1.msra.mxu0 0.0
    %437 = vmatprep.subr.mxu0 0.0
    %438 = vmatpush1.msra.mxu0 0.0
    %439 = vmatprep.subr.mxu0 0.0
    %440 = vmatpush1.msra.mxu0 0.0
    %441 = vmatprep.subr.mxu0 0.0
    %442 = vmatpush1.msra.mxu0 0.0
    %443 = vmatprep.subr.mxu0 0.0
    %444 = vmatpush1.msra.mxu0 0.0
    %445 = vmatprep.subr.mxu0 0.0
    %446 = vmatpush1.msra.mxu0 0.0
    %447 = vmatprep.subr.mxu0 0.0
    %448 = vmatpush1.msra.mxu0 0.0
    %449 = vmatprep.mubr.f32.mxu0 0.0
    %450 = vmatmul.mubr.f32.gmra.mrb[0].mxu0 %v113
    %v451 = vpop.f32.mrb[0].mxu0
    %v452 = vadd.f32 %v383, %v451
    %v453 = vpop.f32.mrb[0].mxu0
    %454 = vmatprep.mubr.f32.mxu0 0.0
    %455 = vmatmul.mubr.f32.gmra.mrb[0].mxu0 %v116
    %v456 = vpop.f32.mrb[0].mxu0
    %v457 = vadd.f32 %v383, %v456
    %v458 = vpop.f32.mrb[0].mxu0
    %459 = vmatprep.mubr.f32.mxu0 0.0
    %460 = vmatmul.mubr.f32.gmra.mrb[0].mxu0 %v119
    %v461 = vpop.f32.mrb[0].mxu0
    %v462 = vadd.f32 %v383, %v461
    %v463 = vpop.f32.mrb[0].mxu0
    %464 = vmatprep.mubr.f32.mxu0 0.0
    %465 = vmatmul.mubr.f32.gmra.mrb[0].mxu0 %v122
    %v466 = vpop.f32.mrb[0].mxu0
    %v467 = vadd.f32 %v383, %v466
    %v468 = vpop.f32.mrb[0].mxu0
    %469 = vmatprep.mubr.f32.mxu0 0.0
    %470 = vmatmul.mubr.f32.gmra.mrb[0].mxu0 %v125
    %v471 = vpop.f32.mrb[0].mxu0
    %v472 = vadd.f32 %v383, %v471
    %v473 = vpop.f32.mrb[0].mxu0
    %474 = vmatprep.mubr.f32.mxu0 0.0
    %475 = vmatmul.mubr.f32.gmra.mrb[0].mxu0 %v128
    %v476 = vpop.f32.mrb[0].mxu0
    %v477 = vadd.f32 %v383, %v476
    %v478 = vpop.f32.mrb[0].mxu0
    %479 = vmatprep.mubr.f32.mxu0 0.0
    %480 = vmatmul.mubr.f32.gmra.mrb[0].mxu0 %v131
    %v481 = vpop.f32.mrb[0].mxu0
    %v482 = vadd.f32 %v383, %v481
    %v483 = vpop.f32.mrb[0].mxu0
    %484 = vmatprep.mubr.f32.mxu0 0.0
    %485 = vmatmul.mubr.f32.gmra.mrb[0].mxu0 %v134
    %v486 = vpop.f32.mrb[0].mxu0
    %v487 = vadd.f32 %v383, %v486
    %v488 = vpop.f32.mrb[0].mxu0
    %489 = vdwg.mxu0
    %490 = vst.msk [vmem:[#allocation4] sm:$0xff] %vm241, %v452
    %491 = vst.msk [vmem:[#allocation4 + $0x8] sm:$0xff] %vm241, %v457
    %492 = vst.msk [vmem:[#allocation4 + $0x10] sm:$0xff] %vm241, %v462
    %493 = vst.msk [vmem:[#allocation4 + $0x18] sm:$0xff] %vm241, %v467
    %494 = vst.msk [vmem:[#allocation4 + $0x20] sm:$0xff] %vm241, %v472
    %495 = vst.msk [vmem:[#allocation4 + $0x28] sm:$0xff] %vm241, %v477
    %496 = vst.msk [vmem:[#allocation4 + $0x30] sm:$0xff] %vm241, %v482
    %497 = vst.msk [vmem:[#allocation4 + $0x38] sm:$0xff] %vm241, %v487
    %s498 = scalar_lea.vmem [#allocation7], 48
    %v499 = vld [vmem:[%s498] sm:$0xff]
    %v500 = vld [vmem:[%s498 + $0x8] sm:$0xff]
    %s501 = scalar_lea.vmem [#allocation12], 3
    %v502 = vld [vmem:[%s501] sm:$0x1]
    %v504 = vlaneseq
    %v505 = vshrl.u32 %v504, 7
    %v506 = vsub.s32 0, %v505
    %v507 = vrot.slane %v502, %v506
    %509 = vmatprep.subr.mxu0 0.0
    %510 = vmatpush1.msra.mxu0 %v499
    %511 = vmatprep.subr.mxu0 0.0
    %512 = vmatpush1.msra.mxu0 %v500
    %513 = vmatprep.subr.mxu0 0.0
    %514 = vmatpush1.msra.mxu0 0.0
    %515 = vmatprep.subr.mxu0 0.0
    %516 = vmatpush1.msra.mxu0 0.0
    %517 = vmatprep.subr.mxu0 0.0
    %518 = vmatpush1.msra.mxu0 0.0
    %519 = vmatprep.subr.mxu0 0.0
    %520 = vmatpush1.msra.mxu0 0.0
    %521 = vmatprep.subr.mxu0 0.0
    %522 = vmatpush1.msra.mxu0 0.0
    %523 = vmatprep.subr.mxu0 0.0
    %524 = vmatpush1.msra.mxu0 0.0
    %525 = vmatprep.subr.mxu0 0.0
    %526 = vmatpush1.msra.mxu0 0.0
    %527 = vmatprep.subr.mxu0 0.0
    %528 = vmatpush1.msra.mxu0 0.0
    %529 = vmatprep.subr.mxu0 0.0
    %530 = vmatpush1.msra.mxu0 0.0
    %531 = vmatprep.subr.mxu0 0.0
    %532 = vmatpush1.msra.mxu0 0.0
    %533 = vmatprep.subr.mxu0 0.0
    %534 = vmatpush1.msra.mxu0 0.0
    %535 = vmatprep.subr.mxu0 0.0
    %536 = vmatpush1.msra.mxu0 0.0
    %537 = vmatprep.subr.mxu0 0.0
    %538 = vmatpush1.msra.mxu0 0.0
    %539 = vmatprep.subr.mxu0 0.0
    %540 = vmatpush1.msra.mxu0 0.0
    %541 = vmatprep.subr.mxu0 0.0
    %542 = vmatpush1.msra.mxu0 0.0
    %543 = vmatprep.subr.mxu0 0.0
    %544 = vmatpush1.msra.mxu0 0.0
    %545 = vmatprep.subr.mxu0 0.0
    %546 = vmatpush1.msra.mxu0 0.0
    %547 = vmatprep.subr.mxu0 0.0
    %548 = vmatpush1.msra.mxu0 0.0
    %549 = vmatprep.subr.mxu0 0.0
    %550 = vmatpush1.msra.mxu0 0.0
    %551 = vmatprep.subr.mxu0 0.0
    %552 = vmatpush1.msra.mxu0 0.0
    %553 = vmatprep.subr.mxu0 0.0
    %554 = vmatpush1.msra.mxu0 0.0
    %555 = vmatprep.subr.mxu0 0.0
    %556 = vmatpush1.msra.mxu0 0.0
    %557 = vmatprep.subr.mxu0 0.0
    %558 = vmatpush1.msra.mxu0 0.0
    %559 = vmatprep.subr.mxu0 0.0
    %560 = vmatpush1.msra.mxu0 0.0
    %561 = vmatprep.subr.mxu0 0.0
    %562 = vmatpush1.msra.mxu0 0.0
    %563 = vmatprep.subr.mxu0 0.0
    %564 = vmatpush1.msra.mxu0 0.0
    %565 = vmatprep.subr.mxu0 0.0
    %566 = vmatpush1.msra.mxu0 0.0
    %567 = vmatprep.subr.mxu0 0.0
    %568 = vmatpush1.msra.mxu0 0.0
    %569 = vmatprep.subr.mxu0 0.0
    %570 = vmatpush1.msra.mxu0 0.0
    %571 = vmatprep.subr.mxu0 0.0
    %572 = vmatpush1.msra.mxu0 0.0
    %573 = vmatprep.mubr.f32.mxu0 0.0
    %574 = vmatmul.mubr.f32.gmra.mrb[0].mxu0 %v113
    %v575 = vpop.f32.mrb[0].mxu0
    %v576 = vadd.f32 %v507, %v575
    %v577 = vpop.f32.mrb[0].mxu0
    %578 = vmatprep.mubr.f32.mxu0 0.0
    %579 = vmatmul.mubr.f32.gmra.mrb[0].mxu0 %v116
    %v580 = vpop.f32.mrb[0].mxu0
    %v581 = vadd.f32 %v507, %v580
    %v582 = vpop.f32.mrb[0].mxu0
    %583 = vmatprep.mubr.f32.mxu0 0.0
    %584 = vmatmul.mubr.f32.gmra.mrb[0].mxu0 %v119
    %v585 = vpop.f32.mrb[0].mxu0
    %v586 = vadd.f32 %v507, %v585
    %v587 = vpop.f32.mrb[0].mxu0
    %588 = vmatprep.mubr.f32.mxu0 0.0
    %589 = vmatmul.mubr.f32.gmra.mrb[0].mxu0 %v122
    %v590 = vpop.f32.mrb[0].mxu0
    %v591 = vadd.f32 %v507, %v590
    %v592 = vpop.f32.mrb[0].mxu0
    %593 = vmatprep.mubr.f32.mxu0 0.0
    %594 = vmatmul.mubr.f32.gmra.mrb[0].mxu0 %v125
    %v595 = vpop.f32.mrb[0].mxu0
    %v596 = vadd.f32 %v507, %v595
    %v597 = vpop.f32.mrb[0].mxu0
    %598 = vmatprep.mubr.f32.mxu0 0.0
    %599 = vmatmul.mubr.f32.gmra.mrb[0].mxu0 %v128
    %v600 = vpop.f32.mrb[0].mxu0
    %v601 = vadd.f32 %v507, %v600
    %v602 = vpop.f32.mrb[0].mxu0
    %603 = vmatprep.mubr.f32.mxu0 0.0
    %604 = vmatmul.mubr.f32.gmra.mrb[0].mxu0 %v131
    %v605 = vpop.f32.mrb[0].mxu0
    %v606 = vadd.f32 %v507, %v605
    %v607 = vpop.f32.mrb[0].mxu0
    %608 = vmatprep.mubr.f32.mxu0 0.0
    %609 = vmatmul.mubr.f32.gmra.mrb[0].mxu0 %v134
    %v610 = vpop.f32.mrb[0].mxu0
    %v611 = vadd.f32 %v507, %v610
    %v612 = vpop.f32.mrb[0].mxu0
    %613 = vdwg.mxu0
    %614 = vst.msk [vmem:[#allocation5] sm:$0xff] %vm241, %v576
    %615 = vst.msk [vmem:[#allocation5 + $0x8] sm:$0xff] %vm241, %v581
    %616 = vst.msk [vmem:[#allocation5 + $0x10] sm:$0xff] %vm241, %v586
    %617 = vst.msk [vmem:[#allocation5 + $0x18] sm:$0xff] %vm241, %v591
    %618 = vst.msk [vmem:[#allocation5 + $0x20] sm:$0xff] %vm241, %v596
    %619 = vst.msk [vmem:[#allocation5 + $0x28] sm:$0xff] %vm241, %v601
    %620 = vst.msk [vmem:[#allocation5 + $0x30] sm:$0xff] %vm241, %v606
    %621 = vst.msk [vmem:[#allocation5 + $0x38] sm:$0xff] %vm241, %v611
    %v622 = vld [vmem:[#allocation10] sm:$0xff]
    %v623 = vld [vmem:[#allocation10 + $0x8] sm:$0xff]
    %v624 = vld [vmem:[#allocation10 + $0x10] sm:$0xff]
    %v625 = vld [vmem:[#allocation10 + $0x18] sm:$0xff]
    %s626 = scalar_lea.vmem [#allocation10], 32
    %v627 = vld [vmem:[%s626] sm:$0xff]
    %v628 = vld [vmem:[%s626 + $0x8] sm:$0xff]
    %v629 = vld [vmem:[%s626 + $0x10] sm:$0xff]
    %v630 = vld [vmem:[%s626 + $0x18] sm:$0xff]
    %s631 = scalar_lea.vmem [#allocation10], 64
    %v632 = vld [vmem:[%s631] sm:$0xff]
    %v633 = vld [vmem:[%s631 + $0x8] sm:$0xff]
    %v634 = vld [vmem:[%s631 + $0x10] sm:$0xff]
    %v635 = vld [vmem:[%s631 + $0x18] sm:$0xff]
    %s636 = scalar_lea.vmem [#allocation10], 96
    %v637 = vld [vmem:[%s636] sm:$0xff]
    %v638 = vld [vmem:[%s636 + $0x8] sm:$0xff]
    %v639 = vld [vmem:[%s636 + $0x10] sm:$0xff]
    %v640 = vld [vmem:[%s636 + $0x18] sm:$0xff]
    %v641 = vld [vmem:[#allocation2] sm:$0xff]
    %v643 = vsel %vm241, 0.0, 0
    %645 = vmatprep.subr.mxu0 0.0
    %646 = vmatpush1.msra.mxu0 %v622
    %647 = vmatprep.subr.mxu0 0.0
    %648 = vmatpush1.msra.mxu0 %v623
    %649 = vmatprep.subr.mxu0 0.0
    %650 = vmatpush1.msra.mxu0 %v624
    %651 = vmatprep.subr.mxu0 0.0
    %652 = vmatpush1.msra.mxu0 %v625
    %653 = vmatprep.subr.mxu0 0.0
    %654 = vmatpush1.msra.mxu0 0.0
    %655 = vmatprep.subr.mxu0 0.0
    %656 = vmatpush1.msra.mxu0 0.0
    %657 = vmatprep.subr.mxu0 0.0
    %658 = vmatpush1.msra.mxu0 0.0
    %659 = vmatprep.subr.mxu0 0.0
    %660 = vmatpush1.msra.mxu0 0.0
    %661 = vmatprep.subr.mxu0 0.0
    %662 = vmatpush1.msra.mxu0 0.0
    %663 = vmatprep.subr.mxu0 0.0
    %664 = vmatpush1.msra.mxu0 0.0
    %665 = vmatprep.subr.mxu0 0.0
    %666 = vmatpush1.msra.mxu0 0.0
    %667 = vmatprep.subr.mxu0 0.0
    %668 = vmatpush1.msra.mxu0 0.0
    %669 = vmatprep.subr.mxu0 0.0
    %670 = vmatpush1.msra.mxu0 0.0
    %671 = vmatprep.subr.mxu0 0.0
    %672 = vmatpush1.msra.mxu0 0.0
    %673 = vmatprep.subr.mxu0 0.0
    %674 = vmatpush1.msra.mxu0 0.0
    %675 = vmatprep.subr.mxu0 0.0
    %676 = vmatpush1.msra.mxu0 0.0
    %677 = vmatprep.subr.mxu0 0.0
    %678 = vmatpush1.msra.mxu0 0.0
    %679 = vmatprep.subr.mxu0 0.0
    %680 = vmatpush1.msra.mxu0 0.0
    %681 = vmatprep.subr.mxu0 0.0
    %682 = vmatpush1.msra.mxu0 0.0
    %683 = vmatprep.subr.mxu0 0.0
    %684 = vmatpush1.msra.mxu0 0.0
    %685 = vmatprep.subr.mxu0 0.0
    %686 = vmatpush1.msra.mxu0 0.0
    %687 = vmatprep.subr.mxu0 0.0
    %688 = vmatpush1.msra.mxu0 0.0
    %689 = vmatprep.subr.mxu0 0.0
    %690 = vmatpush1.msra.mxu0 0.0
    %691 = vmatprep.subr.mxu0 0.0
    %692 = vmatpush1.msra.mxu0 0.0
    %693 = vmatprep.subr.mxu0 0.0
    %694 = vmatpush1.msra.mxu0 0.0
    %695 = vmatprep.subr.mxu0 0.0
    %696 = vmatpush1.msra.mxu0 0.0
    %697 = vmatprep.subr.mxu0 0.0
    %698 = vmatpush1.msra.mxu0 0.0
    %699 = vmatprep.subr.mxu0 0.0
    %700 = vmatpush1.msra.mxu0 0.0
    %701 = vmatprep.subr.mxu0 0.0
    %702 = vmatpush1.msra.mxu0 0.0
    %703 = vmatprep.subr.mxu0 0.0
    %704 = vmatpush1.msra.mxu0 0.0
    %705 = vmatprep.subr.mxu0 0.0
    %706 = vmatpush1.msra.mxu0 0.0
    %707 = vmatprep.subr.mxu0 0.0
    %708 = vmatpush1.msra.mxu0 0.0
    %709 = vmatprep.mubr.f32.mxu0 0.0
    %710 = vmatmul.mubr.f32.gmra.mrb[0].mxu0 %v643
    %v711 = vpop.f32.mrb[0].mxu0
    %v712 = vadd.f32 0.0, %v711
    %v713 = vpop.f32.mrb[0].mxu0
    %714 = vdwg.mxu0
    %v715 = vadd.f32 %v641, %v712
    %v716 = vxor.u32 %v715, 2147483648
    %v717 = vmul.f32 %v716, 1.442695
    %v718 = vpow.pop %v717
    %v719 = vadd.f32 %v718, 1.0
    %v720 = vrcp.pop %v719
    %v721 = vmul.f32 1.0, %v720
    %v722 = vld [vmem:[#allocation3] sm:$0xff]
    %723 = vmatprep.subr.mxu0 0.0
    %724 = vmatpush1.msra.mxu0 %v627
    %725 = vmatprep.subr.mxu0 0.0
    %726 = vmatpush1.msra.mxu0 %v628
    %727 = vmatprep.subr.mxu0 0.0
    %728 = vmatpush1.msra.mxu0 %v629
    %729 = vmatprep.subr.mxu0 0.0
    %730 = vmatpush1.msra.mxu0 %v630
    %731 = vmatprep.subr.mxu0 0.0
    %732 = vmatpush1.msra.mxu0 0.0
    %733 = vmatprep.subr.mxu0 0.0
    %734 = vmatpush1.msra.mxu0 0.0
    %735 = vmatprep.subr.mxu0 0.0
    %736 = vmatpush1.msra.mxu0 0.0
    %737 = vmatprep.subr.mxu0 0.0
    %738 = vmatpush1.msra.mxu0 0.0
    %739 = vmatprep.subr.mxu0 0.0
    %740 = vmatpush1.msra.mxu0 0.0
    %741 = vmatprep.subr.mxu0 0.0
    %742 = vmatpush1.msra.mxu0 0.0
    %743 = vmatprep.subr.mxu0 0.0
    %744 = vmatpush1.msra.mxu0 0.0
    %745 = vmatprep.subr.mxu0 0.0
    %746 = vmatpush1.msra.mxu0 0.0
    %747 = vmatprep.subr.mxu0 0.0
    %748 = vmatpush1.msra.mxu0 0.0
    %749 = vmatprep.subr.mxu0 0.0
    %750 = vmatpush1.msra.mxu0 0.0
    %751 = vmatprep.subr.mxu0 0.0
    %752 = vmatpush1.msra.mxu0 0.0
    %753 = vmatprep.subr.mxu0 0.0
    %754 = vmatpush1.msra.mxu0 0.0
    %755 = vmatprep.subr.mxu0 0.0
    %756 = vmatpush1.msra.mxu0 0.0
    %757 = vmatprep.subr.mxu0 0.0
    %758 = vmatpush1.msra.mxu0 0.0
    %759 = vmatprep.subr.mxu0 0.0
    %760 = vmatpush1.msra.mxu0 0.0
    %761 = vmatprep.subr.mxu0 0.0
    %762 = vmatpush1.msra.mxu0 0.0
    %763 = vmatprep.subr.mxu0 0.0
    %764 = vmatpush1.msra.mxu0 0.0
    %765 = vmatprep.subr.mxu0 0.0
    %766 = vmatpush1.msra.mxu0 0.0
    %767 = vmatprep.subr.mxu0 0.0
    %768 = vmatpush1.msra.mxu0 0.0
    %769 = vmatprep.subr.mxu0 0.0
    %770 = vmatpush1.msra.mxu0 0.0
    %771 = vmatprep.subr.mxu0 0.0
    %772 = vmatpush1.msra.mxu0 0.0
    %773 = vmatprep.subr.mxu0 0.0
    %774 = vmatpush1.msra.mxu0 0.0
    %775 = vmatprep.subr.mxu0 0.0
    %776 = vmatpush1.msra.mxu0 0.0
    %777 = vmatprep.subr.mxu0 0.0
    %778 = vmatpush1.msra.mxu0 0.0
    %779 = vmatprep.subr.mxu0 0.0
    %780 = vmatpush1.msra.mxu0 0.0
    %781 = vmatprep.subr.mxu0 0.0
    %782 = vmatpush1.msra.mxu0 0.0
    %783 = vmatprep.subr.mxu0 0.0
    %784 = vmatpush1.msra.mxu0 0.0
    %785 = vmatprep.subr.mxu0 0.0
    %786 = vmatpush1.msra.mxu0 0.0
    %787 = vmatprep.mubr.f32.mxu0 0.0
    %788 = vmatmul.mubr.f32.gmra.mrb[0].mxu0 %v643
    %v789 = vpop.f32.mrb[0].mxu0
    %v790 = vadd.f32 0.0, %v789
    %v791 = vpop.f32.mrb[0].mxu0
    %792 = vdwg.mxu0
    %v793 = vadd.f32 %v722, %v790
    %v794 = vxor.u32 %v793, 2147483648
    %v795 = vmul.f32 %v794, 1.442695
    %v796 = vpow.pop %v795
    %v797 = vadd.f32 %v796, 1.0
    %v798 = vrcp.pop %v797
    %v799 = vmul.f32 1.0, %v798
    %v800 = vld [vmem:[#allocation4] sm:$0xff]
    %801 = vmatprep.subr.mxu0 0.0
    %802 = vmatpush1.msra.mxu0 %v632
    %803 = vmatprep.subr.mxu0 0.0
    %804 = vmatpush1.msra.mxu0 %v633
    %805 = vmatprep.subr.mxu0 0.0
    %806 = vmatpush1.msra.mxu0 %v634
    %807 = vmatprep.subr.mxu0 0.0
    %808 = vmatpush1.msra.mxu0 %v635
    %809 = vmatprep.subr.mxu0 0.0
    %810 = vmatpush1.msra.mxu0 0.0
    %811 = vmatprep.subr.mxu0 0.0
    %812 = vmatpush1.msra.mxu0 0.0
    %813 = vmatprep.subr.mxu0 0.0
    %814 = vmatpush1.msra.mxu0 0.0
    %815 = vmatprep.subr.mxu0 0.0
    %816 = vmatpush1.msra.mxu0 0.0
    %817 = vmatprep.subr.mxu0 0.0
    %818 = vmatpush1.msra.mxu0 0.0
    %819 = vmatprep.subr.mxu0 0.0
    %820 = vmatpush1.msra.mxu0 0.0
    %821 = vmatprep.subr.mxu0 0.0
    %822 = vmatpush1.msra.mxu0 0.0
    %823 = vmatprep.subr.mxu0 0.0
    %824 = vmatpush1.msra.mxu0 0.0
    %825 = vmatprep.subr.mxu0 0.0
    %826 = vmatpush1.msra.mxu0 0.0
    %827 = vmatprep.subr.mxu0 0.0
    %828 = vmatpush1.msra.mxu0 0.0
    %829 = vmatprep.subr.mxu0 0.0
    %830 = vmatpush1.msra.mxu0 0.0
    %831 = vmatprep.subr.mxu0 0.0
    %832 = vmatpush1.msra.mxu0 0.0
    %833 = vmatprep.subr.mxu0 0.0
    %834 = vmatpush1.msra.mxu0 0.0
    %835 = vmatprep.subr.mxu0 0.0
    %836 = vmatpush1.msra.mxu0 0.0
    %837 = vmatprep.subr.mxu0 0.0
    %838 = vmatpush1.msra.mxu0 0.0
    %839 = vmatprep.subr.mxu0 0.0
    %840 = vmatpush1.msra.mxu0 0.0
    %841 = vmatprep.subr.mxu0 0.0
    %842 = vmatpush1.msra.mxu0 0.0
    %843 = vmatprep.subr.mxu0 0.0
    %844 = vmatpush1.msra.mxu0 0.0
    %845 = vmatprep.subr.mxu0 0.0
    %846 = vmatpush1.msra.mxu0 0.0
    %847 = vmatprep.subr.mxu0 0.0
    %848 = vmatpush1.msra.mxu0 0.0
    %849 = vmatprep.subr.mxu0 0.0
    %850 = vmatpush1.msra.mxu0 0.0
    %851 = vmatprep.subr.mxu0 0.0
    %852 = vmatpush1.msra.mxu0 0.0
    %853 = vmatprep.subr.mxu0 0.0
    %854 = vmatpush1.msra.mxu0 0.0
    %855 = vmatprep.subr.mxu0 0.0
    %856 = vmatpush1.msra.mxu0 0.0
    %857 = vmatprep.subr.mxu0 0.0
    %858 = vmatpush1.msra.mxu0 0.0
    %859 = vmatprep.subr.mxu0 0.0
    %860 = vmatpush1.msra.mxu0 0.0
    %861 = vmatprep.subr.mxu0 0.0
    %862 = vmatpush1.msra.mxu0 0.0
    %863 = vmatprep.subr.mxu0 0.0
    %864 = vmatpush1.msra.mxu0 0.0
    %865 = vmatprep.mubr.f32.mxu0 0.0
    %866 = vmatmul.mubr.f32.gmra.mrb[0].mxu0 %v643
    %v867 = vpop.f32.mrb[0].mxu0
    %v868 = vadd.f32 0.0, %v867
    %v869 = vpop.f32.mrb[0].mxu0
    %870 = vdwg.mxu0
    %v871 = vadd.f32 %v800, %v868
    %v872 = vtanh.pop %v871
    %v873 = vld [vmem:[#allocation5] sm:$0xff]
    %874 = vmatprep.subr.mxu0 0.0
    %875 = vmatpush1.msra.mxu0 %v637
    %876 = vmatprep.subr.mxu0 0.0
    %877 = vmatpush1.msra.mxu0 %v638
    %878 = vmatprep.subr.mxu0 0.0
    %879 = vmatpush1.msra.mxu0 %v639
    %880 = vmatprep.subr.mxu0 0.0
    %881 = vmatpush1.msra.mxu0 %v640
    %882 = vmatprep.subr.mxu0 0.0
    %883 = vmatpush1.msra.mxu0 0.0
    %884 = vmatprep.subr.mxu0 0.0
    %885 = vmatpush1.msra.mxu0 0.0
    %886 = vmatprep.subr.mxu0 0.0
    %887 = vmatpush1.msra.mxu0 0.0
    %888 = vmatprep.subr.mxu0 0.0
    %889 = vmatpush1.msra.mxu0 0.0
    %890 = vmatprep.subr.mxu0 0.0
    %891 = vmatpush1.msra.mxu0 0.0
    %892 = vmatprep.subr.mxu0 0.0
    %893 = vmatpush1.msra.mxu0 0.0
    %894 = vmatprep.subr.mxu0 0.0
    %895 = vmatpush1.msra.mxu0 0.0
    %896 = vmatprep.subr.mxu0 0.0
    %897 = vmatpush1.msra.mxu0 0.0
    %898 = vmatprep.subr.mxu0 0.0
    %899 = vmatpush1.msra.mxu0 0.0
    %900 = vmatprep.subr.mxu0 0.0
    %901 = vmatpush1.msra.mxu0 0.0
    %902 = vmatprep.subr.mxu0 0.0
    %903 = vmatpush1.msra.mxu0 0.0
    %904 = vmatprep.subr.mxu0 0.0
    %905 = vmatpush1.msra.mxu0 0.0
    %906 = vmatprep.subr.mxu0 0.0
    %907 = vmatpush1.msra.mxu0 0.0
    %908 = vmatprep.subr.mxu0 0.0
    %909 = vmatpush1.msra.mxu0 0.0
    %910 = vmatprep.subr.mxu0 0.0
    %911 = vmatpush1.msra.mxu0 0.0
    %912 = vmatprep.subr.mxu0 0.0
    %913 = vmatpush1.msra.mxu0 0.0
    %914 = vmatprep.subr.mxu0 0.0
    %915 = vmatpush1.msra.mxu0 0.0
    %916 = vmatprep.subr.mxu0 0.0
    %917 = vmatpush1.msra.mxu0 0.0
    %918 = vmatprep.subr.mxu0 0.0
    %919 = vmatpush1.msra.mxu0 0.0
    %920 = vmatprep.subr.mxu0 0.0
    %921 = vmatpush1.msra.mxu0 0.0
    %922 = vmatprep.subr.mxu0 0.0
    %923 = vmatpush1.msra.mxu0 0.0
    %924 = vmatprep.subr.mxu0 0.0
    %925 = vmatpush1.msra.mxu0 0.0
    %926 = vmatprep.subr.mxu0 0.0
    %927 = vmatpush1.msra.mxu0 0.0
    %928 = vmatprep.subr.mxu0 0.0
    %929 = vmatpush1.msra.mxu0 0.0
    %930 = vmatprep.subr.mxu0 0.0
    %931 = vmatpush1.msra.mxu0 0.0
    %932 = vmatprep.subr.mxu0 0.0
    %933 = vmatpush1.msra.mxu0 0.0
    %934 = vmatprep.subr.mxu0 0.0
    %935 = vmatpush1.msra.mxu0 0.0
    %936 = vmatprep.subr.mxu0 0.0
    %937 = vmatpush1.msra.mxu0 0.0
    %938 = vmatprep.mubr.f32.mxu0 0.0
    %939 = vmatmul.mubr.f32.gmra.mrb[0].mxu0 %v643
    %v940 = vpop.f32.mrb[0].mxu0
    %v941 = vadd.f32 0.0, %v940
    %v942 = vpop.f32.mrb[0].mxu0
    %943 = vdwg.mxu0
    %v944 = vadd.f32 %v873, %v941
    %v945 = vxor.u32 %v944, 2147483648
    %v946 = vmul.f32 %v945, 1.442695
    %v947 = vpow.pop %v946
    %v948 = vadd.f32 %v947, 1.0
    %v949 = vrcp.pop %v948
    %v950 = vmul.f32 1.0, %v949
    %v951 = vmul.f32 %v799, 0.0
    %v952 = vmul.f32 %v721, %v872
    %v953 = vadd.f32 %v951, %v952
    %v954 = vtanh.pop %v953
    %v955 = vmul.f32 %v950, %v954
    %956 = vst.msk [vmem:[#allocation6] sm:$0xff] %vm241, %v955
    %s957 = scalar_lea.vmem [#allocation2], 8
    %v958 = vld [vmem:[%s957] sm:$0xff]
    %v960 = vsel %vm241, %v955, 0
    %962 = vmatprep.subr.mxu0 0.0
    %963 = vmatpush1.msra.mxu0 %v622
    %964 = vmatprep.subr.mxu0 0.0
    %965 = vmatpush1.msra.mxu0 %v623
    %966 = vmatprep.subr.mxu0 0.0
    %967 = vmatpush1.msra.mxu0 %v624
    %968 = vmatprep.subr.mxu0 0.0
    %969 = vmatpush1.msra.mxu0 %v625
    %970 = vmatprep.subr.mxu0 0.0
    %971 = vmatpush1.msra.mxu0 0.0
    %972 = vmatprep.subr.mxu0 0.0
    %973 = vmatpush1.msra.mxu0 0.0
    %974 = vmatprep.subr.mxu0 0.0
    %975 = vmatpush1.msra.mxu0 0.0
    %976 = vmatprep.subr.mxu0 0.0
    %977 = vmatpush1.msra.mxu0 0.0
    %978 = vmatprep.subr.mxu0 0.0
    %979 = vmatpush1.msra.mxu0 0.0
    %980 = vmatprep.subr.mxu0 0.0
    %981 = vmatpush1.msra.mxu0 0.0
    %982 = vmatprep.subr.mxu0 0.0
    %983 = vmatpush1.msra.mxu0 0.0
    %984 = vmatprep.subr.mxu0 0.0
    %985 = vmatpush1.msra.mxu0 0.0
    %986 = vmatprep.subr.mxu0 0.0
    %987 = vmatpush1.msra.mxu0 0.0
    %988 = vmatprep.subr.mxu0 0.0
    %989 = vmatpush1.msra.mxu0 0.0
    %990 = vmatprep.subr.mxu0 0.0
    %991 = vmatpush1.msra.mxu0 0.0
    %992 = vmatprep.subr.mxu0 0.0
    %993 = vmatpush1.msra.mxu0 0.0
    %994 = vmatprep.subr.mxu0 0.0
    %995 = vmatpush1.msra.mxu0 0.0
    %996 = vmatprep.subr.mxu0 0.0
    %997 = vmatpush1.msra.mxu0 0.0
    %998 = vmatprep.subr.mxu0 0.0
    %999 = vmatpush1.msra.mxu0 0.0
    %1000 = vmatprep.subr.mxu0 0.0
    %1001 = vmatpush1.msra.mxu0 0.0
    %1002 = vmatprep.subr.mxu0 0.0
    %1003 = vmatpush1.msra.mxu0 0.0
    %1004 = vmatprep.subr.mxu0 0.0
    %1005 = vmatpush1.msra.mxu0 0.0
    %1006 = vmatprep.subr.mxu0 0.0
    %1007 = vmatpush1.msra.mxu0 0.0
    %1008 = vmatprep.subr.mxu0 0.0
    %1009 = vmatpush1.msra.mxu0 0.0
    %1010 = vmatprep.subr.mxu0 0.0
    %1011 = vmatpush1.msra.mxu0 0.0
    %1012 = vmatprep.subr.mxu0 0.0
    %1013 = vmatpush1.msra.mxu0 0.0
    %1014 = vmatprep.subr.mxu0 0.0
    %1015 = vmatpush1.msra.mxu0 0.0
    %1016 = vmatprep.subr.mxu0 0.0
    %1017 = vmatpush1.msra.mxu0 0.0
    %1018 = vmatprep.subr.mxu0 0.0
    %1019 = vmatpush1.msra.mxu0 0.0
    %1020 = vmatprep.subr.mxu0 0.0
    %1021 = vmatpush1.msra.mxu0 0.0
    %1022 = vmatprep.subr.mxu0 0.0
    %1023 = vmatpush1.msra.mxu0 0.0
    %1024 = vmatprep.subr.mxu0 0.0
    %1025 = vmatpush1.msra.mxu0 0.0
    %1026 = vmatprep.mubr.f32.mxu0 0.0
    %1027 = vmatmul.mubr.f32.gmra.mrb[0].mxu0 %v960
    %v1028 = vpop.f32.mrb[0].mxu0
    %v1029 = vadd.f32 0.0, %v1028
    %v1030 = vpop.f32.mrb[0].mxu0
    %1031 = vdwg.mxu0
    %v1032 = vadd.f32 %v958, %v1029
    %v1033 = vxor.u32 %v1032, 2147483648
    %v1034 = vmul.f32 %v1033, 1.442695
    %v1035 = vpow.pop %v1034
    %v1036 = vadd.f32 %v1035, 1.0
    %v1037 = vrcp.pop %v1036
    %v1038 = vmul.f32 1.0, %v1037
    %s1039 = scalar_lea.vmem [#allocation3], 8
    %v1040 = vld [vmem:[%s1039] sm:$0xff]
    %1041 = vmatprep.subr.mxu0 0.0
    %1042 = vmatpush1.msra.mxu0 %v627
    %1043 = vmatprep.subr.mxu0 0.0
    %1044 = vmatpush1.msra.mxu0 %v628
    %1045 = vmatprep.subr.mxu0 0.0
    %1046 = vmatpush1.msra.mxu0 %v629
    %1047 = vmatprep.subr.mxu0 0.0
    %1048 = vmatpush1.msra.mxu0 %v630
    %1049 = vmatprep.subr.mxu0 0.0
    %1050 = vmatpush1.msra.mxu0 0.0
    %1051 = vmatprep.subr.mxu0 0.0
    %1052 = vmatpush1.msra.mxu0 0.0
    %1053 = vmatprep.subr.mxu0 0.0
    %1054 = vmatpush1.msra.mxu0 0.0
    %1055 = vmatprep.subr.mxu0 0.0
    %1056 = vmatpush1.msra.mxu0 0.0
    %1057 = vmatprep.subr.mxu0 0.0
    %1058 = vmatpush1.msra.mxu0 0.0
    %1059 = vmatprep.subr.mxu0 0.0
    %1060 = vmatpush1.msra.mxu0 0.0
    %1061 = vmatprep.subr.mxu0 0.0
    %1062 = vmatpush1.msra.mxu0 0.0
    %1063 = vmatprep.subr.mxu0 0.0
    %1064 = vmatpush1.msra.mxu0 0.0
    %1065 = vmatprep.subr.mxu0 0.0
    %1066 = vmatpush1.msra.mxu0 0.0
    %1067 = vmatprep.subr.mxu0 0.0
    %1068 = vmatpush1.msra.mxu0 0.0
    %1069 = vmatprep.subr.mxu0 0.0
    %1070 = vmatpush1.msra.mxu0 0.0
    %1071 = vmatprep.subr.mxu0 0.0
    %1072 = vmatpush1.msra.mxu0 0.0
    %1073 = vmatprep.subr.mxu0 0.0
    %1074 = vmatpush1.msra.mxu0 0.0
    %1075 = vmatprep.subr.mxu0 0.0
    %1076 = vmatpush1.msra.mxu0 0.0
    %1077 = vmatprep.subr.mxu0 0.0
    %1078 = vmatpush1.msra.mxu0 0.0
    %1079 = vmatprep.subr.mxu0 0.0
    %1080 = vmatpush1.msra.mxu0 0.0
    %1081 = vmatprep.subr.mxu0 0.0
    %1082 = vmatpush1.msra.mxu0 0.0
    %1083 = vmatprep.subr.mxu0 0.0
    %1084 = vmatpush1.msra.mxu0 0.0
    %1085 = vmatprep.subr.mxu0 0.0
    %1086 = vmatpush1.msra.mxu0 0.0
    %1087 = vmatprep.subr.mxu0 0.0
    %1088 = vmatpush1.msra.mxu0 0.0
    %1089 = vmatprep.subr.mxu0 0.0
    %1090 = vmatpush1.msra.mxu0 0.0
    %1091 = vmatprep.subr.mxu0 0.0
    %1092 = vmatpush1.msra.mxu0 0.0
    %1093 = vmatprep.subr.mxu0 0.0
    %1094 = vmatpush1.msra.mxu0 0.0
    %1095 = vmatprep.subr.mxu0 0.0
    %1096 = vmatpush1.msra.mxu0 0.0
    %1097 = vmatprep.subr.mxu0 0.0
    %1098 = vmatpush1.msra.mxu0 0.0
    %1099 = vmatprep.subr.mxu0 0.0
    %1100 = vmatpush1.msra.mxu0 0.0
    %1101 = vmatprep.subr.mxu0 0.0
    %1102 = vmatpush1.msra.mxu0 0.0
    %1103 = vmatprep.subr.mxu0 0.0
    %1104 = vmatpush1.msra.mxu0 0.0
    %1105 = vmatprep.mubr.f32.mxu0 0.0
    %1106 = vmatmul.mubr.f32.gmra.mrb[0].mxu0 %v960
    %v1107 = vpop.f32.mrb[0].mxu0
    %v1108 = vadd.f32 0.0, %v1107
    %v1109 = vpop.f32.mrb[0].mxu0
    %1110 = vdwg.mxu0
    %v1111 = vadd.f32 %v1040, %v1108
    %v1112 = vxor.u32 %v1111, 2147483648
    %v1113 = vmul.f32 %v1112, 1.442695
    %v1114 = vpow.pop %v1113
    %v1115 = vadd.f32 %v1114, 1.0
    %v1116 = vrcp.pop %v1115
    %v1117 = vmul.f32 1.0, %v1116
    %s1118 = scalar_lea.vmem [#allocation4], 8
    %v1119 = vld [vmem:[%s1118] sm:$0xff]
    %1120 = vmatprep.subr.mxu0 0.0
    %1121 = vmatpush1.msra.mxu0 %v632
    %1122 = vmatprep.subr.mxu0 0.0
    %1123 = vmatpush1.msra.mxu0 %v633
    %1124 = vmatprep.subr.mxu0 0.0
    %1125 = vmatpush1.msra.mxu0 %v634
    %1126 = vmatprep.subr.mxu0 0.0
    %1127 = vmatpush1.msra.mxu0 %v635
    %1128 = vmatprep.subr.mxu0 0.0
    %1129 = vmatpush1.msra.mxu0 0.0
    %1130 = vmatprep.subr.mxu0 0.0
    %1131 = vmatpush1.msra.mxu0 0.0
    %1132 = vmatprep.subr.mxu0 0.0
    %1133 = vmatpush1.msra.mxu0 0.0
    %1134 = vmatprep.subr.mxu0 0.0
    %1135 = vmatpush1.msra.mxu0 0.0
    %1136 = vmatprep.subr.mxu0 0.0
    %1137 = vmatpush1.msra.mxu0 0.0
    %1138 = vmatprep.subr.mxu0 0.0
    %1139 = vmatpush1.msra.mxu0 0.0
    %1140 = vmatprep.subr.mxu0 0.0
    %1141 = vmatpush1.msra.mxu0 0.0
    %1142 = vmatprep.subr.mxu0 0.0
    %1143 = vmatpush1.msra.mxu0 0.0
    %1144 = vmatprep.subr.mxu0 0.0
    %1145 = vmatpush1.msra.mxu0 0.0
    %1146 = vmatprep.subr.mxu0 0.0
    %1147 = vmatpush1.msra.mxu0 0.0
    %1148 = vmatprep.subr.mxu0 0.0
    %1149 = vmatpush1.msra.mxu0 0.0
    %1150 = vmatprep.subr.mxu0 0.0
    %1151 = vmatpush1.msra.mxu0 0.0
    %1152 = vmatprep.subr.mxu0 0.0
    %1153 = vmatpush1.msra.mxu0 0.0
    %1154 = vmatprep.subr.mxu0 0.0
    %1155 = vmatpush1.msra.mxu0 0.0
    %1156 = vmatprep.subr.mxu0 0.0
    %1157 = vmatpush1.msra.mxu0 0.0
    %1158 = vmatprep.subr.mxu0 0.0
    %1159 = vmatpush1.msra.mxu0 0.0
    %1160 = vmatprep.subr.mxu0 0.0
    %1161 = vmatpush1.msra.mxu0 0.0
    %1162 = vmatprep.subr.mxu0 0.0
    %1163 = vmatpush1.msra.mxu0 0.0
    %1164 = vmatprep.subr.mxu0 0.0
    %1165 = vmatpush1.msra.mxu0 0.0
    %1166 = vmatprep.subr.mxu0 0.0
    %1167 = vmatpush1.msra.mxu0 0.0
    %1168 = vmatprep.subr.mxu0 0.0
    %1169 = vmatpush1.msra.mxu0 0.0
    %1170 = vmatprep.subr.mxu0 0.0
    %1171 = vmatpush1.msra.mxu0 0.0
    %1172 = vmatprep.subr.mxu0 0.0
    %1173 = vmatpush1.msra.mxu0 0.0
    %1174 = vmatprep.subr.mxu0 0.0
    %1175 = vmatpush1.msra.mxu0 0.0
    %1176 = vmatprep.subr.mxu0 0.0
    %1177 = vmatpush1.msra.mxu0 0.0
    %1178 = vmatprep.subr.mxu0 0.0
    %1179 = vmatpush1.msra.mxu0 0.0
    %1180 = vmatprep.subr.mxu0 0.0
    %1181 = vmatpush1.msra.mxu0 0.0
    %1182 = vmatprep.subr.mxu0 0.0
    %1183 = vmatpush1.msra.mxu0 0.0
    %1184 = vmatprep.mubr.f32.mxu0 0.0
    %1185 = vmatmul.mubr.f32.gmra.mrb[0].mxu0 %v960
    %v1186 = vpop.f32.mrb[0].mxu0
    %v1187 = vadd.f32 0.0, %v1186
    %v1188 = vpop.f32.mrb[0].mxu0
    %1189 = vdwg.mxu0
    %v1190 = vadd.f32 %v1119, %v1187
    %v1191 = vtanh.pop %v1190
    %s1192 = scalar_lea.vmem [#allocation5], 8
    %v1193 = vld [vmem:[%s1192] sm:$0xff]
    %1194 = vmatprep.subr.mxu0 0.0
    %1195 = vmatpush1.msra.mxu0 %v637
    %1196 = vmatprep.subr.mxu0 0.0
    %1197 = vmatpush1.msra.mxu0 %v638
    %1198 = vmatprep.subr.mxu0 0.0
    %1199 = vmatpush1.msra.mxu0 %v639
    %1200 = vmatprep.subr.mxu0 0.0
    %1201 = vmatpush1.msra.mxu0 %v640
    %1202 = vmatprep.subr.mxu0 0.0
    %1203 = vmatpush1.msra.mxu0 0.0
    %1204 = vmatprep.subr.mxu0 0.0
    %1205 = vmatpush1.msra.mxu0 0.0
    %1206 = vmatprep.subr.mxu0 0.0
    %1207 = vmatpush1.msra.mxu0 0.0
    %1208 = vmatprep.subr.mxu0 0.0
    %1209 = vmatpush1.msra.mxu0 0.0
    %1210 = vmatprep.subr.mxu0 0.0
    %1211 = vmatpush1.msra.mxu0 0.0
    %1212 = vmatprep.subr.mxu0 0.0
    %1213 = vmatpush1.msra.mxu0 0.0
    %1214 = vmatprep.subr.mxu0 0.0
    %1215 = vmatpush1.msra.mxu0 0.0
    %1216 = vmatprep.subr.mxu0 0.0
    %1217 = vmatpush1.msra.mxu0 0.0
    %1218 = vmatprep.subr.mxu0 0.0
    %1219 = vmatpush1.msra.mxu0 0.0
    %1220 = vmatprep.subr.mxu0 0.0
    %1221 = vmatpush1.msra.mxu0 0.0
    %1222 = vmatprep.subr.mxu0 0.0
    %1223 = vmatpush1.msra.mxu0 0.0
    %1224 = vmatprep.subr.mxu0 0.0
    %1225 = vmatpush1.msra.mxu0 0.0
    %1226 = vmatprep.subr.mxu0 0.0
    %1227 = vmatpush1.msra.mxu0 0.0
    %1228 = vmatprep.subr.mxu0 0.0
    %1229 = vmatpush1.msra.mxu0 0.0
    %1230 = vmatprep.subr.mxu0 0.0
    %1231 = vmatpush1.msra.mxu0 0.0
    %1232 = vmatprep.subr.mxu0 0.0
    %1233 = vmatpush1.msra.mxu0 0.0
    %1234 = vmatprep.subr.mxu0 0.0
    %1235 = vmatpush1.msra.mxu0 0.0
    %1236 = vmatprep.subr.mxu0 0.0
    %1237 = vmatpush1.msra.mxu0 0.0
    %1238 = vmatprep.subr.mxu0 0.0
    %1239 = vmatpush1.msra.mxu0 0.0
    %1240 = vmatprep.subr.mxu0 0.0
    %1241 = vmatpush1.msra.mxu0 0.0
    %1242 = vmatprep.subr.mxu0 0.0
    %1243 = vmatpush1.msra.mxu0 0.0
    %1244 = vmatprep.subr.mxu0 0.0
    %1245 = vmatpush1.msra.mxu0 0.0
    %1246 = vmatprep.subr.mxu0 0.0
    %1247 = vmatpush1.msra.mxu0 0.0
    %1248 = vmatprep.subr.mxu0 0.0
    %1249 = vmatpush1.msra.mxu0 0.0
    %1250 = vmatprep.subr.mxu0 0.0
    %1251 = vmatpush1.msra.mxu0 0.0
    %1252 = vmatprep.subr.mxu0 0.0
    %1253 = vmatpush1.msra.mxu0 0.0
    %1254 = vmatprep.subr.mxu0 0.0
    %1255 = vmatpush1.msra.mxu0 0.0
    %1256 = vmatprep.subr.mxu0 0.0
    %1257 = vmatpush1.msra.mxu0 0.0
    %1258 = vmatprep.mubr.f32.mxu0 0.0
    %1259 = vmatmul.mubr.f32.gmra.mrb[0].mxu0 %v960
    %v1260 = vpop.f32.mrb[0].mxu0
    %v1261 = vadd.f32 0.0, %v1260
    %v1262 = vpop.f32.mrb[0].mxu0
    %1263 = vdwg.mxu0
    %v1264 = vadd.f32 %v1193, %v1261
    %v1265 = vxor.u32 %v1264, 2147483648
    %v1266 = vmul.f32 %v1265, 1.442695
    %v1267 = vpow.pop %v1266
    %v1268 = vadd.f32 %v1267, 1.0
    %v1269 = vrcp.pop %v1268
    %v1270 = vmul.f32 1.0, %v1269
    %v1271 = vmul.f32 %v1117, %v953
    %v1272 = vmul.f32 %v1038, %v1191
    %v1273 = vadd.f32 %v1271, %v1272
    %v1274 = vtanh.pop %v1273
    %v1275 = vmul.f32 %v1270, %v1274
    %s1276 = scalar_lea.vmem [#allocation6], 8
    %1277 = vst.msk [vmem:[%s1276] sm:$0xff] %vm241, %v1275
    %s1278 = scalar_lea.vmem [#allocation2], 16
    %v1279 = vld [vmem:[%s1278] sm:$0xff]
    %v1281 = vsel %vm241, %v1275, 0
    %1283 = vmatprep.subr.mxu0 0.0
    %1284 = vmatpush1.msra.mxu0 %v622
    %1285 = vmatprep.subr.mxu0 0.0
    %1286 = vmatpush1.msra.mxu0 %v623
    %1287 = vmatprep.subr.mxu0 0.0
    %1288 = vmatpush1.msra.mxu0 %v624
    %1289 = vmatprep.subr.mxu0 0.0
    %1290 = vmatpush1.msra.mxu0 %v625
    %1291 = vmatprep.subr.mxu0 0.0
    %1292 = vmatpush1.msra.mxu0 0.0
    %1293 = vmatprep.subr.mxu0 0.0
    %1294 = vmatpush1.msra.mxu0 0.0
    %1295 = vmatprep.subr.mxu0 0.0
    %1296 = vmatpush1.msra.mxu0 0.0
    %1297 = vmatprep.subr.mxu0 0.0
    %1298 = vmatpush1.msra.mxu0 0.0
    %1299 = vmatprep.subr.mxu0 0.0
    %1300 = vmatpush1.msra.mxu0 0.0
    %1301 = vmatprep.subr.mxu0 0.0
    %1302 = vmatpush1.msra.mxu0 0.0
    %1303 = vmatprep.subr.mxu0 0.0
    %1304 = vmatpush1.msra.mxu0 0.0
    %1305 = vmatprep.subr.mxu0 0.0
    %1306 = vmatpush1.msra.mxu0 0.0
    %1307 = vmatprep.subr.mxu0 0.0
    %1308 = vmatpush1.msra.mxu0 0.0
    %1309 = vmatprep.subr.mxu0 0.0
    %1310 = vmatpush1.msra.mxu0 0.0
    %1311 = vmatprep.subr.mxu0 0.0
    %1312 = vmatpush1.msra.mxu0 0.0
    %1313 = vmatprep.subr.mxu0 0.0
    %1314 = vmatpush1.msra.mxu0 0.0
    %1315 = vmatprep.subr.mxu0 0.0
    %1316 = vmatpush1.msra.mxu0 0.0
    %1317 = vmatprep.subr.mxu0 0.0
    %1318 = vmatpush1.msra.mxu0 0.0
    %1319 = vmatprep.subr.mxu0 0.0
    %1320 = vmatpush1.msra.mxu0 0.0
    %1321 = vmatprep.subr.mxu0 0.0
    %1322 = vmatpush1.msra.mxu0 0.0
    %1323 = vmatprep.subr.mxu0 0.0
    %1324 = vmatpush1.msra.mxu0 0.0
    %1325 = vmatprep.subr.mxu0 0.0
    %1326 = vmatpush1.msra.mxu0 0.0
    %1327 = vmatprep.subr.mxu0 0.0
    %1328 = vmatpush1.msra.mxu0 0.0
    %1329 = vmatprep.subr.mxu0 0.0
    %1330 = vmatpush1.msra.mxu0 0.0
    %1331 = vmatprep.subr.mxu0 0.0
    %1332 = vmatpush1.msra.mxu0 0.0
    %1333 = vmatprep.subr.mxu0 0.0
    %1334 = vmatpush1.msra.mxu0 0.0
    %1335 = vmatprep.subr.mxu0 0.0
    %1336 = vmatpush1.msra.mxu0 0.0
    %1337 = vmatprep.subr.mxu0 0.0
    %1338 = vmatpush1.msra.mxu0 0.0
    %1339 = vmatprep.subr.mxu0 0.0
    %1340 = vmatpush1.msra.mxu0 0.0
    %1341 = vmatprep.subr.mxu0 0.0
    %1342 = vmatpush1.msra.mxu0 0.0
    %1343 = vmatprep.subr.mxu0 0.0
    %1344 = vmatpush1.msra.mxu0 0.0
    %1345 = vmatprep.subr.mxu0 0.0
    %1346 = vmatpush1.msra.mxu0 0.0
    %1347 = vmatprep.mubr.f32.mxu0 0.0
    %1348 = vmatmul.mubr.f32.gmra.mrb[0].mxu0 %v1281
    %v1349 = vpop.f32.mrb[0].mxu0
    %v1350 = vadd.f32 0.0, %v1349
    %v1351 = vpop.f32.mrb[0].mxu0
    %1352 = vdwg.mxu0
    %v1353 = vadd.f32 %v1279, %v1350
    %v1354 = vxor.u32 %v1353, 2147483648
    %v1355 = vmul.f32 %v1354, 1.442695
    %v1356 = vpow.pop %v1355
    %v1357 = vadd.f32 %v1356, 1.0
    %v1358 = vrcp.pop %v1357
    %v1359 = vmul.f32 1.0, %v1358
    %s1360 = scalar_lea.vmem [#allocation3], 16
    %v1361 = vld [vmem:[%s1360] sm:$0xff]
    %1362 = vmatprep.subr.mxu0 0.0
    %1363 = vmatpush1.msra.mxu0 %v627
    %1364 = vmatprep.subr.mxu0 0.0
    %1365 = vmatpush1.msra.mxu0 %v628
    %1366 = vmatprep.subr.mxu0 0.0
    %1367 = vmatpush1.msra.mxu0 %v629
    %1368 = vmatprep.subr.mxu0 0.0
    %1369 = vmatpush1.msra.mxu0 %v630
    %1370 = vmatprep.subr.mxu0 0.0
    %1371 = vmatpush1.msra.mxu0 0.0
    %1372 = vmatprep.subr.mxu0 0.0
    %1373 = vmatpush1.msra.mxu0 0.0
    %1374 = vmatprep.subr.mxu0 0.0
    %1375 = vmatpush1.msra.mxu0 0.0
    %1376 = vmatprep.subr.mxu0 0.0
    %1377 = vmatpush1.msra.mxu0 0.0
    %1378 = vmatprep.subr.mxu0 0.0
    %1379 = vmatpush1.msra.mxu0 0.0
    %1380 = vmatprep.subr.mxu0 0.0
    %1381 = vmatpush1.msra.mxu0 0.0
    %1382 = vmatprep.subr.mxu0 0.0
    %1383 = vmatpush1.msra.mxu0 0.0
    %1384 = vmatprep.subr.mxu0 0.0
    %1385 = vmatpush1.msra.mxu0 0.0
    %1386 = vmatprep.subr.mxu0 0.0
    %1387 = vmatpush1.msra.mxu0 0.0
    %1388 = vmatprep.subr.mxu0 0.0
    %1389 = vmatpush1.msra.mxu0 0.0
    %1390 = vmatprep.subr.mxu0 0.0
    %1391 = vmatpush1.msra.mxu0 0.0
    %1392 = vmatprep.subr.mxu0 0.0
    %1393 = vmatpush1.msra.mxu0 0.0
    %1394 = vmatprep.subr.mxu0 0.0
    %1395 = vmatpush1.msra.mxu0 0.0
    %1396 = vmatprep.subr.mxu0 0.0
    %1397 = vmatpush1.msra.mxu0 0.0
    %1398 = vmatprep.subr.mxu0 0.0
    %1399 = vmatpush1.msra.mxu0 0.0
    %1400 = vmatprep.subr.mxu0 0.0
    %1401 = vmatpush1.msra.mxu0 0.0
    %1402 = vmatprep.subr.mxu0 0.0
    %1403 = vmatpush1.msra.mxu0 0.0
    %1404 = vmatprep.subr.mxu0 0.0
    %1405 = vmatpush1.msra.mxu0 0.0
    %1406 = vmatprep.subr.mxu0 0.0
    %1407 = vmatpush1.msra.mxu0 0.0
    %1408 = vmatprep.subr.mxu0 0.0
    %1409 = vmatpush1.msra.mxu0 0.0
    %1410 = vmatprep.subr.mxu0 0.0
    %1411 = vmatpush1.msra.mxu0 0.0
    %1412 = vmatprep.subr.mxu0 0.0
    %1413 = vmatpush1.msra.mxu0 0.0
    %1414 = vmatprep.subr.mxu0 0.0
    %1415 = vmatpush1.msra.mxu0 0.0
    %1416 = vmatprep.subr.mxu0 0.0
    %1417 = vmatpush1.msra.mxu0 0.0
    %1418 = vmatprep.subr.mxu0 0.0
    %1419 = vmatpush1.msra.mxu0 0.0
    %1420 = vmatprep.subr.mxu0 0.0
    %1421 = vmatpush1.msra.mxu0 0.0
    %1422 = vmatprep.subr.mxu0 0.0
    %1423 = vmatpush1.msra.mxu0 0.0
    %1424 = vmatprep.subr.mxu0 0.0
    %1425 = vmatpush1.msra.mxu0 0.0
    %1426 = vmatprep.mubr.f32.mxu0 0.0
    %1427 = vmatmul.mubr.f32.gmra.mrb[0].mxu0 %v1281
    %v1428 = vpop.f32.mrb[0].mxu0
    %v1429 = vadd.f32 0.0, %v1428
    %v1430 = vpop.f32.mrb[0].mxu0
    %1431 = vdwg.mxu0
    %v1432 = vadd.f32 %v1361, %v1429
    %v1433 = vxor.u32 %v1432, 2147483648
    %v1434 = vmul.f32 %v1433, 1.442695
    %v1435 = vpow.pop %v1434
    %v1436 = vadd.f32 %v1435, 1.0
    %v1437 = vrcp.pop %v1436
    %v1438 = vmul.f32 1.0, %v1437
    %s1439 = scalar_lea.vmem [#allocation4], 16
    %v1440 = vld [vmem:[%s1439] sm:$0xff]
    %1441 = vmatprep.subr.mxu0 0.0
    %1442 = vmatpush1.msra.mxu0 %v632
    %1443 = vmatprep.subr.mxu0 0.0
    %1444 = vmatpush1.msra.mxu0 %v633
    %1445 = vmatprep.subr.mxu0 0.0
    %1446 = vmatpush1.msra.mxu0 %v634
    %1447 = vmatprep.subr.mxu0 0.0
    %1448 = vmatpush1.msra.mxu0 %v635
    %1449 = vmatprep.subr.mxu0 0.0
    %1450 = vmatpush1.msra.mxu0 0.0
    %1451 = vmatprep.subr.mxu0 0.0
    %1452 = vmatpush1.msra.mxu0 0.0
    %1453 = vmatprep.subr.mxu0 0.0
    %1454 = vmatpush1.msra.mxu0 0.0
    %1455 = vmatprep.subr.mxu0 0.0
    %1456 = vmatpush1.msra.mxu0 0.0
    %1457 = vmatprep.subr.mxu0 0.0
    %1458 = vmatpush1.msra.mxu0 0.0
    %1459 = vmatprep.subr.mxu0 0.0
    %1460 = vmatpush1.msra.mxu0 0.0
    %1461 = vmatprep.subr.mxu0 0.0
    %1462 = vmatpush1.msra.mxu0 0.0
    %1463 = vmatprep.subr.mxu0 0.0
    %1464 = vmatpush1.msra.mxu0 0.0
    %1465 = vmatprep.subr.mxu0 0.0
    %1466 = vmatpush1.msra.mxu0 0.0
    %1467 = vmatprep.subr.mxu0 0.0
    %1468 = vmatpush1.msra.mxu0 0.0
    %1469 = vmatprep.subr.mxu0 0.0
    %1470 = vmatpush1.msra.mxu0 0.0
    %1471 = vmatprep.subr.mxu0 0.0
    %1472 = vmatpush1.msra.mxu0 0.0
    %1473 = vmatprep.subr.mxu0 0.0
    %1474 = vmatpush1.msra.mxu0 0.0
    %1475 = vmatprep.subr.mxu0 0.0
    %1476 = vmatpush1.msra.mxu0 0.0
    %1477 = vmatprep.subr.mxu0 0.0
    %1478 = vmatpush1.msra.mxu0 0.0
    %1479 = vmatprep.subr.mxu0 0.0
    %1480 = vmatpush1.msra.mxu0 0.0
    %1481 = vmatprep.subr.mxu0 0.0
    %1482 = vmatpush1.msra.mxu0 0.0
    %1483 = vmatprep.subr.mxu0 0.0
    %1484 = vmatpush1.msra.mxu0 0.0
    %1485 = vmatprep.subr.mxu0 0.0
    %1486 = vmatpush1.msra.mxu0 0.0
    %1487 = vmatprep.subr.mxu0 0.0
    %1488 = vmatpush1.msra.mxu0 0.0
    %1489 = vmatprep.subr.mxu0 0.0
    %1490 = vmatpush1.msra.mxu0 0.0
    %1491 = vmatprep.subr.mxu0 0.0
    %1492 = vmatpush1.msra.mxu0 0.0
    %1493 = vmatprep.subr.mxu0 0.0
    %1494 = vmatpush1.msra.mxu0 0.0
    %1495 = vmatprep.subr.mxu0 0.0
    %1496 = vmatpush1.msra.mxu0 0.0
    %1497 = vmatprep.subr.mxu0 0.0
    %1498 = vmatpush1.msra.mxu0 0.0
    %1499 = vmatprep.subr.mxu0 0.0
    %1500 = vmatpush1.msra.mxu0 0.0
    %1501 = vmatprep.subr.mxu0 0.0
    %1502 = vmatpush1.msra.mxu0 0.0
    %1503 = vmatprep.subr.mxu0 0.0
    %1504 = vmatpush1.msra.mxu0 0.0
    %1505 = vmatprep.mubr.f32.mxu0 0.0
    %1506 = vmatmul.mubr.f32.gmra.mrb[0].mxu0 %v1281
    %v1507 = vpop.f32.mrb[0].mxu0
    %v1508 = vadd.f32 0.0, %v1507
    %v1509 = vpop.f32.mrb[0].mxu0
    %1510 = vdwg.mxu0
    %v1511 = vadd.f32 %v1440, %v1508
    %v1512 = vtanh.pop %v1511
    %s1513 = scalar_lea.vmem [#allocation5], 16
    %v1514 = vld [vmem:[%s1513] sm:$0xff]
    %1515 = vmatprep.subr.mxu0 0.0
    %1516 = vmatpush1.msra.mxu0 %v637
    %1517 = vmatprep.subr.mxu0 0.0
    %1518 = vmatpush1.msra.mxu0 %v638
    %1519 = vmatprep.subr.mxu0 0.0
    %1520 = vmatpush1.msra.mxu0 %v639
    %1521 = vmatprep.subr.mxu0 0.0
    %1522 = vmatpush1.msra.mxu0 %v640
    %1523 = vmatprep.subr.mxu0 0.0
    %1524 = vmatpush1.msra.mxu0 0.0
    %1525 = vmatprep.subr.mxu0 0.0
    %1526 = vmatpush1.msra.mxu0 0.0
    %1527 = vmatprep.subr.mxu0 0.0
    %1528 = vmatpush1.msra.mxu0 0.0
    %1529 = vmatprep.subr.mxu0 0.0
    %1530 = vmatpush1.msra.mxu0 0.0
    %1531 = vmatprep.subr.mxu0 0.0
    %1532 = vmatpush1.msra.mxu0 0.0
    %1533 = vmatprep.subr.mxu0 0.0
    %1534 = vmatpush1.msra.mxu0 0.0
    %1535 = vmatprep.subr.mxu0 0.0
    %1536 = vmatpush1.msra.mxu0 0.0
    %1537 = vmatprep.subr.mxu0 0.0
    %1538 = vmatpush1.msra.mxu0 0.0
    %1539 = vmatprep.subr.mxu0 0.0
    %1540 = vmatpush1.msra.mxu0 0.0
    %1541 = vmatprep.subr.mxu0 0.0
    %1542 = vmatpush1.msra.mxu0 0.0
    %1543 = vmatprep.subr.mxu0 0.0
    %1544 = vmatpush1.msra.mxu0 0.0
    %1545 = vmatprep.subr.mxu0 0.0
    %1546 = vmatpush1.msra.mxu0 0.0
    %1547 = vmatprep.subr.mxu0 0.0
    %1548 = vmatpush1.msra.mxu0 0.0
    %1549 = vmatprep.subr.mxu0 0.0
    %1550 = vmatpush1.msra.mxu0 0.0
    %1551 = vmatprep.subr.mxu0 0.0
    %1552 = vmatpush1.msra.mxu0 0.0
    %1553 = vmatprep.subr.mxu0 0.0
    %1554 = vmatpush1.msra.mxu0 0.0
    %1555 = vmatprep.subr.mxu0 0.0
    %1556 = vmatpush1.msra.mxu0 0.0
    %1557 = vmatprep.subr.mxu0 0.0
    %1558 = vmatpush1.msra.mxu0 0.0
    %1559 = vmatprep.subr.mxu0 0.0
    %1560 = vmatpush1.msra.mxu0 0.0
    %1561 = vmatprep.subr.mxu0 0.0
    %1562 = vmatpush1.msra.mxu0 0.0
    %1563 = vmatprep.subr.mxu0 0.0
    %1564 = vmatpush1.msra.mxu0 0.0
    %1565 = vmatprep.subr.mxu0 0.0
    %1566 = vmatpush1.msra.mxu0 0.0
    %1567 = vmatprep.subr.mxu0 0.0
    %1568 = vmatpush1.msra.mxu0 0.0
    %1569 = vmatprep.subr.mxu0 0.0
    %1570 = vmatpush1.msra.mxu0 0.0
    %1571 = vmatprep.subr.mxu0 0.0
    %1572 = vmatpush1.msra.mxu0 0.0
    %1573 = vmatprep.subr.mxu0 0.0
    %1574 = vmatpush1.msra.mxu0 0.0
    %1575 = vmatprep.subr.mxu0 0.0
    %1576 = vmatpush1.msra.mxu0 0.0
    %1577 = vmatprep.subr.mxu0 0.0
    %1578 = vmatpush1.msra.mxu0 0.0
    %1579 = vmatprep.mubr.f32.mxu0 0.0
    %1580 = vmatmul.mubr.f32.gmra.mrb[0].mxu0 %v1281
    %v1581 = vpop.f32.mrb[0].mxu0
    %v1582 = vadd.f32 0.0, %v1581
    %v1583 = vpop.f32.mrb[0].mxu0
    %1584 = vdwg.mxu0
    %v1585 = vadd.f32 %v1514, %v1582
    %v1586 = vxor.u32 %v1585, 2147483648
    %v1587 = vmul.f32 %v1586, 1.442695
    %v1588 = vpow.pop %v1587
    %v1589 = vadd.f32 %v1588, 1.0
    %v1590 = vrcp.pop %v1589
    %v1591 = vmul.f32 1.0, %v1590
    %v1592 = vmul.f32 %v1438, %v1273
    %v1593 = vmul.f32 %v1359, %v1512
    %v1594 = vadd.f32 %v1592, %v1593
    %v1595 = vtanh.pop %v1594
    %v1596 = vmul.f32 %v1591, %v1595
    %s1597 = scalar_lea.vmem [#allocation6], 16
    %1598 = vst.msk [vmem:[%s1597] sm:$0xff] %vm241, %v1596
    %s1599 = scalar_lea.vmem [#allocation2], 24
    %v1600 = vld [vmem:[%s1599] sm:$0xff]
    %v1602 = vsel %vm241, %v1596, 0
    %1604 = vmatprep.subr.mxu0 0.0
    %1605 = vmatpush1.msra.mxu0 %v622
    %1606 = vmatprep.subr.mxu0 0.0
    %1607 = vmatpush1.msra.mxu0 %v623
    %1608 = vmatprep.subr.mxu0 0.0
    %1609 = vmatpush1.msra.mxu0 %v624
    %1610 = vmatprep.subr.mxu0 0.0
    %1611 = vmatpush1.msra.mxu0 %v625
    %1612 = vmatprep.subr.mxu0 0.0
    %1613 = vmatpush1.msra.mxu0 0.0
    %1614 = vmatprep.subr.mxu0 0.0
    %1615 = vmatpush1.msra.mxu0 0.0
    %1616 = vmatprep.subr.mxu0 0.0
    %1617 = vmatpush1.msra.mxu0 0.0
    %1618 = vmatprep.subr.mxu0 0.0
    %1619 = vmatpush1.msra.mxu0 0.0
    %1620 = vmatprep.subr.mxu0 0.0
    %1621 = vmatpush1.msra.mxu0 0.0
    %1622 = vmatprep.subr.mxu0 0.0
    %1623 = vmatpush1.msra.mxu0 0.0
    %1624 = vmatprep.subr.mxu0 0.0
    %1625 = vmatpush1.msra.mxu0 0.0
    %1626 = vmatprep.subr.mxu0 0.0
    %1627 = vmatpush1.msra.mxu0 0.0
    %1628 = vmatprep.subr.mxu0 0.0
    %1629 = vmatpush1.msra.mxu0 0.0
    %1630 = vmatprep.subr.mxu0 0.0
    %1631 = vmatpush1.msra.mxu0 0.0
    %1632 = vmatprep.subr.mxu0 0.0
    %1633 = vmatpush1.msra.mxu0 0.0
    %1634 = vmatprep.subr.mxu0 0.0
    %1635 = vmatpush1.msra.mxu0 0.0
    %1636 = vmatprep.subr.mxu0 0.0
    %1637 = vmatpush1.msra.mxu0 0.0
    %1638 = vmatprep.subr.mxu0 0.0
    %1639 = vmatpush1.msra.mxu0 0.0
    %1640 = vmatprep.subr.mxu0 0.0
    %1641 = vmatpush1.msra.mxu0 0.0
    %1642 = vmatprep.subr.mxu0 0.0
    %1643 = vmatpush1.msra.mxu0 0.0
    %1644 = vmatprep.subr.mxu0 0.0
    %1645 = vmatpush1.msra.mxu0 0.0
    %1646 = vmatprep.subr.mxu0 0.0
    %1647 = vmatpush1.msra.mxu0 0.0
    %1648 = vmatprep.subr.mxu0 0.0
    %1649 = vmatpush1.msra.mxu0 0.0
    %1650 = vmatprep.subr.mxu0 0.0
    %1651 = vmatpush1.msra.mxu0 0.0
    %1652 = vmatprep.subr.mxu0 0.0
    %1653 = vmatpush1.msra.mxu0 0.0
    %1654 = vmatprep.subr.mxu0 0.0
    %1655 = vmatpush1.msra.mxu0 0.0
    %1656 = vmatprep.subr.mxu0 0.0
    %1657 = vmatpush1.msra.mxu0 0.0
    %1658 = vmatprep.subr.mxu0 0.0
    %1659 = vmatpush1.msra.mxu0 0.0
    %1660 = vmatprep.subr.mxu0 0.0
    %1661 = vmatpush1.msra.mxu0 0.0
    %1662 = vmatprep.subr.mxu0 0.0
    %1663 = vmatpush1.msra.mxu0 0.0
    %1664 = vmatprep.subr.mxu0 0.0
    %1665 = vmatpush1.msra.mxu0 0.0
    %1666 = vmatprep.subr.mxu0 0.0
    %1667 = vmatpush1.msra.mxu0 0.0
    %1668 = vmatprep.mubr.f32.mxu0 0.0
    %1669 = vmatmul.mubr.f32.gmra.mrb[0].mxu0 %v1602
    %v1670 = vpop.f32.mrb[0].mxu0
    %v1671 = vadd.f32 0.0, %v1670
    %v1672 = vpop.f32.mrb[0].mxu0
    %1673 = vdwg.mxu0
    %v1674 = vadd.f32 %v1600, %v1671
    %v1675 = vxor.u32 %v1674, 2147483648
    %v1676 = vmul.f32 %v1675, 1.442695
    %v1677 = vpow.pop %v1676
    %v1678 = vadd.f32 %v1677, 1.0
    %v1679 = vrcp.pop %v1678
    %v1680 = vmul.f32 1.0, %v1679
    %s1681 = scalar_lea.vmem [#allocation3], 24
    %v1682 = vld [vmem:[%s1681] sm:$0xff]
    %1683 = vmatprep.subr.mxu0 0.0
    %1684 = vmatpush1.msra.mxu0 %v627
    %1685 = vmatprep.subr.mxu0 0.0
    %1686 = vmatpush1.msra.mxu0 %v628
    %1687 = vmatprep.subr.mxu0 0.0
    %1688 = vmatpush1.msra.mxu0 %v629
    %1689 = vmatprep.subr.mxu0 0.0
    %1690 = vmatpush1.msra.mxu0 %v630
    %1691 = vmatprep.subr.mxu0 0.0
    %1692 = vmatpush1.msra.mxu0 0.0
    %1693 = vmatprep.subr.mxu0 0.0
    %1694 = vmatpush1.msra.mxu0 0.0
    %1695 = vmatprep.subr.mxu0 0.0
    %1696 = vmatpush1.msra.mxu0 0.0
    %1697 = vmatprep.subr.mxu0 0.0
    %1698 = vmatpush1.msra.mxu0 0.0
    %1699 = vmatprep.subr.mxu0 0.0
    %1700 = vmatpush1.msra.mxu0 0.0
    %1701 = vmatprep.subr.mxu0 0.0
    %1702 = vmatpush1.msra.mxu0 0.0
    %1703 = vmatprep.subr.mxu0 0.0
    %1704 = vmatpush1.msra.mxu0 0.0
    %1705 = vmatprep.subr.mxu0 0.0
    %1706 = vmatpush1.msra.mxu0 0.0
    %1707 = vmatprep.subr.mxu0 0.0
    %1708 = vmatpush1.msra.mxu0 0.0
    %1709 = vmatprep.subr.mxu0 0.0
    %1710 = vmatpush1.msra.mxu0 0.0
    %1711 = vmatprep.subr.mxu0 0.0
    %1712 = vmatpush1.msra.mxu0 0.0
    %1713 = vmatprep.subr.mxu0 0.0
    %1714 = vmatpush1.msra.mxu0 0.0
    %1715 = vmatprep.subr.mxu0 0.0
    %1716 = vmatpush1.msra.mxu0 0.0
    %1717 = vmatprep.subr.mxu0 0.0
    %1718 = vmatpush1.msra.mxu0 0.0
    %1719 = vmatprep.subr.mxu0 0.0
    %1720 = vmatpush1.msra.mxu0 0.0
    %1721 = vmatprep.subr.mxu0 0.0
    %1722 = vmatpush1.msra.mxu0 0.0
    %1723 = vmatprep.subr.mxu0 0.0
    %1724 = vmatpush1.msra.mxu0 0.0
    %1725 = vmatprep.subr.mxu0 0.0
    %1726 = vmatpush1.msra.mxu0 0.0
    %1727 = vmatprep.subr.mxu0 0.0
    %1728 = vmatpush1.msra.mxu0 0.0
    %1729 = vmatprep.subr.mxu0 0.0
    %1730 = vmatpush1.msra.mxu0 0.0
    %1731 = vmatprep.subr.mxu0 0.0
    %1732 = vmatpush1.msra.mxu0 0.0
    %1733 = vmatprep.subr.mxu0 0.0
    %1734 = vmatpush1.msra.mxu0 0.0
    %1735 = vmatprep.subr.mxu0 0.0
    %1736 = vmatpush1.msra.mxu0 0.0
    %1737 = vmatprep.subr.mxu0 0.0
    %1738 = vmatpush1.msra.mxu0 0.0
    %1739 = vmatprep.subr.mxu0 0.0
    %1740 = vmatpush1.msra.mxu0 0.0
    %1741 = vmatprep.subr.mxu0 0.0
    %1742 = vmatpush1.msra.mxu0 0.0
    %1743 = vmatprep.subr.mxu0 0.0
    %1744 = vmatpush1.msra.mxu0 0.0
    %1745 = vmatprep.subr.mxu0 0.0
    %1746 = vmatpush1.msra.mxu0 0.0
    %1747 = vmatprep.mubr.f32.mxu0 0.0
    %1748 = vmatmul.mubr.f32.gmra.mrb[0].mxu0 %v1602
    %v1749 = vpop.f32.mrb[0].mxu0
    %v1750 = vadd.f32 0.0, %v1749
    %v1751 = vpop.f32.mrb[0].mxu0
    %1752 = vdwg.mxu0
    %v1753 = vadd.f32 %v1682, %v1750
    %v1754 = vxor.u32 %v1753, 2147483648
    %v1755 = vmul.f32 %v1754, 1.442695
    %v1756 = vpow.pop %v1755
    %v1757 = vadd.f32 %v1756, 1.0
    %v1758 = vrcp.pop %v1757
    %v1759 = vmul.f32 1.0, %v1758
    %s1760 = scalar_lea.vmem [#allocation4], 24
    %v1761 = vld [vmem:[%s1760] sm:$0xff]
    %1762 = vmatprep.subr.mxu0 0.0
    %1763 = vmatpush1.msra.mxu0 %v632
    %1764 = vmatprep.subr.mxu0 0.0
    %1765 = vmatpush1.msra.mxu0 %v633
    %1766 = vmatprep.subr.mxu0 0.0
    %1767 = vmatpush1.msra.mxu0 %v634
    %1768 = vmatprep.subr.mxu0 0.0
    %1769 = vmatpush1.msra.mxu0 %v635
    %1770 = vmatprep.subr.mxu0 0.0
    %1771 = vmatpush1.msra.mxu0 0.0
    %1772 = vmatprep.subr.mxu0 0.0
    %1773 = vmatpush1.msra.mxu0 0.0
    %1774 = vmatprep.subr.mxu0 0.0
    %1775 = vmatpush1.msra.mxu0 0.0
    %1776 = vmatprep.subr.mxu0 0.0
    %1777 = vmatpush1.msra.mxu0 0.0
    %1778 = vmatprep.subr.mxu0 0.0
    %1779 = vmatpush1.msra.mxu0 0.0
    %1780 = vmatprep.subr.mxu0 0.0
    %1781 = vmatpush1.msra.mxu0 0.0
    %1782 = vmatprep.subr.mxu0 0.0
    %1783 = vmatpush1.msra.mxu0 0.0
    %1784 = vmatprep.subr.mxu0 0.0
    %1785 = vmatpush1.msra.mxu0 0.0
    %1786 = vmatprep.subr.mxu0 0.0
    %1787 = vmatpush1.msra.mxu0 0.0
    %1788 = vmatprep.subr.mxu0 0.0
    %1789 = vmatpush1.msra.mxu0 0.0
    %1790 = vmatprep.subr.mxu0 0.0
    %1791 = vmatpush1.msra.mxu0 0.0
    %1792 = vmatprep.subr.mxu0 0.0
    %1793 = vmatpush1.msra.mxu0 0.0
    %1794 = vmatprep.subr.mxu0 0.0
    %1795 = vmatpush1.msra.mxu0 0.0
    %1796 = vmatprep.subr.mxu0 0.0
    %1797 = vmatpush1.msra.mxu0 0.0
    %1798 = vmatprep.subr.mxu0 0.0
    %1799 = vmatpush1.msra.mxu0 0.0
    %1800 = vmatprep.subr.mxu0 0.0
    %1801 = vmatpush1.msra.mxu0 0.0
    %1802 = vmatprep.subr.mxu0 0.0
    %1803 = vmatpush1.msra.mxu0 0.0
    %1804 = vmatprep.subr.mxu0 0.0
    %1805 = vmatpush1.msra.mxu0 0.0
    %1806 = vmatprep.subr.mxu0 0.0
    %1807 = vmatpush1.msra.mxu0 0.0
    %1808 = vmatprep.subr.mxu0 0.0
    %1809 = vmatpush1.msra.mxu0 0.0
    %1810 = vmatprep.subr.mxu0 0.0
    %1811 = vmatpush1.msra.mxu0 0.0
    %1812 = vmatprep.subr.mxu0 0.0
    %1813 = vmatpush1.msra.mxu0 0.0
    %1814 = vmatprep.subr.mxu0 0.0
    %1815 = vmatpush1.msra.mxu0 0.0
    %1816 = vmatprep.subr.mxu0 0.0
    %1817 = vmatpush1.msra.mxu0 0.0
    %1818 = vmatprep.subr.mxu0 0.0
    %1819 = vmatpush1.msra.mxu0 0.0
    %1820 = vmatprep.subr.mxu0 0.0
    %1821 = vmatpush1.msra.mxu0 0.0
    %1822 = vmatprep.subr.mxu0 0.0
    %1823 = vmatpush1.msra.mxu0 0.0
    %1824 = vmatprep.subr.mxu0 0.0
    %1825 = vmatpush1.msra.mxu0 0.0
    %1826 = vmatprep.mubr.f32.mxu0 0.0
    %1827 = vmatmul.mubr.f32.gmra.mrb[0].mxu0 %v1602
    %v1828 = vpop.f32.mrb[0].mxu0
    %v1829 = vadd.f32 0.0, %v1828
    %v1830 = vpop.f32.mrb[0].mxu0
    %1831 = vdwg.mxu0
    %v1832 = vadd.f32 %v1761, %v1829
    %v1833 = vtanh.pop %v1832
    %s1834 = scalar_lea.vmem [#allocation5], 24
    %v1835 = vld [vmem:[%s1834] sm:$0xff]
    %1836 = vmatprep.subr.mxu0 0.0
    %1837 = vmatpush1.msra.mxu0 %v637
    %1838 = vmatprep.subr.mxu0 0.0
    %1839 = vmatpush1.msra.mxu0 %v638
    %1840 = vmatprep.subr.mxu0 0.0
    %1841 = vmatpush1.msra.mxu0 %v639
    %1842 = vmatprep.subr.mxu0 0.0
    %1843 = vmatpush1.msra.mxu0 %v640
    %1844 = vmatprep.subr.mxu0 0.0
    %1845 = vmatpush1.msra.mxu0 0.0
    %1846 = vmatprep.subr.mxu0 0.0
    %1847 = vmatpush1.msra.mxu0 0.0
    %1848 = vmatprep.subr.mxu0 0.0
    %1849 = vmatpush1.msra.mxu0 0.0
    %1850 = vmatprep.subr.mxu0 0.0
    %1851 = vmatpush1.msra.mxu0 0.0
    %1852 = vmatprep.subr.mxu0 0.0
    %1853 = vmatpush1.msra.mxu0 0.0
    %1854 = vmatprep.subr.mxu0 0.0
    %1855 = vmatpush1.msra.mxu0 0.0
    %1856 = vmatprep.subr.mxu0 0.0
    %1857 = vmatpush1.msra.mxu0 0.0
    %1858 = vmatprep.subr.mxu0 0.0
    %1859 = vmatpush1.msra.mxu0 0.0
    %1860 = vmatprep.subr.mxu0 0.0
    %1861 = vmatpush1.msra.mxu0 0.0
    %1862 = vmatprep.subr.mxu0 0.0
    %1863 = vmatpush1.msra.mxu0 0.0
    %1864 = vmatprep.subr.mxu0 0.0
    %1865 = vmatpush1.msra.mxu0 0.0
    %1866 = vmatprep.subr.mxu0 0.0
    %1867 = vmatpush1.msra.mxu0 0.0
    %1868 = vmatprep.subr.mxu0 0.0
    %1869 = vmatpush1.msra.mxu0 0.0
    %1870 = vmatprep.subr.mxu0 0.0
    %1871 = vmatpush1.msra.mxu0 0.0
    %1872 = vmatprep.subr.mxu0 0.0
    %1873 = vmatpush1.msra.mxu0 0.0
    %1874 = vmatprep.subr.mxu0 0.0
    %1875 = vmatpush1.msra.mxu0 0.0
    %1876 = vmatprep.subr.mxu0 0.0
    %1877 = vmatpush1.msra.mxu0 0.0
    %1878 = vmatprep.subr.mxu0 0.0
    %1879 = vmatpush1.msra.mxu0 0.0
    %1880 = vmatprep.subr.mxu0 0.0
    %1881 = vmatpush1.msra.mxu0 0.0
    %1882 = vmatprep.subr.mxu0 0.0
    %1883 = vmatpush1.msra.mxu0 0.0
    %1884 = vmatprep.subr.mxu0 0.0
    %1885 = vmatpush1.msra.mxu0 0.0
    %1886 = vmatprep.subr.mxu0 0.0
    %1887 = vmatpush1.msra.mxu0 0.0
    %1888 = vmatprep.subr.mxu0 0.0
    %1889 = vmatpush1.msra.mxu0 0.0
    %1890 = vmatprep.subr.mxu0 0.0
    %1891 = vmatpush1.msra.mxu0 0.0
    %1892 = vmatprep.subr.mxu0 0.0
    %1893 = vmatpush1.msra.mxu0 0.0
    %1894 = vmatprep.subr.mxu0 0.0
    %1895 = vmatpush1.msra.mxu0 0.0
    %1896 = vmatprep.subr.mxu0 0.0
    %1897 = vmatpush1.msra.mxu0 0.0
    %1898 = vmatprep.subr.mxu0 0.0
    %1899 = vmatpush1.msra.mxu0 0.0
    %1900 = vmatprep.mubr.f32.mxu0 0.0
    %1901 = vmatmul.mubr.f32.gmra.mrb[0].mxu0 %v1602
    %v1902 = vpop.f32.mrb[0].mxu0
    %v1903 = vadd.f32 0.0, %v1902
    %v1904 = vpop.f32.mrb[0].mxu0
    %1905 = vdwg.mxu0
    %v1906 = vadd.f32 %v1835, %v1903
    %v1907 = vxor.u32 %v1906, 2147483648
    %v1908 = vmul.f32 %v1907, 1.442695
    %v1909 = vpow.pop %v1908
    %v1910 = vadd.f32 %v1909, 1.0
    %v1911 = vrcp.pop %v1910
    %v1912 = vmul.f32 1.0, %v1911
    %v1913 = vmul.f32 %v1759, %v1594
    %v1914 = vmul.f32 %v1680, %v1833
    %v1915 = vadd.f32 %v1913, %v1914
    %v1916 = vtanh.pop %v1915
    %v1917 = vmul.f32 %v1912, %v1916
    %s1918 = scalar_lea.vmem [#allocation6], 24
    %1919 = vst.msk [vmem:[%s1918] sm:$0xff] %vm241, %v1917
    %s1920 = scalar_lea.vmem [#allocation2], 32
    %v1921 = vld [vmem:[%s1920] sm:$0xff]
    %v1923 = vsel %vm241, %v1917, 0
    %1925 = vmatprep.subr.mxu0 0.0
    %1926 = vmatpush1.msra.mxu0 %v622
    %1927 = vmatprep.subr.mxu0 0.0
    %1928 = vmatpush1.msra.mxu0 %v623
    %1929 = vmatprep.subr.mxu0 0.0
    %1930 = vmatpush1.msra.mxu0 %v624
    %1931 = vmatprep.subr.mxu0 0.0
    %1932 = vmatpush1.msra.mxu0 %v625
    %1933 = vmatprep.subr.mxu0 0.0
    %1934 = vmatpush1.msra.mxu0 0.0
    %1935 = vmatprep.subr.mxu0 0.0
    %1936 = vmatpush1.msra.mxu0 0.0
    %1937 = vmatprep.subr.mxu0 0.0
    %1938 = vmatpush1.msra.mxu0 0.0
    %1939 = vmatprep.subr.mxu0 0.0
    %1940 = vmatpush1.msra.mxu0 0.0
    %1941 = vmatprep.subr.mxu0 0.0
    %1942 = vmatpush1.msra.mxu0 0.0
    %1943 = vmatprep.subr.mxu0 0.0
    %1944 = vmatpush1.msra.mxu0 0.0
    %1945 = vmatprep.subr.mxu0 0.0
    %1946 = vmatpush1.msra.mxu0 0.0
    %1947 = vmatprep.subr.mxu0 0.0
    %1948 = vmatpush1.msra.mxu0 0.0
    %1949 = vmatprep.subr.mxu0 0.0
    %1950 = vmatpush1.msra.mxu0 0.0
    %1951 = vmatprep.subr.mxu0 0.0
    %1952 = vmatpush1.msra.mxu0 0.0
    %1953 = vmatprep.subr.mxu0 0.0
    %1954 = vmatpush1.msra.mxu0 0.0
    %1955 = vmatprep.subr.mxu0 0.0
    %1956 = vmatpush1.msra.mxu0 0.0
    %1957 = vmatprep.subr.mxu0 0.0
    %1958 = vmatpush1.msra.mxu0 0.0
    %1959 = vmatprep.subr.mxu0 0.0
    %1960 = vmatpush1.msra.mxu0 0.0
    %1961 = vmatprep.subr.mxu0 0.0
    %1962 = vmatpush1.msra.mxu0 0.0
    %1963 = vmatprep.subr.mxu0 0.0
    %1964 = vmatpush1.msra.mxu0 0.0
    %1965 = vmatprep.subr.mxu0 0.0
    %1966 = vmatpush1.msra.mxu0 0.0
    %1967 = vmatprep.subr.mxu0 0.0
    %1968 = vmatpush1.msra.mxu0 0.0
    %1969 = vmatprep.subr.mxu0 0.0
    %1970 = vmatpush1.msra.mxu0 0.0
    %1971 = vmatprep.subr.mxu0 0.0
    %1972 = vmatpush1.msra.mxu0 0.0
    %1973 = vmatprep.subr.mxu0 0.0
    %1974 = vmatpush1.msra.mxu0 0.0
    %1975 = vmatprep.subr.mxu0 0.0
    %1976 = vmatpush1.msra.mxu0 0.0
    %1977 = vmatprep.subr.mxu0 0.0
    %1978 = vmatpush1.msra.mxu0 0.0
    %1979 = vmatprep.subr.mxu0 0.0
    %1980 = vmatpush1.msra.mxu0 0.0
    %1981 = vmatprep.subr.mxu0 0.0
    %1982 = vmatpush1.msra.mxu0 0.0
    %1983 = vmatprep.subr.mxu0 0.0
    %1984 = vmatpush1.msra.mxu0 0.0
    %1985 = vmatprep.subr.mxu0 0.0
    %1986 = vmatpush1.msra.mxu0 0.0
    %1987 = vmatprep.subr.mxu0 0.0
    %1988 = vmatpush1.msra.mxu0 0.0
    %1989 = vmatprep.mubr.f32.mxu0 0.0
    %1990 = vmatmul.mubr.f32.gmra.mrb[0].mxu0 %v1923
    %v1991 = vpop.f32.mrb[0].mxu0
    %v1992 = vadd.f32 0.0, %v1991
    %v1993 = vpop.f32.mrb[0].mxu0
    %1994 = vdwg.mxu0
    %v1995 = vadd.f32 %v1921, %v1992
    %v1996 = vxor.u32 %v1995, 2147483648
    %v1997 = vmul.f32 %v1996, 1.442695
    %v1998 = vpow.pop %v1997
    %v1999 = vadd.f32 %v1998, 1.0
    %v2000 = vrcp.pop %v1999
    %v2001 = vmul.f32 1.0, %v2000
    %s2002 = scalar_lea.vmem [#allocation3], 32
    %v2003 = vld [vmem:[%s2002] sm:$0xff]
    %2004 = vmatprep.subr.mxu0 0.0
    %2005 = vmatpush1.msra.mxu0 %v627
    %2006 = vmatprep.subr.mxu0 0.0
    %2007 = vmatpush1.msra.mxu0 %v628
    %2008 = vmatprep.subr.mxu0 0.0
    %2009 = vmatpush1.msra.mxu0 %v629
    %2010 = vmatprep.subr.mxu0 0.0
    %2011 = vmatpush1.msra.mxu0 %v630
    %2012 = vmatprep.subr.mxu0 0.0
    %2013 = vmatpush1.msra.mxu0 0.0
    %2014 = vmatprep.subr.mxu0 0.0
    %2015 = vmatpush1.msra.mxu0 0.0
    %2016 = vmatprep.subr.mxu0 0.0
    %2017 = vmatpush1.msra.mxu0 0.0
    %2018 = vmatprep.subr.mxu0 0.0
    %2019 = vmatpush1.msra.mxu0 0.0
    %2020 = vmatprep.subr.mxu0 0.0
    %2021 = vmatpush1.msra.mxu0 0.0
    %2022 = vmatprep.subr.mxu0 0.0
    %2023 = vmatpush1.msra.mxu0 0.0
    %2024 = vmatprep.subr.mxu0 0.0
    %2025 = vmatpush1.msra.mxu0 0.0
    %2026 = vmatprep.subr.mxu0 0.0
    %2027 = vmatpush1.msra.mxu0 0.0
    %2028 = vmatprep.subr.mxu0 0.0
    %2029 = vmatpush1.msra.mxu0 0.0
    %2030 = vmatprep.subr.mxu0 0.0
    %2031 = vmatpush1.msra.mxu0 0.0
    %2032 = vmatprep.subr.mxu0 0.0
    %2033 = vmatpush1.msra.mxu0 0.0
    %2034 = vmatprep.subr.mxu0 0.0
    %2035 = vmatpush1.msra.mxu0 0.0
    %2036 = vmatprep.subr.mxu0 0.0
    %2037 = vmatpush1.msra.mxu0 0.0
    %2038 = vmatprep.subr.mxu0 0.0
    %2039 = vmatpush1.msra.mxu0 0.0
    %2040 = vmatprep.subr.mxu0 0.0
    %2041 = vmatpush1.msra.mxu0 0.0
    %2042 = vmatprep.subr.mxu0 0.0
    %2043 = vmatpush1.msra.mxu0 0.0
    %2044 = vmatprep.subr.mxu0 0.0
    %2045 = vmatpush1.msra.mxu0 0.0
    %2046 = vmatprep.subr.mxu0 0.0
    %2047 = vmatpush1.msra.mxu0 0.0
    %2048 = vmatprep.subr.mxu0 0.0
    %2049 = vmatpush1.msra.mxu0 0.0
    %2050 = vmatprep.subr.mxu0 0.0
    %2051 = vmatpush1.msra.mxu0 0.0
    %2052 = vmatprep.subr.mxu0 0.0
    %2053 = vmatpush1.msra.mxu0 0.0
    %2054 = vmatprep.subr.mxu0 0.0
    %2055 = vmatpush1.msra.mxu0 0.0
    %2056 = vmatprep.subr.mxu0 0.0
    %2057 = vmatpush1.msra.mxu0 0.0
    %2058 = vmatprep.subr.mxu0 0.0
    %2059 = vmatpush1.msra.mxu0 0.0
    %2060 = vmatprep.subr.mxu0 0.0
    %2061 = vmatpush1.msra.mxu0 0.0
    %2062 = vmatprep.subr.mxu0 0.0
    %2063 = vmatpush1.msra.mxu0 0.0
    %2064 = vmatprep.subr.mxu0 0.0
    %2065 = vmatpush1.msra.mxu0 0.0
    %2066 = vmatprep.subr.mxu0 0.0
    %2067 = vmatpush1.msra.mxu0 0.0
    %2068 = vmatprep.mubr.f32.mxu0 0.0
    %2069 = vmatmul.mubr.f32.gmra.mrb[0].mxu0 %v1923
    %v2070 = vpop.f32.mrb[0].mxu0
    %v2071 = vadd.f32 0.0, %v2070
    %v2072 = vpop.f32.mrb[0].mxu0
    %2073 = vdwg.mxu0
    %v2074 = vadd.f32 %v2003, %v2071
    %v2075 = vxor.u32 %v2074, 2147483648
    %v2076 = vmul.f32 %v2075, 1.442695
    %v2077 = vpow.pop %v2076
    %v2078 = vadd.f32 %v2077, 1.0
    %v2079 = vrcp.pop %v2078
    %v2080 = vmul.f32 1.0, %v2079
    %s2081 = scalar_lea.vmem [#allocation4], 32
    %v2082 = vld [vmem:[%s2081] sm:$0xff]
    %2083 = vmatprep.subr.mxu0 0.0
    %2084 = vmatpush1.msra.mxu0 %v632
    %2085 = vmatprep.subr.mxu0 0.0
    %2086 = vmatpush1.msra.mxu0 %v633
    %2087 = vmatprep.subr.mxu0 0.0
    %2088 = vmatpush1.msra.mxu0 %v634
    %2089 = vmatprep.subr.mxu0 0.0
    %2090 = vmatpush1.msra.mxu0 %v635
    %2091 = vmatprep.subr.mxu0 0.0
    %2092 = vmatpush1.msra.mxu0 0.0
    %2093 = vmatprep.subr.mxu0 0.0
    %2094 = vmatpush1.msra.mxu0 0.0
    %2095 = vmatprep.subr.mxu0 0.0
    %2096 = vmatpush1.msra.mxu0 0.0
    %2097 = vmatprep.subr.mxu0 0.0
    %2098 = vmatpush1.msra.mxu0 0.0
    %2099 = vmatprep.subr.mxu0 0.0
    %2100 = vmatpush1.msra.mxu0 0.0
    %2101 = vmatprep.subr.mxu0 0.0
    %2102 = vmatpush1.msra.mxu0 0.0
    %2103 = vmatprep.subr.mxu0 0.0
    %2104 = vmatpush1.msra.mxu0 0.0
    %2105 = vmatprep.subr.mxu0 0.0
    %2106 = vmatpush1.msra.mxu0 0.0
    %2107 = vmatprep.subr.mxu0 0.0
    %2108 = vmatpush1.msra.mxu0 0.0
    %2109 = vmatprep.subr.mxu0 0.0
    %2110 = vmatpush1.msra.mxu0 0.0
    %2111 = vmatprep.subr.mxu0 0.0
    %2112 = vmatpush1.msra.mxu0 0.0
    %2113 = vmatprep.subr.mxu0 0.0
    %2114 = vmatpush1.msra.mxu0 0.0
    %2115 = vmatprep.subr.mxu0 0.0
    %2116 = vmatpush1.msra.mxu0 0.0
    %2117 = vmatprep.subr.mxu0 0.0
    %2118 = vmatpush1.msra.mxu0 0.0
    %2119 = vmatprep.subr.mxu0 0.0
    %2120 = vmatpush1.msra.mxu0 0.0
    %2121 = vmatprep.subr.mxu0 0.0
    %2122 = vmatpush1.msra.mxu0 0.0
    %2123 = vmatprep.subr.mxu0 0.0
    %2124 = vmatpush1.msra.mxu0 0.0
    %2125 = vmatprep.subr.mxu0 0.0
    %2126 = vmatpush1.msra.mxu0 0.0
    %2127 = vmatprep.subr.mxu0 0.0
    %2128 = vmatpush1.msra.mxu0 0.0
    %2129 = vmatprep.subr.mxu0 0.0
    %2130 = vmatpush1.msra.mxu0 0.0
    %2131 = vmatprep.subr.mxu0 0.0
    %2132 = vmatpush1.msra.mxu0 0.0
    %2133 = vmatprep.subr.mxu0 0.0
    %2134 = vmatpush1.msra.mxu0 0.0
    %2135 = vmatprep.subr.mxu0 0.0
    %2136 = vmatpush1.msra.mxu0 0.0
    %2137 = vmatprep.subr.mxu0 0.0
    %2138 = vmatpush1.msra.mxu0 0.0
    %2139 = vmatprep.subr.mxu0 0.0
    %2140 = vmatpush1.msra.mxu0 0.0
    %2141 = vmatprep.subr.mxu0 0.0
    %2142 = vmatpush1.msra.mxu0 0.0
    %2143 = vmatprep.subr.mxu0 0.0
    %2144 = vmatpush1.msra.mxu0 0.0
    %2145 = vmatprep.subr.mxu0 0.0
    %2146 = vmatpush1.msra.mxu0 0.0
    %2147 = vmatprep.mubr.f32.mxu0 0.0
    %2148 = vmatmul.mubr.f32.gmra.mrb[0].mxu0 %v1923
    %v2149 = vpop.f32.mrb[0].mxu0
    %v2150 = vadd.f32 0.0, %v2149
    %v2151 = vpop.f32.mrb[0].mxu0
    %2152 = vdwg.mxu0
    %v2153 = vadd.f32 %v2082, %v2150
    %v2154 = vtanh.pop %v2153
    %s2155 = scalar_lea.vmem [#allocation5], 32
    %v2156 = vld [vmem:[%s2155] sm:$0xff]
    %2157 = vmatprep.subr.mxu0 0.0
    %2158 = vmatpush1.msra.mxu0 %v637
    %2159 = vmatprep.subr.mxu0 0.0
    %2160 = vmatpush1.msra.mxu0 %v638
    %2161 = vmatprep.subr.mxu0 0.0
    %2162 = vmatpush1.msra.mxu0 %v639
    %2163 = vmatprep.subr.mxu0 0.0
    %2164 = vmatpush1.msra.mxu0 %v640
    %2165 = vmatprep.subr.mxu0 0.0
    %2166 = vmatpush1.msra.mxu0 0.0
    %2167 = vmatprep.subr.mxu0 0.0
    %2168 = vmatpush1.msra.mxu0 0.0
    %2169 = vmatprep.subr.mxu0 0.0
    %2170 = vmatpush1.msra.mxu0 0.0
    %2171 = vmatprep.subr.mxu0 0.0
    %2172 = vmatpush1.msra.mxu0 0.0
    %2173 = vmatprep.subr.mxu0 0.0
    %2174 = vmatpush1.msra.mxu0 0.0
    %2175 = vmatprep.subr.mxu0 0.0
    %2176 = vmatpush1.msra.mxu0 0.0
    %2177 = vmatprep.subr.mxu0 0.0
    %2178 = vmatpush1.msra.mxu0 0.0
    %2179 = vmatprep.subr.mxu0 0.0
    %2180 = vmatpush1.msra.mxu0 0.0
    %2181 = vmatprep.subr.mxu0 0.0
    %2182 = vmatpush1.msra.mxu0 0.0
    %2183 = vmatprep.subr.mxu0 0.0
    %2184 = vmatpush1.msra.mxu0 0.0
    %2185 = vmatprep.subr.mxu0 0.0
    %2186 = vmatpush1.msra.mxu0 0.0
    %2187 = vmatprep.subr.mxu0 0.0
    %2188 = vmatpush1.msra.mxu0 0.0
    %2189 = vmatprep.subr.mxu0 0.0
    %2190 = vmatpush1.msra.mxu0 0.0
    %2191 = vmatprep.subr.mxu0 0.0
    %2192 = vmatpush1.msra.mxu0 0.0
    %2193 = vmatprep.subr.mxu0 0.0
    %2194 = vmatpush1.msra.mxu0 0.0
    %2195 = vmatprep.subr.mxu0 0.0
    %2196 = vmatpush1.msra.mxu0 0.0
    %2197 = vmatprep.subr.mxu0 0.0
    %2198 = vmatpush1.msra.mxu0 0.0
    %2199 = vmatprep.subr.mxu0 0.0
    %2200 = vmatpush1.msra.mxu0 0.0
    %2201 = vmatprep.subr.mxu0 0.0
    %2202 = vmatpush1.msra.mxu0 0.0
    %2203 = vmatprep.subr.mxu0 0.0
    %2204 = vmatpush1.msra.mxu0 0.0
    %2205 = vmatprep.subr.mxu0 0.0
    %2206 = vmatpush1.msra.mxu0 0.0
    %2207 = vmatprep.subr.mxu0 0.0
    %2208 = vmatpush1.msra.mxu0 0.0
    %2209 = vmatprep.subr.mxu0 0.0
    %2210 = vmatpush1.msra.mxu0 0.0
    %2211 = vmatprep.subr.mxu0 0.0
    %2212 = vmatpush1.msra.mxu0 0.0
    %2213 = vmatprep.subr.mxu0 0.0
    %2214 = vmatpush1.msra.mxu0 0.0
    %2215 = vmatprep.subr.mxu0 0.0
    %2216 = vmatpush1.msra.mxu0 0.0
    %2217 = vmatprep.subr.mxu0 0.0
    %2218 = vmatpush1.msra.mxu0 0.0
    %2219 = vmatprep.subr.mxu0 0.0
    %2220 = vmatpush1.msra.mxu0 0.0
    %2221 = vmatprep.mubr.f32.mxu0 0.0
    %2222 = vmatmul.mubr.f32.gmra.mrb[0].mxu0 %v1923
    %v2223 = vpop.f32.mrb[0].mxu0
    %v2224 = vadd.f32 0.0, %v2223
    %v2225 = vpop.f32.mrb[0].mxu0
    %2226 = vdwg.mxu0
    %v2227 = vadd.f32 %v2156, %v2224
    %v2228 = vxor.u32 %v2227, 2147483648
    %v2229 = vmul.f32 %v2228, 1.442695
    %v2230 = vpow.pop %v2229
    %v2231 = vadd.f32 %v2230, 1.0
    %v2232 = vrcp.pop %v2231
    %v2233 = vmul.f32 1.0, %v2232
    %v2234 = vmul.f32 %v2080, %v1915
    %v2235 = vmul.f32 %v2001, %v2154
    %v2236 = vadd.f32 %v2234, %v2235
    %v2237 = vtanh.pop %v2236
    %v2238 = vmul.f32 %v2233, %v2237
    %s2239 = scalar_lea.vmem [#allocation6], 32
    %2240 = vst.msk [vmem:[%s2239] sm:$0xff] %vm241, %v2238
    %s2241 = scalar_lea.vmem [#allocation2], 40
    %v2242 = vld [vmem:[%s2241] sm:$0xff]
    %v2244 = vsel %vm241, %v2238, 0
    %2246 = vmatprep.subr.mxu0 0.0
    %2247 = vmatpush1.msra.mxu0 %v622
    %2248 = vmatprep.subr.mxu0 0.0
    %2249 = vmatpush1.msra.mxu0 %v623
    %2250 = vmatprep.subr.mxu0 0.0
    %2251 = vmatpush1.msra.mxu0 %v624
    %2252 = vmatprep.subr.mxu0 0.0
    %2253 = vmatpush1.msra.mxu0 %v625
    %2254 = vmatprep.subr.mxu0 0.0
    %2255 = vmatpush1.msra.mxu0 0.0
    %2256 = vmatprep.subr.mxu0 0.0
    %2257 = vmatpush1.msra.mxu0 0.0
    %2258 = vmatprep.subr.mxu0 0.0
    %2259 = vmatpush1.msra.mxu0 0.0
    %2260 = vmatprep.subr.mxu0 0.0
    %2261 = vmatpush1.msra.mxu0 0.0
    %2262 = vmatprep.subr.mxu0 0.0
    %2263 = vmatpush1.msra.mxu0 0.0
    %2264 = vmatprep.subr.mxu0 0.0
    %2265 = vmatpush1.msra.mxu0 0.0
    %2266 = vmatprep.subr.mxu0 0.0
    %2267 = vmatpush1.msra.mxu0 0.0
    %2268 = vmatprep.subr.mxu0 0.0
    %2269 = vmatpush1.msra.mxu0 0.0
    %2270 = vmatprep.subr.mxu0 0.0
    %2271 = vmatpush1.msra.mxu0 0.0
    %2272 = vmatprep.subr.mxu0 0.0
    %2273 = vmatpush1.msra.mxu0 0.0
    %2274 = vmatprep.subr.mxu0 0.0
    %2275 = vmatpush1.msra.mxu0 0.0
    %2276 = vmatprep.subr.mxu0 0.0
    %2277 = vmatpush1.msra.mxu0 0.0
    %2278 = vmatprep.subr.mxu0 0.0
    %2279 = vmatpush1.msra.mxu0 0.0
    %2280 = vmatprep.subr.mxu0 0.0
    %2281 = vmatpush1.msra.mxu0 0.0
    %2282 = vmatprep.subr.mxu0 0.0
    %2283 = vmatpush1.msra.mxu0 0.0
    %2284 = vmatprep.subr.mxu0 0.0
    %2285 = vmatpush1.msra.mxu0 0.0
    %2286 = vmatprep.subr.mxu0 0.0
    %2287 = vmatpush1.msra.mxu0 0.0
    %2288 = vmatprep.subr.mxu0 0.0
    %2289 = vmatpush1.msra.mxu0 0.0
    %2290 = vmatprep.subr.mxu0 0.0
    %2291 = vmatpush1.msra.mxu0 0.0
    %2292 = vmatprep.subr.mxu0 0.0
    %2293 = vmatpush1.msra.mxu0 0.0
    %2294 = vmatprep.subr.mxu0 0.0
    %2295 = vmatpush1.msra.mxu0 0.0
    %2296 = vmatprep.subr.mxu0 0.0
    %2297 = vmatpush1.msra.mxu0 0.0
    %2298 = vmatprep.subr.mxu0 0.0
    %2299 = vmatpush1.msra.mxu0 0.0
    %2300 = vmatprep.subr.mxu0 0.0
    %2301 = vmatpush1.msra.mxu0 0.0
    %2302 = vmatprep.subr.mxu0 0.0
    %2303 = vmatpush1.msra.mxu0 0.0
    %2304 = vmatprep.subr.mxu0 0.0
    %2305 = vmatpush1.msra.mxu0 0.0
    %2306 = vmatprep.subr.mxu0 0.0
    %2307 = vmatpush1.msra.mxu0 0.0
    %2308 = vmatprep.subr.mxu0 0.0
    %2309 = vmatpush1.msra.mxu0 0.0
    %2310 = vmatprep.mubr.f32.mxu0 0.0
    %2311 = vmatmul.mubr.f32.gmra.mrb[0].mxu0 %v2244
    %v2312 = vpop.f32.mrb[0].mxu0
    %v2313 = vadd.f32 0.0, %v2312
    %v2314 = vpop.f32.mrb[0].mxu0
    %2315 = vdwg.mxu0
    %v2316 = vadd.f32 %v2242, %v2313
    %v2317 = vxor.u32 %v2316, 2147483648
    %v2318 = vmul.f32 %v2317, 1.442695
    %v2319 = vpow.pop %v2318
    %v2320 = vadd.f32 %v2319, 1.0
    %v2321 = vrcp.pop %v2320
    %v2322 = vmul.f32 1.0, %v2321
    %s2323 = scalar_lea.vmem [#allocation3], 40
    %v2324 = vld [vmem:[%s2323] sm:$0xff]
    %2325 = vmatprep.subr.mxu0 0.0
    %2326 = vmatpush1.msra.mxu0 %v627
    %2327 = vmatprep.subr.mxu0 0.0
    %2328 = vmatpush1.msra.mxu0 %v628
    %2329 = vmatprep.subr.mxu0 0.0
    %2330 = vmatpush1.msra.mxu0 %v629
    %2331 = vmatprep.subr.mxu0 0.0
    %2332 = vmatpush1.msra.mxu0 %v630
    %2333 = vmatprep.subr.mxu0 0.0
    %2334 = vmatpush1.msra.mxu0 0.0
    %2335 = vmatprep.subr.mxu0 0.0
    %2336 = vmatpush1.msra.mxu0 0.0
    %2337 = vmatprep.subr.mxu0 0.0
    %2338 = vmatpush1.msra.mxu0 0.0
    %2339 = vmatprep.subr.mxu0 0.0
    %2340 = vmatpush1.msra.mxu0 0.0
    %2341 = vmatprep.subr.mxu0 0.0
    %2342 = vmatpush1.msra.mxu0 0.0
    %2343 = vmatprep.subr.mxu0 0.0
    %2344 = vmatpush1.msra.mxu0 0.0
    %2345 = vmatprep.subr.mxu0 0.0
    %2346 = vmatpush1.msra.mxu0 0.0
    %2347 = vmatprep.subr.mxu0 0.0
    %2348 = vmatpush1.msra.mxu0 0.0
    %2349 = vmatprep.subr.mxu0 0.0
    %2350 = vmatpush1.msra.mxu0 0.0
    %2351 = vmatprep.subr.mxu0 0.0
    %2352 = vmatpush1.msra.mxu0 0.0
    %2353 = vmatprep.subr.mxu0 0.0
    %2354 = vmatpush1.msra.mxu0 0.0
    %2355 = vmatprep.subr.mxu0 0.0
    %2356 = vmatpush1.msra.mxu0 0.0
    %2357 = vmatprep.subr.mxu0 0.0
    %2358 = vmatpush1.msra.mxu0 0.0
    %2359 = vmatprep.subr.mxu0 0.0
    %2360 = vmatpush1.msra.mxu0 0.0
    %2361 = vmatprep.subr.mxu0 0.0
    %2362 = vmatpush1.msra.mxu0 0.0
    %2363 = vmatprep.subr.mxu0 0.0
    %2364 = vmatpush1.msra.mxu0 0.0
    %2365 = vmatprep.subr.mxu0 0.0
    %2366 = vmatpush1.msra.mxu0 0.0
    %2367 = vmatprep.subr.mxu0 0.0
    %2368 = vmatpush1.msra.mxu0 0.0
    %2369 = vmatprep.subr.mxu0 0.0
    %2370 = vmatpush1.msra.mxu0 0.0
    %2371 = vmatprep.subr.mxu0 0.0
    %2372 = vmatpush1.msra.mxu0 0.0
    %2373 = vmatprep.subr.mxu0 0.0
    %2374 = vmatpush1.msra.mxu0 0.0
    %2375 = vmatprep.subr.mxu0 0.0
    %2376 = vmatpush1.msra.mxu0 0.0
    %2377 = vmatprep.subr.mxu0 0.0
    %2378 = vmatpush1.msra.mxu0 0.0
    %2379 = vmatprep.subr.mxu0 0.0
    %2380 = vmatpush1.msra.mxu0 0.0
    %2381 = vmatprep.subr.mxu0 0.0
    %2382 = vmatpush1.msra.mxu0 0.0
    %2383 = vmatprep.subr.mxu0 0.0
    %2384 = vmatpush1.msra.mxu0 0.0
    %2385 = vmatprep.subr.mxu0 0.0
    %2386 = vmatpush1.msra.mxu0 0.0
    %2387 = vmatprep.subr.mxu0 0.0
    %2388 = vmatpush1.msra.mxu0 0.0
    %2389 = vmatprep.mubr.f32.mxu0 0.0
    %2390 = vmatmul.mubr.f32.gmra.mrb[0].mxu0 %v2244
    %v2391 = vpop.f32.mrb[0].mxu0
    %v2392 = vadd.f32 0.0, %v2391
    %v2393 = vpop.f32.mrb[0].mxu0
    %2394 = vdwg.mxu0
    %v2395 = vadd.f32 %v2324, %v2392
    %v2396 = vxor.u32 %v2395, 2147483648
    %v2397 = vmul.f32 %v2396, 1.442695
    %v2398 = vpow.pop %v2397
    %v2399 = vadd.f32 %v2398, 1.0
    %v2400 = vrcp.pop %v2399
    %v2401 = vmul.f32 1.0, %v2400
    %s2402 = scalar_lea.vmem [#allocation4], 40
    %v2403 = vld [vmem:[%s2402] sm:$0xff]
    %2404 = vmatprep.subr.mxu0 0.0
    %2405 = vmatpush1.msra.mxu0 %v632
    %2406 = vmatprep.subr.mxu0 0.0
    %2407 = vmatpush1.msra.mxu0 %v633
    %2408 = vmatprep.subr.mxu0 0.0
    %2409 = vmatpush1.msra.mxu0 %v634
    %2410 = vmatprep.subr.mxu0 0.0
    %2411 = vmatpush1.msra.mxu0 %v635
    %2412 = vmatprep.subr.mxu0 0.0
    %2413 = vmatpush1.msra.mxu0 0.0
    %2414 = vmatprep.subr.mxu0 0.0
    %2415 = vmatpush1.msra.mxu0 0.0
    %2416 = vmatprep.subr.mxu0 0.0
    %2417 = vmatpush1.msra.mxu0 0.0
    %2418 = vmatprep.subr.mxu0 0.0
    %2419 = vmatpush1.msra.mxu0 0.0
    %2420 = vmatprep.subr.mxu0 0.0
    %2421 = vmatpush1.msra.mxu0 0.0
    %2422 = vmatprep.subr.mxu0 0.0
    %2423 = vmatpush1.msra.mxu0 0.0
    %2424 = vmatprep.subr.mxu0 0.0
    %2425 = vmatpush1.msra.mxu0 0.0
    %2426 = vmatprep.subr.mxu0 0.0
    %2427 = vmatpush1.msra.mxu0 0.0
    %2428 = vmatprep.subr.mxu0 0.0
    %2429 = vmatpush1.msra.mxu0 0.0
    %2430 = vmatprep.subr.mxu0 0.0
    %2431 = vmatpush1.msra.mxu0 0.0
    %2432 = vmatprep.subr.mxu0 0.0
    %2433 = vmatpush1.msra.mxu0 0.0
    %2434 = vmatprep.subr.mxu0 0.0
    %2435 = vmatpush1.msra.mxu0 0.0
    %2436 = vmatprep.subr.mxu0 0.0
    %2437 = vmatpush1.msra.mxu0 0.0
    %2438 = vmatprep.subr.mxu0 0.0
    %2439 = vmatpush1.msra.mxu0 0.0
    %2440 = vmatprep.subr.mxu0 0.0
    %2441 = vmatpush1.msra.mxu0 0.0
    %2442 = vmatprep.subr.mxu0 0.0
    %2443 = vmatpush1.msra.mxu0 0.0
    %2444 = vmatprep.subr.mxu0 0.0
    %2445 = vmatpush1.msra.mxu0 0.0
    %2446 = vmatprep.subr.mxu0 0.0
    %2447 = vmatpush1.msra.mxu0 0.0
    %2448 = vmatprep.subr.mxu0 0.0
    %2449 = vmatpush1.msra.mxu0 0.0
    %2450 = vmatprep.subr.mxu0 0.0
    %2451 = vmatpush1.msra.mxu0 0.0
    %2452 = vmatprep.subr.mxu0 0.0
    %2453 = vmatpush1.msra.mxu0 0.0
    %2454 = vmatprep.subr.mxu0 0.0
    %2455 = vmatpush1.msra.mxu0 0.0
    %2456 = vmatprep.subr.mxu0 0.0
    %2457 = vmatpush1.msra.mxu0 0.0
    %2458 = vmatprep.subr.mxu0 0.0
    %2459 = vmatpush1.msra.mxu0 0.0
    %2460 = vmatprep.subr.mxu0 0.0
    %2461 = vmatpush1.msra.mxu0 0.0
    %2462 = vmatprep.subr.mxu0 0.0
    %2463 = vmatpush1.msra.mxu0 0.0
    %2464 = vmatprep.subr.mxu0 0.0
    %2465 = vmatpush1.msra.mxu0 0.0
    %2466 = vmatprep.subr.mxu0 0.0
    %2467 = vmatpush1.msra.mxu0 0.0
    %2468 = vmatprep.mubr.f32.mxu0 0.0
    %2469 = vmatmul.mubr.f32.gmra.mrb[0].mxu0 %v2244
    %v2470 = vpop.f32.mrb[0].mxu0
    %v2471 = vadd.f32 0.0, %v2470
    %v2472 = vpop.f32.mrb[0].mxu0
    %2473 = vdwg.mxu0
    %v2474 = vadd.f32 %v2403, %v2471
    %v2475 = vtanh.pop %v2474
    %s2476 = scalar_lea.vmem [#allocation5], 40
    %v2477 = vld [vmem:[%s2476] sm:$0xff]
    %2478 = vmatprep.subr.mxu0 0.0
    %2479 = vmatpush1.msra.mxu0 %v637
    %2480 = vmatprep.subr.mxu0 0.0
    %2481 = vmatpush1.msra.mxu0 %v638
    %2482 = vmatprep.subr.mxu0 0.0
    %2483 = vmatpush1.msra.mxu0 %v639
    %2484 = vmatprep.subr.mxu0 0.0
    %2485 = vmatpush1.msra.mxu0 %v640
    %2486 = vmatprep.subr.mxu0 0.0
    %2487 = vmatpush1.msra.mxu0 0.0
    %2488 = vmatprep.subr.mxu0 0.0
    %2489 = vmatpush1.msra.mxu0 0.0
    %2490 = vmatprep.subr.mxu0 0.0
    %2491 = vmatpush1.msra.mxu0 0.0
    %2492 = vmatprep.subr.mxu0 0.0
    %2493 = vmatpush1.msra.mxu0 0.0
    %2494 = vmatprep.subr.mxu0 0.0
    %2495 = vmatpush1.msra.mxu0 0.0
    %2496 = vmatprep.subr.mxu0 0.0
    %2497 = vmatpush1.msra.mxu0 0.0
    %2498 = vmatprep.subr.mxu0 0.0
    %2499 = vmatpush1.msra.mxu0 0.0
    %2500 = vmatprep.subr.mxu0 0.0
    %2501 = vmatpush1.msra.mxu0 0.0
    %2502 = vmatprep.subr.mxu0 0.0
    %2503 = vmatpush1.msra.mxu0 0.0
    %2504 = vmatprep.subr.mxu0 0.0
    %2505 = vmatpush1.msra.mxu0 0.0
    %2506 = vmatprep.subr.mxu0 0.0
    %2507 = vmatpush1.msra.mxu0 0.0
    %2508 = vmatprep.subr.mxu0 0.0
    %2509 = vmatpush1.msra.mxu0 0.0
    %2510 = vmatprep.subr.mxu0 0.0
    %2511 = vmatpush1.msra.mxu0 0.0
    %2512 = vmatprep.subr.mxu0 0.0
    %2513 = vmatpush1.msra.mxu0 0.0
    %2514 = vmatprep.subr.mxu0 0.0
    %2515 = vmatpush1.msra.mxu0 0.0
    %2516 = vmatprep.subr.mxu0 0.0
    %2517 = vmatpush1.msra.mxu0 0.0
    %2518 = vmatprep.subr.mxu0 0.0
    %2519 = vmatpush1.msra.mxu0 0.0
    %2520 = vmatprep.subr.mxu0 0.0
    %2521 = vmatpush1.msra.mxu0 0.0
    %2522 = vmatprep.subr.mxu0 0.0
    %2523 = vmatpush1.msra.mxu0 0.0
    %2524 = vmatprep.subr.mxu0 0.0
    %2525 = vmatpush1.msra.mxu0 0.0
    %2526 = vmatprep.subr.mxu0 0.0
    %2527 = vmatpush1.msra.mxu0 0.0
    %2528 = vmatprep.subr.mxu0 0.0
    %2529 = vmatpush1.msra.mxu0 0.0
    %2530 = vmatprep.subr.mxu0 0.0
    %2531 = vmatpush1.msra.mxu0 0.0
    %2532 = vmatprep.subr.mxu0 0.0
    %2533 = vmatpush1.msra.mxu0 0.0
    %2534 = vmatprep.subr.mxu0 0.0
    %2535 = vmatpush1.msra.mxu0 0.0
    %2536 = vmatprep.subr.mxu0 0.0
    %2537 = vmatpush1.msra.mxu0 0.0
    %2538 = vmatprep.subr.mxu0 0.0
    %2539 = vmatpush1.msra.mxu0 0.0
    %2540 = vmatprep.subr.mxu0 0.0
    %2541 = vmatpush1.msra.mxu0 0.0
    %2542 = vmatprep.mubr.f32.mxu0 0.0
    %2543 = vmatmul.mubr.f32.gmra.mrb[0].mxu0 %v2244
    %v2544 = vpop.f32.mrb[0].mxu0
    %v2545 = vadd.f32 0.0, %v2544
    %v2546 = vpop.f32.mrb[0].mxu0
    %2547 = vdwg.mxu0
    %v2548 = vadd.f32 %v2477, %v2545
    %v2549 = vxor.u32 %v2548, 2147483648
    %v2550 = vmul.f32 %v2549, 1.442695
    %v2551 = vpow.pop %v2550
    %v2552 = vadd.f32 %v2551, 1.0
    %v2553 = vrcp.pop %v2552
    %v2554 = vmul.f32 1.0, %v2553
    %v2555 = vmul.f32 %v2401, %v2236
    %v2556 = vmul.f32 %v2322, %v2475
    %v2557 = vadd.f32 %v2555, %v2556
    %v2558 = vtanh.pop %v2557
    %v2559 = vmul.f32 %v2554, %v2558
    %s2560 = scalar_lea.vmem [#allocation6], 40
    %2561 = vst.msk [vmem:[%s2560] sm:$0xff] %vm241, %v2559
    %s2562 = scalar_lea.vmem [#allocation2], 48
    %v2563 = vld [vmem:[%s2562] sm:$0xff]
    %v2565 = vsel %vm241, %v2559, 0
    %2567 = vmatprep.subr.mxu0 0.0
    %2568 = vmatpush1.msra.mxu0 %v622
    %2569 = vmatprep.subr.mxu0 0.0
    %2570 = vmatpush1.msra.mxu0 %v623
    %2571 = vmatprep.subr.mxu0 0.0
    %2572 = vmatpush1.msra.mxu0 %v624
    %2573 = vmatprep.subr.mxu0 0.0
    %2574 = vmatpush1.msra.mxu0 %v625
    %2575 = vmatprep.subr.mxu0 0.0
    %2576 = vmatpush1.msra.mxu0 0.0
    %2577 = vmatprep.subr.mxu0 0.0
    %2578 = vmatpush1.msra.mxu0 0.0
    %2579 = vmatprep.subr.mxu0 0.0
    %2580 = vmatpush1.msra.mxu0 0.0
    %2581 = vmatprep.subr.mxu0 0.0
    %2582 = vmatpush1.msra.mxu0 0.0
    %2583 = vmatprep.subr.mxu0 0.0
    %2584 = vmatpush1.msra.mxu0 0.0
    %2585 = vmatprep.subr.mxu0 0.0
    %2586 = vmatpush1.msra.mxu0 0.0
    %2587 = vmatprep.subr.mxu0 0.0
    %2588 = vmatpush1.msra.mxu0 0.0
    %2589 = vmatprep.subr.mxu0 0.0
    %2590 = vmatpush1.msra.mxu0 0.0
    %2591 = vmatprep.subr.mxu0 0.0
    %2592 = vmatpush1.msra.mxu0 0.0
    %2593 = vmatprep.subr.mxu0 0.0
    %2594 = vmatpush1.msra.mxu0 0.0
    %2595 = vmatprep.subr.mxu0 0.0
    %2596 = vmatpush1.msra.mxu0 0.0
    %2597 = vmatprep.subr.mxu0 0.0
    %2598 = vmatpush1.msra.mxu0 0.0
    %2599 = vmatprep.subr.mxu0 0.0
    %2600 = vmatpush1.msra.mxu0 0.0
    %2601 = vmatprep.subr.mxu0 0.0
    %2602 = vmatpush1.msra.mxu0 0.0
    %2603 = vmatprep.subr.mxu0 0.0
    %2604 = vmatpush1.msra.mxu0 0.0
    %2605 = vmatprep.subr.mxu0 0.0
    %2606 = vmatpush1.msra.mxu0 0.0
    %2607 = vmatprep.subr.mxu0 0.0
    %2608 = vmatpush1.msra.mxu0 0.0
    %2609 = vmatprep.subr.mxu0 0.0
    %2610 = vmatpush1.msra.mxu0 0.0
    %2611 = vmatprep.subr.mxu0 0.0
    %2612 = vmatpush1.msra.mxu0 0.0
    %2613 = vmatprep.subr.mxu0 0.0
    %2614 = vmatpush1.msra.mxu0 0.0
    %2615 = vmatprep.subr.mxu0 0.0
    %2616 = vmatpush1.msra.mxu0 0.0
    %2617 = vmatprep.subr.mxu0 0.0
    %2618 = vmatpush1.msra.mxu0 0.0
    %2619 = vmatprep.subr.mxu0 0.0
    %2620 = vmatpush1.msra.mxu0 0.0
    %2621 = vmatprep.subr.mxu0 0.0
    %2622 = vmatpush1.msra.mxu0 0.0
    %2623 = vmatprep.subr.mxu0 0.0
    %2624 = vmatpush1.msra.mxu0 0.0
    %2625 = vmatprep.subr.mxu0 0.0
    %2626 = vmatpush1.msra.mxu0 0.0
    %2627 = vmatprep.subr.mxu0 0.0
    %2628 = vmatpush1.msra.mxu0 0.0
    %2629 = vmatprep.subr.mxu0 0.0
    %2630 = vmatpush1.msra.mxu0 0.0
    %2631 = vmatprep.mubr.f32.mxu0 0.0
    %2632 = vmatmul.mubr.f32.gmra.mrb[0].mxu0 %v2565
    %v2633 = vpop.f32.mrb[0].mxu0
    %v2634 = vadd.f32 0.0, %v2633
    %v2635 = vpop.f32.mrb[0].mxu0
    %2636 = vdwg.mxu0
    %v2637 = vadd.f32 %v2563, %v2634
    %v2638 = vxor.u32 %v2637, 2147483648
    %v2639 = vmul.f32 %v2638, 1.442695
    %v2640 = vpow.pop %v2639
    %v2641 = vadd.f32 %v2640, 1.0
    %v2642 = vrcp.pop %v2641
    %v2643 = vmul.f32 1.0, %v2642
    %s2644 = scalar_lea.vmem [#allocation3], 48
    %v2645 = vld [vmem:[%s2644] sm:$0xff]
    %2646 = vmatprep.subr.mxu0 0.0
    %2647 = vmatpush1.msra.mxu0 %v627
    %2648 = vmatprep.subr.mxu0 0.0
    %2649 = vmatpush1.msra.mxu0 %v628
    %2650 = vmatprep.subr.mxu0 0.0
    %2651 = vmatpush1.msra.mxu0 %v629
    %2652 = vmatprep.subr.mxu0 0.0
    %2653 = vmatpush1.msra.mxu0 %v630
    %2654 = vmatprep.subr.mxu0 0.0
    %2655 = vmatpush1.msra.mxu0 0.0
    %2656 = vmatprep.subr.mxu0 0.0
    %2657 = vmatpush1.msra.mxu0 0.0
    %2658 = vmatprep.subr.mxu0 0.0
    %2659 = vmatpush1.msra.mxu0 0.0
    %2660 = vmatprep.subr.mxu0 0.0
    %2661 = vmatpush1.msra.mxu0 0.0
    %2662 = vmatprep.subr.mxu0 0.0
    %2663 = vmatpush1.msra.mxu0 0.0
    %2664 = vmatprep.subr.mxu0 0.0
    %2665 = vmatpush1.msra.mxu0 0.0
    %2666 = vmatprep.subr.mxu0 0.0
    %2667 = vmatpush1.msra.mxu0 0.0
    %2668 = vmatprep.subr.mxu0 0.0
    %2669 = vmatpush1.msra.mxu0 0.0
    %2670 = vmatprep.subr.mxu0 0.0
    %2671 = vmatpush1.msra.mxu0 0.0
    %2672 = vmatprep.subr.mxu0 0.0
    %2673 = vmatpush1.msra.mxu0 0.0
    %2674 = vmatprep.subr.mxu0 0.0
    %2675 = vmatpush1.msra.mxu0 0.0
    %2676 = vmatprep.subr.mxu0 0.0
    %2677 = vmatpush1.msra.mxu0 0.0
    %2678 = vmatprep.subr.mxu0 0.0
    %2679 = vmatpush1.msra.mxu0 0.0
    %2680 = vmatprep.subr.mxu0 0.0
    %2681 = vmatpush1.msra.mxu0 0.0
    %2682 = vmatprep.subr.mxu0 0.0
    %2683 = vmatpush1.msra.mxu0 0.0
    %2684 = vmatprep.subr.mxu0 0.0
    %2685 = vmatpush1.msra.mxu0 0.0
    %2686 = vmatprep.subr.mxu0 0.0
    %2687 = vmatpush1.msra.mxu0 0.0
    %2688 = vmatprep.subr.mxu0 0.0
    %2689 = vmatpush1.msra.mxu0 0.0
    %2690 = vmatprep.subr.mxu0 0.0
    %2691 = vmatpush1.msra.mxu0 0.0
    %2692 = vmatprep.subr.mxu0 0.0
    %2693 = vmatpush1.msra.mxu0 0.0
    %2694 = vmatprep.subr.mxu0 0.0
    %2695 = vmatpush1.msra.mxu0 0.0
    %2696 = vmatprep.subr.mxu0 0.0
    %2697 = vmatpush1.msra.mxu0 0.0
    %2698 = vmatprep.subr.mxu0 0.0
    %2699 = vmatpush1.msra.mxu0 0.0
    %2700 = vmatprep.subr.mxu0 0.0
    %2701 = vmatpush1.msra.mxu0 0.0
    %2702 = vmatprep.subr.mxu0 0.0
    %2703 = vmatpush1.msra.mxu0 0.0
    %2704 = vmatprep.subr.mxu0 0.0
    %2705 = vmatpush1.msra.mxu0 0.0
    %2706 = vmatprep.subr.mxu0 0.0
    %2707 = vmatpush1.msra.mxu0 0.0
    %2708 = vmatprep.subr.mxu0 0.0
    %2709 = vmatpush1.msra.mxu0 0.0
    %2710 = vmatprep.mubr.f32.mxu0 0.0
    %2711 = vmatmul.mubr.f32.gmra.mrb[0].mxu0 %v2565
    %v2712 = vpop.f32.mrb[0].mxu0
    %v2713 = vadd.f32 0.0, %v2712
    %v2714 = vpop.f32.mrb[0].mxu0
    %2715 = vdwg.mxu0
    %v2716 = vadd.f32 %v2645, %v2713
    %v2717 = vxor.u32 %v2716, 2147483648
    %v2718 = vmul.f32 %v2717, 1.442695
    %v2719 = vpow.pop %v2718
    %v2720 = vadd.f32 %v2719, 1.0
    %v2721 = vrcp.pop %v2720
    %v2722 = vmul.f32 1.0, %v2721
    %s2723 = scalar_lea.vmem [#allocation4], 48
    %v2724 = vld [vmem:[%s2723] sm:$0xff]
    %2725 = vmatprep.subr.mxu0 0.0
    %2726 = vmatpush1.msra.mxu0 %v632
    %2727 = vmatprep.subr.mxu0 0.0
    %2728 = vmatpush1.msra.mxu0 %v633
    %2729 = vmatprep.subr.mxu0 0.0
    %2730 = vmatpush1.msra.mxu0 %v634
    %2731 = vmatprep.subr.mxu0 0.0
    %2732 = vmatpush1.msra.mxu0 %v635
    %2733 = vmatprep.subr.mxu0 0.0
    %2734 = vmatpush1.msra.mxu0 0.0
    %2735 = vmatprep.subr.mxu0 0.0
    %2736 = vmatpush1.msra.mxu0 0.0
    %2737 = vmatprep.subr.mxu0 0.0
    %2738 = vmatpush1.msra.mxu0 0.0
    %2739 = vmatprep.subr.mxu0 0.0
    %2740 = vmatpush1.msra.mxu0 0.0
    %2741 = vmatprep.subr.mxu0 0.0
    %2742 = vmatpush1.msra.mxu0 0.0
    %2743 = vmatprep.subr.mxu0 0.0
    %2744 = vmatpush1.msra.mxu0 0.0
    %2745 = vmatprep.subr.mxu0 0.0
    %2746 = vmatpush1.msra.mxu0 0.0
    %2747 = vmatprep.subr.mxu0 0.0
    %2748 = vmatpush1.msra.mxu0 0.0
    %2749 = vmatprep.subr.mxu0 0.0
    %2750 = vmatpush1.msra.mxu0 0.0
    %2751 = vmatprep.subr.mxu0 0.0
    %2752 = vmatpush1.msra.mxu0 0.0
    %2753 = vmatprep.subr.mxu0 0.0
    %2754 = vmatpush1.msra.mxu0 0.0
    %2755 = vmatprep.subr.mxu0 0.0
    %2756 = vmatpush1.msra.mxu0 0.0
    %2757 = vmatprep.subr.mxu0 0.0
    %2758 = vmatpush1.msra.mxu0 0.0
    %2759 = vmatprep.subr.mxu0 0.0
    %2760 = vmatpush1.msra.mxu0 0.0
    %2761 = vmatprep.subr.mxu0 0.0
    %2762 = vmatpush1.msra.mxu0 0.0
    %2763 = vmatprep.subr.mxu0 0.0
    %2764 = vmatpush1.msra.mxu0 0.0
    %2765 = vmatprep.subr.mxu0 0.0
    %2766 = vmatpush1.msra.mxu0 0.0
    %2767 = vmatprep.subr.mxu0 0.0
    %2768 = vmatpush1.msra.mxu0 0.0
    %2769 = vmatprep.subr.mxu0 0.0
    %2770 = vmatpush1.msra.mxu0 0.0
    %2771 = vmatprep.subr.mxu0 0.0
    %2772 = vmatpush1.msra.mxu0 0.0
    %2773 = vmatprep.subr.mxu0 0.0
    %2774 = vmatpush1.msra.mxu0 0.0
    %2775 = vmatprep.subr.mxu0 0.0
    %2776 = vmatpush1.msra.mxu0 0.0
    %2777 = vmatprep.subr.mxu0 0.0
    %2778 = vmatpush1.msra.mxu0 0.0
    %2779 = vmatprep.subr.mxu0 0.0
    %2780 = vmatpush1.msra.mxu0 0.0
    %2781 = vmatprep.subr.mxu0 0.0
    %2782 = vmatpush1.msra.mxu0 0.0
    %2783 = vmatprep.subr.mxu0 0.0
    %2784 = vmatpush1.msra.mxu0 0.0
    %2785 = vmatprep.subr.mxu0 0.0
    %2786 = vmatpush1.msra.mxu0 0.0
    %2787 = vmatprep.subr.mxu0 0.0
    %2788 = vmatpush1.msra.mxu0 0.0
    %2789 = vmatprep.mubr.f32.mxu0 0.0
    %2790 = vmatmul.mubr.f32.gmra.mrb[0].mxu0 %v2565
    %v2791 = vpop.f32.mrb[0].mxu0
    %v2792 = vadd.f32 0.0, %v2791
    %v2793 = vpop.f32.mrb[0].mxu0
    %2794 = vdwg.mxu0
    %v2795 = vadd.f32 %v2724, %v2792
    %v2796 = vtanh.pop %v2795
    %s2797 = scalar_lea.vmem [#allocation5], 48
    %v2798 = vld [vmem:[%s2797] sm:$0xff]
    %2799 = vmatprep.subr.mxu0 0.0
    %2800 = vmatpush1.msra.mxu0 %v637
    %2801 = vmatprep.subr.mxu0 0.0
    %2802 = vmatpush1.msra.mxu0 %v638
    %2803 = vmatprep.subr.mxu0 0.0
    %2804 = vmatpush1.msra.mxu0 %v639
    %2805 = vmatprep.subr.mxu0 0.0
    %2806 = vmatpush1.msra.mxu0 %v640
    %2807 = vmatprep.subr.mxu0 0.0
    %2808 = vmatpush1.msra.mxu0 0.0
    %2809 = vmatprep.subr.mxu0 0.0
    %2810 = vmatpush1.msra.mxu0 0.0
    %2811 = vmatprep.subr.mxu0 0.0
    %2812 = vmatpush1.msra.mxu0 0.0
    %2813 = vmatprep.subr.mxu0 0.0
    %2814 = vmatpush1.msra.mxu0 0.0
    %2815 = vmatprep.subr.mxu0 0.0
    %2816 = vmatpush1.msra.mxu0 0.0
    %2817 = vmatprep.subr.mxu0 0.0
    %2818 = vmatpush1.msra.mxu0 0.0
    %2819 = vmatprep.subr.mxu0 0.0
    %2820 = vmatpush1.msra.mxu0 0.0
    %2821 = vmatprep.subr.mxu0 0.0
    %2822 = vmatpush1.msra.mxu0 0.0
    %2823 = vmatprep.subr.mxu0 0.0
    %2824 = vmatpush1.msra.mxu0 0.0
    %2825 = vmatprep.subr.mxu0 0.0
    %2826 = vmatpush1.msra.mxu0 0.0
    %2827 = vmatprep.subr.mxu0 0.0
    %2828 = vmatpush1.msra.mxu0 0.0
    %2829 = vmatprep.subr.mxu0 0.0
    %2830 = vmatpush1.msra.mxu0 0.0
    %2831 = vmatprep.subr.mxu0 0.0
    %2832 = vmatpush1.msra.mxu0 0.0
    %2833 = vmatprep.subr.mxu0 0.0
    %2834 = vmatpush1.msra.mxu0 0.0
    %2835 = vmatprep.subr.mxu0 0.0
    %2836 = vmatpush1.msra.mxu0 0.0
    %2837 = vmatprep.subr.mxu0 0.0
    %2838 = vmatpush1.msra.mxu0 0.0
    %2839 = vmatprep.subr.mxu0 0.0
    %2840 = vmatpush1.msra.mxu0 0.0
    %2841 = vmatprep.subr.mxu0 0.0
    %2842 = vmatpush1.msra.mxu0 0.0
    %2843 = vmatprep.subr.mxu0 0.0
    %2844 = vmatpush1.msra.mxu0 0.0
    %2845 = vmatprep.subr.mxu0 0.0
    %2846 = vmatpush1.msra.mxu0 0.0
    %2847 = vmatprep.subr.mxu0 0.0
    %2848 = vmatpush1.msra.mxu0 0.0
    %2849 = vmatprep.subr.mxu0 0.0
    %2850 = vmatpush1.msra.mxu0 0.0
    %2851 = vmatprep.subr.mxu0 0.0
    %2852 = vmatpush1.msra.mxu0 0.0
    %2853 = vmatprep.subr.mxu0 0.0
    %2854 = vmatpush1.msra.mxu0 0.0
    %2855 = vmatprep.subr.mxu0 0.0
    %2856 = vmatpush1.msra.mxu0 0.0
    %2857 = vmatprep.subr.mxu0 0.0
    %2858 = vmatpush1.msra.mxu0 0.0
    %2859 = vmatprep.subr.mxu0 0.0
    %2860 = vmatpush1.msra.mxu0 0.0
    %2861 = vmatprep.subr.mxu0 0.0
    %2862 = vmatpush1.msra.mxu0 0.0
    %2863 = vmatprep.mubr.f32.mxu0 0.0
    %2864 = vmatmul.mubr.f32.gmra.mrb[0].mxu0 %v2565
    %v2865 = vpop.f32.mrb[0].mxu0
    %v2866 = vadd.f32 0.0, %v2865
    %v2867 = vpop.f32.mrb[0].mxu0
    %2868 = vdwg.mxu0
    %v2869 = vadd.f32 %v2798, %v2866
    %v2870 = vxor.u32 %v2869, 2147483648
    %v2871 = vmul.f32 %v2870, 1.442695
    %v2872 = vpow.pop %v2871
    %v2873 = vadd.f32 %v2872, 1.0
    %v2874 = vrcp.pop %v2873
    %v2875 = vmul.f32 1.0, %v2874
    %v2876 = vmul.f32 %v2722, %v2557
    %v2877 = vmul.f32 %v2643, %v2796
    %v2878 = vadd.f32 %v2876, %v2877
    %v2879 = vtanh.pop %v2878
    %v2880 = vmul.f32 %v2875, %v2879
    %s2881 = scalar_lea.vmem [#allocation6], 48
    %2882 = vst.msk [vmem:[%s2881] sm:$0xff] %vm241, %v2880
    %s2883 = scalar_lea.vmem [#allocation2], 56
    %v2884 = vld [vmem:[%s2883] sm:$0xff]
    %v2886 = vsel %vm241, %v2880, 0
    %2888 = vmatprep.subr.mxu0 0.0
    %2889 = vmatpush1.msra.mxu0 %v622
    %2890 = vmatprep.subr.mxu0 0.0
    %2891 = vmatpush1.msra.mxu0 %v623
    %2892 = vmatprep.subr.mxu0 0.0
    %2893 = vmatpush1.msra.mxu0 %v624
    %2894 = vmatprep.subr.mxu0 0.0
    %2895 = vmatpush1.msra.mxu0 %v625
    %2896 = vmatprep.subr.mxu0 0.0
    %2897 = vmatpush1.msra.mxu0 0.0
    %2898 = vmatprep.subr.mxu0 0.0
    %2899 = vmatpush1.msra.mxu0 0.0
    %2900 = vmatprep.subr.mxu0 0.0
    %2901 = vmatpush1.msra.mxu0 0.0
    %2902 = vmatprep.subr.mxu0 0.0
    %2903 = vmatpush1.msra.mxu0 0.0
    %2904 = vmatprep.subr.mxu0 0.0
    %2905 = vmatpush1.msra.mxu0 0.0
    %2906 = vmatprep.subr.mxu0 0.0
    %2907 = vmatpush1.msra.mxu0 0.0
    %2908 = vmatprep.subr.mxu0 0.0
    %2909 = vmatpush1.msra.mxu0 0.0
    %2910 = vmatprep.subr.mxu0 0.0
    %2911 = vmatpush1.msra.mxu0 0.0
    %2912 = vmatprep.subr.mxu0 0.0
    %2913 = vmatpush1.msra.mxu0 0.0
    %2914 = vmatprep.subr.mxu0 0.0
    %2915 = vmatpush1.msra.mxu0 0.0
    %2916 = vmatprep.subr.mxu0 0.0
    %2917 = vmatpush1.msra.mxu0 0.0
    %2918 = vmatprep.subr.mxu0 0.0
    %2919 = vmatpush1.msra.mxu0 0.0
    %2920 = vmatprep.subr.mxu0 0.0
    %2921 = vmatpush1.msra.mxu0 0.0
    %2922 = vmatprep.subr.mxu0 0.0
    %2923 = vmatpush1.msra.mxu0 0.0
    %2924 = vmatprep.subr.mxu0 0.0
    %2925 = vmatpush1.msra.mxu0 0.0
    %2926 = vmatprep.subr.mxu0 0.0
    %2927 = vmatpush1.msra.mxu0 0.0
    %2928 = vmatprep.subr.mxu0 0.0
    %2929 = vmatpush1.msra.mxu0 0.0
    %2930 = vmatprep.subr.mxu0 0.0
    %2931 = vmatpush1.msra.mxu0 0.0
    %2932 = vmatprep.subr.mxu0 0.0
    %2933 = vmatpush1.msra.mxu0 0.0
    %2934 = vmatprep.subr.mxu0 0.0
    %2935 = vmatpush1.msra.mxu0 0.0
    %2936 = vmatprep.subr.mxu0 0.0
    %2937 = vmatpush1.msra.mxu0 0.0
    %2938 = vmatprep.subr.mxu0 0.0
    %2939 = vmatpush1.msra.mxu0 0.0
    %2940 = vmatprep.subr.mxu0 0.0
    %2941 = vmatpush1.msra.mxu0 0.0
    %2942 = vmatprep.subr.mxu0 0.0
    %2943 = vmatpush1.msra.mxu0 0.0
    %2944 = vmatprep.subr.mxu0 0.0
    %2945 = vmatpush1.msra.mxu0 0.0
    %2946 = vmatprep.subr.mxu0 0.0
    %2947 = vmatpush1.msra.mxu0 0.0
    %2948 = vmatprep.subr.mxu0 0.0
    %2949 = vmatpush1.msra.mxu0 0.0
    %2950 = vmatprep.subr.mxu0 0.0
    %2951 = vmatpush1.msra.mxu0 0.0
    %2952 = vmatprep.mubr.f32.mxu0 0.0
    %2953 = vmatmul.mubr.f32.gmra.mrb[0].mxu0 %v2886
    %v2954 = vpop.f32.mrb[0].mxu0
    %v2955 = vadd.f32 0.0, %v2954
    %v2956 = vpop.f32.mrb[0].mxu0
    %2957 = vdwg.mxu0
    %v2958 = vadd.f32 %v2884, %v2955
    %v2959 = vxor.u32 %v2958, 2147483648
    %v2960 = vmul.f32 %v2959, 1.442695
    %v2961 = vpow.pop %v2960
    %v2962 = vadd.f32 %v2961, 1.0
    %v2963 = vrcp.pop %v2962
    %v2964 = vmul.f32 1.0, %v2963
    %s2965 = scalar_lea.vmem [#allocation3], 56
    %v2966 = vld [vmem:[%s2965] sm:$0xff]
    %2967 = vmatprep.subr.mxu0 0.0
    %2968 = vmatpush1.msra.mxu0 %v627
    %2969 = vmatprep.subr.mxu0 0.0
    %2970 = vmatpush1.msra.mxu0 %v628
    %2971 = vmatprep.subr.mxu0 0.0
    %2972 = vmatpush1.msra.mxu0 %v629
    %2973 = vmatprep.subr.mxu0 0.0
    %2974 = vmatpush1.msra.mxu0 %v630
    %2975 = vmatprep.subr.mxu0 0.0
    %2976 = vmatpush1.msra.mxu0 0.0
    %2977 = vmatprep.subr.mxu0 0.0
    %2978 = vmatpush1.msra.mxu0 0.0
    %2979 = vmatprep.subr.mxu0 0.0
    %2980 = vmatpush1.msra.mxu0 0.0
    %2981 = vmatprep.subr.mxu0 0.0
    %2982 = vmatpush1.msra.mxu0 0.0
    %2983 = vmatprep.subr.mxu0 0.0
    %2984 = vmatpush1.msra.mxu0 0.0
    %2985 = vmatprep.subr.mxu0 0.0
    %2986 = vmatpush1.msra.mxu0 0.0
    %2987 = vmatprep.subr.mxu0 0.0
    %2988 = vmatpush1.msra.mxu0 0.0
    %2989 = vmatprep.subr.mxu0 0.0
    %2990 = vmatpush1.msra.mxu0 0.0
    %2991 = vmatprep.subr.mxu0 0.0
    %2992 = vmatpush1.msra.mxu0 0.0
    %2993 = vmatprep.subr.mxu0 0.0
    %2994 = vmatpush1.msra.mxu0 0.0
    %2995 = vmatprep.subr.mxu0 0.0
    %2996 = vmatpush1.msra.mxu0 0.0
    %2997 = vmatprep.subr.mxu0 0.0
    %2998 = vmatpush1.msra.mxu0 0.0
    %2999 = vmatprep.subr.mxu0 0.0
    %3000 = vmatpush1.msra.mxu0 0.0
    %3001 = vmatprep.subr.mxu0 0.0
    %3002 = vmatpush1.msra.mxu0 0.0
    %3003 = vmatprep.subr.mxu0 0.0
    %3004 = vmatpush1.msra.mxu0 0.0
    %3005 = vmatprep.subr.mxu0 0.0
    %3006 = vmatpush1.msra.mxu0 0.0
    %3007 = vmatprep.subr.mxu0 0.0
    %3008 = vmatpush1.msra.mxu0 0.0
    %3009 = vmatprep.subr.mxu0 0.0
    %3010 = vmatpush1.msra.mxu0 0.0
    %3011 = vmatprep.subr.mxu0 0.0
    %3012 = vmatpush1.msra.mxu0 0.0
    %3013 = vmatprep.subr.mxu0 0.0
    %3014 = vmatpush1.msra.mxu0 0.0
    %3015 = vmatprep.subr.mxu0 0.0
    %3016 = vmatpush1.msra.mxu0 0.0
    %3017 = vmatprep.subr.mxu0 0.0
    %3018 = vmatpush1.msra.mxu0 0.0
    %3019 = vmatprep.subr.mxu0 0.0
    %3020 = vmatpush1.msra.mxu0 0.0
    %3021 = vmatprep.subr.mxu0 0.0
    %3022 = vmatpush1.msra.mxu0 0.0
    %3023 = vmatprep.subr.mxu0 0.0
    %3024 = vmatpush1.msra.mxu0 0.0
    %3025 = vmatprep.subr.mxu0 0.0
    %3026 = vmatpush1.msra.mxu0 0.0
    %3027 = vmatprep.subr.mxu0 0.0
    %3028 = vmatpush1.msra.mxu0 0.0
    %3029 = vmatprep.subr.mxu0 0.0
    %3030 = vmatpush1.msra.mxu0 0.0
    %3031 = vmatprep.mubr.f32.mxu0 0.0
    %3032 = vmatmul.mubr.f32.gmra.mrb[0].mxu0 %v2886
    %v3033 = vpop.f32.mrb[0].mxu0
    %v3034 = vadd.f32 0.0, %v3033
    %v3035 = vpop.f32.mrb[0].mxu0
    %3036 = vdwg.mxu0
    %v3037 = vadd.f32 %v2966, %v3034
    %v3038 = vxor.u32 %v3037, 2147483648
    %v3039 = vmul.f32 %v3038, 1.442695
    %v3040 = vpow.pop %v3039
    %v3041 = vadd.f32 %v3040, 1.0
    %v3042 = vrcp.pop %v3041
    %v3043 = vmul.f32 1.0, %v3042
    %s3044 = scalar_lea.vmem [#allocation4], 56
    %v3045 = vld [vmem:[%s3044] sm:$0xff]
    %3046 = vmatprep.subr.mxu0 0.0
    %3047 = vmatpush1.msra.mxu0 %v632
    %3048 = vmatprep.subr.mxu0 0.0
    %3049 = vmatpush1.msra.mxu0 %v633
    %3050 = vmatprep.subr.mxu0 0.0
    %3051 = vmatpush1.msra.mxu0 %v634
    %3052 = vmatprep.subr.mxu0 0.0
    %3053 = vmatpush1.msra.mxu0 %v635
    %3054 = vmatprep.subr.mxu0 0.0
    %3055 = vmatpush1.msra.mxu0 0.0
    %3056 = vmatprep.subr.mxu0 0.0
    %3057 = vmatpush1.msra.mxu0 0.0
    %3058 = vmatprep.subr.mxu0 0.0
    %3059 = vmatpush1.msra.mxu0 0.0
    %3060 = vmatprep.subr.mxu0 0.0
    %3061 = vmatpush1.msra.mxu0 0.0
    %3062 = vmatprep.subr.mxu0 0.0
    %3063 = vmatpush1.msra.mxu0 0.0
    %3064 = vmatprep.subr.mxu0 0.0
    %3065 = vmatpush1.msra.mxu0 0.0
    %3066 = vmatprep.subr.mxu0 0.0
    %3067 = vmatpush1.msra.mxu0 0.0
    %3068 = vmatprep.subr.mxu0 0.0
    %3069 = vmatpush1.msra.mxu0 0.0
    %3070 = vmatprep.subr.mxu0 0.0
    %3071 = vmatpush1.msra.mxu0 0.0
    %3072 = vmatprep.subr.mxu0 0.0
    %3073 = vmatpush1.msra.mxu0 0.0
    %3074 = vmatprep.subr.mxu0 0.0
    %3075 = vmatpush1.msra.mxu0 0.0
    %3076 = vmatprep.subr.mxu0 0.0
    %3077 = vmatpush1.msra.mxu0 0.0
    %3078 = vmatprep.subr.mxu0 0.0
    %3079 = vmatpush1.msra.mxu0 0.0
    %3080 = vmatprep.subr.mxu0 0.0
    %3081 = vmatpush1.msra.mxu0 0.0
    %3082 = vmatprep.subr.mxu0 0.0
    %3083 = vmatpush1.msra.mxu0 0.0
    %3084 = vmatprep.subr.mxu0 0.0
    %3085 = vmatpush1.msra.mxu0 0.0
    %3086 = vmatprep.subr.mxu0 0.0
    %3087 = vmatpush1.msra.mxu0 0.0
    %3088 = vmatprep.subr.mxu0 0.0
    %3089 = vmatpush1.msra.mxu0 0.0
    %3090 = vmatprep.subr.mxu0 0.0
    %3091 = vmatpush1.msra.mxu0 0.0
    %3092 = vmatprep.subr.mxu0 0.0
    %3093 = vmatpush1.msra.mxu0 0.0
    %3094 = vmatprep.subr.mxu0 0.0
    %3095 = vmatpush1.msra.mxu0 0.0
    %3096 = vmatprep.subr.mxu0 0.0
    %3097 = vmatpush1.msra.mxu0 0.0
    %3098 = vmatprep.subr.mxu0 0.0
    %3099 = vmatpush1.msra.mxu0 0.0
    %3100 = vmatprep.subr.mxu0 0.0
    %3101 = vmatpush1.msra.mxu0 0.0
    %3102 = vmatprep.subr.mxu0 0.0
    %3103 = vmatpush1.msra.mxu0 0.0
    %3104 = vmatprep.subr.mxu0 0.0
    %3105 = vmatpush1.msra.mxu0 0.0
    %3106 = vmatprep.subr.mxu0 0.0
    %3107 = vmatpush1.msra.mxu0 0.0
    %3108 = vmatprep.subr.mxu0 0.0
    %3109 = vmatpush1.msra.mxu0 0.0
    %3110 = vmatprep.mubr.f32.mxu0 0.0
    %3111 = vmatmul.mubr.f32.gmra.mrb[0].mxu0 %v2886
    %v3112 = vpop.f32.mrb[0].mxu0
    %v3113 = vadd.f32 0.0, %v3112
    %v3114 = vpop.f32.mrb[0].mxu0
    %3115 = vdwg.mxu0
    %v3116 = vadd.f32 %v3045, %v3113
    %v3117 = vtanh.pop %v3116
    %s3118 = scalar_lea.vmem [#allocation5], 56
    %v3119 = vld [vmem:[%s3118] sm:$0xff]
    %3120 = vmatprep.subr.mxu0 0.0
    %3121 = vmatpush1.msra.mxu0 %v637
    %3122 = vmatprep.subr.mxu0 0.0
    %3123 = vmatpush1.msra.mxu0 %v638
    %3124 = vmatprep.subr.mxu0 0.0
    %3125 = vmatpush1.msra.mxu0 %v639
    %3126 = vmatprep.subr.mxu0 0.0
    %3127 = vmatpush1.msra.mxu0 %v640
    %3128 = vmatprep.subr.mxu0 0.0
    %3129 = vmatpush1.msra.mxu0 0.0
    %3130 = vmatprep.subr.mxu0 0.0
    %3131 = vmatpush1.msra.mxu0 0.0
    %3132 = vmatprep.subr.mxu0 0.0
    %3133 = vmatpush1.msra.mxu0 0.0
    %3134 = vmatprep.subr.mxu0 0.0
    %3135 = vmatpush1.msra.mxu0 0.0
    %3136 = vmatprep.subr.mxu0 0.0
    %3137 = vmatpush1.msra.mxu0 0.0
    %3138 = vmatprep.subr.mxu0 0.0
    %3139 = vmatpush1.msra.mxu0 0.0
    %3140 = vmatprep.subr.mxu0 0.0
    %3141 = vmatpush1.msra.mxu0 0.0
    %3142 = vmatprep.subr.mxu0 0.0
    %3143 = vmatpush1.msra.mxu0 0.0
    %3144 = vmatprep.subr.mxu0 0.0
    %3145 = vmatpush1.msra.mxu0 0.0
    %3146 = vmatprep.subr.mxu0 0.0
    %3147 = vmatpush1.msra.mxu0 0.0
    %3148 = vmatprep.subr.mxu0 0.0
    %3149 = vmatpush1.msra.mxu0 0.0
    %3150 = vmatprep.subr.mxu0 0.0
    %3151 = vmatpush1.msra.mxu0 0.0
    %3152 = vmatprep.subr.mxu0 0.0
    %3153 = vmatpush1.msra.mxu0 0.0
    %3154 = vmatprep.subr.mxu0 0.0
    %3155 = vmatpush1.msra.mxu0 0.0
    %3156 = vmatprep.subr.mxu0 0.0
    %3157 = vmatpush1.msra.mxu0 0.0
    %3158 = vmatprep.subr.mxu0 0.0
    %3159 = vmatpush1.msra.mxu0 0.0
    %3160 = vmatprep.subr.mxu0 0.0
    %3161 = vmatpush1.msra.mxu0 0.0
    %3162 = vmatprep.subr.mxu0 0.0
    %3163 = vmatpush1.msra.mxu0 0.0
    %3164 = vmatprep.subr.mxu0 0.0
    %3165 = vmatpush1.msra.mxu0 0.0
    %3166 = vmatprep.subr.mxu0 0.0
    %3167 = vmatpush1.msra.mxu0 0.0
    %3168 = vmatprep.subr.mxu0 0.0
    %3169 = vmatpush1.msra.mxu0 0.0
    %3170 = vmatprep.subr.mxu0 0.0
    %3171 = vmatpush1.msra.mxu0 0.0
    %3172 = vmatprep.subr.mxu0 0.0
    %3173 = vmatpush1.msra.mxu0 0.0
    %3174 = vmatprep.subr.mxu0 0.0
    %3175 = vmatpush1.msra.mxu0 0.0
    %3176 = vmatprep.subr.mxu0 0.0
    %3177 = vmatpush1.msra.mxu0 0.0
    %3178 = vmatprep.subr.mxu0 0.0
    %3179 = vmatpush1.msra.mxu0 0.0
    %3180 = vmatprep.subr.mxu0 0.0
    %3181 = vmatpush1.msra.mxu0 0.0
    %3182 = vmatprep.subr.mxu0 0.0
    %3183 = vmatpush1.msra.mxu0 0.0
    %3184 = vmatprep.mubr.f32.mxu0 0.0
    %3185 = vmatmul.mubr.f32.gmra.mrb[0].mxu0 %v2886
    %v3186 = vpop.f32.mrb[0].mxu0
    %v3187 = vadd.f32 0.0, %v3186
    %v3188 = vpop.f32.mrb[0].mxu0
    %3189 = vdwg.mxu0
    %v3190 = vadd.f32 %v3119, %v3187
    %v3191 = vxor.u32 %v3190, 2147483648
    %v3192 = vmul.f32 %v3191, 1.442695
    %v3193 = vpow.pop %v3192
    %v3194 = vadd.f32 %v3193, 1.0
    %v3195 = vrcp.pop %v3194
    %v3196 = vmul.f32 1.0, %v3195
    %v3197 = vmul.f32 %v3043, %v2878
    %v3198 = vmul.f32 %v2964, %v3117
    %v3199 = vadd.f32 %v3197, %v3198
    %v3200 = vtanh.pop %v3199
    %v3201 = vmul.f32 %v3196, %v3200
    %s3202 = scalar_lea.vmem [#allocation6], 56
    %3203 = vst.msk [vmem:[%s3202] sm:$0xff] %vm241, %v3201
    %v3204 = vld [vmem:[#allocation6] sm:$0xff]
    %v3205 = vld [vmem:[#allocation6 + $0x8] sm:$0xff]
    %v3206 = vld [vmem:[#allocation6 + $0x10] sm:$0xff]
    %v3207 = vld [vmem:[#allocation6 + $0x18] sm:$0xff]
    %v3208 = vld [vmem:[#allocation6 + $0x20] sm:$0xff]
    %v3209 = vld [vmem:[#allocation6 + $0x28] sm:$0xff]
    %v3210 = vld [vmem:[#allocation6 + $0x30] sm:$0xff]
    %v3211 = vld [vmem:[#allocation6 + $0x38] sm:$0xff]
    %v3212 = vld [vmem:[%s4] sm:$0xff]
    %v3213 = vld [vmem:[%s4 + $0x8] sm:$0xff]
    %v3214 = vld [vmem:[%s4 + $0x10] sm:$0xff]
    %v3215 = vld [vmem:[%s4 + $0x18] sm:$0xff]
    %v3216 = vld [vmem:[%s6] sm:$0x1]
    %v3218 = vlaneseq
    %v3219 = vshrl.u32 %v3218, 7
    %v3220 = vsub.s32 0, %v3219
    %v3221 = vrot.slane %v3216, %v3220
    %v3224 = vsel %vm241, %v3204, 0
    %v3227 = vsel %vm241, %v3205, 0
    %v3230 = vsel %vm241, %v3206, 0
    %v3233 = vsel %vm241, %v3207, 0
    %v3236 = vsel %vm241, %v3208, 0
    %v3239 = vsel %vm241, %v3209, 0
    %v3242 = vsel %vm241, %v3210, 0
    %v3245 = vsel %vm241, %v3211, 0
    %3247 = vmatprep.subr.mxu0 0.0
    %3248 = vmatpush1.msra.mxu0 %v3212
    %3249 = vmatprep.subr.mxu0 0.0
    %3250 = vmatpush1.msra.mxu0 %v3213
    %3251 = vmatprep.subr.mxu0 0.0
    %3252 = vmatpush1.msra.mxu0 %v3214
    %3253 = vmatprep.subr.mxu0 0.0
    %3254 = vmatpush1.msra.mxu0 %v3215
    %3255 = vmatprep.subr.mxu0 0.0
    %3256 = vmatpush1.msra.mxu0 0.0
    %3257 = vmatprep.subr.mxu0 0.0
    %3258 = vmatpush1.msra.mxu0 0.0
    %3259 = vmatprep.subr.mxu0 0.0
    %3260 = vmatpush1.msra.mxu0 0.0
    %3261 = vmatprep.subr.mxu0 0.0
    %3262 = vmatpush1.msra.mxu0 0.0
    %3263 = vmatprep.subr.mxu0 0.0
    %3264 = vmatpush1.msra.mxu0 0.0
    %3265 = vmatprep.subr.mxu0 0.0
    %3266 = vmatpush1.msra.mxu0 0.0
    %3267 = vmatprep.subr.mxu0 0.0
    %3268 = vmatpush1.msra.mxu0 0.0
    %3269 = vmatprep.subr.mxu0 0.0
    %3270 = vmatpush1.msra.mxu0 0.0
    %3271 = vmatprep.subr.mxu0 0.0
    %3272 = vmatpush1.msra.mxu0 0.0
    %3273 = vmatprep.subr.mxu0 0.0
    %3274 = vmatpush1.msra.mxu0 0.0
    %3275 = vmatprep.subr.mxu0 0.0
    %3276 = vmatpush1.msra.mxu0 0.0
    %3277 = vmatprep.subr.mxu0 0.0
    %3278 = vmatpush1.msra.mxu0 0.0
    %3279 = vmatprep.subr.mxu0 0.0
    %3280 = vmatpush1.msra.mxu0 0.0
    %3281 = vmatprep.subr.mxu0 0.0
    %3282 = vmatpush1.msra.mxu0 0.0
    %3283 = vmatprep.subr.mxu0 0.0
    %3284 = vmatpush1.msra.mxu0 0.0
    %3285 = vmatprep.subr.mxu0 0.0
    %3286 = vmatpush1.msra.mxu0 0.0
    %3287 = vmatprep.subr.mxu0 0.0
    %3288 = vmatpush1.msra.mxu0 0.0
    %3289 = vmatprep.subr.mxu0 0.0
    %3290 = vmatpush1.msra.mxu0 0.0
    %3291 = vmatprep.subr.mxu0 0.0
    %3292 = vmatpush1.msra.mxu0 0.0
    %3293 = vmatprep.subr.mxu0 0.0
    %3294 = vmatpush1.msra.mxu0 0.0
    %3295 = vmatprep.subr.mxu0 0.0
    %3296 = vmatpush1.msra.mxu0 0.0
    %3297 = vmatprep.subr.mxu0 0.0
    %3298 = vmatpush1.msra.mxu0 0.0
    %3299 = vmatprep.subr.mxu0 0.0
    %3300 = vmatpush1.msra.mxu0 0.0
    %3301 = vmatprep.subr.mxu0 0.0
    %3302 = vmatpush1.msra.mxu0 0.0
    %3303 = vmatprep.subr.mxu0 0.0
    %3304 = vmatpush1.msra.mxu0 0.0
    %3305 = vmatprep.subr.mxu0 0.0
    %3306 = vmatpush1.msra.mxu0 0.0
    %3307 = vmatprep.subr.mxu0 0.0
    %3308 = vmatpush1.msra.mxu0 0.0
    %3309 = vmatprep.subr.mxu0 0.0
    %3310 = vmatpush1.msra.mxu0 0.0
    %3311 = vmatprep.mubr.f32.mxu0 0.0
    %3312 = vmatmul.mubr.f32.gmra.mrb[0].mxu0 %v3224
    %v3313 = vpop.f32.mrb[0].mxu0
    %v3314 = vadd.f32 %v3221, %v3313
    %v3315 = vpop.f32.mrb[0].mxu0
    %3316 = vmatprep.mubr.f32.mxu0 0.0
    %3317 = vmatmul.mubr.f32.gmra.mrb[0].mxu0 %v3227
    %v3318 = vpop.f32.mrb[0].mxu0
    %v3319 = vadd.f32 %v3221, %v3318
    %v3320 = vpop.f32.mrb[0].mxu0
    %3321 = vmatprep.mubr.f32.mxu0 0.0
    %3322 = vmatmul.mubr.f32.gmra.mrb[0].mxu0 %v3230
    %v3323 = vpop.f32.mrb[0].mxu0
    %v3324 = vadd.f32 %v3221, %v3323
    %v3325 = vpop.f32.mrb[0].mxu0
    %3326 = vmatprep.mubr.f32.mxu0 0.0
    %3327 = vmatmul.mubr.f32.gmra.mrb[0].mxu0 %v3233
    %v3328 = vpop.f32.mrb[0].mxu0
    %v3329 = vadd.f32 %v3221, %v3328
    %v3330 = vpop.f32.mrb[0].mxu0
    %3331 = vmatprep.mubr.f32.mxu0 0.0
    %3332 = vmatmul.mubr.f32.gmra.mrb[0].mxu0 %v3236
    %v3333 = vpop.f32.mrb[0].mxu0
    %v3334 = vadd.f32 %v3221, %v3333
    %v3335 = vpop.f32.mrb[0].mxu0
    %3336 = vmatprep.mubr.f32.mxu0 0.0
    %3337 = vmatmul.mubr.f32.gmra.mrb[0].mxu0 %v3239
    %v3338 = vpop.f32.mrb[0].mxu0
    %v3339 = vadd.f32 %v3221, %v3338
    %v3340 = vpop.f32.mrb[0].mxu0
    %3341 = vmatprep.mubr.f32.mxu0 0.0
    %3342 = vmatmul.mubr.f32.gmra.mrb[0].mxu0 %v3242
    %v3343 = vpop.f32.mrb[0].mxu0
    %v3344 = vadd.f32 %v3221, %v3343
    %v3345 = vpop.f32.mrb[0].mxu0
    %3346 = vmatprep.mubr.f32.mxu0 0.0
    %3347 = vmatmul.mubr.f32.gmra.mrb[0].mxu0 %v3245
    %v3348 = vpop.f32.mrb[0].mxu0
    %v3349 = vadd.f32 %v3221, %v3348
    %v3350 = vpop.f32.mrb[0].mxu0
    %3351 = vdwg.mxu0
    %3352 = vst.msk [vmem:[#allocation2] sm:$0xff] %vm241, %v3314
    %3353 = vst.msk [vmem:[#allocation2 + $0x8] sm:$0xff] %vm241, %v3319
    %3354 = vst.msk [vmem:[#allocation2 + $0x10] sm:$0xff] %vm241, %v3324
    %3355 = vst.msk [vmem:[#allocation2 + $0x18] sm:$0xff] %vm241, %v3329
    %3356 = vst.msk [vmem:[#allocation2 + $0x20] sm:$0xff] %vm241, %v3334
    %3357 = vst.msk [vmem:[#allocation2 + $0x28] sm:$0xff] %vm241, %v3339
    %3358 = vst.msk [vmem:[#allocation2 + $0x30] sm:$0xff] %vm241, %v3344
    %3359 = vst.msk [vmem:[#allocation2 + $0x38] sm:$0xff] %vm241, %v3349
    %s3360 = scalar_lea.vmem %s4, 32
    %v3361 = vld [vmem:[%s3360] sm:$0xff]
    %v3362 = vld [vmem:[%s3360 + $0x8] sm:$0xff]
    %v3363 = vld [vmem:[%s3360 + $0x10] sm:$0xff]
    %v3364 = vld [vmem:[%s3360 + $0x18] sm:$0xff]
    %s3365 = scalar_lea.vmem %s6, 1
    %v3366 = vld [vmem:[%s3365] sm:$0x1]
    %v3368 = vlaneseq
    %v3369 = vshrl.u32 %v3368, 7
    %v3370 = vsub.s32 0, %v3369
    %v3371 = vrot.slane %v3366, %v3370
    %3373 = vmatprep.subr.mxu0 0.0
    %3374 = vmatpush1.msra.mxu0 %v3361
    %3375 = vmatprep.subr.mxu0 0.0
    %3376 = vmatpush1.msra.mxu0 %v3362
    %3377 = vmatprep.subr.mxu0 0.0
    %3378 = vmatpush1.msra.mxu0 %v3363
    %3379 = vmatprep.subr.mxu0 0.0
    %3380 = vmatpush1.msra.mxu0 %v3364
    %3381 = vmatprep.subr.mxu0 0.0
    %3382 = vmatpush1.msra.mxu0 0.0
    %3383 = vmatprep.subr.mxu0 0.0
    %3384 = vmatpush1.msra.mxu0 0.0
    %3385 = vmatprep.subr.mxu0 0.0
    %3386 = vmatpush1.msra.mxu0 0.0
    %3387 = vmatprep.subr.mxu0 0.0
    %3388 = vmatpush1.msra.mxu0 0.0
    %3389 = vmatprep.subr.mxu0 0.0
    %3390 = vmatpush1.msra.mxu0 0.0
    %3391 = vmatprep.subr.mxu0 0.0
    %3392 = vmatpush1.msra.mxu0 0.0
    %3393 = vmatprep.subr.mxu0 0.0
    %3394 = vmatpush1.msra.mxu0 0.0
    %3395 = vmatprep.subr.mxu0 0.0
    %3396 = vmatpush1.msra.mxu0 0.0
    %3397 = vmatprep.subr.mxu0 0.0
    %3398 = vmatpush1.msra.mxu0 0.0
    %3399 = vmatprep.subr.mxu0 0.0
    %3400 = vmatpush1.msra.mxu0 0.0
    %3401 = vmatprep.subr.mxu0 0.0
    %3402 = vmatpush1.msra.mxu0 0.0
    %3403 = vmatprep.subr.mxu0 0.0
    %3404 = vmatpush1.msra.mxu0 0.0
    %3405 = vmatprep.subr.mxu0 0.0
    %3406 = vmatpush1.msra.mxu0 0.0
    %3407 = vmatprep.subr.mxu0 0.0
    %3408 = vmatpush1.msra.mxu0 0.0
    %3409 = vmatprep.subr.mxu0 0.0
    %3410 = vmatpush1.msra.mxu0 0.0
    %3411 = vmatprep.subr.mxu0 0.0
    %3412 = vmatpush1.msra.mxu0 0.0
    %3413 = vmatprep.subr.mxu0 0.0
    %3414 = vmatpush1.msra.mxu0 0.0
    %3415 = vmatprep.subr.mxu0 0.0
    %3416 = vmatpush1.msra.mxu0 0.0
    %3417 = vmatprep.subr.mxu0 0.0
    %3418 = vmatpush1.msra.mxu0 0.0
    %3419 = vmatprep.subr.mxu0 0.0
    %3420 = vmatpush1.msra.mxu0 0.0
    %3421 = vmatprep.subr.mxu0 0.0
    %3422 = vmatpush1.msra.mxu0 0.0
    %3423 = vmatprep.subr.mxu0 0.0
    %3424 = vmatpush1.msra.mxu0 0.0
    %3425 = vmatprep.subr.mxu0 0.0
    %3426 = vmatpush1.msra.mxu0 0.0
    %3427 = vmatprep.subr.mxu0 0.0
    %3428 = vmatpush1.msra.mxu0 0.0
    %3429 = vmatprep.subr.mxu0 0.0
    %3430 = vmatpush1.msra.mxu0 0.0
    %3431 = vmatprep.subr.mxu0 0.0
    %3432 = vmatpush1.msra.mxu0 0.0
    %3433 = vmatprep.subr.mxu0 0.0
    %3434 = vmatpush1.msra.mxu0 0.0
    %3435 = vmatprep.subr.mxu0 0.0
    %3436 = vmatpush1.msra.mxu0 0.0
    %3437 = vmatprep.mubr.f32.mxu0 0.0
    %3438 = vmatmul.mubr.f32.gmra.mrb[0].mxu0 %v3224
    %v3439 = vpop.f32.mrb[0].mxu0
    %v3440 = vadd.f32 %v3371, %v3439
    %v3441 = vpop.f32.mrb[0].mxu0
    %3442 = vmatprep.mubr.f32.mxu0 0.0
    %3443 = vmatmul.mubr.f32.gmra.mrb[0].mxu0 %v3227
    %v3444 = vpop.f32.mrb[0].mxu0
    %v3445 = vadd.f32 %v3371, %v3444
    %v3446 = vpop.f32.mrb[0].mxu0
    %3447 = vmatprep.mubr.f32.mxu0 0.0
    %3448 = vmatmul.mubr.f32.gmra.mrb[0].mxu0 %v3230
    %v3449 = vpop.f32.mrb[0].mxu0
    %v3450 = vadd.f32 %v3371, %v3449
    %v3451 = vpop.f32.mrb[0].mxu0
    %3452 = vmatprep.mubr.f32.mxu0 0.0
    %3453 = vmatmul.mubr.f32.gmra.mrb[0].mxu0 %v3233
    %v3454 = vpop.f32.mrb[0].mxu0
    %v3455 = vadd.f32 %v3371, %v3454
    %v3456 = vpop.f32.mrb[0].mxu0
    %3457 = vmatprep.mubr.f32.mxu0 0.0
    %3458 = vmatmul.mubr.f32.gmra.mrb[0].mxu0 %v3236
    %v3459 = vpop.f32.mrb[0].mxu0
    %v3460 = vadd.f32 %v3371, %v3459
    %v3461 = vpop.f32.mrb[0].mxu0
    %3462 = vmatprep.mubr.f32.mxu0 0.0
    %3463 = vmatmul.mubr.f32.gmra.mrb[0].mxu0 %v3239
    %v3464 = vpop.f32.mrb[0].mxu0
    %v3465 = vadd.f32 %v3371, %v3464
    %v3466 = vpop.f32.mrb[0].mxu0
    %3467 = vmatprep.mubr.f32.mxu0 0.0
    %3468 = vmatmul.mubr.f32.gmra.mrb[0].mxu0 %v3242
    %v3469 = vpop.f32.mrb[0].mxu0
    %v3470 = vadd.f32 %v3371, %v3469
    %v3471 = vpop.f32.mrb[0].mxu0
    %3472 = vmatprep.mubr.f32.mxu0 0.0
    %3473 = vmatmul.mubr.f32.gmra.mrb[0].mxu0 %v3245
    %v3474 = vpop.f32.mrb[0].mxu0
    %v3475 = vadd.f32 %v3371, %v3474
    %v3476 = vpop.f32.mrb[0].mxu0
    %3477 = vdwg.mxu0
    %3478 = vst.msk [vmem:[#allocation3] sm:$0xff] %vm241, %v3440
    %3479 = vst.msk [vmem:[#allocation3 + $0x8] sm:$0xff] %vm241, %v3445
    %3480 = vst.msk [vmem:[#allocation3 + $0x10] sm:$0xff] %vm241, %v3450
    %3481 = vst.msk [vmem:[#allocation3 + $0x18] sm:$0xff] %vm241, %v3455
    %3482 = vst.msk [vmem:[#allocation3 + $0x20] sm:$0xff] %vm241, %v3460
    %3483 = vst.msk [vmem:[#allocation3 + $0x28] sm:$0xff] %vm241, %v3465
    %3484 = vst.msk [vmem:[#allocation3 + $0x30] sm:$0xff] %vm241, %v3470
    %3485 = vst.msk [vmem:[#allocation3 + $0x38] sm:$0xff] %vm241, %v3475
    %s3486 = scalar_lea.vmem %s4, 64
    %v3487 = vld [vmem:[%s3486] sm:$0xff]
    %v3488 = vld [vmem:[%s3486 + $0x8] sm:$0xff]
    %v3489 = vld [vmem:[%s3486 + $0x10] sm:$0xff]
    %v3490 = vld [vmem:[%s3486 + $0x18] sm:$0xff]
    %s3491 = scalar_lea.vmem %s6, 2
    %v3492 = vld [vmem:[%s3491] sm:$0x1]
    %v3494 = vlaneseq
    %v3495 = vshrl.u32 %v3494, 7
    %v3496 = vsub.s32 0, %v3495
    %v3497 = vrot.slane %v3492, %v3496
    %3499 = vmatprep.subr.mxu0 0.0
    %3500 = vmatpush1.msra.mxu0 %v3487
    %3501 = vmatprep.subr.mxu0 0.0
    %3502 = vmatpush1.msra.mxu0 %v3488
    %3503 = vmatprep.subr.mxu0 0.0
    %3504 = vmatpush1.msra.mxu0 %v3489
    %3505 = vmatprep.subr.mxu0 0.0
    %3506 = vmatpush1.msra.mxu0 %v3490
    %3507 = vmatprep.subr.mxu0 0.0
    %3508 = vmatpush1.msra.mxu0 0.0
    %3509 = vmatprep.subr.mxu0 0.0
    %3510 = vmatpush1.msra.mxu0 0.0
    %3511 = vmatprep.subr.mxu0 0.0
    %3512 = vmatpush1.msra.mxu0 0.0
    %3513 = vmatprep.subr.mxu0 0.0
    %3514 = vmatpush1.msra.mxu0 0.0
    %3515 = vmatprep.subr.mxu0 0.0
    %3516 = vmatpush1.msra.mxu0 0.0
    %3517 = vmatprep.subr.mxu0 0.0
    %3518 = vmatpush1.msra.mxu0 0.0
    %3519 = vmatprep.subr.mxu0 0.0
    %3520 = vmatpush1.msra.mxu0 0.0
    %3521 = vmatprep.subr.mxu0 0.0
    %3522 = vmatpush1.msra.mxu0 0.0
    %3523 = vmatprep.subr.mxu0 0.0
    %3524 = vmatpush1.msra.mxu0 0.0
    %3525 = vmatprep.subr.mxu0 0.0
    %3526 = vmatpush1.msra.mxu0 0.0
    %3527 = vmatprep.subr.mxu0 0.0
    %3528 = vmatpush1.msra.mxu0 0.0
    %3529 = vmatprep.subr.mxu0 0.0
    %3530 = vmatpush1.msra.mxu0 0.0
    %3531 = vmatprep.subr.mxu0 0.0
    %3532 = vmatpush1.msra.mxu0 0.0
    %3533 = vmatprep.subr.mxu0 0.0
    %3534 = vmatpush1.msra.mxu0 0.0
    %3535 = vmatprep.subr.mxu0 0.0
    %3536 = vmatpush1.msra.mxu0 0.0
    %3537 = vmatprep.subr.mxu0 0.0
    %3538 = vmatpush1.msra.mxu0 0.0
    %3539 = vmatprep.subr.mxu0 0.0
    %3540 = vmatpush1.msra.mxu0 0.0
    %3541 = vmatprep.subr.mxu0 0.0
    %3542 = vmatpush1.msra.mxu0 0.0
    %3543 = vmatprep.subr.mxu0 0.0
    %3544 = vmatpush1.msra.mxu0 0.0
    %3545 = vmatprep.subr.mxu0 0.0
    %3546 = vmatpush1.msra.mxu0 0.0
    %3547 = vmatprep.subr.mxu0 0.0
    %3548 = vmatpush1.msra.mxu0 0.0
    %3549 = vmatprep.subr.mxu0 0.0
    %3550 = vmatpush1.msra.mxu0 0.0
    %3551 = vmatprep.subr.mxu0 0.0
    %3552 = vmatpush1.msra.mxu0 0.0
    %3553 = vmatprep.subr.mxu0 0.0
    %3554 = vmatpush1.msra.mxu0 0.0
    %3555 = vmatprep.subr.mxu0 0.0
    %3556 = vmatpush1.msra.mxu0 0.0
    %3557 = vmatprep.subr.mxu0 0.0
    %3558 = vmatpush1.msra.mxu0 0.0
    %3559 = vmatprep.subr.mxu0 0.0
    %3560 = vmatpush1.msra.mxu0 0.0
    %3561 = vmatprep.subr.mxu0 0.0
    %3562 = vmatpush1.msra.mxu0 0.0
    %3563 = vmatprep.mubr.f32.mxu0 0.0
    %3564 = vmatmul.mubr.f32.gmra.mrb[0].mxu0 %v3224
    %v3565 = vpop.f32.mrb[0].mxu0
    %v3566 = vadd.f32 %v3497, %v3565
    %v3567 = vpop.f32.mrb[0].mxu0
    %3568 = vmatprep.mubr.f32.mxu0 0.0
    %3569 = vmatmul.mubr.f32.gmra.mrb[0].mxu0 %v3227
    %v3570 = vpop.f32.mrb[0].mxu0
    %v3571 = vadd.f32 %v3497, %v3570
    %v3572 = vpop.f32.mrb[0].mxu0
    %3573 = vmatprep.mubr.f32.mxu0 0.0
    %3574 = vmatmul.mubr.f32.gmra.mrb[0].mxu0 %v3230
    %v3575 = vpop.f32.mrb[0].mxu0
    %v3576 = vadd.f32 %v3497, %v3575
    %v3577 = vpop.f32.mrb[0].mxu0
    %3578 = vmatprep.mubr.f32.mxu0 0.0
    %3579 = vmatmul.mubr.f32.gmra.mrb[0].mxu0 %v3233
    %v3580 = vpop.f32.mrb[0].mxu0
    %v3581 = vadd.f32 %v3497, %v3580
    %v3582 = vpop.f32.mrb[0].mxu0
    %3583 = vmatprep.mubr.f32.mxu0 0.0
    %3584 = vmatmul.mubr.f32.gmra.mrb[0].mxu0 %v3236
    %v3585 = vpop.f32.mrb[0].mxu0
    %v3586 = vadd.f32 %v3497, %v3585
    %v3587 = vpop.f32.mrb[0].mxu0
    %3588 = vmatprep.mubr.f32.mxu0 0.0
    %3589 = vmatmul.mubr.f32.gmra.mrb[0].mxu0 %v3239
    %v3590 = vpop.f32.mrb[0].mxu0
    %v3591 = vadd.f32 %v3497, %v3590
    %v3592 = vpop.f32.mrb[0].mxu0
    %3593 = vmatprep.mubr.f32.mxu0 0.0
    %3594 = vmatmul.mubr.f32.gmra.mrb[0].mxu0 %v3242
    %v3595 = vpop.f32.mrb[0].mxu0
    %v3596 = vadd.f32 %v3497, %v3595
    %v3597 = vpop.f32.mrb[0].mxu0
    %3598 = vmatprep.mubr.f32.mxu0 0.0
    %3599 = vmatmul.mubr.f32.gmra.mrb[0].mxu0 %v3245
    %v3600 = vpop.f32.mrb[0].mxu0
    %v3601 = vadd.f32 %v3497, %v3600
    %v3602 = vpop.f32.mrb[0].mxu0
    %3603 = vdwg.mxu0
    %3604 = vst.msk [vmem:[#allocation4] sm:$0xff] %vm241, %v3566
    %3605 = vst.msk [vmem:[#allocation4 + $0x8] sm:$0xff] %vm241, %v3571
    %3606 = vst.msk [vmem:[#allocation4 + $0x10] sm:$0xff] %vm241, %v3576
    %3607 = vst.msk [vmem:[#allocation4 + $0x18] sm:$0xff] %vm241, %v3581
    %3608 = vst.msk [vmem:[#allocation4 + $0x20] sm:$0xff] %vm241, %v3586
    %3609 = vst.msk [vmem:[#allocation4 + $0x28] sm:$0xff] %vm241, %v3591
    %3610 = vst.msk [vmem:[#allocation4 + $0x30] sm:$0xff] %vm241, %v3596
    %3611 = vst.msk [vmem:[#allocation4 + $0x38] sm:$0xff] %vm241, %v3601
    %s3612 = scalar_lea.vmem %s4, 96
    %v3613 = vld [vmem:[%s3612] sm:$0xff]
    %v3614 = vld [vmem:[%s3612 + $0x8] sm:$0xff]
    %v3615 = vld [vmem:[%s3612 + $0x10] sm:$0xff]
    %v3616 = vld [vmem:[%s3612 + $0x18] sm:$0xff]
    %s3617 = scalar_lea.vmem %s6, 3
    %v3618 = vld [vmem:[%s3617] sm:$0x1]
    %v3620 = vlaneseq
    %v3621 = vshrl.u32 %v3620, 7
    %v3622 = vsub.s32 0, %v3621
    %v3623 = vrot.slane %v3618, %v3622
    %3625 = vmatprep.subr.mxu0 0.0
    %3626 = vmatpush1.msra.mxu0 %v3613
    %3627 = vmatprep.subr.mxu0 0.0
    %3628 = vmatpush1.msra.mxu0 %v3614
    %3629 = vmatprep.subr.mxu0 0.0
    %3630 = vmatpush1.msra.mxu0 %v3615
    %3631 = vmatprep.subr.mxu0 0.0
    %3632 = vmatpush1.msra.mxu0 %v3616
    %3633 = vmatprep.subr.mxu0 0.0
    %3634 = vmatpush1.msra.mxu0 0.0
    %3635 = vmatprep.subr.mxu0 0.0
    %3636 = vmatpush1.msra.mxu0 0.0
    %3637 = vmatprep.subr.mxu0 0.0
    %3638 = vmatpush1.msra.mxu0 0.0
    %3639 = vmatprep.subr.mxu0 0.0
    %3640 = vmatpush1.msra.mxu0 0.0
    %3641 = vmatprep.subr.mxu0 0.0
    %3642 = vmatpush1.msra.mxu0 0.0
    %3643 = vmatprep.subr.mxu0 0.0
    %3644 = vmatpush1.msra.mxu0 0.0
    %3645 = vmatprep.subr.mxu0 0.0
    %3646 = vmatpush1.msra.mxu0 0.0
    %3647 = vmatprep.subr.mxu0 0.0
    %3648 = vmatpush1.msra.mxu0 0.0
    %3649 = vmatprep.subr.mxu0 0.0
    %3650 = vmatpush1.msra.mxu0 0.0
    %3651 = vmatprep.subr.mxu0 0.0
    %3652 = vmatpush1.msra.mxu0 0.0
    %3653 = vmatprep.subr.mxu0 0.0
    %3654 = vmatpush1.msra.mxu0 0.0
    %3655 = vmatprep.subr.mxu0 0.0
    %3656 = vmatpush1.msra.mxu0 0.0
    %3657 = vmatprep.subr.mxu0 0.0
    %3658 = vmatpush1.msra.mxu0 0.0
    %3659 = vmatprep.subr.mxu0 0.0
    %3660 = vmatpush1.msra.mxu0 0.0
    %3661 = vmatprep.subr.mxu0 0.0
    %3662 = vmatpush1.msra.mxu0 0.0
    %3663 = vmatprep.subr.mxu0 0.0
    %3664 = vmatpush1.msra.mxu0 0.0
    %3665 = vmatprep.subr.mxu0 0.0
    %3666 = vmatpush1.msra.mxu0 0.0
    %3667 = vmatprep.subr.mxu0 0.0
    %3668 = vmatpush1.msra.mxu0 0.0
    %3669 = vmatprep.subr.mxu0 0.0
    %3670 = vmatpush1.msra.mxu0 0.0
    %3671 = vmatprep.subr.mxu0 0.0
    %3672 = vmatpush1.msra.mxu0 0.0
    %3673 = vmatprep.subr.mxu0 0.0
    %3674 = vmatpush1.msra.mxu0 0.0
    %3675 = vmatprep.subr.mxu0 0.0
    %3676 = vmatpush1.msra.mxu0 0.0
    %3677 = vmatprep.subr.mxu0 0.0
    %3678 = vmatpush1.msra.mxu0 0.0
    %3679 = vmatprep.subr.mxu0 0.0
    %3680 = vmatpush1.msra.mxu0 0.0
    %3681 = vmatprep.subr.mxu0 0.0
    %3682 = vmatpush1.msra.mxu0 0.0
    %3683 = vmatprep.subr.mxu0 0.0
    %3684 = vmatpush1.msra.mxu0 0.0
    %3685 = vmatprep.subr.mxu0 0.0
    %3686 = vmatpush1.msra.mxu0 0.0
    %3687 = vmatprep.subr.mxu0 0.0
    %3688 = vmatpush1.msra.mxu0 0.0
    %3689 = vmatprep.mubr.f32.mxu0 0.0
    %3690 = vmatmul.mubr.f32.gmra.mrb[0].mxu0 %v3224
    %v3691 = vpop.f32.mrb[0].mxu0
    %v3692 = vadd.f32 %v3623, %v3691
    %v3693 = vpop.f32.mrb[0].mxu0
    %3694 = vmatprep.mubr.f32.mxu0 0.0
    %3695 = vmatmul.mubr.f32.gmra.mrb[0].mxu0 %v3227
    %v3696 = vpop.f32.mrb[0].mxu0
    %v3697 = vadd.f32 %v3623, %v3696
    %v3698 = vpop.f32.mrb[0].mxu0
    %3699 = vmatprep.mubr.f32.mxu0 0.0
    %3700 = vmatmul.mubr.f32.gmra.mrb[0].mxu0 %v3230
    %v3701 = vpop.f32.mrb[0].mxu0
    %v3702 = vadd.f32 %v3623, %v3701
    %v3703 = vpop.f32.mrb[0].mxu0
    %3704 = vmatprep.mubr.f32.mxu0 0.0
    %3705 = vmatmul.mubr.f32.gmra.mrb[0].mxu0 %v3233
    %v3706 = vpop.f32.mrb[0].mxu0
    %v3707 = vadd.f32 %v3623, %v3706
    %v3708 = vpop.f32.mrb[0].mxu0
    %3709 = vmatprep.mubr.f32.mxu0 0.0
    %3710 = vmatmul.mubr.f32.gmra.mrb[0].mxu0 %v3236
    %v3711 = vpop.f32.mrb[0].mxu0
    %v3712 = vadd.f32 %v3623, %v3711
    %v3713 = vpop.f32.mrb[0].mxu0
    %3714 = vmatprep.mubr.f32.mxu0 0.0
    %3715 = vmatmul.mubr.f32.gmra.mrb[0].mxu0 %v3239
    %v3716 = vpop.f32.mrb[0].mxu0
    %v3717 = vadd.f32 %v3623, %v3716
    %v3718 = vpop.f32.mrb[0].mxu0
    %3719 = vmatprep.mubr.f32.mxu0 0.0
    %3720 = vmatmul.mubr.f32.gmra.mrb[0].mxu0 %v3242
    %v3721 = vpop.f32.mrb[0].mxu0
    %v3722 = vadd.f32 %v3623, %v3721
    %v3723 = vpop.f32.mrb[0].mxu0
    %3724 = vmatprep.mubr.f32.mxu0 0.0
    %3725 = vmatmul.mubr.f32.gmra.mrb[0].mxu0 %v3245
    %v3726 = vpop.f32.mrb[0].mxu0
    %v3727 = vadd.f32 %v3623, %v3726
    %v3728 = vpop.f32.mrb[0].mxu0
    %3729 = vdwg.mxu0
    %3730 = vst.msk [vmem:[#allocation5] sm:$0xff] %vm241, %v3692
    %3731 = vst.msk [vmem:[#allocation5 + $0x8] sm:$0xff] %vm241, %v3697
    %3732 = vst.msk [vmem:[#allocation5 + $0x10] sm:$0xff] %vm241, %v3702
    %3733 = vst.msk [vmem:[#allocation5 + $0x18] sm:$0xff] %vm241, %v3707
    %3734 = vst.msk [vmem:[#allocation5 + $0x20] sm:$0xff] %vm241, %v3712
    %3735 = vst.msk [vmem:[#allocation5 + $0x28] sm:$0xff] %vm241, %v3717
    %3736 = vst.msk [vmem:[#allocation5 + $0x30] sm:$0xff] %vm241, %v3722
    %3737 = vst.msk [vmem:[#allocation5 + $0x38] sm:$0xff] %vm241, %v3727
    %v3738 = vld [vmem:[#allocation13] sm:$0xff]
    %v3739 = vld [vmem:[#allocation13 + $0x8] sm:$0xff]
    %v3740 = vld [vmem:[#allocation13 + $0x10] sm:$0xff]
    %v3741 = vld [vmem:[#allocation13 + $0x18] sm:$0xff]
    %s3742 = scalar_lea.vmem [#allocation13], 32
    %v3743 = vld [vmem:[%s3742] sm:$0xff]
    %v3744 = vld [vmem:[%s3742 + $0x8] sm:$0xff]
    %v3745 = vld [vmem:[%s3742 + $0x10] sm:$0xff]
    %v3746 = vld [vmem:[%s3742 + $0x18] sm:$0xff]
    %s3747 = scalar_lea.vmem [#allocation13], 64
    %v3748 = vld [vmem:[%s3747] sm:$0xff]
    %v3749 = vld [vmem:[%s3747 + $0x8] sm:$0xff]
    %v3750 = vld [vmem:[%s3747 + $0x10] sm:$0xff]
    %v3751 = vld [vmem:[%s3747 + $0x18] sm:$0xff]
    %s3752 = scalar_lea.vmem [#allocation13], 96
    %v3753 = vld [vmem:[%s3752] sm:$0xff]
    %v3754 = vld [vmem:[%s3752 + $0x8] sm:$0xff]
    %v3755 = vld [vmem:[%s3752 + $0x10] sm:$0xff]
    %v3756 = vld [vmem:[%s3752 + $0x18] sm:$0xff]
    %v3757 = vld [vmem:[#allocation2] sm:$0xff]
    %3758 = vmatprep.subr.mxu0 0.0
    %3759 = vmatpush1.msra.mxu0 %v3738
    %3760 = vmatprep.subr.mxu0 0.0
    %3761 = vmatpush1.msra.mxu0 %v3739
    %3762 = vmatprep.subr.mxu0 0.0
    %3763 = vmatpush1.msra.mxu0 %v3740
    %3764 = vmatprep.subr.mxu0 0.0
    %3765 = vmatpush1.msra.mxu0 %v3741
    %3766 = vmatprep.subr.mxu0 0.0
    %3767 = vmatpush1.msra.mxu0 0.0
    %3768 = vmatprep.subr.mxu0 0.0
    %3769 = vmatpush1.msra.mxu0 0.0
    %3770 = vmatprep.subr.mxu0 0.0
    %3771 = vmatpush1.msra.mxu0 0.0
    %3772 = vmatprep.subr.mxu0 0.0
    %3773 = vmatpush1.msra.mxu0 0.0
    %3774 = vmatprep.subr.mxu0 0.0
    %3775 = vmatpush1.msra.mxu0 0.0
    %3776 = vmatprep.subr.mxu0 0.0
    %3777 = vmatpush1.msra.mxu0 0.0
    %3778 = vmatprep.subr.mxu0 0.0
    %3779 = vmatpush1.msra.mxu0 0.0
    %3780 = vmatprep.subr.mxu0 0.0
    %3781 = vmatpush1.msra.mxu0 0.0
    %3782 = vmatprep.subr.mxu0 0.0
    %3783 = vmatpush1.msra.mxu0 0.0
    %3784 = vmatprep.subr.mxu0 0.0
    %3785 = vmatpush1.msra.mxu0 0.0
    %3786 = vmatprep.subr.mxu0 0.0
    %3787 = vmatpush1.msra.mxu0 0.0
    %3788 = vmatprep.subr.mxu0 0.0
    %3789 = vmatpush1.msra.mxu0 0.0
    %3790 = vmatprep.subr.mxu0 0.0
    %3791 = vmatpush1.msra.mxu0 0.0
    %3792 = vmatprep.subr.mxu0 0.0
    %3793 = vmatpush1.msra.mxu0 0.0
    %3794 = vmatprep.subr.mxu0 0.0
    %3795 = vmatpush1.msra.mxu0 0.0
    %3796 = vmatprep.subr.mxu0 0.0
    %3797 = vmatpush1.msra.mxu0 0.0
    %3798 = vmatprep.subr.mxu0 0.0
    %3799 = vmatpush1.msra.mxu0 0.0
    %3800 = vmatprep.subr.mxu0 0.0
    %3801 = vmatpush1.msra.mxu0 0.0
    %3802 = vmatprep.subr.mxu0 0.0
    %3803 = vmatpush1.msra.mxu0 0.0
    %3804 = vmatprep.subr.mxu0 0.0
    %3805 = vmatpush1.msra.mxu0 0.0
    %3806 = vmatprep.subr.mxu0 0.0
    %3807 = vmatpush1.msra.mxu0 0.0
    %3808 = vmatprep.subr.mxu0 0.0
    %3809 = vmatpush1.msra.mxu0 0.0
    %3810 = vmatprep.subr.mxu0 0.0
    %3811 = vmatpush1.msra.mxu0 0.0
    %3812 = vmatprep.subr.mxu0 0.0
    %3813 = vmatpush1.msra.mxu0 0.0
    %3814 = vmatprep.subr.mxu0 0.0
    %3815 = vmatpush1.msra.mxu0 0.0
    %3816 = vmatprep.subr.mxu0 0.0
    %3817 = vmatpush1.msra.mxu0 0.0
    %3818 = vmatprep.subr.mxu0 0.0
    %3819 = vmatpush1.msra.mxu0 0.0
    %3820 = vmatprep.subr.mxu0 0.0
    %3821 = vmatpush1.msra.mxu0 0.0
    %3822 = vmatprep.mubr.f32.mxu0 0.0
    %3823 = vmatmul.mubr.f32.gmra.mrb[0].mxu0 %v643
    %v3824 = vpop.f32.mrb[0].mxu0
    %v3825 = vadd.f32 0.0, %v3824
    %v3826 = vpop.f32.mrb[0].mxu0
    %3827 = vdwg.mxu0
    %v3828 = vadd.f32 %v3757, %v3825
    %v3829 = vxor.u32 %v3828, 2147483648
    %v3830 = vmul.f32 %v3829, 1.442695
    %v3831 = vpow.pop %v3830
    %v3832 = vadd.f32 %v3831, 1.0
    %v3833 = vrcp.pop %v3832
    %v3834 = vmul.f32 1.0, %v3833
    %v3835 = vld [vmem:[#allocation3] sm:$0xff]
    %3836 = vmatprep.subr.mxu0 0.0
    %3837 = vmatpush1.msra.mxu0 %v3743
    %3838 = vmatprep.subr.mxu0 0.0
    %3839 = vmatpush1.msra.mxu0 %v3744
    %3840 = vmatprep.subr.mxu0 0.0
    %3841 = vmatpush1.msra.mxu0 %v3745
    %3842 = vmatprep.subr.mxu0 0.0
    %3843 = vmatpush1.msra.mxu0 %v3746
    %3844 = vmatprep.subr.mxu0 0.0
    %3845 = vmatpush1.msra.mxu0 0.0
    %3846 = vmatprep.subr.mxu0 0.0
    %3847 = vmatpush1.msra.mxu0 0.0
    %3848 = vmatprep.subr.mxu0 0.0
    %3849 = vmatpush1.msra.mxu0 0.0
    %3850 = vmatprep.subr.mxu0 0.0
    %3851 = vmatpush1.msra.mxu0 0.0
    %3852 = vmatprep.subr.mxu0 0.0
    %3853 = vmatpush1.msra.mxu0 0.0
    %3854 = vmatprep.subr.mxu0 0.0
    %3855 = vmatpush1.msra.mxu0 0.0
    %3856 = vmatprep.subr.mxu0 0.0
    %3857 = vmatpush1.msra.mxu0 0.0
    %3858 = vmatprep.subr.mxu0 0.0
    %3859 = vmatpush1.msra.mxu0 0.0
    %3860 = vmatprep.subr.mxu0 0.0
    %3861 = vmatpush1.msra.mxu0 0.0
    %3862 = vmatprep.subr.mxu0 0.0
    %3863 = vmatpush1.msra.mxu0 0.0
    %3864 = vmatprep.subr.mxu0 0.0
    %3865 = vmatpush1.msra.mxu0 0.0
    %3866 = vmatprep.subr.mxu0 0.0
    %3867 = vmatpush1.msra.mxu0 0.0
    %3868 = vmatprep.subr.mxu0 0.0
    %3869 = vmatpush1.msra.mxu0 0.0
    %3870 = vmatprep.subr.mxu0 0.0
    %3871 = vmatpush1.msra.mxu0 0.0
    %3872 = vmatprep.subr.mxu0 0.0
    %3873 = vmatpush1.msra.mxu0 0.0
    %3874 = vmatprep.subr.mxu0 0.0
    %3875 = vmatpush1.msra.mxu0 0.0
    %3876 = vmatprep.subr.mxu0 0.0
    %3877 = vmatpush1.msra.mxu0 0.0
    %3878 = vmatprep.subr.mxu0 0.0
    %3879 = vmatpush1.msra.mxu0 0.0
    %3880 = vmatprep.subr.mxu0 0.0
    %3881 = vmatpush1.msra.mxu0 0.0
    %3882 = vmatprep.subr.mxu0 0.0
    %3883 = vmatpush1.msra.mxu0 0.0
    %3884 = vmatprep.subr.mxu0 0.0
    %3885 = vmatpush1.msra.mxu0 0.0
    %3886 = vmatprep.subr.mxu0 0.0
    %3887 = vmatpush1.msra.mxu0 0.0
    %3888 = vmatprep.subr.mxu0 0.0
    %3889 = vmatpush1.msra.mxu0 0.0
    %3890 = vmatprep.subr.mxu0 0.0
    %3891 = vmatpush1.msra.mxu0 0.0
    %3892 = vmatprep.subr.mxu0 0.0
    %3893 = vmatpush1.msra.mxu0 0.0
    %3894 = vmatprep.subr.mxu0 0.0
    %3895 = vmatpush1.msra.mxu0 0.0
    %3896 = vmatprep.subr.mxu0 0.0
    %3897 = vmatpush1.msra.mxu0 0.0
    %3898 = vmatprep.subr.mxu0 0.0
    %3899 = vmatpush1.msra.mxu0 0.0
    %3900 = vmatprep.mubr.f32.mxu0 0.0
    %3901 = vmatmul.mubr.f32.gmra.mrb[0].mxu0 %v643
    %v3902 = vpop.f32.mrb[0].mxu0
    %v3903 = vadd.f32 0.0, %v3902
    %v3904 = vpop.f32.mrb[0].mxu0
    %3905 = vdwg.mxu0
    %v3906 = vadd.f32 %v3835, %v3903
    %v3907 = vxor.u32 %v3906, 2147483648
    %v3908 = vmul.f32 %v3907, 1.442695
    %v3909 = vpow.pop %v3908
    %v3910 = vadd.f32 %v3909, 1.0
    %v3911 = vrcp.pop %v3910
    %v3912 = vmul.f32 1.0, %v3911
    %v3913 = vld [vmem:[#allocation4] sm:$0xff]
    %3914 = vmatprep.subr.mxu0 0.0
    %3915 = vmatpush1.msra.mxu0 %v3748
    %3916 = vmatprep.subr.mxu0 0.0
    %3917 = vmatpush1.msra.mxu0 %v3749
    %3918 = vmatprep.subr.mxu0 0.0
    %3919 = vmatpush1.msra.mxu0 %v3750
    %3920 = vmatprep.subr.mxu0 0.0
    %3921 = vmatpush1.msra.mxu0 %v3751
    %3922 = vmatprep.subr.mxu0 0.0
    %3923 = vmatpush1.msra.mxu0 0.0
    %3924 = vmatprep.subr.mxu0 0.0
    %3925 = vmatpush1.msra.mxu0 0.0
    %3926 = vmatprep.subr.mxu0 0.0
    %3927 = vmatpush1.msra.mxu0 0.0
    %3928 = vmatprep.subr.mxu0 0.0
    %3929 = vmatpush1.msra.mxu0 0.0
    %3930 = vmatprep.subr.mxu0 0.0
    %3931 = vmatpush1.msra.mxu0 0.0
    %3932 = vmatprep.subr.mxu0 0.0
    %3933 = vmatpush1.msra.mxu0 0.0
    %3934 = vmatprep.subr.mxu0 0.0
    %3935 = vmatpush1.msra.mxu0 0.0
    %3936 = vmatprep.subr.mxu0 0.0
    %3937 = vmatpush1.msra.mxu0 0.0
    %3938 = vmatprep.subr.mxu0 0.0
    %3939 = vmatpush1.msra.mxu0 0.0
    %3940 = vmatprep.subr.mxu0 0.0
    %3941 = vmatpush1.msra.mxu0 0.0
    %3942 = vmatprep.subr.mxu0 0.0
    %3943 = vmatpush1.msra.mxu0 0.0
    %3944 = vmatprep.subr.mxu0 0.0
    %3945 = vmatpush1.msra.mxu0 0.0
    %3946 = vmatprep.subr.mxu0 0.0
    %3947 = vmatpush1.msra.mxu0 0.0
    %3948 = vmatprep.subr.mxu0 0.0
    %3949 = vmatpush1.msra.mxu0 0.0
    %3950 = vmatprep.subr.mxu0 0.0
    %3951 = vmatpush1.msra.mxu0 0.0
    %3952 = vmatprep.subr.mxu0 0.0
    %3953 = vmatpush1.msra.mxu0 0.0
    %3954 = vmatprep.subr.mxu0 0.0
    %3955 = vmatpush1.msra.mxu0 0.0
    %3956 = vmatprep.subr.mxu0 0.0
    %3957 = vmatpush1.msra.mxu0 0.0
    %3958 = vmatprep.subr.mxu0 0.0
    %3959 = vmatpush1.msra.mxu0 0.0
    %3960 = vmatprep.subr.mxu0 0.0
    %3961 = vmatpush1.msra.mxu0 0.0
    %3962 = vmatprep.subr.mxu0 0.0
    %3963 = vmatpush1.msra.mxu0 0.0
    %3964 = vmatprep.subr.mxu0 0.0
    %3965 = vmatpush1.msra.mxu0 0.0
    %3966 = vmatprep.subr.mxu0 0.0
    %3967 = vmatpush1.msra.mxu0 0.0
    %3968 = vmatprep.subr.mxu0 0.0
    %3969 = vmatpush1.msra.mxu0 0.0
    %3970 = vmatprep.subr.mxu0 0.0
    %3971 = vmatpush1.msra.mxu0 0.0
    %3972 = vmatprep.subr.mxu0 0.0
    %3973 = vmatpush1.msra.mxu0 0.0
    %3974 = vmatprep.subr.mxu0 0.0
    %3975 = vmatpush1.msra.mxu0 0.0
    %3976 = vmatprep.subr.mxu0 0.0
    %3977 = vmatpush1.msra.mxu0 0.0
    %3978 = vmatprep.mubr.f32.mxu0 0.0
    %3979 = vmatmul.mubr.f32.gmra.mrb[0].mxu0 %v643
    %v3980 = vpop.f32.mrb[0].mxu0
    %v3981 = vadd.f32 0.0, %v3980
    %v3982 = vpop.f32.mrb[0].mxu0
    %3983 = vdwg.mxu0
    %v3984 = vadd.f32 %v3913, %v3981
    %v3985 = vtanh.pop %v3984
    %v3986 = vld [vmem:[#allocation5] sm:$0xff]
    %3987 = vmatprep.subr.mxu0 0.0
    %3988 = vmatpush1.msra.mxu0 %v3753
    %3989 = vmatprep.subr.mxu0 0.0
    %3990 = vmatpush1.msra.mxu0 %v3754
    %3991 = vmatprep.subr.mxu0 0.0
    %3992 = vmatpush1.msra.mxu0 %v3755
    %3993 = vmatprep.subr.mxu0 0.0
    %3994 = vmatpush1.msra.mxu0 %v3756
    %3995 = vmatprep.subr.mxu0 0.0
    %3996 = vmatpush1.msra.mxu0 0.0
    %3997 = vmatprep.subr.mxu0 0.0
    %3998 = vmatpush1.msra.mxu0 0.0
    %3999 = vmatprep.subr.mxu0 0.0
    %4000 = vmatpush1.msra.mxu0 0.0
    %4001 = vmatprep.subr.mxu0 0.0
    %4002 = vmatpush1.msra.mxu0 0.0
    %4003 = vmatprep.subr.mxu0 0.0
    %4004 = vmatpush1.msra.mxu0 0.0
    %4005 = vmatprep.subr.mxu0 0.0
    %4006 = vmatpush1.msra.mxu0 0.0
    %4007 = vmatprep.subr.mxu0 0.0
    %4008 = vmatpush1.msra.mxu0 0.0
    %4009 = vmatprep.subr.mxu0 0.0
    %4010 = vmatpush1.msra.mxu0 0.0
    %4011 = vmatprep.subr.mxu0 0.0
    %4012 = vmatpush1.msra.mxu0 0.0
    %4013 = vmatprep.subr.mxu0 0.0
    %4014 = vmatpush1.msra.mxu0 0.0
    %4015 = vmatprep.subr.mxu0 0.0
    %4016 = vmatpush1.msra.mxu0 0.0
    %4017 = vmatprep.subr.mxu0 0.0
    %4018 = vmatpush1.msra.mxu0 0.0
    %4019 = vmatprep.subr.mxu0 0.0
    %4020 = vmatpush1.msra.mxu0 0.0
    %4021 = vmatprep.subr.mxu0 0.0
    %4022 = vmatpush1.msra.mxu0 0.0
    %4023 = vmatprep.subr.mxu0 0.0
    %4024 = vmatpush1.msra.mxu0 0.0
    %4025 = vmatprep.subr.mxu0 0.0
    %4026 = vmatpush1.msra.mxu0 0.0
    %4027 = vmatprep.subr.mxu0 0.0
    %4028 = vmatpush1.msra.mxu0 0.0
    %4029 = vmatprep.subr.mxu0 0.0
    %4030 = vmatpush1.msra.mxu0 0.0
    %4031 = vmatprep.subr.mxu0 0.0
    %4032 = vmatpush1.msra.mxu0 0.0
    %4033 = vmatprep.subr.mxu0 0.0
    %4034 = vmatpush1.msra.mxu0 0.0
    %4035 = vmatprep.subr.mxu0 0.0
    %4036 = vmatpush1.msra.mxu0 0.0
    %4037 = vmatprep.subr.mxu0 0.0
    %4038 = vmatpush1.msra.mxu0 0.0
    %4039 = vmatprep.subr.mxu0 0.0
    %4040 = vmatpush1.msra.mxu0 0.0
    %4041 = vmatprep.subr.mxu0 0.0
    %4042 = vmatpush1.msra.mxu0 0.0
    %4043 = vmatprep.subr.mxu0 0.0
    %4044 = vmatpush1.msra.mxu0 0.0
    %4045 = vmatprep.subr.mxu0 0.0
    %4046 = vmatpush1.msra.mxu0 0.0
    %4047 = vmatprep.subr.mxu0 0.0
    %4048 = vmatpush1.msra.mxu0 0.0
    %4049 = vmatprep.subr.mxu0 0.0
    %4050 = vmatpush1.msra.mxu0 0.0
    %4051 = vmatprep.mubr.f32.mxu0 0.0
    %4052 = vmatmul.mubr.f32.gmra.mrb[0].mxu0 %v643
    %v4053 = vpop.f32.mrb[0].mxu0
    %v4054 = vadd.f32 0.0, %v4053
    %v4055 = vpop.f32.mrb[0].mxu0
    %4056 = vdwg.mxu0
    %v4057 = vadd.f32 %v3986, %v4054
    %v4058 = vxor.u32 %v4057, 2147483648
    %v4059 = vmul.f32 %v4058, 1.442695
    %v4060 = vpow.pop %v4059
    %v4061 = vadd.f32 %v4060, 1.0
    %v4062 = vrcp.pop %v4061
    %v4063 = vmul.f32 1.0, %v4062
    %v4064 = vmul.f32 %v3912, 0.0
    %v4065 = vmul.f32 %v3834, %v3985
    %v4066 = vadd.f32 %v4064, %v4065
    %v4067 = vtanh.pop %v4066
    %v4068 = vmul.f32 %v4063, %v4067
    %v4069 = vld [vmem:[%s957] sm:$0xff]
    %v4071 = vsel %vm241, %v4068, 0
    %4073 = vmatprep.subr.mxu0 0.0
    %4074 = vmatpush1.msra.mxu0 %v3738
    %4075 = vmatprep.subr.mxu0 0.0
    %4076 = vmatpush1.msra.mxu0 %v3739
    %4077 = vmatprep.subr.mxu0 0.0
    %4078 = vmatpush1.msra.mxu0 %v3740
    %4079 = vmatprep.subr.mxu0 0.0
    %4080 = vmatpush1.msra.mxu0 %v3741
    %4081 = vmatprep.subr.mxu0 0.0
    %4082 = vmatpush1.msra.mxu0 0.0
    %4083 = vmatprep.subr.mxu0 0.0
    %4084 = vmatpush1.msra.mxu0 0.0
    %4085 = vmatprep.subr.mxu0 0.0
    %4086 = vmatpush1.msra.mxu0 0.0
    %4087 = vmatprep.subr.mxu0 0.0
    %4088 = vmatpush1.msra.mxu0 0.0
    %4089 = vmatprep.subr.mxu0 0.0
    %4090 = vmatpush1.msra.mxu0 0.0
    %4091 = vmatprep.subr.mxu0 0.0
    %4092 = vmatpush1.msra.mxu0 0.0
    %4093 = vmatprep.subr.mxu0 0.0
    %4094 = vmatpush1.msra.mxu0 0.0
    %4095 = vmatprep.subr.mxu0 0.0
    %4096 = vmatpush1.msra.mxu0 0.0
    %4097 = vmatprep.subr.mxu0 0.0
    %4098 = vmatpush1.msra.mxu0 0.0
    %4099 = vmatprep.subr.mxu0 0.0
    %4100 = vmatpush1.msra.mxu0 0.0
    %4101 = vmatprep.subr.mxu0 0.0
    %4102 = vmatpush1.msra.mxu0 0.0
    %4103 = vmatprep.subr.mxu0 0.0
    %4104 = vmatpush1.msra.mxu0 0.0
    %4105 = vmatprep.subr.mxu0 0.0
    %4106 = vmatpush1.msra.mxu0 0.0
    %4107 = vmatprep.subr.mxu0 0.0
    %4108 = vmatpush1.msra.mxu0 0.0
    %4109 = vmatprep.subr.mxu0 0.0
    %4110 = vmatpush1.msra.mxu0 0.0
    %4111 = vmatprep.subr.mxu0 0.0
    %4112 = vmatpush1.msra.mxu0 0.0
    %4113 = vmatprep.subr.mxu0 0.0
    %4114 = vmatpush1.msra.mxu0 0.0
    %4115 = vmatprep.subr.mxu0 0.0
    %4116 = vmatpush1.msra.mxu0 0.0
    %4117 = vmatprep.subr.mxu0 0.0
    %4118 = vmatpush1.msra.mxu0 0.0
    %4119 = vmatprep.subr.mxu0 0.0
    %4120 = vmatpush1.msra.mxu0 0.0
    %4121 = vmatprep.subr.mxu0 0.0
    %4122 = vmatpush1.msra.mxu0 0.0
    %4123 = vmatprep.subr.mxu0 0.0
    %4124 = vmatpush1.msra.mxu0 0.0
    %4125 = vmatprep.subr.mxu0 0.0
    %4126 = vmatpush1.msra.mxu0 0.0
    %4127 = vmatprep.subr.mxu0 0.0
    %4128 = vmatpush1.msra.mxu0 0.0
    %4129 = vmatprep.subr.mxu0 0.0
    %4130 = vmatpush1.msra.mxu0 0.0
    %4131 = vmatprep.subr.mxu0 0.0
    %4132 = vmatpush1.msra.mxu0 0.0
    %4133 = vmatprep.subr.mxu0 0.0
    %4134 = vmatpush1.msra.mxu0 0.0
    %4135 = vmatprep.subr.mxu0 0.0
    %4136 = vmatpush1.msra.mxu0 0.0
    %4137 = vmatprep.mubr.f32.mxu0 0.0
    %4138 = vmatmul.mubr.f32.gmra.mrb[0].mxu0 %v4071
    %v4139 = vpop.f32.mrb[0].mxu0
    %v4140 = vadd.f32 0.0, %v4139
    %v4141 = vpop.f32.mrb[0].mxu0
    %4142 = vdwg.mxu0
    %v4143 = vadd.f32 %v4069, %v4140
    %v4144 = vxor.u32 %v4143, 2147483648
    %v4145 = vmul.f32 %v4144, 1.442695
    %v4146 = vpow.pop %v4145
    %v4147 = vadd.f32 %v4146, 1.0
    %v4148 = vrcp.pop %v4147
    %v4149 = vmul.f32 1.0, %v4148
    %v4150 = vld [vmem:[%s1039] sm:$0xff]
    %4151 = vmatprep.subr.mxu0 0.0
    %4152 = vmatpush1.msra.mxu0 %v3743
    %4153 = vmatprep.subr.mxu0 0.0
    %4154 = vmatpush1.msra.mxu0 %v3744
    %4155 = vmatprep.subr.mxu0 0.0
    %4156 = vmatpush1.msra.mxu0 %v3745
    %4157 = vmatprep.subr.mxu0 0.0
    %4158 = vmatpush1.msra.mxu0 %v3746
    %4159 = vmatprep.subr.mxu0 0.0
    %4160 = vmatpush1.msra.mxu0 0.0
    %4161 = vmatprep.subr.mxu0 0.0
    %4162 = vmatpush1.msra.mxu0 0.0
    %4163 = vmatprep.subr.mxu0 0.0
    %4164 = vmatpush1.msra.mxu0 0.0
    %4165 = vmatprep.subr.mxu0 0.0
    %4166 = vmatpush1.msra.mxu0 0.0
    %4167 = vmatprep.subr.mxu0 0.0
    %4168 = vmatpush1.msra.mxu0 0.0
    %4169 = vmatprep.subr.mxu0 0.0
    %4170 = vmatpush1.msra.mxu0 0.0
    %4171 = vmatprep.subr.mxu0 0.0
    %4172 = vmatpush1.msra.mxu0 0.0
    %4173 = vmatprep.subr.mxu0 0.0
    %4174 = vmatpush1.msra.mxu0 0.0
    %4175 = vmatprep.subr.mxu0 0.0
    %4176 = vmatpush1.msra.mxu0 0.0
    %4177 = vmatprep.subr.mxu0 0.0
    %4178 = vmatpush1.msra.mxu0 0.0
    %4179 = vmatprep.subr.mxu0 0.0
    %4180 = vmatpush1.msra.mxu0 0.0
    %4181 = vmatprep.subr.mxu0 0.0
    %4182 = vmatpush1.msra.mxu0 0.0
    %4183 = vmatprep.subr.mxu0 0.0
    %4184 = vmatpush1.msra.mxu0 0.0
    %4185 = vmatprep.subr.mxu0 0.0
    %4186 = vmatpush1.msra.mxu0 0.0
    %4187 = vmatprep.subr.mxu0 0.0
    %4188 = vmatpush1.msra.mxu0 0.0
    %4189 = vmatprep.subr.mxu0 0.0
    %4190 = vmatpush1.msra.mxu0 0.0
    %4191 = vmatprep.subr.mxu0 0.0
    %4192 = vmatpush1.msra.mxu0 0.0
    %4193 = vmatprep.subr.mxu0 0.0
    %4194 = vmatpush1.msra.mxu0 0.0
    %4195 = vmatprep.subr.mxu0 0.0
    %4196 = vmatpush1.msra.mxu0 0.0
    %4197 = vmatprep.subr.mxu0 0.0
    %4198 = vmatpush1.msra.mxu0 0.0
    %4199 = vmatprep.subr.mxu0 0.0
    %4200 = vmatpush1.msra.mxu0 0.0
    %4201 = vmatprep.subr.mxu0 0.0
    %4202 = vmatpush1.msra.mxu0 0.0
    %4203 = vmatprep.subr.mxu0 0.0
    %4204 = vmatpush1.msra.mxu0 0.0
    %4205 = vmatprep.subr.mxu0 0.0
    %4206 = vmatpush1.msra.mxu0 0.0
    %4207 = vmatprep.subr.mxu0 0.0
    %4208 = vmatpush1.msra.mxu0 0.0
    %4209 = vmatprep.subr.mxu0 0.0
    %4210 = vmatpush1.msra.mxu0 0.0
    %4211 = vmatprep.subr.mxu0 0.0
    %4212 = vmatpush1.msra.mxu0 0.0
    %4213 = vmatprep.subr.mxu0 0.0
    %4214 = vmatpush1.msra.mxu0 0.0
    %4215 = vmatprep.mubr.f32.mxu0 0.0
    %4216 = vmatmul.mubr.f32.gmra.mrb[0].mxu0 %v4071
    %v4217 = vpop.f32.mrb[0].mxu0
    %v4218 = vadd.f32 0.0, %v4217
    %v4219 = vpop.f32.mrb[0].mxu0
    %4220 = vdwg.mxu0
    %v4221 = vadd.f32 %v4150, %v4218
    %v4222 = vxor.u32 %v4221, 2147483648
    %v4223 = vmul.f32 %v4222, 1.442695
    %v4224 = vpow.pop %v4223
    %v4225 = vadd.f32 %v4224, 1.0
    %v4226 = vrcp.pop %v4225
    %v4227 = vmul.f32 1.0, %v4226
    %v4228 = vld [vmem:[%s1118] sm:$0xff]
    %4229 = vmatprep.subr.mxu0 0.0
    %4230 = vmatpush1.msra.mxu0 %v3748
    %4231 = vmatprep.subr.mxu0 0.0
    %4232 = vmatpush1.msra.mxu0 %v3749
    %4233 = vmatprep.subr.mxu0 0.0
    %4234 = vmatpush1.msra.mxu0 %v3750
    %4235 = vmatprep.subr.mxu0 0.0
    %4236 = vmatpush1.msra.mxu0 %v3751
    %4237 = vmatprep.subr.mxu0 0.0
    %4238 = vmatpush1.msra.mxu0 0.0
    %4239 = vmatprep.subr.mxu0 0.0
    %4240 = vmatpush1.msra.mxu0 0.0
    %4241 = vmatprep.subr.mxu0 0.0
    %4242 = vmatpush1.msra.mxu0 0.0
    %4243 = vmatprep.subr.mxu0 0.0
    %4244 = vmatpush1.msra.mxu0 0.0
    %4245 = vmatprep.subr.mxu0 0.0
    %4246 = vmatpush1.msra.mxu0 0.0
    %4247 = vmatprep.subr.mxu0 0.0
    %4248 = vmatpush1.msra.mxu0 0.0
    %4249 = vmatprep.subr.mxu0 0.0
    %4250 = vmatpush1.msra.mxu0 0.0
    %4251 = vmatprep.subr.mxu0 0.0
    %4252 = vmatpush1.msra.mxu0 0.0
    %4253 = vmatprep.subr.mxu0 0.0
    %4254 = vmatpush1.msra.mxu0 0.0
    %4255 = vmatprep.subr.mxu0 0.0
    %4256 = vmatpush1.msra.mxu0 0.0
    %4257 = vmatprep.subr.mxu0 0.0
    %4258 = vmatpush1.msra.mxu0 0.0
    %4259 = vmatprep.subr.mxu0 0.0
    %4260 = vmatpush1.msra.mxu0 0.0
    %4261 = vmatprep.subr.mxu0 0.0
    %4262 = vmatpush1.msra.mxu0 0.0
    %4263 = vmatprep.subr.mxu0 0.0
    %4264 = vmatpush1.msra.mxu0 0.0
    %4265 = vmatprep.subr.mxu0 0.0
    %4266 = vmatpush1.msra.mxu0 0.0
    %4267 = vmatprep.subr.mxu0 0.0
    %4268 = vmatpush1.msra.mxu0 0.0
    %4269 = vmatprep.subr.mxu0 0.0
    %4270 = vmatpush1.msra.mxu0 0.0
    %4271 = vmatprep.subr.mxu0 0.0
    %4272 = vmatpush1.msra.mxu0 0.0
    %4273 = vmatprep.subr.mxu0 0.0
    %4274 = vmatpush1.msra.mxu0 0.0
    %4275 = vmatprep.subr.mxu0 0.0
    %4276 = vmatpush1.msra.mxu0 0.0
    %4277 = vmatprep.subr.mxu0 0.0
    %4278 = vmatpush1.msra.mxu0 0.0
    %4279 = vmatprep.subr.mxu0 0.0
    %4280 = vmatpush1.msra.mxu0 0.0
    %4281 = vmatprep.subr.mxu0 0.0
    %4282 = vmatpush1.msra.mxu0 0.0
    %4283 = vmatprep.subr.mxu0 0.0
    %4284 = vmatpush1.msra.mxu0 0.0
    %4285 = vmatprep.subr.mxu0 0.0
    %4286 = vmatpush1.msra.mxu0 0.0
    %4287 = vmatprep.subr.mxu0 0.0
    %4288 = vmatpush1.msra.mxu0 0.0
    %4289 = vmatprep.subr.mxu0 0.0
    %4290 = vmatpush1.msra.mxu0 0.0
    %4291 = vmatprep.subr.mxu0 0.0
    %4292 = vmatpush1.msra.mxu0 0.0
    %4293 = vmatprep.mubr.f32.mxu0 0.0
    %4294 = vmatmul.mubr.f32.gmra.mrb[0].mxu0 %v4071
    %v4295 = vpop.f32.mrb[0].mxu0
    %v4296 = vadd.f32 0.0, %v4295
    %v4297 = vpop.f32.mrb[0].mxu0
    %4298 = vdwg.mxu0
    %v4299 = vadd.f32 %v4228, %v4296
    %v4300 = vtanh.pop %v4299
    %v4301 = vld [vmem:[%s1192] sm:$0xff]
    %4302 = vmatprep.subr.mxu0 0.0
    %4303 = vmatpush1.msra.mxu0 %v3753
    %4304 = vmatprep.subr.mxu0 0.0
    %4305 = vmatpush1.msra.mxu0 %v3754
    %4306 = vmatprep.subr.mxu0 0.0
    %4307 = vmatpush1.msra.mxu0 %v3755
    %4308 = vmatprep.subr.mxu0 0.0
    %4309 = vmatpush1.msra.mxu0 %v3756
    %4310 = vmatprep.subr.mxu0 0.0
    %4311 = vmatpush1.msra.mxu0 0.0
    %4312 = vmatprep.subr.mxu0 0.0
    %4313 = vmatpush1.msra.mxu0 0.0
    %4314 = vmatprep.subr.mxu0 0.0
    %4315 = vmatpush1.msra.mxu0 0.0
    %4316 = vmatprep.subr.mxu0 0.0
    %4317 = vmatpush1.msra.mxu0 0.0
    %4318 = vmatprep.subr.mxu0 0.0
    %4319 = vmatpush1.msra.mxu0 0.0
    %4320 = vmatprep.subr.mxu0 0.0
    %4321 = vmatpush1.msra.mxu0 0.0
    %4322 = vmatprep.subr.mxu0 0.0
    %4323 = vmatpush1.msra.mxu0 0.0
    %4324 = vmatprep.subr.mxu0 0.0
    %4325 = vmatpush1.msra.mxu0 0.0
    %4326 = vmatprep.subr.mxu0 0.0
    %4327 = vmatpush1.msra.mxu0 0.0
    %4328 = vmatprep.subr.mxu0 0.0
    %4329 = vmatpush1.msra.mxu0 0.0
    %4330 = vmatprep.subr.mxu0 0.0
    %4331 = vmatpush1.msra.mxu0 0.0
    %4332 = vmatprep.subr.mxu0 0.0
    %4333 = vmatpush1.msra.mxu0 0.0
    %4334 = vmatprep.subr.mxu0 0.0
    %4335 = vmatpush1.msra.mxu0 0.0
    %4336 = vmatprep.subr.mxu0 0.0
    %4337 = vmatpush1.msra.mxu0 0.0
    %4338 = vmatprep.subr.mxu0 0.0
    %4339 = vmatpush1.msra.mxu0 0.0
    %4340 = vmatprep.subr.mxu0 0.0
    %4341 = vmatpush1.msra.mxu0 0.0
    %4342 = vmatprep.subr.mxu0 0.0
    %4343 = vmatpush1.msra.mxu0 0.0
    %4344 = vmatprep.subr.mxu0 0.0
    %4345 = vmatpush1.msra.mxu0 0.0
    %4346 = vmatprep.subr.mxu0 0.0
    %4347 = vmatpush1.msra.mxu0 0.0
    %4348 = vmatprep.subr.mxu0 0.0
    %4349 = vmatpush1.msra.mxu0 0.0
    %4350 = vmatprep.subr.mxu0 0.0
    %4351 = vmatpush1.msra.mxu0 0.0
    %4352 = vmatprep.subr.mxu0 0.0
    %4353 = vmatpush1.msra.mxu0 0.0
    %4354 = vmatprep.subr.mxu0 0.0
    %4355 = vmatpush1.msra.mxu0 0.0
    %4356 = vmatprep.subr.mxu0 0.0
    %4357 = vmatpush1.msra.mxu0 0.0
    %4358 = vmatprep.subr.mxu0 0.0
    %4359 = vmatpush1.msra.mxu0 0.0
    %4360 = vmatprep.subr.mxu0 0.0
    %4361 = vmatpush1.msra.mxu0 0.0
    %4362 = vmatprep.subr.mxu0 0.0
    %4363 = vmatpush1.msra.mxu0 0.0
    %4364 = vmatprep.subr.mxu0 0.0
    %4365 = vmatpush1.msra.mxu0 0.0
    %4366 = vmatprep.mubr.f32.mxu0 0.0
    %4367 = vmatmul.mubr.f32.gmra.mrb[0].mxu0 %v4071
    %v4368 = vpop.f32.mrb[0].mxu0
    %v4369 = vadd.f32 0.0, %v4368
    %v4370 = vpop.f32.mrb[0].mxu0
    %4371 = vdwg.mxu0
    %v4372 = vadd.f32 %v4301, %v4369
    %v4373 = vxor.u32 %v4372, 2147483648
    %v4374 = vmul.f32 %v4373, 1.442695
    %v4375 = vpow.pop %v4374
    %v4376 = vadd.f32 %v4375, 1.0
    %v4377 = vrcp.pop %v4376
    %v4378 = vmul.f32 1.0, %v4377
    %v4379 = vmul.f32 %v4227, %v4066
    %v4380 = vmul.f32 %v4149, %v4300
    %v4381 = vadd.f32 %v4379, %v4380
    %v4382 = vtanh.pop %v4381
    %v4383 = vmul.f32 %v4378, %v4382
    %v4384 = vld [vmem:[%s1278] sm:$0xff]
    %v4386 = vsel %vm241, %v4383, 0
    %4388 = vmatprep.subr.mxu0 0.0
    %4389 = vmatpush1.msra.mxu0 %v3738
    %4390 = vmatprep.subr.mxu0 0.0
    %4391 = vmatpush1.msra.mxu0 %v3739
    %4392 = vmatprep.subr.mxu0 0.0
    %4393 = vmatpush1.msra.mxu0 %v3740
    %4394 = vmatprep.subr.mxu0 0.0
    %4395 = vmatpush1.msra.mxu0 %v3741
    %4396 = vmatprep.subr.mxu0 0.0
    %4397 = vmatpush1.msra.mxu0 0.0
    %4398 = vmatprep.subr.mxu0 0.0
    %4399 = vmatpush1.msra.mxu0 0.0
    %4400 = vmatprep.subr.mxu0 0.0
    %4401 = vmatpush1.msra.mxu0 0.0
    %4402 = vmatprep.subr.mxu0 0.0
    %4403 = vmatpush1.msra.mxu0 0.0
    %4404 = vmatprep.subr.mxu0 0.0
    %4405 = vmatpush1.msra.mxu0 0.0
    %4406 = vmatprep.subr.mxu0 0.0
    %4407 = vmatpush1.msra.mxu0 0.0
    %4408 = vmatprep.subr.mxu0 0.0
    %4409 = vmatpush1.msra.mxu0 0.0
    %4410 = vmatprep.subr.mxu0 0.0
    %4411 = vmatpush1.msra.mxu0 0.0
    %4412 = vmatprep.subr.mxu0 0.0
    %4413 = vmatpush1.msra.mxu0 0.0
    %4414 = vmatprep.subr.mxu0 0.0
    %4415 = vmatpush1.msra.mxu0 0.0
    %4416 = vmatprep.subr.mxu0 0.0
    %4417 = vmatpush1.msra.mxu0 0.0
    %4418 = vmatprep.subr.mxu0 0.0
    %4419 = vmatpush1.msra.mxu0 0.0
    %4420 = vmatprep.subr.mxu0 0.0
    %4421 = vmatpush1.msra.mxu0 0.0
    %4422 = vmatprep.subr.mxu0 0.0
    %4423 = vmatpush1.msra.mxu0 0.0
    %4424 = vmatprep.subr.mxu0 0.0
    %4425 = vmatpush1.msra.mxu0 0.0
    %4426 = vmatprep.subr.mxu0 0.0
    %4427 = vmatpush1.msra.mxu0 0.0
    %4428 = vmatprep.subr.mxu0 0.0
    %4429 = vmatpush1.msra.mxu0 0.0
    %4430 = vmatprep.subr.mxu0 0.0
    %4431 = vmatpush1.msra.mxu0 0.0
    %4432 = vmatprep.subr.mxu0 0.0
    %4433 = vmatpush1.msra.mxu0 0.0
    %4434 = vmatprep.subr.mxu0 0.0
    %4435 = vmatpush1.msra.mxu0 0.0
    %4436 = vmatprep.subr.mxu0 0.0
    %4437 = vmatpush1.msra.mxu0 0.0
    %4438 = vmatprep.subr.mxu0 0.0
    %4439 = vmatpush1.msra.mxu0 0.0
    %4440 = vmatprep.subr.mxu0 0.0
    %4441 = vmatpush1.msra.mxu0 0.0
    %4442 = vmatprep.subr.mxu0 0.0
    %4443 = vmatpush1.msra.mxu0 0.0
    %4444 = vmatprep.subr.mxu0 0.0
    %4445 = vmatpush1.msra.mxu0 0.0
    %4446 = vmatprep.subr.mxu0 0.0
    %4447 = vmatpush1.msra.mxu0 0.0
    %4448 = vmatprep.subr.mxu0 0.0
    %4449 = vmatpush1.msra.mxu0 0.0
    %4450 = vmatprep.subr.mxu0 0.0
    %4451 = vmatpush1.msra.mxu0 0.0
    %4452 = vmatprep.mubr.f32.mxu0 0.0
    %4453 = vmatmul.mubr.f32.gmra.mrb[0].mxu0 %v4386
    %v4454 = vpop.f32.mrb[0].mxu0
    %v4455 = vadd.f32 0.0, %v4454
    %v4456 = vpop.f32.mrb[0].mxu0
    %4457 = vdwg.mxu0
    %v4458 = vadd.f32 %v4384, %v4455
    %v4459 = vxor.u32 %v4458, 2147483648
    %v4460 = vmul.f32 %v4459, 1.442695
    %v4461 = vpow.pop %v4460
    %v4462 = vadd.f32 %v4461, 1.0
    %v4463 = vrcp.pop %v4462
    %v4464 = vmul.f32 1.0, %v4463
    %v4465 = vld [vmem:[%s1360] sm:$0xff]
    %4466 = vmatprep.subr.mxu0 0.0
    %4467 = vmatpush1.msra.mxu0 %v3743
    %4468 = vmatprep.subr.mxu0 0.0
    %4469 = vmatpush1.msra.mxu0 %v3744
    %4470 = vmatprep.subr.mxu0 0.0
    %4471 = vmatpush1.msra.mxu0 %v3745
    %4472 = vmatprep.subr.mxu0 0.0
    %4473 = vmatpush1.msra.mxu0 %v3746
    %4474 = vmatprep.subr.mxu0 0.0
    %4475 = vmatpush1.msra.mxu0 0.0
    %4476 = vmatprep.subr.mxu0 0.0
    %4477 = vmatpush1.msra.mxu0 0.0
    %4478 = vmatprep.subr.mxu0 0.0
    %4479 = vmatpush1.msra.mxu0 0.0
    %4480 = vmatprep.subr.mxu0 0.0
    %4481 = vmatpush1.msra.mxu0 0.0
    %4482 = vmatprep.subr.mxu0 0.0
    %4483 = vmatpush1.msra.mxu0 0.0
    %4484 = vmatprep.subr.mxu0 0.0
    %4485 = vmatpush1.msra.mxu0 0.0
    %4486 = vmatprep.subr.mxu0 0.0
    %4487 = vmatpush1.msra.mxu0 0.0
    %4488 = vmatprep.subr.mxu0 0.0
    %4489 = vmatpush1.msra.mxu0 0.0
    %4490 = vmatprep.subr.mxu0 0.0
    %4491 = vmatpush1.msra.mxu0 0.0
    %4492 = vmatprep.subr.mxu0 0.0
    %4493 = vmatpush1.msra.mxu0 0.0
    %4494 = vmatprep.subr.mxu0 0.0
    %4495 = vmatpush1.msra.mxu0 0.0
    %4496 = vmatprep.subr.mxu0 0.0
    %4497 = vmatpush1.msra.mxu0 0.0
    %4498 = vmatprep.subr.mxu0 0.0
    %4499 = vmatpush1.msra.mxu0 0.0
    %4500 = vmatprep.subr.mxu0 0.0
    %4501 = vmatpush1.msra.mxu0 0.0
    %4502 = vmatprep.subr.mxu0 0.0
    %4503 = vmatpush1.msra.mxu0 0.0
    %4504 = vmatprep.subr.mxu0 0.0
    %4505 = vmatpush1.msra.mxu0 0.0
    %4506 = vmatprep.subr.mxu0 0.0
    %4507 = vmatpush1.msra.mxu0 0.0
    %4508 = vmatprep.subr.mxu0 0.0
    %4509 = vmatpush1.msra.mxu0 0.0
    %4510 = vmatprep.subr.mxu0 0.0
    %4511 = vmatpush1.msra.mxu0 0.0
    %4512 = vmatprep.subr.mxu0 0.0
    %4513 = vmatpush1.msra.mxu0 0.0
    %4514 = vmatprep.subr.mxu0 0.0
    %4515 = vmatpush1.msra.mxu0 0.0
    %4516 = vmatprep.subr.mxu0 0.0
    %4517 = vmatpush1.msra.mxu0 0.0
    %4518 = vmatprep.subr.mxu0 0.0
    %4519 = vmatpush1.msra.mxu0 0.0
    %4520 = vmatprep.subr.mxu0 0.0
    %4521 = vmatpush1.msra.mxu0 0.0
    %4522 = vmatprep.subr.mxu0 0.0
    %4523 = vmatpush1.msra.mxu0 0.0
    %4524 = vmatprep.subr.mxu0 0.0
    %4525 = vmatpush1.msra.mxu0 0.0
    %4526 = vmatprep.subr.mxu0 0.0
    %4527 = vmatpush1.msra.mxu0 0.0
    %4528 = vmatprep.subr.mxu0 0.0
    %4529 = vmatpush1.msra.mxu0 0.0
    %4530 = vmatprep.mubr.f32.mxu0 0.0
    %4531 = vmatmul.mubr.f32.gmra.mrb[0].mxu0 %v4386
    %v4532 = vpop.f32.mrb[0].mxu0
    %v4533 = vadd.f32 0.0, %v4532
    %v4534 = vpop.f32.mrb[0].mxu0
    %4535 = vdwg.mxu0
    %v4536 = vadd.f32 %v4465, %v4533
    %v4537 = vxor.u32 %v4536, 2147483648
    %v4538 = vmul.f32 %v4537, 1.442695
    %v4539 = vpow.pop %v4538
    %v4540 = vadd.f32 %v4539, 1.0
    %v4541 = vrcp.pop %v4540
    %v4542 = vmul.f32 1.0, %v4541
    %v4543 = vld [vmem:[%s1439] sm:$0xff]
    %4544 = vmatprep.subr.mxu0 0.0
    %4545 = vmatpush1.msra.mxu0 %v3748
    %4546 = vmatprep.subr.mxu0 0.0
    %4547 = vmatpush1.msra.mxu0 %v3749
    %4548 = vmatprep.subr.mxu0 0.0
    %4549 = vmatpush1.msra.mxu0 %v3750
    %4550 = vmatprep.subr.mxu0 0.0
    %4551 = vmatpush1.msra.mxu0 %v3751
    %4552 = vmatprep.subr.mxu0 0.0
    %4553 = vmatpush1.msra.mxu0 0.0
    %4554 = vmatprep.subr.mxu0 0.0
    %4555 = vmatpush1.msra.mxu0 0.0
    %4556 = vmatprep.subr.mxu0 0.0
    %4557 = vmatpush1.msra.mxu0 0.0
    %4558 = vmatprep.subr.mxu0 0.0
    %4559 = vmatpush1.msra.mxu0 0.0
    %4560 = vmatprep.subr.mxu0 0.0
    %4561 = vmatpush1.msra.mxu0 0.0
    %4562 = vmatprep.subr.mxu0 0.0
    %4563 = vmatpush1.msra.mxu0 0.0
    %4564 = vmatprep.subr.mxu0 0.0
    %4565 = vmatpush1.msra.mxu0 0.0
    %4566 = vmatprep.subr.mxu0 0.0
    %4567 = vmatpush1.msra.mxu0 0.0
    %4568 = vmatprep.subr.mxu0 0.0
    %4569 = vmatpush1.msra.mxu0 0.0
    %4570 = vmatprep.subr.mxu0 0.0
    %4571 = vmatpush1.msra.mxu0 0.0
    %4572 = vmatprep.subr.mxu0 0.0
    %4573 = vmatpush1.msra.mxu0 0.0
    %4574 = vmatprep.subr.mxu0 0.0
    %4575 = vmatpush1.msra.mxu0 0.0
    %4576 = vmatprep.subr.mxu0 0.0
    %4577 = vmatpush1.msra.mxu0 0.0
    %4578 = vmatprep.subr.mxu0 0.0
    %4579 = vmatpush1.msra.mxu0 0.0
    %4580 = vmatprep.subr.mxu0 0.0
    %4581 = vmatpush1.msra.mxu0 0.0
    %4582 = vmatprep.subr.mxu0 0.0
    %4583 = vmatpush1.msra.mxu0 0.0
    %4584 = vmatprep.subr.mxu0 0.0
    %4585 = vmatpush1.msra.mxu0 0.0
    %4586 = vmatprep.subr.mxu0 0.0
    %4587 = vmatpush1.msra.mxu0 0.0
    %4588 = vmatprep.subr.mxu0 0.0
    %4589 = vmatpush1.msra.mxu0 0.0
    %4590 = vmatprep.subr.mxu0 0.0
    %4591 = vmatpush1.msra.mxu0 0.0
    %4592 = vmatprep.subr.mxu0 0.0
    %4593 = vmatpush1.msra.mxu0 0.0
    %4594 = vmatprep.subr.mxu0 0.0
    %4595 = vmatpush1.msra.mxu0 0.0
    %4596 = vmatprep.subr.mxu0 0.0
    %4597 = vmatpush1.msra.mxu0 0.0
    %4598 = vmatprep.subr.mxu0 0.0
    %4599 = vmatpush1.msra.mxu0 0.0
    %4600 = vmatprep.subr.mxu0 0.0
    %4601 = vmatpush1.msra.mxu0 0.0
    %4602 = vmatprep.subr.mxu0 0.0
    %4603 = vmatpush1.msra.mxu0 0.0
    %4604 = vmatprep.subr.mxu0 0.0
    %4605 = vmatpush1.msra.mxu0 0.0
    %4606 = vmatprep.subr.mxu0 0.0
    %4607 = vmatpush1.msra.mxu0 0.0
    %4608 = vmatprep.mubr.f32.mxu0 0.0
    %4609 = vmatmul.mubr.f32.gmra.mrb[0].mxu0 %v4386
    %v4610 = vpop.f32.mrb[0].mxu0
    %v4611 = vadd.f32 0.0, %v4610
    %v4612 = vpop.f32.mrb[0].mxu0
    %4613 = vdwg.mxu0
    %v4614 = vadd.f32 %v4543, %v4611
    %v4615 = vtanh.pop %v4614
    %v4616 = vld [vmem:[%s1513] sm:$0xff]
    %4617 = vmatprep.subr.mxu0 0.0
    %4618 = vmatpush1.msra.mxu0 %v3753
    %4619 = vmatprep.subr.mxu0 0.0
    %4620 = vmatpush1.msra.mxu0 %v3754
    %4621 = vmatprep.subr.mxu0 0.0
    %4622 = vmatpush1.msra.mxu0 %v3755
    %4623 = vmatprep.subr.mxu0 0.0
    %4624 = vmatpush1.msra.mxu0 %v3756
    %4625 = vmatprep.subr.mxu0 0.0
    %4626 = vmatpush1.msra.mxu0 0.0
    %4627 = vmatprep.subr.mxu0 0.0
    %4628 = vmatpush1.msra.mxu0 0.0
    %4629 = vmatprep.subr.mxu0 0.0
    %4630 = vmatpush1.msra.mxu0 0.0
    %4631 = vmatprep.subr.mxu0 0.0
    %4632 = vmatpush1.msra.mxu0 0.0
    %4633 = vmatprep.subr.mxu0 0.0
    %4634 = vmatpush1.msra.mxu0 0.0
    %4635 = vmatprep.subr.mxu0 0.0
    %4636 = vmatpush1.msra.mxu0 0.0
    %4637 = vmatprep.subr.mxu0 0.0
    %4638 = vmatpush1.msra.mxu0 0.0
    %4639 = vmatprep.subr.mxu0 0.0
    %4640 = vmatpush1.msra.mxu0 0.0
    %4641 = vmatprep.subr.mxu0 0.0
    %4642 = vmatpush1.msra.mxu0 0.0
    %4643 = vmatprep.subr.mxu0 0.0
    %4644 = vmatpush1.msra.mxu0 0.0
    %4645 = vmatprep.subr.mxu0 0.0
    %4646 = vmatpush1.msra.mxu0 0.0
    %4647 = vmatprep.subr.mxu0 0.0
    %4648 = vmatpush1.msra.mxu0 0.0
    %4649 = vmatprep.subr.mxu0 0.0
    %4650 = vmatpush1.msra.mxu0 0.0
    %4651 = vmatprep.subr.mxu0 0.0
    %4652 = vmatpush1.msra.mxu0 0.0
    %4653 = vmatprep.subr.mxu0 0.0
    %4654 = vmatpush1.msra.mxu0 0.0
    %4655 = vmatprep.subr.mxu0 0.0
    %4656 = vmatpush1.msra.mxu0 0.0
    %4657 = vmatprep.subr.mxu0 0.0
    %4658 = vmatpush1.msra.mxu0 0.0
    %4659 = vmatprep.subr.mxu0 0.0
    %4660 = vmatpush1.msra.mxu0 0.0
    %4661 = vmatprep.subr.mxu0 0.0
    %4662 = vmatpush1.msra.mxu0 0.0
    %4663 = vmatprep.subr.mxu0 0.0
    %4664 = vmatpush1.msra.mxu0 0.0
    %4665 = vmatprep.subr.mxu0 0.0
    %4666 = vmatpush1.msra.mxu0 0.0
    %4667 = vmatprep.subr.mxu0 0.0
    %4668 = vmatpush1.msra.mxu0 0.0
    %4669 = vmatprep.subr.mxu0 0.0
    %4670 = vmatpush1.msra.mxu0 0.0
    %4671 = vmatprep.subr.mxu0 0.0
    %4672 = vmatpush1.msra.mxu0 0.0
    %4673 = vmatprep.subr.mxu0 0.0
    %4674 = vmatpush1.msra.mxu0 0.0
    %4675 = vmatprep.subr.mxu0 0.0
    %4676 = vmatpush1.msra.mxu0 0.0
    %4677 = vmatprep.subr.mxu0 0.0
    %4678 = vmatpush1.msra.mxu0 0.0
    %4679 = vmatprep.subr.mxu0 0.0
    %4680 = vmatpush1.msra.mxu0 0.0
    %4681 = vmatprep.mubr.f32.mxu0 0.0
    %4682 = vmatmul.mubr.f32.gmra.mrb[0].mxu0 %v4386
    %v4683 = vpop.f32.mrb[0].mxu0
    %v4684 = vadd.f32 0.0, %v4683
    %v4685 = vpop.f32.mrb[0].mxu0
    %4686 = vdwg.mxu0
    %v4687 = vadd.f32 %v4616, %v4684
    %v4688 = vxor.u32 %v4687, 2147483648
    %v4689 = vmul.f32 %v4688, 1.442695
    %v4690 = vpow.pop %v4689
    %v4691 = vadd.f32 %v4690, 1.0
    %v4692 = vrcp.pop %v4691
    %v4693 = vmul.f32 1.0, %v4692
    %v4694 = vmul.f32 %v4542, %v4381
    %v4695 = vmul.f32 %v4464, %v4615
    %v4696 = vadd.f32 %v4694, %v4695
    %v4697 = vtanh.pop %v4696
    %v4698 = vmul.f32 %v4693, %v4697
    %v4699 = vld [vmem:[%s1599] sm:$0xff]
    %v4701 = vsel %vm241, %v4698, 0
    %4703 = vmatprep.subr.mxu0 0.0
    %4704 = vmatpush1.msra.mxu0 %v3738
    %4705 = vmatprep.subr.mxu0 0.0
    %4706 = vmatpush1.msra.mxu0 %v3739
    %4707 = vmatprep.subr.mxu0 0.0
    %4708 = vmatpush1.msra.mxu0 %v3740
    %4709 = vmatprep.subr.mxu0 0.0
    %4710 = vmatpush1.msra.mxu0 %v3741
    %4711 = vmatprep.subr.mxu0 0.0
    %4712 = vmatpush1.msra.mxu0 0.0
    %4713 = vmatprep.subr.mxu0 0.0
    %4714 = vmatpush1.msra.mxu0 0.0
    %4715 = vmatprep.subr.mxu0 0.0
    %4716 = vmatpush1.msra.mxu0 0.0
    %4717 = vmatprep.subr.mxu0 0.0
    %4718 = vmatpush1.msra.mxu0 0.0
    %4719 = vmatprep.subr.mxu0 0.0
    %4720 = vmatpush1.msra.mxu0 0.0
    %4721 = vmatprep.subr.mxu0 0.0
    %4722 = vmatpush1.msra.mxu0 0.0
    %4723 = vmatprep.subr.mxu0 0.0
    %4724 = vmatpush1.msra.mxu0 0.0
    %4725 = vmatprep.subr.mxu0 0.0
    %4726 = vmatpush1.msra.mxu0 0.0
    %4727 = vmatprep.subr.mxu0 0.0
    %4728 = vmatpush1.msra.mxu0 0.0
    %4729 = vmatprep.subr.mxu0 0.0
    %4730 = vmatpush1.msra.mxu0 0.0
    %4731 = vmatprep.subr.mxu0 0.0
    %4732 = vmatpush1.msra.mxu0 0.0
    %4733 = vmatprep.subr.mxu0 0.0
    %4734 = vmatpush1.msra.mxu0 0.0
    %4735 = vmatprep.subr.mxu0 0.0
    %4736 = vmatpush1.msra.mxu0 0.0
    %4737 = vmatprep.subr.mxu0 0.0
    %4738 = vmatpush1.msra.mxu0 0.0
    %4739 = vmatprep.subr.mxu0 0.0
    %4740 = vmatpush1.msra.mxu0 0.0
    %4741 = vmatprep.subr.mxu0 0.0
    %4742 = vmatpush1.msra.mxu0 0.0
    %4743 = vmatprep.subr.mxu0 0.0
    %4744 = vmatpush1.msra.mxu0 0.0
    %4745 = vmatprep.subr.mxu0 0.0
    %4746 = vmatpush1.msra.mxu0 0.0
    %4747 = vmatprep.subr.mxu0 0.0
    %4748 = vmatpush1.msra.mxu0 0.0
    %4749 = vmatprep.subr.mxu0 0.0
    %4750 = vmatpush1.msra.mxu0 0.0
    %4751 = vmatprep.subr.mxu0 0.0
    %4752 = vmatpush1.msra.mxu0 0.0
    %4753 = vmatprep.subr.mxu0 0.0
    %4754 = vmatpush1.msra.mxu0 0.0
    %4755 = vmatprep.subr.mxu0 0.0
    %4756 = vmatpush1.msra.mxu0 0.0
    %4757 = vmatprep.subr.mxu0 0.0
    %4758 = vmatpush1.msra.mxu0 0.0
    %4759 = vmatprep.subr.mxu0 0.0
    %4760 = vmatpush1.msra.mxu0 0.0
    %4761 = vmatprep.subr.mxu0 0.0
    %4762 = vmatpush1.msra.mxu0 0.0
    %4763 = vmatprep.subr.mxu0 0.0
    %4764 = vmatpush1.msra.mxu0 0.0
    %4765 = vmatprep.subr.mxu0 0.0
    %4766 = vmatpush1.msra.mxu0 0.0
    %4767 = vmatprep.mubr.f32.mxu0 0.0
    %4768 = vmatmul.mubr.f32.gmra.mrb[0].mxu0 %v4701
    %v4769 = vpop.f32.mrb[0].mxu0
    %v4770 = vadd.f32 0.0, %v4769
    %v4771 = vpop.f32.mrb[0].mxu0
    %4772 = vdwg.mxu0
    %v4773 = vadd.f32 %v4699, %v4770
    %v4774 = vxor.u32 %v4773, 2147483648
    %v4775 = vmul.f32 %v4774, 1.442695
    %v4776 = vpow.pop %v4775
    %v4777 = vadd.f32 %v4776, 1.0
    %v4778 = vrcp.pop %v4777
    %v4779 = vmul.f32 1.0, %v4778
    %v4780 = vld [vmem:[%s1681] sm:$0xff]
    %4781 = vmatprep.subr.mxu0 0.0
    %4782 = vmatpush1.msra.mxu0 %v3743
    %4783 = vmatprep.subr.mxu0 0.0
    %4784 = vmatpush1.msra.mxu0 %v3744
    %4785 = vmatprep.subr.mxu0 0.0
    %4786 = vmatpush1.msra.mxu0 %v3745
    %4787 = vmatprep.subr.mxu0 0.0
    %4788 = vmatpush1.msra.mxu0 %v3746
    %4789 = vmatprep.subr.mxu0 0.0
    %4790 = vmatpush1.msra.mxu0 0.0
    %4791 = vmatprep.subr.mxu0 0.0
    %4792 = vmatpush1.msra.mxu0 0.0
    %4793 = vmatprep.subr.mxu0 0.0
    %4794 = vmatpush1.msra.mxu0 0.0
    %4795 = vmatprep.subr.mxu0 0.0
    %4796 = vmatpush1.msra.mxu0 0.0
    %4797 = vmatprep.subr.mxu0 0.0
    %4798 = vmatpush1.msra.mxu0 0.0
    %4799 = vmatprep.subr.mxu0 0.0
    %4800 = vmatpush1.msra.mxu0 0.0
    %4801 = vmatprep.subr.mxu0 0.0
    %4802 = vmatpush1.msra.mxu0 0.0
    %4803 = vmatprep.subr.mxu0 0.0
    %4804 = vmatpush1.msra.mxu0 0.0
    %4805 = vmatprep.subr.mxu0 0.0
    %4806 = vmatpush1.msra.mxu0 0.0
    %4807 = vmatprep.subr.mxu0 0.0
    %4808 = vmatpush1.msra.mxu0 0.0
    %4809 = vmatprep.subr.mxu0 0.0
    %4810 = vmatpush1.msra.mxu0 0.0
    %4811 = vmatprep.subr.mxu0 0.0
    %4812 = vmatpush1.msra.mxu0 0.0
    %4813 = vmatprep.subr.mxu0 0.0
    %4814 = vmatpush1.msra.mxu0 0.0
    %4815 = vmatprep.subr.mxu0 0.0
    %4816 = vmatpush1.msra.mxu0 0.0
    %4817 = vmatprep.subr.mxu0 0.0
    %4818 = vmatpush1.msra.mxu0 0.0
    %4819 = vmatprep.subr.mxu0 0.0
    %4820 = vmatpush1.msra.mxu0 0.0
    %4821 = vmatprep.subr.mxu0 0.0
    %4822 = vmatpush1.msra.mxu0 0.0
    %4823 = vmatprep.subr.mxu0 0.0
    %4824 = vmatpush1.msra.mxu0 0.0
    %4825 = vmatprep.subr.mxu0 0.0
    %4826 = vmatpush1.msra.mxu0 0.0
    %4827 = vmatprep.subr.mxu0 0.0
    %4828 = vmatpush1.msra.mxu0 0.0
    %4829 = vmatprep.subr.mxu0 0.0
    %4830 = vmatpush1.msra.mxu0 0.0
    %4831 = vmatprep.subr.mxu0 0.0
    %4832 = vmatpush1.msra.mxu0 0.0
    %4833 = vmatprep.subr.mxu0 0.0
    %4834 = vmatpush1.msra.mxu0 0.0
    %4835 = vmatprep.subr.mxu0 0.0
    %4836 = vmatpush1.msra.mxu0 0.0
    %4837 = vmatprep.subr.mxu0 0.0
    %4838 = vmatpush1.msra.mxu0 0.0
    %4839 = vmatprep.subr.mxu0 0.0
    %4840 = vmatpush1.msra.mxu0 0.0
    %4841 = vmatprep.subr.mxu0 0.0
    %4842 = vmatpush1.msra.mxu0 0.0
    %4843 = vmatprep.subr.mxu0 0.0
    %4844 = vmatpush1.msra.mxu0 0.0
    %4845 = vmatprep.mubr.f32.mxu0 0.0
    %4846 = vmatmul.mubr.f32.gmra.mrb[0].mxu0 %v4701
    %v4847 = vpop.f32.mrb[0].mxu0
    %v4848 = vadd.f32 0.0, %v4847
    %v4849 = vpop.f32.mrb[0].mxu0
    %4850 = vdwg.mxu0
    %v4851 = vadd.f32 %v4780, %v4848
    %v4852 = vxor.u32 %v4851, 2147483648
    %v4853 = vmul.f32 %v4852, 1.442695
    %v4854 = vpow.pop %v4853
    %v4855 = vadd.f32 %v4854, 1.0
    %v4856 = vrcp.pop %v4855
    %v4857 = vmul.f32 1.0, %v4856
    %v4858 = vld [vmem:[%s1760] sm:$0xff]
    %4859 = vmatprep.subr.mxu0 0.0
    %4860 = vmatpush1.msra.mxu0 %v3748
    %4861 = vmatprep.subr.mxu0 0.0
    %4862 = vmatpush1.msra.mxu0 %v3749
    %4863 = vmatprep.subr.mxu0 0.0
    %4864 = vmatpush1.msra.mxu0 %v3750
    %4865 = vmatprep.subr.mxu0 0.0
    %4866 = vmatpush1.msra.mxu0 %v3751
    %4867 = vmatprep.subr.mxu0 0.0
    %4868 = vmatpush1.msra.mxu0 0.0
    %4869 = vmatprep.subr.mxu0 0.0
    %4870 = vmatpush1.msra.mxu0 0.0
    %4871 = vmatprep.subr.mxu0 0.0
    %4872 = vmatpush1.msra.mxu0 0.0
    %4873 = vmatprep.subr.mxu0 0.0
    %4874 = vmatpush1.msra.mxu0 0.0
    %4875 = vmatprep.subr.mxu0 0.0
    %4876 = vmatpush1.msra.mxu0 0.0
    %4877 = vmatprep.subr.mxu0 0.0
    %4878 = vmatpush1.msra.mxu0 0.0
    %4879 = vmatprep.subr.mxu0 0.0
    %4880 = vmatpush1.msra.mxu0 0.0
    %4881 = vmatprep.subr.mxu0 0.0
    %4882 = vmatpush1.msra.mxu0 0.0
    %4883 = vmatprep.subr.mxu0 0.0
    %4884 = vmatpush1.msra.mxu0 0.0
    %4885 = vmatprep.subr.mxu0 0.0
    %4886 = vmatpush1.msra.mxu0 0.0
    %4887 = vmatprep.subr.mxu0 0.0
    %4888 = vmatpush1.msra.mxu0 0.0
    %4889 = vmatprep.subr.mxu0 0.0
    %4890 = vmatpush1.msra.mxu0 0.0
    %4891 = vmatprep.subr.mxu0 0.0
    %4892 = vmatpush1.msra.mxu0 0.0
    %4893 = vmatprep.subr.mxu0 0.0
    %4894 = vmatpush1.msra.mxu0 0.0
    %4895 = vmatprep.subr.mxu0 0.0
    %4896 = vmatpush1.msra.mxu0 0.0
    %4897 = vmatprep.subr.mxu0 0.0
    %4898 = vmatpush1.msra.mxu0 0.0
    %4899 = vmatprep.subr.mxu0 0.0
    %4900 = vmatpush1.msra.mxu0 0.0
    %4901 = vmatprep.subr.mxu0 0.0
    %4902 = vmatpush1.msra.mxu0 0.0
    %4903 = vmatprep.subr.mxu0 0.0
    %4904 = vmatpush1.msra.mxu0 0.0
    %4905 = vmatprep.subr.mxu0 0.0
    %4906 = vmatpush1.msra.mxu0 0.0
    %4907 = vmatprep.subr.mxu0 0.0
    %4908 = vmatpush1.msra.mxu0 0.0
    %4909 = vmatprep.subr.mxu0 0.0
    %4910 = vmatpush1.msra.mxu0 0.0
    %4911 = vmatprep.subr.mxu0 0.0
    %4912 = vmatpush1.msra.mxu0 0.0
    %4913 = vmatprep.subr.mxu0 0.0
    %4914 = vmatpush1.msra.mxu0 0.0
    %4915 = vmatprep.subr.mxu0 0.0
    %4916 = vmatpush1.msra.mxu0 0.0
    %4917 = vmatprep.subr.mxu0 0.0
    %4918 = vmatpush1.msra.mxu0 0.0
    %4919 = vmatprep.subr.mxu0 0.0
    %4920 = vmatpush1.msra.mxu0 0.0
    %4921 = vmatprep.subr.mxu0 0.0
    %4922 = vmatpush1.msra.mxu0 0.0
    %4923 = vmatprep.mubr.f32.mxu0 0.0
    %4924 = vmatmul.mubr.f32.gmra.mrb[0].mxu0 %v4701
    %v4925 = vpop.f32.mrb[0].mxu0
    %v4926 = vadd.f32 0.0, %v4925
    %v4927 = vpop.f32.mrb[0].mxu0
    %4928 = vdwg.mxu0
    %v4929 = vadd.f32 %v4858, %v4926
    %v4930 = vtanh.pop %v4929
    %v4931 = vld [vmem:[%s1834] sm:$0xff]
    %4932 = vmatprep.subr.mxu0 0.0
    %4933 = vmatpush1.msra.mxu0 %v3753
    %4934 = vmatprep.subr.mxu0 0.0
    %4935 = vmatpush1.msra.mxu0 %v3754
    %4936 = vmatprep.subr.mxu0 0.0
    %4937 = vmatpush1.msra.mxu0 %v3755
    %4938 = vmatprep.subr.mxu0 0.0
    %4939 = vmatpush1.msra.mxu0 %v3756
    %4940 = vmatprep.subr.mxu0 0.0
    %4941 = vmatpush1.msra.mxu0 0.0
    %4942 = vmatprep.subr.mxu0 0.0
    %4943 = vmatpush1.msra.mxu0 0.0
    %4944 = vmatprep.subr.mxu0 0.0
    %4945 = vmatpush1.msra.mxu0 0.0
    %4946 = vmatprep.subr.mxu0 0.0
    %4947 = vmatpush1.msra.mxu0 0.0
    %4948 = vmatprep.subr.mxu0 0.0
    %4949 = vmatpush1.msra.mxu0 0.0
    %4950 = vmatprep.subr.mxu0 0.0
    %4951 = vmatpush1.msra.mxu0 0.0
    %4952 = vmatprep.subr.mxu0 0.0
    %4953 = vmatpush1.msra.mxu0 0.0
    %4954 = vmatprep.subr.mxu0 0.0
    %4955 = vmatpush1.msra.mxu0 0.0
    %4956 = vmatprep.subr.mxu0 0.0
    %4957 = vmatpush1.msra.mxu0 0.0
    %4958 = vmatprep.subr.mxu0 0.0
    %4959 = vmatpush1.msra.mxu0 0.0
    %4960 = vmatprep.subr.mxu0 0.0
    %4961 = vmatpush1.msra.mxu0 0.0
    %4962 = vmatprep.subr.mxu0 0.0
    %4963 = vmatpush1.msra.mxu0 0.0
    %4964 = vmatprep.subr.mxu0 0.0
    %4965 = vmatpush1.msra.mxu0 0.0
    %4966 = vmatprep.subr.mxu0 0.0
    %4967 = vmatpush1.msra.mxu0 0.0
    %4968 = vmatprep.subr.mxu0 0.0
    %4969 = vmatpush1.msra.mxu0 0.0
    %4970 = vmatprep.subr.mxu0 0.0
    %4971 = vmatpush1.msra.mxu0 0.0
    %4972 = vmatprep.subr.mxu0 0.0
    %4973 = vmatpush1.msra.mxu0 0.0
    %4974 = vmatprep.subr.mxu0 0.0
    %4975 = vmatpush1.msra.mxu0 0.0
    %4976 = vmatprep.subr.mxu0 0.0
    %4977 = vmatpush1.msra.mxu0 0.0
    %4978 = vmatprep.subr.mxu0 0.0
    %4979 = vmatpush1.msra.mxu0 0.0
    %4980 = vmatprep.subr.mxu0 0.0
    %4981 = vmatpush1.msra.mxu0 0.0
    %4982 = vmatprep.subr.mxu0 0.0
    %4983 = vmatpush1.msra.mxu0 0.0
    %4984 = vmatprep.subr.mxu0 0.0
    %4985 = vmatpush1.msra.mxu0 0.0
    %4986 = vmatprep.subr.mxu0 0.0
    %4987 = vmatpush1.msra.mxu0 0.0
    %4988 = vmatprep.subr.mxu0 0.0
    %4989 = vmatpush1.msra.mxu0 0.0
    %4990 = vmatprep.subr.mxu0 0.0
    %4991 = vmatpush1.msra.mxu0 0.0
    %4992 = vmatprep.subr.mxu0 0.0
    %4993 = vmatpush1.msra.mxu0 0.0
    %4994 = vmatprep.subr.mxu0 0.0
    %4995 = vmatpush1.msra.mxu0 0.0
    %4996 = vmatprep.mubr.f32.mxu0 0.0
    %4997 = vmatmul.mubr.f32.gmra.mrb[0].mxu0 %v4701
    %v4998 = vpop.f32.mrb[0].mxu0
    %v4999 = vadd.f32 0.0, %v4998
    %v5000 = vpop.f32.mrb[0].mxu0
    %5001 = vdwg.mxu0
    %v5002 = vadd.f32 %v4931, %v4999
    %v5003 = vxor.u32 %v5002, 2147483648
    %v5004 = vmul.f32 %v5003, 1.442695
    %v5005 = vpow.pop %v5004
    %v5006 = vadd.f32 %v5005, 1.0
    %v5007 = vrcp.pop %v5006
    %v5008 = vmul.f32 1.0, %v5007
    %v5009 = vmul.f32 %v4857, %v4696
    %v5010 = vmul.f32 %v4779, %v4930
    %v5011 = vadd.f32 %v5009, %v5010
    %v5012 = vtanh.pop %v5011
    %v5013 = vmul.f32 %v5008, %v5012
    %v5014 = vld [vmem:[%s1920] sm:$0xff]
    %v5016 = vsel %vm241, %v5013, 0
    %5018 = vmatprep.subr.mxu0 0.0
    %5019 = vmatpush1.msra.mxu0 %v3738
    %5020 = vmatprep.subr.mxu0 0.0
    %5021 = vmatpush1.msra.mxu0 %v3739
    %5022 = vmatprep.subr.mxu0 0.0
    %5023 = vmatpush1.msra.mxu0 %v3740
    %5024 = vmatprep.subr.mxu0 0.0
    %5025 = vmatpush1.msra.mxu0 %v3741
    %5026 = vmatprep.subr.mxu0 0.0
    %5027 = vmatpush1.msra.mxu0 0.0
    %5028 = vmatprep.subr.mxu0 0.0
    %5029 = vmatpush1.msra.mxu0 0.0
    %5030 = vmatprep.subr.mxu0 0.0
    %5031 = vmatpush1.msra.mxu0 0.0
    %5032 = vmatprep.subr.mxu0 0.0
    %5033 = vmatpush1.msra.mxu0 0.0
    %5034 = vmatprep.subr.mxu0 0.0
    %5035 = vmatpush1.msra.mxu0 0.0
    %5036 = vmatprep.subr.mxu0 0.0
    %5037 = vmatpush1.msra.mxu0 0.0
    %5038 = vmatprep.subr.mxu0 0.0
    %5039 = vmatpush1.msra.mxu0 0.0
    %5040 = vmatprep.subr.mxu0 0.0
    %5041 = vmatpush1.msra.mxu0 0.0
    %5042 = vmatprep.subr.mxu0 0.0
    %5043 = vmatpush1.msra.mxu0 0.0
    %5044 = vmatprep.subr.mxu0 0.0
    %5045 = vmatpush1.msra.mxu0 0.0
    %5046 = vmatprep.subr.mxu0 0.0
    %5047 = vmatpush1.msra.mxu0 0.0
    %5048 = vmatprep.subr.mxu0 0.0
    %5049 = vmatpush1.msra.mxu0 0.0
    %5050 = vmatprep.subr.mxu0 0.0
    %5051 = vmatpush1.msra.mxu0 0.0
    %5052 = vmatprep.subr.mxu0 0.0
    %5053 = vmatpush1.msra.mxu0 0.0
    %5054 = vmatprep.subr.mxu0 0.0
    %5055 = vmatpush1.msra.mxu0 0.0
    %5056 = vmatprep.subr.mxu0 0.0
    %5057 = vmatpush1.msra.mxu0 0.0
    %5058 = vmatprep.subr.mxu0 0.0
    %5059 = vmatpush1.msra.mxu0 0.0
    %5060 = vmatprep.subr.mxu0 0.0
    %5061 = vmatpush1.msra.mxu0 0.0
    %5062 = vmatprep.subr.mxu0 0.0
    %5063 = vmatpush1.msra.mxu0 0.0
    %5064 = vmatprep.subr.mxu0 0.0
    %5065 = vmatpush1.msra.mxu0 0.0
    %5066 = vmatprep.subr.mxu0 0.0
    %5067 = vmatpush1.msra.mxu0 0.0
    %5068 = vmatprep.subr.mxu0 0.0
    %5069 = vmatpush1.msra.mxu0 0.0
    %5070 = vmatprep.subr.mxu0 0.0
    %5071 = vmatpush1.msra.mxu0 0.0
    %5072 = vmatprep.subr.mxu0 0.0
    %5073 = vmatpush1.msra.mxu0 0.0
    %5074 = vmatprep.subr.mxu0 0.0
    %5075 = vmatpush1.msra.mxu0 0.0
    %5076 = vmatprep.subr.mxu0 0.0
    %5077 = vmatpush1.msra.mxu0 0.0
    %5078 = vmatprep.subr.mxu0 0.0
    %5079 = vmatpush1.msra.mxu0 0.0
    %5080 = vmatprep.subr.mxu0 0.0
    %5081 = vmatpush1.msra.mxu0 0.0
    %5082 = vmatprep.mubr.f32.mxu0 0.0
    %5083 = vmatmul.mubr.f32.gmra.mrb[0].mxu0 %v5016
    %v5084 = vpop.f32.mrb[0].mxu0
    %v5085 = vadd.f32 0.0, %v5084
    %v5086 = vpop.f32.mrb[0].mxu0
    %5087 = vdwg.mxu0
    %v5088 = vadd.f32 %v5014, %v5085
    %v5089 = vxor.u32 %v5088, 2147483648
    %v5090 = vmul.f32 %v5089, 1.442695
    %v5091 = vpow.pop %v5090
    %v5092 = vadd.f32 %v5091, 1.0
    %v5093 = vrcp.pop %v5092
    %v5094 = vmul.f32 1.0, %v5093
    %v5095 = vld [vmem:[%s2002] sm:$0xff]
    %5096 = vmatprep.subr.mxu0 0.0
    %5097 = vmatpush1.msra.mxu0 %v3743
    %5098 = vmatprep.subr.mxu0 0.0
    %5099 = vmatpush1.msra.mxu0 %v3744
    %5100 = vmatprep.subr.mxu0 0.0
    %5101 = vmatpush1.msra.mxu0 %v3745
    %5102 = vmatprep.subr.mxu0 0.0
    %5103 = vmatpush1.msra.mxu0 %v3746
    %5104 = vmatprep.subr.mxu0 0.0
    %5105 = vmatpush1.msra.mxu0 0.0
    %5106 = vmatprep.subr.mxu0 0.0
    %5107 = vmatpush1.msra.mxu0 0.0
    %5108 = vmatprep.subr.mxu0 0.0
    %5109 = vmatpush1.msra.mxu0 0.0
    %5110 = vmatprep.subr.mxu0 0.0
    %5111 = vmatpush1.msra.mxu0 0.0
    %5112 = vmatprep.subr.mxu0 0.0
    %5113 = vmatpush1.msra.mxu0 0.0
    %5114 = vmatprep.subr.mxu0 0.0
    %5115 = vmatpush1.msra.mxu0 0.0
    %5116 = vmatprep.subr.mxu0 0.0
    %5117 = vmatpush1.msra.mxu0 0.0
    %5118 = vmatprep.subr.mxu0 0.0
    %5119 = vmatpush1.msra.mxu0 0.0
    %5120 = vmatprep.subr.mxu0 0.0
    %5121 = vmatpush1.msra.mxu0 0.0
    %5122 = vmatprep.subr.mxu0 0.0
    %5123 = vmatpush1.msra.mxu0 0.0
    %5124 = vmatprep.subr.mxu0 0.0
    %5125 = vmatpush1.msra.mxu0 0.0
    %5126 = vmatprep.subr.mxu0 0.0
    %5127 = vmatpush1.msra.mxu0 0.0
    %5128 = vmatprep.subr.mxu0 0.0
    %5129 = vmatpush1.msra.mxu0 0.0
    %5130 = vmatprep.subr.mxu0 0.0
    %5131 = vmatpush1.msra.mxu0 0.0
    %5132 = vmatprep.subr.mxu0 0.0
    %5133 = vmatpush1.msra.mxu0 0.0
    %5134 = vmatprep.subr.mxu0 0.0
    %5135 = vmatpush1.msra.mxu0 0.0
    %5136 = vmatprep.subr.mxu0 0.0
    %5137 = vmatpush1.msra.mxu0 0.0
    %5138 = vmatprep.subr.mxu0 0.0
    %5139 = vmatpush1.msra.mxu0 0.0
    %5140 = vmatprep.subr.mxu0 0.0
    %5141 = vmatpush1.msra.mxu0 0.0
    %5142 = vmatprep.subr.mxu0 0.0
    %5143 = vmatpush1.msra.mxu0 0.0
    %5144 = vmatprep.subr.mxu0 0.0
    %5145 = vmatpush1.msra.mxu0 0.0
    %5146 = vmatprep.subr.mxu0 0.0
    %5147 = vmatpush1.msra.mxu0 0.0
    %5148 = vmatprep.subr.mxu0 0.0
    %5149 = vmatpush1.msra.mxu0 0.0
    %5150 = vmatprep.subr.mxu0 0.0
    %5151 = vmatpush1.msra.mxu0 0.0
    %5152 = vmatprep.subr.mxu0 0.0
    %5153 = vmatpush1.msra.mxu0 0.0
    %5154 = vmatprep.subr.mxu0 0.0
    %5155 = vmatpush1.msra.mxu0 0.0
    %5156 = vmatprep.subr.mxu0 0.0
    %5157 = vmatpush1.msra.mxu0 0.0
    %5158 = vmatprep.subr.mxu0 0.0
    %5159 = vmatpush1.msra.mxu0 0.0
    %5160 = vmatprep.mubr.f32.mxu0 0.0
    %5161 = vmatmul.mubr.f32.gmra.mrb[0].mxu0 %v5016
    %v5162 = vpop.f32.mrb[0].mxu0
    %v5163 = vadd.f32 0.0, %v5162
    %v5164 = vpop.f32.mrb[0].mxu0
    %5165 = vdwg.mxu0
    %v5166 = vadd.f32 %v5095, %v5163
    %v5167 = vxor.u32 %v5166, 2147483648
    %v5168 = vmul.f32 %v5167, 1.442695
    %v5169 = vpow.pop %v5168
    %v5170 = vadd.f32 %v5169, 1.0
    %v5171 = vrcp.pop %v5170
    %v5172 = vmul.f32 1.0, %v5171
    %v5173 = vld [vmem:[%s2081] sm:$0xff]
    %5174 = vmatprep.subr.mxu0 0.0
    %5175 = vmatpush1.msra.mxu0 %v3748
    %5176 = vmatprep.subr.mxu0 0.0
    %5177 = vmatpush1.msra.mxu0 %v3749
    %5178 = vmatprep.subr.mxu0 0.0
    %5179 = vmatpush1.msra.mxu0 %v3750
    %5180 = vmatprep.subr.mxu0 0.0
    %5181 = vmatpush1.msra.mxu0 %v3751
    %5182 = vmatprep.subr.mxu0 0.0
    %5183 = vmatpush1.msra.mxu0 0.0
    %5184 = vmatprep.subr.mxu0 0.0
    %5185 = vmatpush1.msra.mxu0 0.0
    %5186 = vmatprep.subr.mxu0 0.0
    %5187 = vmatpush1.msra.mxu0 0.0
    %5188 = vmatprep.subr.mxu0 0.0
    %5189 = vmatpush1.msra.mxu0 0.0
    %5190 = vmatprep.subr.mxu0 0.0
    %5191 = vmatpush1.msra.mxu0 0.0
    %5192 = vmatprep.subr.mxu0 0.0
    %5193 = vmatpush1.msra.mxu0 0.0
    %5194 = vmatprep.subr.mxu0 0.0
    %5195 = vmatpush1.msra.mxu0 0.0
    %5196 = vmatprep.subr.mxu0 0.0
    %5197 = vmatpush1.msra.mxu0 0.0
    %5198 = vmatprep.subr.mxu0 0.0
    %5199 = vmatpush1.msra.mxu0 0.0
    %5200 = vmatprep.subr.mxu0 0.0
    %5201 = vmatpush1.msra.mxu0 0.0
    %5202 = vmatprep.subr.mxu0 0.0
    %5203 = vmatpush1.msra.mxu0 0.0
    %5204 = vmatprep.subr.mxu0 0.0
    %5205 = vmatpush1.msra.mxu0 0.0
    %5206 = vmatprep.subr.mxu0 0.0
    %5207 = vmatpush1.msra.mxu0 0.0
    %5208 = vmatprep.subr.mxu0 0.0
    %5209 = vmatpush1.msra.mxu0 0.0
    %5210 = vmatprep.subr.mxu0 0.0
    %5211 = vmatpush1.msra.mxu0 0.0
    %5212 = vmatprep.subr.mxu0 0.0
    %5213 = vmatpush1.msra.mxu0 0.0
    %5214 = vmatprep.subr.mxu0 0.0
    %5215 = vmatpush1.msra.mxu0 0.0
    %5216 = vmatprep.subr.mxu0 0.0
    %5217 = vmatpush1.msra.mxu0 0.0
    %5218 = vmatprep.subr.mxu0 0.0
    %5219 = vmatpush1.msra.mxu0 0.0
    %5220 = vmatprep.subr.mxu0 0.0
    %5221 = vmatpush1.msra.mxu0 0.0
    %5222 = vmatprep.subr.mxu0 0.0
    %5223 = vmatpush1.msra.mxu0 0.0
    %5224 = vmatprep.subr.mxu0 0.0
    %5225 = vmatpush1.msra.mxu0 0.0
    %5226 = vmatprep.subr.mxu0 0.0
    %5227 = vmatpush1.msra.mxu0 0.0
    %5228 = vmatprep.subr.mxu0 0.0
    %5229 = vmatpush1.msra.mxu0 0.0
    %5230 = vmatprep.subr.mxu0 0.0
    %5231 = vmatpush1.msra.mxu0 0.0
    %5232 = vmatprep.subr.mxu0 0.0
    %5233 = vmatpush1.msra.mxu0 0.0
    %5234 = vmatprep.subr.mxu0 0.0
    %5235 = vmatpush1.msra.mxu0 0.0
    %5236 = vmatprep.subr.mxu0 0.0
    %5237 = vmatpush1.msra.mxu0 0.0
    %5238 = vmatprep.mubr.f32.mxu0 0.0
    %5239 = vmatmul.mubr.f32.gmra.mrb[0].mxu0 %v5016
    %v5240 = vpop.f32.mrb[0].mxu0
    %v5241 = vadd.f32 0.0, %v5240
    %v5242 = vpop.f32.mrb[0].mxu0
    %5243 = vdwg.mxu0
    %v5244 = vadd.f32 %v5173, %v5241
    %v5245 = vtanh.pop %v5244
    %v5246 = vld [vmem:[%s2155] sm:$0xff]
    %5247 = vmatprep.subr.mxu0 0.0
    %5248 = vmatpush1.msra.mxu0 %v3753
    %5249 = vmatprep.subr.mxu0 0.0
    %5250 = vmatpush1.msra.mxu0 %v3754
    %5251 = vmatprep.subr.mxu0 0.0
    %5252 = vmatpush1.msra.mxu0 %v3755
    %5253 = vmatprep.subr.mxu0 0.0
    %5254 = vmatpush1.msra.mxu0 %v3756
    %5255 = vmatprep.subr.mxu0 0.0
    %5256 = vmatpush1.msra.mxu0 0.0
    %5257 = vmatprep.subr.mxu0 0.0
    %5258 = vmatpush1.msra.mxu0 0.0
    %5259 = vmatprep.subr.mxu0 0.0
    %5260 = vmatpush1.msra.mxu0 0.0
    %5261 = vmatprep.subr.mxu0 0.0
    %5262 = vmatpush1.msra.mxu0 0.0
    %5263 = vmatprep.subr.mxu0 0.0
    %5264 = vmatpush1.msra.mxu0 0.0
    %5265 = vmatprep.subr.mxu0 0.0
    %5266 = vmatpush1.msra.mxu0 0.0
    %5267 = vmatprep.subr.mxu0 0.0
    %5268 = vmatpush1.msra.mxu0 0.0
    %5269 = vmatprep.subr.mxu0 0.0
    %5270 = vmatpush1.msra.mxu0 0.0
    %5271 = vmatprep.subr.mxu0 0.0
    %5272 = vmatpush1.msra.mxu0 0.0
    %5273 = vmatprep.subr.mxu0 0.0
    %5274 = vmatpush1.msra.mxu0 0.0
    %5275 = vmatprep.subr.mxu0 0.0
    %5276 = vmatpush1.msra.mxu0 0.0
    %5277 = vmatprep.subr.mxu0 0.0
    %5278 = vmatpush1.msra.mxu0 0.0
    %5279 = vmatprep.subr.mxu0 0.0
    %5280 = vmatpush1.msra.mxu0 0.0
    %5281 = vmatprep.subr.mxu0 0.0
    %5282 = vmatpush1.msra.mxu0 0.0
    %5283 = vmatprep.subr.mxu0 0.0
    %5284 = vmatpush1.msra.mxu0 0.0
    %5285 = vmatprep.subr.mxu0 0.0
    %5286 = vmatpush1.msra.mxu0 0.0
    %5287 = vmatprep.subr.mxu0 0.0
    %5288 = vmatpush1.msra.mxu0 0.0
    %5289 = vmatprep.subr.mxu0 0.0
    %5290 = vmatpush1.msra.mxu0 0.0
    %5291 = vmatprep.subr.mxu0 0.0
    %5292 = vmatpush1.msra.mxu0 0.0
    %5293 = vmatprep.subr.mxu0 0.0
    %5294 = vmatpush1.msra.mxu0 0.0
    %5295 = vmatprep.subr.mxu0 0.0
    %5296 = vmatpush1.msra.mxu0 0.0
    %5297 = vmatprep.subr.mxu0 0.0
    %5298 = vmatpush1.msra.mxu0 0.0
    %5299 = vmatprep.subr.mxu0 0.0
    %5300 = vmatpush1.msra.mxu0 0.0
    %5301 = vmatprep.subr.mxu0 0.0
    %5302 = vmatpush1.msra.mxu0 0.0
    %5303 = vmatprep.subr.mxu0 0.0
    %5304 = vmatpush1.msra.mxu0 0.0
    %5305 = vmatprep.subr.mxu0 0.0
    %5306 = vmatpush1.msra.mxu0 0.0
    %5307 = vmatprep.subr.mxu0 0.0
    %5308 = vmatpush1.msra.mxu0 0.0
    %5309 = vmatprep.subr.mxu0 0.0
    %5310 = vmatpush1.msra.mxu0 0.0
    %5311 = vmatprep.mubr.f32.mxu0 0.0
    %5312 = vmatmul.mubr.f32.gmra.mrb[0].mxu0 %v5016
    %v5313 = vpop.f32.mrb[0].mxu0
    %v5314 = vadd.f32 0.0, %v5313
    %v5315 = vpop.f32.mrb[0].mxu0
    %5316 = vdwg.mxu0
    %v5317 = vadd.f32 %v5246, %v5314
    %v5318 = vxor.u32 %v5317, 2147483648
    %v5319 = vmul.f32 %v5318, 1.442695
    %v5320 = vpow.pop %v5319
    %v5321 = vadd.f32 %v5320, 1.0
    %v5322 = vrcp.pop %v5321
    %v5323 = vmul.f32 1.0, %v5322
    %v5324 = vmul.f32 %v5172, %v5011
    %v5325 = vmul.f32 %v5094, %v5245
    %v5326 = vadd.f32 %v5324, %v5325
    %v5327 = vtanh.pop %v5326
    %v5328 = vmul.f32 %v5323, %v5327
    %v5329 = vld [vmem:[%s2241] sm:$0xff]
    %v5331 = vsel %vm241, %v5328, 0
    %5333 = vmatprep.subr.mxu0 0.0
    %5334 = vmatpush1.msra.mxu0 %v3738
    %5335 = vmatprep.subr.mxu0 0.0
    %5336 = vmatpush1.msra.mxu0 %v3739
    %5337 = vmatprep.subr.mxu0 0.0
    %5338 = vmatpush1.msra.mxu0 %v3740
    %5339 = vmatprep.subr.mxu0 0.0
    %5340 = vmatpush1.msra.mxu0 %v3741
    %5341 = vmatprep.subr.mxu0 0.0
    %5342 = vmatpush1.msra.mxu0 0.0
    %5343 = vmatprep.subr.mxu0 0.0
    %5344 = vmatpush1.msra.mxu0 0.0
    %5345 = vmatprep.subr.mxu0 0.0
    %5346 = vmatpush1.msra.mxu0 0.0
    %5347 = vmatprep.subr.mxu0 0.0
    %5348 = vmatpush1.msra.mxu0 0.0
    %5349 = vmatprep.subr.mxu0 0.0
    %5350 = vmatpush1.msra.mxu0 0.0
    %5351 = vmatprep.subr.mxu0 0.0
    %5352 = vmatpush1.msra.mxu0 0.0
    %5353 = vmatprep.subr.mxu0 0.0
    %5354 = vmatpush1.msra.mxu0 0.0
    %5355 = vmatprep.subr.mxu0 0.0
    %5356 = vmatpush1.msra.mxu0 0.0
    %5357 = vmatprep.subr.mxu0 0.0
    %5358 = vmatpush1.msra.mxu0 0.0
    %5359 = vmatprep.subr.mxu0 0.0
    %5360 = vmatpush1.msra.mxu0 0.0
    %5361 = vmatprep.subr.mxu0 0.0
    %5362 = vmatpush1.msra.mxu0 0.0
    %5363 = vmatprep.subr.mxu0 0.0
    %5364 = vmatpush1.msra.mxu0 0.0
    %5365 = vmatprep.subr.mxu0 0.0
    %5366 = vmatpush1.msra.mxu0 0.0
    %5367 = vmatprep.subr.mxu0 0.0
    %5368 = vmatpush1.msra.mxu0 0.0
    %5369 = vmatprep.subr.mxu0 0.0
    %5370 = vmatpush1.msra.mxu0 0.0
    %5371 = vmatprep.subr.mxu0 0.0
    %5372 = vmatpush1.msra.mxu0 0.0
    %5373 = vmatprep.subr.mxu0 0.0
    %5374 = vmatpush1.msra.mxu0 0.0
    %5375 = vmatprep.subr.mxu0 0.0
    %5376 = vmatpush1.msra.mxu0 0.0
    %5377 = vmatprep.subr.mxu0 0.0
    %5378 = vmatpush1.msra.mxu0 0.0
    %5379 = vmatprep.subr.mxu0 0.0
    %5380 = vmatpush1.msra.mxu0 0.0
    %5381 = vmatprep.subr.mxu0 0.0
    %5382 = vmatpush1.msra.mxu0 0.0
    %5383 = vmatprep.subr.mxu0 0.0
    %5384 = vmatpush1.msra.mxu0 0.0
    %5385 = vmatprep.subr.mxu0 0.0
    %5386 = vmatpush1.msra.mxu0 0.0
    %5387 = vmatprep.subr.mxu0 0.0
    %5388 = vmatpush1.msra.mxu0 0.0
    %5389 = vmatprep.subr.mxu0 0.0
    %5390 = vmatpush1.msra.mxu0 0.0
    %5391 = vmatprep.subr.mxu0 0.0
    %5392 = vmatpush1.msra.mxu0 0.0
    %5393 = vmatprep.subr.mxu0 0.0
    %5394 = vmatpush1.msra.mxu0 0.0
    %5395 = vmatprep.subr.mxu0 0.0
    %5396 = vmatpush1.msra.mxu0 0.0
    %5397 = vmatprep.mubr.f32.mxu0 0.0
    %5398 = vmatmul.mubr.f32.gmra.mrb[0].mxu0 %v5331
    %v5399 = vpop.f32.mrb[0].mxu0
    %v5400 = vadd.f32 0.0, %v5399
    %v5401 = vpop.f32.mrb[0].mxu0
    %5402 = vdwg.mxu0
    %v5403 = vadd.f32 %v5329, %v5400
    %v5404 = vxor.u32 %v5403, 2147483648
    %v5405 = vmul.f32 %v5404, 1.442695
    %v5406 = vpow.pop %v5405
    %v5407 = vadd.f32 %v5406, 1.0
    %v5408 = vrcp.pop %v5407
    %v5409 = vmul.f32 1.0, %v5408
    %v5410 = vld [vmem:[%s2323] sm:$0xff]
    %5411 = vmatprep.subr.mxu0 0.0
    %5412 = vmatpush1.msra.mxu0 %v3743
    %5413 = vmatprep.subr.mxu0 0.0
    %5414 = vmatpush1.msra.mxu0 %v3744
    %5415 = vmatprep.subr.mxu0 0.0
    %5416 = vmatpush1.msra.mxu0 %v3745
    %5417 = vmatprep.subr.mxu0 0.0
    %5418 = vmatpush1.msra.mxu0 %v3746
    %5419 = vmatprep.subr.mxu0 0.0
    %5420 = vmatpush1.msra.mxu0 0.0
    %5421 = vmatprep.subr.mxu0 0.0
    %5422 = vmatpush1.msra.mxu0 0.0
    %5423 = vmatprep.subr.mxu0 0.0
    %5424 = vmatpush1.msra.mxu0 0.0
    %5425 = vmatprep.subr.mxu0 0.0
    %5426 = vmatpush1.msra.mxu0 0.0
    %5427 = vmatprep.subr.mxu0 0.0
    %5428 = vmatpush1.msra.mxu0 0.0
    %5429 = vmatprep.subr.mxu0 0.0
    %5430 = vmatpush1.msra.mxu0 0.0
    %5431 = vmatprep.subr.mxu0 0.0
    %5432 = vmatpush1.msra.mxu0 0.0
    %5433 = vmatprep.subr.mxu0 0.0
    %5434 = vmatpush1.msra.mxu0 0.0
    %5435 = vmatprep.subr.mxu0 0.0
    %5436 = vmatpush1.msra.mxu0 0.0
    %5437 = vmatprep.subr.mxu0 0.0
    %5438 = vmatpush1.msra.mxu0 0.0
    %5439 = vmatprep.subr.mxu0 0.0
    %5440 = vmatpush1.msra.mxu0 0.0
    %5441 = vmatprep.subr.mxu0 0.0
    %5442 = vmatpush1.msra.mxu0 0.0
    %5443 = vmatprep.subr.mxu0 0.0
    %5444 = vmatpush1.msra.mxu0 0.0
    %5445 = vmatprep.subr.mxu0 0.0
    %5446 = vmatpush1.msra.mxu0 0.0
    %5447 = vmatprep.subr.mxu0 0.0
    %5448 = vmatpush1.msra.mxu0 0.0
    %5449 = vmatprep.subr.mxu0 0.0
    %5450 = vmatpush1.msra.mxu0 0.0
    %5451 = vmatprep.subr.mxu0 0.0
    %5452 = vmatpush1.msra.mxu0 0.0
    %5453 = vmatprep.subr.mxu0 0.0
    %5454 = vmatpush1.msra.mxu0 0.0
    %5455 = vmatprep.subr.mxu0 0.0
    %5456 = vmatpush1.msra.mxu0 0.0
    %5457 = vmatprep.subr.mxu0 0.0
    %5458 = vmatpush1.msra.mxu0 0.0
    %5459 = vmatprep.subr.mxu0 0.0
    %5460 = vmatpush1.msra.mxu0 0.0
    %5461 = vmatprep.subr.mxu0 0.0
    %5462 = vmatpush1.msra.mxu0 0.0
    %5463 = vmatprep.subr.mxu0 0.0
    %5464 = vmatpush1.msra.mxu0 0.0
    %5465 = vmatprep.subr.mxu0 0.0
    %5466 = vmatpush1.msra.mxu0 0.0
    %5467 = vmatprep.subr.mxu0 0.0
    %5468 = vmatpush1.msra.mxu0 0.0
    %5469 = vmatprep.subr.mxu0 0.0
    %5470 = vmatpush1.msra.mxu0 0.0
    %5471 = vmatprep.subr.mxu0 0.0
    %5472 = vmatpush1.msra.mxu0 0.0
    %5473 = vmatprep.subr.mxu0 0.0
    %5474 = vmatpush1.msra.mxu0 0.0
    %5475 = vmatprep.mubr.f32.mxu0 0.0
    %5476 = vmatmul.mubr.f32.gmra.mrb[0].mxu0 %v5331
    %v5477 = vpop.f32.mrb[0].mxu0
    %v5478 = vadd.f32 0.0, %v5477
    %v5479 = vpop.f32.mrb[0].mxu0
    %5480 = vdwg.mxu0
    %v5481 = vadd.f32 %v5410, %v5478
    %v5482 = vxor.u32 %v5481, 2147483648
    %v5483 = vmul.f32 %v5482, 1.442695
    %v5484 = vpow.pop %v5483
    %v5485 = vadd.f32 %v5484, 1.0
    %v5486 = vrcp.pop %v5485
    %v5487 = vmul.f32 1.0, %v5486
    %v5488 = vld [vmem:[%s2402] sm:$0xff]
    %5489 = vmatprep.subr.mxu0 0.0
    %5490 = vmatpush1.msra.mxu0 %v3748
    %5491 = vmatprep.subr.mxu0 0.0
    %5492 = vmatpush1.msra.mxu0 %v3749
    %5493 = vmatprep.subr.mxu0 0.0
    %5494 = vmatpush1.msra.mxu0 %v3750
    %5495 = vmatprep.subr.mxu0 0.0
    %5496 = vmatpush1.msra.mxu0 %v3751
    %5497 = vmatprep.subr.mxu0 0.0
    %5498 = vmatpush1.msra.mxu0 0.0
    %5499 = vmatprep.subr.mxu0 0.0
    %5500 = vmatpush1.msra.mxu0 0.0
    %5501 = vmatprep.subr.mxu0 0.0
    %5502 = vmatpush1.msra.mxu0 0.0
    %5503 = vmatprep.subr.mxu0 0.0
    %5504 = vmatpush1.msra.mxu0 0.0
    %5505 = vmatprep.subr.mxu0 0.0
    %5506 = vmatpush1.msra.mxu0 0.0
    %5507 = vmatprep.subr.mxu0 0.0
    %5508 = vmatpush1.msra.mxu0 0.0
    %5509 = vmatprep.subr.mxu0 0.0
    %5510 = vmatpush1.msra.mxu0 0.0
    %5511 = vmatprep.subr.mxu0 0.0
    %5512 = vmatpush1.msra.mxu0 0.0
    %5513 = vmatprep.subr.mxu0 0.0
    %5514 = vmatpush1.msra.mxu0 0.0
    %5515 = vmatprep.subr.mxu0 0.0
    %5516 = vmatpush1.msra.mxu0 0.0
    %5517 = vmatprep.subr.mxu0 0.0
    %5518 = vmatpush1.msra.mxu0 0.0
    %5519 = vmatprep.subr.mxu0 0.0
    %5520 = vmatpush1.msra.mxu0 0.0
    %5521 = vmatprep.subr.mxu0 0.0
    %5522 = vmatpush1.msra.mxu0 0.0
    %5523 = vmatprep.subr.mxu0 0.0
    %5524 = vmatpush1.msra.mxu0 0.0
    %5525 = vmatprep.subr.mxu0 0.0
    %5526 = vmatpush1.msra.mxu0 0.0
    %5527 = vmatprep.subr.mxu0 0.0
    %5528 = vmatpush1.msra.mxu0 0.0
    %5529 = vmatprep.subr.mxu0 0.0
    %5530 = vmatpush1.msra.mxu0 0.0
    %5531 = vmatprep.subr.mxu0 0.0
    %5532 = vmatpush1.msra.mxu0 0.0
    %5533 = vmatprep.subr.mxu0 0.0
    %5534 = vmatpush1.msra.mxu0 0.0
    %5535 = vmatprep.subr.mxu0 0.0
    %5536 = vmatpush1.msra.mxu0 0.0
    %5537 = vmatprep.subr.mxu0 0.0
    %5538 = vmatpush1.msra.mxu0 0.0
    %5539 = vmatprep.subr.mxu0 0.0
    %5540 = vmatpush1.msra.mxu0 0.0
    %5541 = vmatprep.subr.mxu0 0.0
    %5542 = vmatpush1.msra.mxu0 0.0
    %5543 = vmatprep.subr.mxu0 0.0
    %5544 = vmatpush1.msra.mxu0 0.0
    %5545 = vmatprep.subr.mxu0 0.0
    %5546 = vmatpush1.msra.mxu0 0.0
    %5547 = vmatprep.subr.mxu0 0.0
    %5548 = vmatpush1.msra.mxu0 0.0
    %5549 = vmatprep.subr.mxu0 0.0
    %5550 = vmatpush1.msra.mxu0 0.0
    %5551 = vmatprep.subr.mxu0 0.0
    %5552 = vmatpush1.msra.mxu0 0.0
    %5553 = vmatprep.mubr.f32.mxu0 0.0
    %5554 = vmatmul.mubr.f32.gmra.mrb[0].mxu0 %v5331
    %v5555 = vpop.f32.mrb[0].mxu0
    %v5556 = vadd.f32 0.0, %v5555
    %v5557 = vpop.f32.mrb[0].mxu0
    %5558 = vdwg.mxu0
    %v5559 = vadd.f32 %v5488, %v5556
    %v5560 = vtanh.pop %v5559
    %v5561 = vld [vmem:[%s2476] sm:$0xff]
    %5562 = vmatprep.subr.mxu0 0.0
    %5563 = vmatpush1.msra.mxu0 %v3753
    %5564 = vmatprep.subr.mxu0 0.0
    %5565 = vmatpush1.msra.mxu0 %v3754
    %5566 = vmatprep.subr.mxu0 0.0
    %5567 = vmatpush1.msra.mxu0 %v3755
    %5568 = vmatprep.subr.mxu0 0.0
    %5569 = vmatpush1.msra.mxu0 %v3756
    %5570 = vmatprep.subr.mxu0 0.0
    %5571 = vmatpush1.msra.mxu0 0.0
    %5572 = vmatprep.subr.mxu0 0.0
    %5573 = vmatpush1.msra.mxu0 0.0
    %5574 = vmatprep.subr.mxu0 0.0
    %5575 = vmatpush1.msra.mxu0 0.0
    %5576 = vmatprep.subr.mxu0 0.0
    %5577 = vmatpush1.msra.mxu0 0.0
    %5578 = vmatprep.subr.mxu0 0.0
    %5579 = vmatpush1.msra.mxu0 0.0
    %5580 = vmatprep.subr.mxu0 0.0
    %5581 = vmatpush1.msra.mxu0 0.0
    %5582 = vmatprep.subr.mxu0 0.0
    %5583 = vmatpush1.msra.mxu0 0.0
    %5584 = vmatprep.subr.mxu0 0.0
    %5585 = vmatpush1.msra.mxu0 0.0
    %5586 = vmatprep.subr.mxu0 0.0
    %5587 = vmatpush1.msra.mxu0 0.0
    %5588 = vmatprep.subr.mxu0 0.0
    %5589 = vmatpush1.msra.mxu0 0.0
    %5590 = vmatprep.subr.mxu0 0.0
    %5591 = vmatpush1.msra.mxu0 0.0
    %5592 = vmatprep.subr.mxu0 0.0
    %5593 = vmatpush1.msra.mxu0 0.0
    %5594 = vmatprep.subr.mxu0 0.0
    %5595 = vmatpush1.msra.mxu0 0.0
    %5596 = vmatprep.subr.mxu0 0.0
    %5597 = vmatpush1.msra.mxu0 0.0
    %5598 = vmatprep.subr.mxu0 0.0
    %5599 = vmatpush1.msra.mxu0 0.0
    %5600 = vmatprep.subr.mxu0 0.0
    %5601 = vmatpush1.msra.mxu0 0.0
    %5602 = vmatprep.subr.mxu0 0.0
    %5603 = vmatpush1.msra.mxu0 0.0
    %5604 = vmatprep.subr.mxu0 0.0
    %5605 = vmatpush1.msra.mxu0 0.0
    %5606 = vmatprep.subr.mxu0 0.0
    %5607 = vmatpush1.msra.mxu0 0.0
    %5608 = vmatprep.subr.mxu0 0.0
    %5609 = vmatpush1.msra.mxu0 0.0
    %5610 = vmatprep.subr.mxu0 0.0
    %5611 = vmatpush1.msra.mxu0 0.0
    %5612 = vmatprep.subr.mxu0 0.0
    %5613 = vmatpush1.msra.mxu0 0.0
    %5614 = vmatprep.subr.mxu0 0.0
    %5615 = vmatpush1.msra.mxu0 0.0
    %5616 = vmatprep.subr.mxu0 0.0
    %5617 = vmatpush1.msra.mxu0 0.0
    %5618 = vmatprep.subr.mxu0 0.0
    %5619 = vmatpush1.msra.mxu0 0.0
    %5620 = vmatprep.subr.mxu0 0.0
    %5621 = vmatpush1.msra.mxu0 0.0
    %5622 = vmatprep.subr.mxu0 0.0
    %5623 = vmatpush1.msra.mxu0 0.0
    %5624 = vmatprep.subr.mxu0 0.0
    %5625 = vmatpush1.msra.mxu0 0.0
    %5626 = vmatprep.mubr.f32.mxu0 0.0
    %5627 = vmatmul.mubr.f32.gmra.mrb[0].mxu0 %v5331
    %v5628 = vpop.f32.mrb[0].mxu0
    %v5629 = vadd.f32 0.0, %v5628
    %v5630 = vpop.f32.mrb[0].mxu0
    %5631 = vdwg.mxu0
    %v5632 = vadd.f32 %v5561, %v5629
    %v5633 = vxor.u32 %v5632, 2147483648
    %v5634 = vmul.f32 %v5633, 1.442695
    %v5635 = vpow.pop %v5634
    %v5636 = vadd.f32 %v5635, 1.0
    %v5637 = vrcp.pop %v5636
    %v5638 = vmul.f32 1.0, %v5637
    %v5639 = vmul.f32 %v5487, %v5326
    %v5640 = vmul.f32 %v5409, %v5560
    %v5641 = vadd.f32 %v5639, %v5640
    %v5642 = vtanh.pop %v5641
    %v5643 = vmul.f32 %v5638, %v5642
    %v5644 = vld [vmem:[%s2562] sm:$0xff]
    %v5646 = vsel %vm241, %v5643, 0
    %5648 = vmatprep.subr.mxu0 0.0
    %5649 = vmatpush1.msra.mxu0 %v3738
    %5650 = vmatprep.subr.mxu0 0.0
    %5651 = vmatpush1.msra.mxu0 %v3739
    %5652 = vmatprep.subr.mxu0 0.0
    %5653 = vmatpush1.msra.mxu0 %v3740
    %5654 = vmatprep.subr.mxu0 0.0
    %5655 = vmatpush1.msra.mxu0 %v3741
    %5656 = vmatprep.subr.mxu0 0.0
    %5657 = vmatpush1.msra.mxu0 0.0
    %5658 = vmatprep.subr.mxu0 0.0
    %5659 = vmatpush1.msra.mxu0 0.0
    %5660 = vmatprep.subr.mxu0 0.0
    %5661 = vmatpush1.msra.mxu0 0.0
    %5662 = vmatprep.subr.mxu0 0.0
    %5663 = vmatpush1.msra.mxu0 0.0
    %5664 = vmatprep.subr.mxu0 0.0
    %5665 = vmatpush1.msra.mxu0 0.0
    %5666 = vmatprep.subr.mxu0 0.0
    %5667 = vmatpush1.msra.mxu0 0.0
    %5668 = vmatprep.subr.mxu0 0.0
    %5669 = vmatpush1.msra.mxu0 0.0
    %5670 = vmatprep.subr.mxu0 0.0
    %5671 = vmatpush1.msra.mxu0 0.0
    %5672 = vmatprep.subr.mxu0 0.0
    %5673 = vmatpush1.msra.mxu0 0.0
    %5674 = vmatprep.subr.mxu0 0.0
    %5675 = vmatpush1.msra.mxu0 0.0
    %5676 = vmatprep.subr.mxu0 0.0
    %5677 = vmatpush1.msra.mxu0 0.0
    %5678 = vmatprep.subr.mxu0 0.0
    %5679 = vmatpush1.msra.mxu0 0.0
    %5680 = vmatprep.subr.mxu0 0.0
    %5681 = vmatpush1.msra.mxu0 0.0
    %5682 = vmatprep.subr.mxu0 0.0
    %5683 = vmatpush1.msra.mxu0 0.0
    %5684 = vmatprep.subr.mxu0 0.0
    %5685 = vmatpush1.msra.mxu0 0.0
    %5686 = vmatprep.subr.mxu0 0.0
    %5687 = vmatpush1.msra.mxu0 0.0
    %5688 = vmatprep.subr.mxu0 0.0
    %5689 = vmatpush1.msra.mxu0 0.0
    %5690 = vmatprep.subr.mxu0 0.0
    %5691 = vmatpush1.msra.mxu0 0.0
    %5692 = vmatprep.subr.mxu0 0.0
    %5693 = vmatpush1.msra.mxu0 0.0
    %5694 = vmatprep.subr.mxu0 0.0
    %5695 = vmatpush1.msra.mxu0 0.0
    %5696 = vmatprep.subr.mxu0 0.0
    %5697 = vmatpush1.msra.mxu0 0.0
    %5698 = vmatprep.subr.mxu0 0.0
    %5699 = vmatpush1.msra.mxu0 0.0
    %5700 = vmatprep.subr.mxu0 0.0
    %5701 = vmatpush1.msra.mxu0 0.0
    %5702 = vmatprep.subr.mxu0 0.0
    %5703 = vmatpush1.msra.mxu0 0.0
    %5704 = vmatprep.subr.mxu0 0.0
    %5705 = vmatpush1.msra.mxu0 0.0
    %5706 = vmatprep.subr.mxu0 0.0
    %5707 = vmatpush1.msra.mxu0 0.0
    %5708 = vmatprep.subr.mxu0 0.0
    %5709 = vmatpush1.msra.mxu0 0.0
    %5710 = vmatprep.subr.mxu0 0.0
    %5711 = vmatpush1.msra.mxu0 0.0
    %5712 = vmatprep.mubr.f32.mxu0 0.0
    %5713 = vmatmul.mubr.f32.gmra.mrb[0].mxu0 %v5646
    %v5714 = vpop.f32.mrb[0].mxu0
    %v5715 = vadd.f32 0.0, %v5714
    %v5716 = vpop.f32.mrb[0].mxu0
    %5717 = vdwg.mxu0
    %v5718 = vadd.f32 %v5644, %v5715
    %v5719 = vxor.u32 %v5718, 2147483648
    %v5720 = vmul.f32 %v5719, 1.442695
    %v5721 = vpow.pop %v5720
    %v5722 = vadd.f32 %v5721, 1.0
    %v5723 = vrcp.pop %v5722
    %v5724 = vmul.f32 1.0, %v5723
    %v5725 = vld [vmem:[%s2644] sm:$0xff]
    %5726 = vmatprep.subr.mxu0 0.0
    %5727 = vmatpush1.msra.mxu0 %v3743
    %5728 = vmatprep.subr.mxu0 0.0
    %5729 = vmatpush1.msra.mxu0 %v3744
    %5730 = vmatprep.subr.mxu0 0.0
    %5731 = vmatpush1.msra.mxu0 %v3745
    %5732 = vmatprep.subr.mxu0 0.0
    %5733 = vmatpush1.msra.mxu0 %v3746
    %5734 = vmatprep.subr.mxu0 0.0
    %5735 = vmatpush1.msra.mxu0 0.0
    %5736 = vmatprep.subr.mxu0 0.0
    %5737 = vmatpush1.msra.mxu0 0.0
    %5738 = vmatprep.subr.mxu0 0.0
    %5739 = vmatpush1.msra.mxu0 0.0
    %5740 = vmatprep.subr.mxu0 0.0
    %5741 = vmatpush1.msra.mxu0 0.0
    %5742 = vmatprep.subr.mxu0 0.0
    %5743 = vmatpush1.msra.mxu0 0.0
    %5744 = vmatprep.subr.mxu0 0.0
    %5745 = vmatpush1.msra.mxu0 0.0
    %5746 = vmatprep.subr.mxu0 0.0
    %5747 = vmatpush1.msra.mxu0 0.0
    %5748 = vmatprep.subr.mxu0 0.0
    %5749 = vmatpush1.msra.mxu0 0.0
    %5750 = vmatprep.subr.mxu0 0.0
    %5751 = vmatpush1.msra.mxu0 0.0
    %5752 = vmatprep.subr.mxu0 0.0
    %5753 = vmatpush1.msra.mxu0 0.0
    %5754 = vmatprep.subr.mxu0 0.0
    %5755 = vmatpush1.msra.mxu0 0.0
    %5756 = vmatprep.subr.mxu0 0.0
    %5757 = vmatpush1.msra.mxu0 0.0
    %5758 = vmatprep.subr.mxu0 0.0
    %5759 = vmatpush1.msra.mxu0 0.0
    %5760 = vmatprep.subr.mxu0 0.0
    %5761 = vmatpush1.msra.mxu0 0.0
    %5762 = vmatprep.subr.mxu0 0.0
    %5763 = vmatpush1.msra.mxu0 0.0
    %5764 = vmatprep.subr.mxu0 0.0
    %5765 = vmatpush1.msra.mxu0 0.0
    %5766 = vmatprep.subr.mxu0 0.0
    %5767 = vmatpush1.msra.mxu0 0.0
    %5768 = vmatprep.subr.mxu0 0.0
    %5769 = vmatpush1.msra.mxu0 0.0
    %5770 = vmatprep.subr.mxu0 0.0
    %5771 = vmatpush1.msra.mxu0 0.0
    %5772 = vmatprep.subr.mxu0 0.0
    %5773 = vmatpush1.msra.mxu0 0.0
    %5774 = vmatprep.subr.mxu0 0.0
    %5775 = vmatpush1.msra.mxu0 0.0
    %5776 = vmatprep.subr.mxu0 0.0
    %5777 = vmatpush1.msra.mxu0 0.0
    %5778 = vmatprep.subr.mxu0 0.0
    %5779 = vmatpush1.msra.mxu0 0.0
    %5780 = vmatprep.subr.mxu0 0.0
    %5781 = vmatpush1.msra.mxu0 0.0
    %5782 = vmatprep.subr.mxu0 0.0
    %5783 = vmatpush1.msra.mxu0 0.0
    %5784 = vmatprep.subr.mxu0 0.0
    %5785 = vmatpush1.msra.mxu0 0.0
    %5786 = vmatprep.subr.mxu0 0.0
    %5787 = vmatpush1.msra.mxu0 0.0
    %5788 = vmatprep.subr.mxu0 0.0
    %5789 = vmatpush1.msra.mxu0 0.0
    %5790 = vmatprep.mubr.f32.mxu0 0.0
    %5791 = vmatmul.mubr.f32.gmra.mrb[0].mxu0 %v5646
    %v5792 = vpop.f32.mrb[0].mxu0
    %v5793 = vadd.f32 0.0, %v5792
    %v5794 = vpop.f32.mrb[0].mxu0
    %5795 = vdwg.mxu0
    %v5796 = vadd.f32 %v5725, %v5793
    %v5797 = vxor.u32 %v5796, 2147483648
    %v5798 = vmul.f32 %v5797, 1.442695
    %v5799 = vpow.pop %v5798
    %v5800 = vadd.f32 %v5799, 1.0
    %v5801 = vrcp.pop %v5800
    %v5802 = vmul.f32 1.0, %v5801
    %v5803 = vld [vmem:[%s2723] sm:$0xff]
    %5804 = vmatprep.subr.mxu0 0.0
    %5805 = vmatpush1.msra.mxu0 %v3748
    %5806 = vmatprep.subr.mxu0 0.0
    %5807 = vmatpush1.msra.mxu0 %v3749
    %5808 = vmatprep.subr.mxu0 0.0
    %5809 = vmatpush1.msra.mxu0 %v3750
    %5810 = vmatprep.subr.mxu0 0.0
    %5811 = vmatpush1.msra.mxu0 %v3751
    %5812 = vmatprep.subr.mxu0 0.0
    %5813 = vmatpush1.msra.mxu0 0.0
    %5814 = vmatprep.subr.mxu0 0.0
    %5815 = vmatpush1.msra.mxu0 0.0
    %5816 = vmatprep.subr.mxu0 0.0
    %5817 = vmatpush1.msra.mxu0 0.0
    %5818 = vmatprep.subr.mxu0 0.0
    %5819 = vmatpush1.msra.mxu0 0.0
    %5820 = vmatprep.subr.mxu0 0.0
    %5821 = vmatpush1.msra.mxu0 0.0
    %5822 = vmatprep.subr.mxu0 0.0
    %5823 = vmatpush1.msra.mxu0 0.0
    %5824 = vmatprep.subr.mxu0 0.0
    %5825 = vmatpush1.msra.mxu0 0.0
    %5826 = vmatprep.subr.mxu0 0.0
    %5827 = vmatpush1.msra.mxu0 0.0
    %5828 = vmatprep.subr.mxu0 0.0
    %5829 = vmatpush1.msra.mxu0 0.0
    %5830 = vmatprep.subr.mxu0 0.0
    %5831 = vmatpush1.msra.mxu0 0.0
    %5832 = vmatprep.subr.mxu0 0.0
    %5833 = vmatpush1.msra.mxu0 0.0
    %5834 = vmatprep.subr.mxu0 0.0
    %5835 = vmatpush1.msra.mxu0 0.0
    %5836 = vmatprep.subr.mxu0 0.0
    %5837 = vmatpush1.msra.mxu0 0.0
    %5838 = vmatprep.subr.mxu0 0.0
    %5839 = vmatpush1.msra.mxu0 0.0
    %5840 = vmatprep.subr.mxu0 0.0
    %5841 = vmatpush1.msra.mxu0 0.0
    %5842 = vmatprep.subr.mxu0 0.0
    %5843 = vmatpush1.msra.mxu0 0.0
    %5844 = vmatprep.subr.mxu0 0.0
    %5845 = vmatpush1.msra.mxu0 0.0
    %5846 = vmatprep.subr.mxu0 0.0
    %5847 = vmatpush1.msra.mxu0 0.0
    %5848 = vmatprep.subr.mxu0 0.0
    %5849 = vmatpush1.msra.mxu0 0.0
    %5850 = vmatprep.subr.mxu0 0.0
    %5851 = vmatpush1.msra.mxu0 0.0
    %5852 = vmatprep.subr.mxu0 0.0
    %5853 = vmatpush1.msra.mxu0 0.0
    %5854 = vmatprep.subr.mxu0 0.0
    %5855 = vmatpush1.msra.mxu0 0.0
    %5856 = vmatprep.subr.mxu0 0.0
    %5857 = vmatpush1.msra.mxu0 0.0
    %5858 = vmatprep.subr.mxu0 0.0
    %5859 = vmatpush1.msra.mxu0 0.0
    %5860 = vmatprep.subr.mxu0 0.0
    %5861 = vmatpush1.msra.mxu0 0.0
    %5862 = vmatprep.subr.mxu0 0.0
    %5863 = vmatpush1.msra.mxu0 0.0
    %5864 = vmatprep.subr.mxu0 0.0
    %5865 = vmatpush1.msra.mxu0 0.0
    %5866 = vmatprep.subr.mxu0 0.0
    %5867 = vmatpush1.msra.mxu0 0.0
    %5868 = vmatprep.mubr.f32.mxu0 0.0
    %5869 = vmatmul.mubr.f32.gmra.mrb[0].mxu0 %v5646
    %v5870 = vpop.f32.mrb[0].mxu0
    %v5871 = vadd.f32 0.0, %v5870
    %v5872 = vpop.f32.mrb[0].mxu0
    %5873 = vdwg.mxu0
    %v5874 = vadd.f32 %v5803, %v5871
    %v5875 = vtanh.pop %v5874
    %v5876 = vld [vmem:[%s2797] sm:$0xff]
    %5877 = vmatprep.subr.mxu0 0.0
    %5878 = vmatpush1.msra.mxu0 %v3753
    %5879 = vmatprep.subr.mxu0 0.0
    %5880 = vmatpush1.msra.mxu0 %v3754
    %5881 = vmatprep.subr.mxu0 0.0
    %5882 = vmatpush1.msra.mxu0 %v3755
    %5883 = vmatprep.subr.mxu0 0.0
    %5884 = vmatpush1.msra.mxu0 %v3756
    %5885 = vmatprep.subr.mxu0 0.0
    %5886 = vmatpush1.msra.mxu0 0.0
    %5887 = vmatprep.subr.mxu0 0.0
    %5888 = vmatpush1.msra.mxu0 0.0
    %5889 = vmatprep.subr.mxu0 0.0
    %5890 = vmatpush1.msra.mxu0 0.0
    %5891 = vmatprep.subr.mxu0 0.0
    %5892 = vmatpush1.msra.mxu0 0.0
    %5893 = vmatprep.subr.mxu0 0.0
    %5894 = vmatpush1.msra.mxu0 0.0
    %5895 = vmatprep.subr.mxu0 0.0
    %5896 = vmatpush1.msra.mxu0 0.0
    %5897 = vmatprep.subr.mxu0 0.0
    %5898 = vmatpush1.msra.mxu0 0.0
    %5899 = vmatprep.subr.mxu0 0.0
    %5900 = vmatpush1.msra.mxu0 0.0
    %5901 = vmatprep.subr.mxu0 0.0
    %5902 = vmatpush1.msra.mxu0 0.0
    %5903 = vmatprep.subr.mxu0 0.0
    %5904 = vmatpush1.msra.mxu0 0.0
    %5905 = vmatprep.subr.mxu0 0.0
    %5906 = vmatpush1.msra.mxu0 0.0
    %5907 = vmatprep.subr.mxu0 0.0
    %5908 = vmatpush1.msra.mxu0 0.0
    %5909 = vmatprep.subr.mxu0 0.0
    %5910 = vmatpush1.msra.mxu0 0.0
    %5911 = vmatprep.subr.mxu0 0.0
    %5912 = vmatpush1.msra.mxu0 0.0
    %5913 = vmatprep.subr.mxu0 0.0
    %5914 = vmatpush1.msra.mxu0 0.0
    %5915 = vmatprep.subr.mxu0 0.0
    %5916 = vmatpush1.msra.mxu0 0.0
    %5917 = vmatprep.subr.mxu0 0.0
    %5918 = vmatpush1.msra.mxu0 0.0
    %5919 = vmatprep.subr.mxu0 0.0
    %5920 = vmatpush1.msra.mxu0 0.0
    %5921 = vmatprep.subr.mxu0 0.0
    %5922 = vmatpush1.msra.mxu0 0.0
    %5923 = vmatprep.subr.mxu0 0.0
    %5924 = vmatpush1.msra.mxu0 0.0
    %5925 = vmatprep.subr.mxu0 0.0
    %5926 = vmatpush1.msra.mxu0 0.0
    %5927 = vmatprep.subr.mxu0 0.0
    %5928 = vmatpush1.msra.mxu0 0.0
    %5929 = vmatprep.subr.mxu0 0.0
    %5930 = vmatpush1.msra.mxu0 0.0
    %5931 = vmatprep.subr.mxu0 0.0
    %5932 = vmatpush1.msra.mxu0 0.0
    %5933 = vmatprep.subr.mxu0 0.0
    %5934 = vmatpush1.msra.mxu0 0.0
    %5935 = vmatprep.subr.mxu0 0.0
    %5936 = vmatpush1.msra.mxu0 0.0
    %5937 = vmatprep.subr.mxu0 0.0
    %5938 = vmatpush1.msra.mxu0 0.0
    %5939 = vmatprep.subr.mxu0 0.0
    %5940 = vmatpush1.msra.mxu0 0.0
    %5941 = vmatprep.mubr.f32.mxu0 0.0
    %5942 = vmatmul.mubr.f32.gmra.mrb[0].mxu0 %v5646
    %v5943 = vpop.f32.mrb[0].mxu0
    %v5944 = vadd.f32 0.0, %v5943
    %v5945 = vpop.f32.mrb[0].mxu0
    %5946 = vdwg.mxu0
    %v5947 = vadd.f32 %v5876, %v5944
    %v5948 = vxor.u32 %v5947, 2147483648
    %v5949 = vmul.f32 %v5948, 1.442695
    %v5950 = vpow.pop %v5949
    %v5951 = vadd.f32 %v5950, 1.0
    %v5952 = vrcp.pop %v5951
    %v5953 = vmul.f32 1.0, %v5952
    %v5954 = vmul.f32 %v5802, %v5641
    %v5955 = vmul.f32 %v5724, %v5875
    %v5956 = vadd.f32 %v5954, %v5955
    %v5957 = vtanh.pop %v5956
    %v5958 = vmul.f32 %v5953, %v5957
    %v5959 = vld [vmem:[%s2883] sm:$0xff]
    %v5961 = vsel %vm241, %v5958, 0
    %5963 = vmatprep.subr.mxu0 0.0
    %5964 = vmatpush1.msra.mxu0 %v3738
    %5965 = vmatprep.subr.mxu0 0.0
    %5966 = vmatpush1.msra.mxu0 %v3739
    %5967 = vmatprep.subr.mxu0 0.0
    %5968 = vmatpush1.msra.mxu0 %v3740
    %5969 = vmatprep.subr.mxu0 0.0
    %5970 = vmatpush1.msra.mxu0 %v3741
    %5971 = vmatprep.subr.mxu0 0.0
    %5972 = vmatpush1.msra.mxu0 0.0
    %5973 = vmatprep.subr.mxu0 0.0
    %5974 = vmatpush1.msra.mxu0 0.0
    %5975 = vmatprep.subr.mxu0 0.0
    %5976 = vmatpush1.msra.mxu0 0.0
    %5977 = vmatprep.subr.mxu0 0.0
    %5978 = vmatpush1.msra.mxu0 0.0
    %5979 = vmatprep.subr.mxu0 0.0
    %5980 = vmatpush1.msra.mxu0 0.0
    %5981 = vmatprep.subr.mxu0 0.0
    %5982 = vmatpush1.msra.mxu0 0.0
    %5983 = vmatprep.subr.mxu0 0.0
    %5984 = vmatpush1.msra.mxu0 0.0
    %5985 = vmatprep.subr.mxu0 0.0
    %5986 = vmatpush1.msra.mxu0 0.0
    %5987 = vmatprep.subr.mxu0 0.0
    %5988 = vmatpush1.msra.mxu0 0.0
    %5989 = vmatprep.subr.mxu0 0.0
    %5990 = vmatpush1.msra.mxu0 0.0
    %5991 = vmatprep.subr.mxu0 0.0
    %5992 = vmatpush1.msra.mxu0 0.0
    %5993 = vmatprep.subr.mxu0 0.0
    %5994 = vmatpush1.msra.mxu0 0.0
    %5995 = vmatprep.subr.mxu0 0.0
    %5996 = vmatpush1.msra.mxu0 0.0
    %5997 = vmatprep.subr.mxu0 0.0
    %5998 = vmatpush1.msra.mxu0 0.0
    %5999 = vmatprep.subr.mxu0 0.0
    %6000 = vmatpush1.msra.mxu0 0.0
    %6001 = vmatprep.subr.mxu0 0.0
    %6002 = vmatpush1.msra.mxu0 0.0
    %6003 = vmatprep.subr.mxu0 0.0
    %6004 = vmatpush1.msra.mxu0 0.0
    %6005 = vmatprep.subr.mxu0 0.0
    %6006 = vmatpush1.msra.mxu0 0.0
    %6007 = vmatprep.subr.mxu0 0.0
    %6008 = vmatpush1.msra.mxu0 0.0
    %6009 = vmatprep.subr.mxu0 0.0
    %6010 = vmatpush1.msra.mxu0 0.0
    %6011 = vmatprep.subr.mxu0 0.0
    %6012 = vmatpush1.msra.mxu0 0.0
    %6013 = vmatprep.subr.mxu0 0.0
    %6014 = vmatpush1.msra.mxu0 0.0
    %6015 = vmatprep.subr.mxu0 0.0
    %6016 = vmatpush1.msra.mxu0 0.0
    %6017 = vmatprep.subr.mxu0 0.0
    %6018 = vmatpush1.msra.mxu0 0.0
    %6019 = vmatprep.subr.mxu0 0.0
    %6020 = vmatpush1.msra.mxu0 0.0
    %6021 = vmatprep.subr.mxu0 0.0
    %6022 = vmatpush1.msra.mxu0 0.0
    %6023 = vmatprep.subr.mxu0 0.0
    %6024 = vmatpush1.msra.mxu0 0.0
    %6025 = vmatprep.subr.mxu0 0.0
    %6026 = vmatpush1.msra.mxu0 0.0
    %6027 = vmatprep.mubr.f32.mxu0 0.0
    %6028 = vmatmul.mubr.f32.gmra.mrb[0].mxu0 %v5961
    %v6029 = vpop.f32.mrb[0].mxu0
    %v6030 = vadd.f32 0.0, %v6029
    %v6031 = vpop.f32.mrb[0].mxu0
    %6032 = vdwg.mxu0
    %v6033 = vadd.f32 %v5959, %v6030
    %v6034 = vxor.u32 %v6033, 2147483648
    %v6035 = vmul.f32 %v6034, 1.442695
    %v6036 = vpow.pop %v6035
    %v6037 = vadd.f32 %v6036, 1.0
    %v6038 = vrcp.pop %v6037
    %v6039 = vmul.f32 1.0, %v6038
    %v6040 = vld [vmem:[%s2965] sm:$0xff]
    %6041 = vmatprep.subr.mxu0 0.0
    %6042 = vmatpush1.msra.mxu0 %v3743
    %6043 = vmatprep.subr.mxu0 0.0
    %6044 = vmatpush1.msra.mxu0 %v3744
    %6045 = vmatprep.subr.mxu0 0.0
    %6046 = vmatpush1.msra.mxu0 %v3745
    %6047 = vmatprep.subr.mxu0 0.0
    %6048 = vmatpush1.msra.mxu0 %v3746
    %6049 = vmatprep.subr.mxu0 0.0
    %6050 = vmatpush1.msra.mxu0 0.0
    %6051 = vmatprep.subr.mxu0 0.0
    %6052 = vmatpush1.msra.mxu0 0.0
    %6053 = vmatprep.subr.mxu0 0.0
    %6054 = vmatpush1.msra.mxu0 0.0
    %6055 = vmatprep.subr.mxu0 0.0
    %6056 = vmatpush1.msra.mxu0 0.0
    %6057 = vmatprep.subr.mxu0 0.0
    %6058 = vmatpush1.msra.mxu0 0.0
    %6059 = vmatprep.subr.mxu0 0.0
    %6060 = vmatpush1.msra.mxu0 0.0
    %6061 = vmatprep.subr.mxu0 0.0
    %6062 = vmatpush1.msra.mxu0 0.0
    %6063 = vmatprep.subr.mxu0 0.0
    %6064 = vmatpush1.msra.mxu0 0.0
    %6065 = vmatprep.subr.mxu0 0.0
    %6066 = vmatpush1.msra.mxu0 0.0
    %6067 = vmatprep.subr.mxu0 0.0
    %6068 = vmatpush1.msra.mxu0 0.0
    %6069 = vmatprep.subr.mxu0 0.0
    %6070 = vmatpush1.msra.mxu0 0.0
    %6071 = vmatprep.subr.mxu0 0.0
    %6072 = vmatpush1.msra.mxu0 0.0
    %6073 = vmatprep.subr.mxu0 0.0
    %6074 = vmatpush1.msra.mxu0 0.0
    %6075 = vmatprep.subr.mxu0 0.0
    %6076 = vmatpush1.msra.mxu0 0.0
    %6077 = vmatprep.subr.mxu0 0.0
    %6078 = vmatpush1.msra.mxu0 0.0
    %6079 = vmatprep.subr.mxu0 0.0
    %6080 = vmatpush1.msra.mxu0 0.0
    %6081 = vmatprep.subr.mxu0 0.0
    %6082 = vmatpush1.msra.mxu0 0.0
    %6083 = vmatprep.subr.mxu0 0.0
    %6084 = vmatpush1.msra.mxu0 0.0
    %6085 = vmatprep.subr.mxu0 0.0
    %6086 = vmatpush1.msra.mxu0 0.0
    %6087 = vmatprep.subr.mxu0 0.0
    %6088 = vmatpush1.msra.mxu0 0.0
    %6089 = vmatprep.subr.mxu0 0.0
    %6090 = vmatpush1.msra.mxu0 0.0
    %6091 = vmatprep.subr.mxu0 0.0
    %6092 = vmatpush1.msra.mxu0 0.0
    %6093 = vmatprep.subr.mxu0 0.0
    %6094 = vmatpush1.msra.mxu0 0.0
    %6095 = vmatprep.subr.mxu0 0.0
    %6096 = vmatpush1.msra.mxu0 0.0
    %6097 = vmatprep.subr.mxu0 0.0
    %6098 = vmatpush1.msra.mxu0 0.0
    %6099 = vmatprep.subr.mxu0 0.0
    %6100 = vmatpush1.msra.mxu0 0.0
    %6101 = vmatprep.subr.mxu0 0.0
    %6102 = vmatpush1.msra.mxu0 0.0
    %6103 = vmatprep.subr.mxu0 0.0
    %6104 = vmatpush1.msra.mxu0 0.0
    %6105 = vmatprep.mubr.f32.mxu0 0.0
    %6106 = vmatmul.mubr.f32.gmra.mrb[0].mxu0 %v5961
    %v6107 = vpop.f32.mrb[0].mxu0
    %v6108 = vadd.f32 0.0, %v6107
    %v6109 = vpop.f32.mrb[0].mxu0
    %6110 = vdwg.mxu0
    %v6111 = vadd.f32 %v6040, %v6108
    %v6112 = vxor.u32 %v6111, 2147483648
    %v6113 = vmul.f32 %v6112, 1.442695
    %v6114 = vpow.pop %v6113
    %v6115 = vadd.f32 %v6114, 1.0
    %v6116 = vrcp.pop %v6115
    %v6117 = vmul.f32 1.0, %v6116
    %v6118 = vld [vmem:[%s3044] sm:$0xff]
    %6119 = vmatprep.subr.mxu0 0.0
    %6120 = vmatpush1.msra.mxu0 %v3748
    %6121 = vmatprep.subr.mxu0 0.0
    %6122 = vmatpush1.msra.mxu0 %v3749
    %6123 = vmatprep.subr.mxu0 0.0
    %6124 = vmatpush1.msra.mxu0 %v3750
    %6125 = vmatprep.subr.mxu0 0.0
    %6126 = vmatpush1.msra.mxu0 %v3751
    %6127 = vmatprep.subr.mxu0 0.0
    %6128 = vmatpush1.msra.mxu0 0.0
    %6129 = vmatprep.subr.mxu0 0.0
    %6130 = vmatpush1.msra.mxu0 0.0
    %6131 = vmatprep.subr.mxu0 0.0
    %6132 = vmatpush1.msra.mxu0 0.0
    %6133 = vmatprep.subr.mxu0 0.0
    %6134 = vmatpush1.msra.mxu0 0.0
    %6135 = vmatprep.subr.mxu0 0.0
    %6136 = vmatpush1.msra.mxu0 0.0
    %6137 = vmatprep.subr.mxu0 0.0
    %6138 = vmatpush1.msra.mxu0 0.0
    %6139 = vmatprep.subr.mxu0 0.0
    %6140 = vmatpush1.msra.mxu0 0.0
    %6141 = vmatprep.subr.mxu0 0.0
    %6142 = vmatpush1.msra.mxu0 0.0
    %6143 = vmatprep.subr.mxu0 0.0
    %6144 = vmatpush1.msra.mxu0 0.0
    %6145 = vmatprep.subr.mxu0 0.0
    %6146 = vmatpush1.msra.mxu0 0.0
    %6147 = vmatprep.subr.mxu0 0.0
    %6148 = vmatpush1.msra.mxu0 0.0
    %6149 = vmatprep.subr.mxu0 0.0
    %6150 = vmatpush1.msra.mxu0 0.0
    %6151 = vmatprep.subr.mxu0 0.0
    %6152 = vmatpush1.msra.mxu0 0.0
    %6153 = vmatprep.subr.mxu0 0.0
    %6154 = vmatpush1.msra.mxu0 0.0
    %6155 = vmatprep.subr.mxu0 0.0
    %6156 = vmatpush1.msra.mxu0 0.0
    %6157 = vmatprep.subr.mxu0 0.0
    %6158 = vmatpush1.msra.mxu0 0.0
    %6159 = vmatprep.subr.mxu0 0.0
    %6160 = vmatpush1.msra.mxu0 0.0
    %6161 = vmatprep.subr.mxu0 0.0
    %6162 = vmatpush1.msra.mxu0 0.0
    %6163 = vmatprep.subr.mxu0 0.0
    %6164 = vmatpush1.msra.mxu0 0.0
    %6165 = vmatprep.subr.mxu0 0.0
    %6166 = vmatpush1.msra.mxu0 0.0
    %6167 = vmatprep.subr.mxu0 0.0
    %6168 = vmatpush1.msra.mxu0 0.0
    %6169 = vmatprep.subr.mxu0 0.0
    %6170 = vmatpush1.msra.mxu0 0.0
    %6171 = vmatprep.subr.mxu0 0.0
    %6172 = vmatpush1.msra.mxu0 0.0
    %6173 = vmatprep.subr.mxu0 0.0
    %6174 = vmatpush1.msra.mxu0 0.0
    %6175 = vmatprep.subr.mxu0 0.0
    %6176 = vmatpush1.msra.mxu0 0.0
    %6177 = vmatprep.subr.mxu0 0.0
    %6178 = vmatpush1.msra.mxu0 0.0
    %6179 = vmatprep.subr.mxu0 0.0
    %6180 = vmatpush1.msra.mxu0 0.0
    %6181 = vmatprep.subr.mxu0 0.0
    %6182 = vmatpush1.msra.mxu0 0.0
    %6183 = vmatprep.mubr.f32.mxu0 0.0
    %6184 = vmatmul.mubr.f32.gmra.mrb[0].mxu0 %v5961
    %v6185 = vpop.f32.mrb[0].mxu0
    %v6186 = vadd.f32 0.0, %v6185
    %v6187 = vpop.f32.mrb[0].mxu0
    %6188 = vdwg.mxu0
    %v6189 = vadd.f32 %v6118, %v6186
    %v6190 = vtanh.pop %v6189
    %v6191 = vld [vmem:[%s3118] sm:$0xff]
    %6192 = vmatprep.subr.mxu0 0.0
    %6193 = vmatpush1.msra.mxu0 %v3753
    %6194 = vmatprep.subr.mxu0 0.0
    %6195 = vmatpush1.msra.mxu0 %v3754
    %6196 = vmatprep.subr.mxu0 0.0
    %6197 = vmatpush1.msra.mxu0 %v3755
    %6198 = vmatprep.subr.mxu0 0.0
    %6199 = vmatpush1.msra.mxu0 %v3756
    %6200 = vmatprep.subr.mxu0 0.0
    %6201 = vmatpush1.msra.mxu0 0.0
    %6202 = vmatprep.subr.mxu0 0.0
    %6203 = vmatpush1.msra.mxu0 0.0
    %6204 = vmatprep.subr.mxu0 0.0
    %6205 = vmatpush1.msra.mxu0 0.0
    %6206 = vmatprep.subr.mxu0 0.0
    %6207 = vmatpush1.msra.mxu0 0.0
    %6208 = vmatprep.subr.mxu0 0.0
    %6209 = vmatpush1.msra.mxu0 0.0
    %6210 = vmatprep.subr.mxu0 0.0
    %6211 = vmatpush1.msra.mxu0 0.0
    %6212 = vmatprep.subr.mxu0 0.0
    %6213 = vmatpush1.msra.mxu0 0.0
    %6214 = vmatprep.subr.mxu0 0.0
    %6215 = vmatpush1.msra.mxu0 0.0
    %6216 = vmatprep.subr.mxu0 0.0
    %6217 = vmatpush1.msra.mxu0 0.0
    %6218 = vmatprep.subr.mxu0 0.0
    %6219 = vmatpush1.msra.mxu0 0.0
    %6220 = vmatprep.subr.mxu0 0.0
    %6221 = vmatpush1.msra.mxu0 0.0
    %6222 = vmatprep.subr.mxu0 0.0
    %6223 = vmatpush1.msra.mxu0 0.0
    %6224 = vmatprep.subr.mxu0 0.0
    %6225 = vmatpush1.msra.mxu0 0.0
    %6226 = vmatprep.subr.mxu0 0.0
    %6227 = vmatpush1.msra.mxu0 0.0
    %6228 = vmatprep.subr.mxu0 0.0
    %6229 = vmatpush1.msra.mxu0 0.0
    %6230 = vmatprep.subr.mxu0 0.0
    %6231 = vmatpush1.msra.mxu0 0.0
    %6232 = vmatprep.subr.mxu0 0.0
    %6233 = vmatpush1.msra.mxu0 0.0
    %6234 = vmatprep.subr.mxu0 0.0
    %6235 = vmatpush1.msra.mxu0 0.0
    %6236 = vmatprep.subr.mxu0 0.0
    %6237 = vmatpush1.msra.mxu0 0.0
    %6238 = vmatprep.subr.mxu0 0.0
    %6239 = vmatpush1.msra.mxu0 0.0
    %6240 = vmatprep.subr.mxu0 0.0
    %6241 = vmatpush1.msra.mxu0 0.0
    %6242 = vmatprep.subr.mxu0 0.0
    %6243 = vmatpush1.msra.mxu0 0.0
    %6244 = vmatprep.subr.mxu0 0.0
    %6245 = vmatpush1.msra.mxu0 0.0
    %6246 = vmatprep.subr.mxu0 0.0
    %6247 = vmatpush1.msra.mxu0 0.0
    %6248 = vmatprep.subr.mxu0 0.0
    %6249 = vmatpush1.msra.mxu0 0.0
    %6250 = vmatprep.subr.mxu0 0.0
    %6251 = vmatpush1.msra.mxu0 0.0
    %6252 = vmatprep.subr.mxu0 0.0
    %6253 = vmatpush1.msra.mxu0 0.0
    %6254 = vmatprep.subr.mxu0 0.0
    %6255 = vmatpush1.msra.mxu0 0.0
    %6256 = vmatprep.mubr.f32.mxu0 0.0
    %6257 = vmatmul.mubr.f32.gmra.mrb[0].mxu0 %v5961
    %v6258 = vpop.f32.mrb[0].mxu0
    %v6259 = vadd.f32 0.0, %v6258
    %v6260 = vpop.f32.mrb[0].mxu0
    %6261 = vdwg.mxu0
    %v6262 = vadd.f32 %v6191, %v6259
    %v6263 = vxor.u32 %v6262, 2147483648
    %v6264 = vmul.f32 %v6263, 1.442695
    %v6265 = vpow.pop %v6264
    %v6266 = vadd.f32 %v6265, 1.0
    %v6267 = vrcp.pop %v6266
    %v6268 = vmul.f32 1.0, %v6267
    %v6269 = vmul.f32 %v6117, %v5956
    %v6270 = vmul.f32 %v6039, %v6190
    %v6271 = vadd.f32 %v6269, %v6270
    %v6272 = vtanh.pop %v6271
    %v6273 = vmul.f32 %v6268, %v6272
    %v6274 = vld [vmem:[%s7] sm:$0xff]
    %v6275 = vld [vmem:[%s7 + $0x8] sm:$0xff]
    %v6276 = vld [vmem:[%s7 + $0x10] sm:$0xff]
    %v6277 = vld [vmem:[%s7 + $0x18] sm:$0xff]
    %v6278 = vld [vmem:[%s8] sm:$0x1]
    %v6280 = vlaneseq
    %v6281 = vshrl.u32 %v6280, 7
    %v6282 = vsub.s32 0, %v6281
    %v6283 = vrot.slane %v6278, %v6282
    %v6286 = vsel %vm241, %v6273, 0
    %6288 = vmatprep.subr.mxu0 0.0
    %6289 = vmatpush1.msra.mxu0 %v6274
    %6290 = vmatprep.subr.mxu0 0.0
    %6291 = vmatpush1.msra.mxu0 %v6275
    %6292 = vmatprep.subr.mxu0 0.0
    %6293 = vmatpush1.msra.mxu0 %v6276
    %6294 = vmatprep.subr.mxu0 0.0
    %6295 = vmatpush1.msra.mxu0 %v6277
    %6296 = vmatprep.subr.mxu0 0.0
    %6297 = vmatpush1.msra.mxu0 0.0
    %6298 = vmatprep.subr.mxu0 0.0
    %6299 = vmatpush1.msra.mxu0 0.0
    %6300 = vmatprep.subr.mxu0 0.0
    %6301 = vmatpush1.msra.mxu0 0.0
    %6302 = vmatprep.subr.mxu0 0.0
    %6303 = vmatpush1.msra.mxu0 0.0
    %6304 = vmatprep.subr.mxu0 0.0
    %6305 = vmatpush1.msra.mxu0 0.0
    %6306 = vmatprep.subr.mxu0 0.0
    %6307 = vmatpush1.msra.mxu0 0.0
    %6308 = vmatprep.subr.mxu0 0.0
    %6309 = vmatpush1.msra.mxu0 0.0
    %6310 = vmatprep.subr.mxu0 0.0
    %6311 = vmatpush1.msra.mxu0 0.0
    %6312 = vmatprep.subr.mxu0 0.0
    %6313 = vmatpush1.msra.mxu0 0.0
    %6314 = vmatprep.subr.mxu0 0.0
    %6315 = vmatpush1.msra.mxu0 0.0
    %6316 = vmatprep.subr.mxu0 0.0
    %6317 = vmatpush1.msra.mxu0 0.0
    %6318 = vmatprep.subr.mxu0 0.0
    %6319 = vmatpush1.msra.mxu0 0.0
    %6320 = vmatprep.subr.mxu0 0.0
    %6321 = vmatpush1.msra.mxu0 0.0
    %6322 = vmatprep.subr.mxu0 0.0
    %6323 = vmatpush1.msra.mxu0 0.0
    %6324 = vmatprep.subr.mxu0 0.0
    %6325 = vmatpush1.msra.mxu0 0.0
    %6326 = vmatprep.subr.mxu0 0.0
    %6327 = vmatpush1.msra.mxu0 0.0
    %6328 = vmatprep.subr.mxu0 0.0
    %6329 = vmatpush1.msra.mxu0 0.0
    %6330 = vmatprep.subr.mxu0 0.0
    %6331 = vmatpush1.msra.mxu0 0.0
    %6332 = vmatprep.subr.mxu0 0.0
    %6333 = vmatpush1.msra.mxu0 0.0
    %6334 = vmatprep.subr.mxu0 0.0
    %6335 = vmatpush1.msra.mxu0 0.0
    %6336 = vmatprep.subr.mxu0 0.0
    %6337 = vmatpush1.msra.mxu0 0.0
    %6338 = vmatprep.subr.mxu0 0.0
    %6339 = vmatpush1.msra.mxu0 0.0
    %6340 = vmatprep.subr.mxu0 0.0
    %6341 = vmatpush1.msra.mxu0 0.0
    %6342 = vmatprep.subr.mxu0 0.0
    %6343 = vmatpush1.msra.mxu0 0.0
    %6344 = vmatprep.subr.mxu0 0.0
    %6345 = vmatpush1.msra.mxu0 0.0
    %6346 = vmatprep.subr.mxu0 0.0
    %6347 = vmatpush1.msra.mxu0 0.0
    %6348 = vmatprep.subr.mxu0 0.0
    %6349 = vmatpush1.msra.mxu0 0.0
    %6350 = vmatprep.subr.mxu0 0.0
    %6351 = vmatpush1.msra.mxu0 0.0
    %6352 = vmatprep.mubr.f32.mxu0 0.0
    %6353 = vmatmul.mubr.f32.gmra.mrb[0].mxu0 %v6286
    %v6354 = vpop.f32.mrb[0].mxu0
    %v6355 = vadd.f32 %v6283, %v6354
    %v6356 = vpop.f32.mrb[0].mxu0
    %6357 = vdwg.mxu0
    %v6358 = vlaneseq
    %v6359 = vshrl.u32 %v6358, 7
    %vm6360 = vcmp.lt.s32.totalorder %v6359, 2
    %v6361 = vsel %vm6360, 1, 0
    %v6362 = vcvt.s32.f32 %v6361
    %v6363 = vmul.f32 %v6355, %v6362
    %vm6364 = vcmask 64512
    %v6365 = vsel %vm6364, %v6363, 0.0
    %v6366 = vrot.slane %v6365, 4
    %v6367 = vadd.f32 %v6365, %v6366
    %v6368 = vrot.slane %v6367, 2
    %v6369 = vadd.f32 %v6367, %v6368
    %v6370 = vrot.slane %v6369, 1
    %v6371 = vadd.f32 %v6369, %v6370
    %v6372 = vmul.f32 %v6371, 0.5
    %v6373 = vsub.f32 %v6355, %v6372
    %v6374 = vmul.f32 %v6373, %v6362
    %v6375 = vmul.f32 %v6374, %v6374
    %v6376 = vsel %vm6364, %v6375, 0.0
    %v6377 = vrot.slane %v6376, 4
    %v6378 = vadd.f32 %v6376, %v6377
    %v6379 = vrot.slane %v6378, 2
    %v6380 = vadd.f32 %v6378, %v6379
    %v6381 = vrot.slane %v6380, 1
    %v6382 = vadd.f32 %v6380, %v6381
    %v6383 = vmul.f32 %v6382, 0.5
    %v6384 = vld [vmem:[%s9] sm:$0x1]
    %v6386 = vlaneseq
    %v6387 = vshrl.u32 %v6386, 7
    %v6388 = vsub.s32 0, %v6387
    %v6389 = vrot.slane %v6384, %v6388
    %v6391 = vmul.f32 %v6389, %v6373
    %v6392 = vadd.f32 %v6383, 1e-05
    %v6393 = vrsqrt.pop %v6392
    %v6394 = vmul.f32 %v6391, %v6393
    %v6395 = vld [vmem:[%s10] sm:$0x1]
    %v6397 = vlaneseq
    %v6398 = vshrl.u32 %v6397, 7
    %v6399 = vsub.s32 0, %v6398
    %v6400 = vrot.slane %v6395, %v6399
    %v6402 = vadd.f32 %v6394, %v6400
    %6403 = vst.msk [vmem:[#allocation15] sm:$0xff] %vm6364, %v6402
    // Predicated region
    $region62: #{tpu_custom_call.1} parent=1 // pred_check
      _
    $region63: #{tpu_custom_call.1} parent=1 // pred_check_branch
      %6405 = sbr.rel (0) target = $region65
    $region64: #{tpu_custom_call.1} parent=1 // pred_region
      %s6407 = ssub.s32 128, 128
      %6408 = vsyncadd [#allocation9], %s6407
      %s6410 = sshll.u32 [#allocation15], 4
      %s6411 = int_to_ptr.vmem [resolvable:$true] %s6410
      %6413 = dma.vmem_to_hbm [thread:$0]  %s6411, 128, %s11, [#allocation9]
    $region65: #{tpu_custom_call.1} parent=1 // pred_fallthru
      _
    // Predicated region
    $region66: #{tpu_custom_call.1} parent=1 // pred_check
      _
    $region67: #{tpu_custom_call.1} parent=1 // pred_check_branch
      %6415 = sbr.rel (0) target = $region69
    $region68: #{tpu_custom_call.1} parent=1 // pred_region
      %6416 = dma.done [#allocation9], 128
    $region69: #{tpu_custom_call.1} parent=1 // pred_fallthru
      _
    %6417 = vsyncpa [#allocation8], 1
    %6418 = vsyncpa [#allocation11], 1
    %6419 = vsyncpa [#allocation14], 1
    %6420 = vsyncpa [#allocation9], 1

</llo_original>
